<compile_context>
chip_gen: v7x
topology: tpu7x:2x2x1
jax: 0.10.0
libtpu: 0.0.40
codegen_flags: <defaults>
</compile_context>

<pallas_src>
import functools
import math

import jax
import jax.numpy as jnp
from jax.experimental import pallas as pl
from jax.experimental.pallas import tpu as pltpu

_VMEM_LIMIT = 32 * 1024 * 1024


# ---------- Kernel A: AFA (pool+MLP+apply) + FTB conv1 + FTB conv2 + stats ---

def _afa_ftb_front_kernel(lat_ref, top_ref, w1_ref, w2_ref, c1_ref, c2_ref,
                          b2_ref, y1_ref, z_ref, s_ref, q_ref, slab_ref,
                          *, H, W, d, inv_hw):
    C = lat_ref.shape[-1]
    Cout = c1_ref.shape[-1]
    HW = H * W

    lat = lat_ref[0].reshape(HW, C).astype(jnp.float32)          # (HW, C)
    top = top_ref[0].reshape(HW, C).astype(jnp.float32)

    # --- AFA attention: global-avg-pool(cat) -> 1x1 -> ReLU -> 1x1 -> sigmoid
    m_lat = jnp.sum(lat, axis=0, keepdims=True) * inv_hw         # (1, C)
    m_top = jnp.sum(top, axis=0, keepdims=True) * inv_hw
    h = jnp.dot(m_lat, w1_ref[0], preferred_element_type=jnp.float32)
    h = h + jnp.dot(m_top, w1_ref[1], preferred_element_type=jnp.float32)
    h = jnp.maximum(h, 0.0)                                      # ReLU
    logits = jnp.dot(h, w2_ref[...], preferred_element_type=jnp.float32)
    att = 1.0 / (1.0 + jnp.exp(-logits))                         # sigmoid (1, C)

    # --- AFA apply + FTB conv1 (1x1, no bias)
    x = lat * att + top                                          # (HW, C) f32
    y1 = jnp.dot(x.astype(jnp.bfloat16), c1_ref[...],
                 preferred_element_type=jnp.float32)             # (HW, Cout) f32
    y1_ref[0] = y1.reshape(H, W, Cout).astype(y1_ref.dtype)      # residual out

    # --- zero-halo slab for the dilated conv, built entirely in VMEM
    slab_ref[...] = jnp.zeros_like(slab_ref)
    slab_ref[d:d + H, d:d + W, :] = y1.reshape(H, W, Cout)

    # --- FTB conv2: 3x3, dilation=d, + bias, as a 9-tap matmul reduction
    acc = jnp.zeros((HW, Cout), jnp.float32)
    for t in range(9):
        ky, kx = divmod(t, 3)
        xs = slab_ref[ky * d:ky * d + H, kx * d:kx * d + W, :]   # (H, W, Cout)
        acc = acc + jnp.dot(xs.reshape(HW, Cout).astype(jnp.bfloat16),
                            c2_ref[t], preferred_element_type=jnp.float32)
    z = acc + b2_ref[...]                                        # conv bias

    # --- per-sample BatchNorm statistics
    s_ref[0] = jnp.sum(z, axis=0, keepdims=True)
    q_ref[0] = jnp.sum(z * z, axis=0, keepdims=True)
    z_ref[0] = z.reshape(H, W, Cout).astype(z_ref.dtype)


def afa_ftb_front(lat, top, afa_w1, afa_w2, conv1_w, conv2_w, conv2_b,
                  *, dilation):
    """lat/top: (N, H, W, C) bf16.  Returns (y1, z, ch_sum, ch_sq)."""
    N, H, W, C = lat.shape
    Cout = conv1_w.shape[-1]
    d = dilation
    kern = functools.partial(_afa_ftb_front_kernel, H=H, W=W, d=d,
                             inv_hw=1.0 / (H * W))
    return pl.pallas_call(
        kern,
        out_shape=(jax.ShapeDtypeStruct((N, H, W, Cout), jnp.bfloat16),
                   jax.ShapeDtypeStruct((N, H, W, Cout), jnp.bfloat16),
                   jax.ShapeDtypeStruct((N, 1, Cout), jnp.float32),
                   jax.ShapeDtypeStruct((N, 1, Cout), jnp.float32)),
        grid_spec=pltpu.PrefetchScalarGridSpec(
            num_scalar_prefetch=0,
            grid=(N,),
            in_specs=[
                pl.BlockSpec((1, H, W, C), lambda n: (n, 0, 0, 0)),
                pl.BlockSpec((1, H, W, C), lambda n: (n, 0, 0, 0)),
                pl.BlockSpec(afa_w1.shape, lambda n: (0, 0, 0)),
                pl.BlockSpec(afa_w2.shape, lambda n: (0, 0)),
                pl.BlockSpec(conv1_w.shape, lambda n: (0, 0)),
                pl.BlockSpec(conv2_w.shape, lambda n: (0, 0, 0)),
                pl.BlockSpec(conv2_b.shape, lambda n: (0, 0)),
            ],
            out_specs=(
                pl.BlockSpec((1, H, W, Cout), lambda n: (n, 0, 0, 0)),
                pl.BlockSpec((1, H, W, Cout), lambda n: (n, 0, 0, 0)),
                pl.BlockSpec((1, 1, Cout), lambda n: (n, 0, 0)),
                pl.BlockSpec((1, 1, Cout), lambda n: (n, 0, 0)),
            ),
            scratch_shapes=[pltpu.VMEM((H + 2 * d, W + 2 * d, Cout),
                                       jnp.float32)],
        ),
        compiler_params=pltpu.CompilerParams(
            dimension_semantics=("parallel",),
            vmem_limit_bytes=_VMEM_LIMIT),
    )(lat, top, afa_w1, afa_w2, conv1_w, conv2_w, conv2_b)


# ---------------- tiny BN finalize (per-channel scale / shift) --------------

def _bn_finalize_kernel(s_ref, q_ref, g_ref, b_ref, scale_ref, shift_ref,
                        *, inv_count, eps):
    mean = jnp.sum(s_ref[...], axis=0, keepdims=True) * inv_count      # (1, C)
    ex2 = jnp.sum(q_ref[...], axis=0, keepdims=True) * inv_count
    var = jnp.maximum(ex2 - mean * mean, 0.0)            # biased (train mode)
    inv = jax.lax.rsqrt(var + eps)
    scale = g_ref[...] * inv
    scale_ref[...] = scale
    shift_ref[...] = b_ref[...] - mean * scale


def bn_scale_shift(ch_sums, ch_sqs, gamma, beta, *, count, eps=1e-5):
    _, C = ch_sums.shape
    kern = functools.partial(_bn_finalize_kernel, inv_count=1.0 / count, eps=eps)
    return pl.pallas_call(
        kern,
        out_shape=(jax.ShapeDtypeStruct((1, C), jnp.float32),
                   jax.ShapeDtypeStruct((1, C), jnp.float32)),
    )(ch_sums, ch_sqs, gamma, beta)


# ---- Kernel B: BN affine + ReLU + FTB conv3 + residual add + ReLU ----------

def _bn_relu_conv3_res_kernel(z_ref, y1_ref, scale_ref, shift_ref, w_ref,
                              o_ref, slab_ref, *, H, W, d):
    Cout = w_ref.shape[-1]
    HW = H * W

    # BN affine + ReLU applied once to the whole activation (not per tap).
    zf = z_ref[0].reshape(HW, Cout).astype(jnp.float32)
    a = jnp.maximum(zf * scale_ref[...] + shift_ref[...], 0.0)

    # zero-halo slab of the *normalized* activation (padding of relu(bn(z))).
    slab_ref[...] = jnp.zeros_like(slab_ref)
    slab_ref[d:d + H, d:d + W, :] = a.reshape(H, W, Cout)

    acc = jnp.zeros((HW, Cout), jnp.float32)
    for t in range(9):
        ky, kx = divmod(t, 3)
        xs = slab_ref[ky * d:ky * d + H, kx * d:kx * d + W, :]
        acc = acc + jnp.dot(xs.reshape(HW, Cout).astype(jnp.bfloat16),
                            w_ref[t], preferred_element_type=jnp.float32)

    res = y1_ref[0].reshape(HW, Cout).astype(jnp.float32)
    out = jnp.maximum(acc + res, 0.0)                    # residual add + ReLU
    o_ref[0] = out.reshape(H, W, Cout).astype(o_ref.dtype)


def bn_relu_conv3_residual(z, y1, scale, shift, conv3_w, *, dilation):
    N, H, W, Cout = z.shape
    d = dilation
    kern = functools.partial(_bn_relu_conv3_res_kernel, H=H, W=W, d=d)
    return pl.pallas_call(
        kern,
        out_shape=jax.ShapeDtypeStruct((N, H, W, Cout), jnp.float32),
        grid_spec=pltpu.PrefetchScalarGridSpec(
            num_scalar_prefetch=0,
            grid=(N,),
            in_specs=[
                pl.BlockSpec((1, H, W, Cout), lambda n: (n, 0, 0, 0)),
                pl.BlockSpec((1, H, W, Cout), lambda n: (n, 0, 0, 0)),
                pl.BlockSpec(scale.shape, lambda n: (0, 0)),
                pl.BlockSpec(shift.shape, lambda n: (0, 0)),
                pl.BlockSpec(conv3_w.shape, lambda n: (0, 0, 0)),
            ],
            out_specs=pl.BlockSpec((1, H, W, Cout), lambda n: (n, 0, 0, 0)),
            scratch_shapes=[pltpu.VMEM((H + 2 * d, W + 2 * d, Cout),
                                       jnp.float32)],
        ),
        compiler_params=pltpu.CompilerParams(
            dimension_semantics=("parallel",),
            vmem_limit_bytes=_VMEM_LIMIT),
    )(z, y1, scale, shift, conv3_w)


# ------------------- bilinear align_corners=True (XLA glue) -----------------

def _interp_matrix(dst, src):
    if src == 1:
        return jnp.ones((dst, 1), jnp.float32)
    pos = jnp.arange(dst, dtype=jnp.float32) * (src - 1) / max(dst - 1, 1)
    lo = jnp.clip(jnp.floor(pos).astype(jnp.int32), 0, src - 2)
    frac = pos - lo.astype(jnp.float32)
    m = jnp.zeros((dst, src), jnp.float32)
    m = m.at[jnp.arange(dst), lo].add(1.0 - frac)
    m = m.at[jnp.arange(dst), lo + 1].add(frac)
    return m


# ------------------------------- the module ---------------------------------

class FcnTopdownBlockPallas:
    """Forward of fcn_topdown_block = AFA_block(dim_in) + FTB_block(dim_in, dim_out)."""

    def __init__(self, key, dim_in, dim_out):
        self.dim_in = dim_in
        self.dim_out = dim_out
        self.dim_mid = max(dim_in // 8, 1)
        ks = jax.random.split(key, 6)

        def xavier(k, shape, fan_in, fan_out):
            std = math.sqrt(2.0 / (fan_in + fan_out))
            return jax.random.normal(k, shape, jnp.float32) * std

        # AFA: conv1 (2*dim_in -> dim_mid, 1x1) stored as (2, dim_in, dim_mid);
        # slot 0 multiplies the lateral half of the concat, slot 1 the top half.
        self.afa_w1 = xavier(ks[0], (2, dim_in, self.dim_mid),
                             2 * dim_in, self.dim_mid)
        self.afa_w2 = xavier(ks[1], (self.dim_mid, dim_in), self.dim_mid, dim_in)
        # FTB: 1x1 conv + two 3x3 dilated convs, tap-major (ky*3+kx, Cin, Cout).
        self.ftb_conv1 = xavier(ks[2], (dim_in, dim_out),
                                dim_in, dim_out).astype(jnp.bfloat16)
        self.ftb_conv2 = xavier(ks[3], (9, dim_out, dim_out),
                                9 * dim_out, 9 * dim_out).astype(jnp.bfloat16)
        self.ftb_conv2_b = 0.01 * jax.random.normal(ks[4], (1, dim_out), jnp.float32)
        self.ftb_conv3 = xavier(ks[5], (9, dim_out, dim_out),
                                9 * dim_out, 9 * dim_out).astype(jnp.bfloat16)
        self.bn1_gamma = jnp.ones((1, dim_out), jnp.float32)
        self.bn1_beta = jnp.zeros((1, dim_out), jnp.float32)

    def __call__(self, lateral_nchw, top_nchw):
        lat = jnp.transpose(lateral_nchw.astype(jnp.float32), (0, 2, 3, 1))  # NHWC
        top = jnp.transpose(top_nchw.astype(jnp.float32), (0, 2, 3, 1))
        N, H, W, C = lat.shape

        if top.shape != lat.shape:
            # F.interpolate(..., mode='bilinear', align_corners=True)
            # TODO(synk): resize stays in XLA (separable interp matrices).
            ry = _interp_matrix(H, top.shape[1])
            rx = _interp_matrix(W, top.shape[2])
            top = jnp.einsum('hy,wx,nyxc->nhwc', ry, rx, top)

        lat_b = lat.astype(jnp.bfloat16)
        top_b = top.astype(jnp.bfloat16)
        Cout = self.dim_out
        d = 2                                        # dilation == padding == 2

        # ---- Kernel A: AFA + FTB conv1 + FTB conv2 (+ per-sample BN stats) ----
        y1, z, ch_sum, ch_sq = afa_ftb_front(
            lat_b, top_b, self.afa_w1, self.afa_w2,
            self.ftb_conv1, self.ftb_conv2, self.ftb_conv2_b, dilation=d)

        # ---- BN finalize (training-mode batch statistics) ----
        scale, shift = bn_scale_shift(ch_sum.reshape(N, Cout),
                                      ch_sq.reshape(N, Cout),
                                      self.bn1_gamma, self.bn1_beta,
                                      count=N * H * W)

        # ---- Kernel B: BN affine + ReLU + FTB conv3 + residual + ReLU ----
        out = bn_relu_conv3_residual(z, y1, scale, shift, self.ftb_conv3,
                                     dilation=d)
        return jnp.transpose(out, (0, 3, 1, 2))      # back to NCHW, f32


# ----------------------------------- main ------------------------------------

if __name__ == "__main__":
    key = jax.random.PRNGKey(0)
    k_model, k_lat, k_top = jax.random.split(key, 3)

    dim_in, dim_out = 16, 8
    N, H, W = 2, 16, 16

    model = FcnTopdownBlockPallas(k_model, dim_in, dim_out)

    lateral = jax.random.normal(k_lat, (N, dim_in, H, W), jnp.float32)
    # `top` comes from the coarser stage -> half resolution, exercising the
    # align_corners=True bilinear resize branch of fcn_topdown_block.forward.
    top = jax.random.normal(k_top, (N, dim_in, H // 2, W // 2), jnp.float32)

    fwd = jax.jit(model.__call__)
    out = jax.block_until_ready(fwd(lateral, top))

    assert out.shape == (N, dim_out, H, W), out.shape
    assert bool(jnp.all(jnp.isfinite(out))), "non-finite output"
    print("KERNEL_OK")
</pallas_src>

<mosaic_0001>
module attributes {stable_mosaic.version = 11 : i64} {
  func.func private @main(%arg0: i32) attributes {dimension_semantics = [#tpu.dimension_semantics<core_parallel>], iteration_bounds = array<i64: 2>, tpu.core_type = #tpu.core_type<sc_scalar_subcore>, window_params = []} {
    return
  }
}

module attributes {stable_mosaic.version = 11 : i64} {
  func.func private @main(%arg0: i32) attributes {dimension_semantics = [#tpu.dimension_semantics<core_parallel>], iteration_bounds = array<i64: 2>, tpu.core_type = #tpu.core_type<sc_scalar_subcore>, window_params = []} {
    return
  }
}

module attributes {stable_mosaic.version = 11 : i64} {
  func.func @_afa_ftb_front_kernel(%arg0: i32, %arg1: memref<1x16x16x16xbf16, #tpu.memory_space<vmem>>, %arg2: memref<1x16x16x16xbf16, #tpu.memory_space<vmem>>, %arg3: memref<2x16x2xf32, #tpu.memory_space<vmem>>, %arg4: memref<2x16xf32, #tpu.memory_space<vmem>>, %arg5: memref<16x8xbf16, #tpu.memory_space<vmem>>, %arg6: memref<9x8x8xbf16, #tpu.memory_space<vmem>>, %arg7: memref<1x8xf32, #tpu.memory_space<vmem>>, %arg8: memref<1x16x16x8xbf16, #tpu.memory_space<vmem>>, %arg9: memref<1x16x16x8xbf16, #tpu.memory_space<vmem>>, %arg10: memref<1x1x8xf32, #tpu.memory_space<vmem>>, %arg11: memref<1x1x8xf32, #tpu.memory_space<vmem>>, %arg12: memref<20x20x8xf32, #tpu.memory_space<vmem>>) attributes {dimension_semantics = [#tpu.dimension_semantics<parallel>], iteration_bounds = array<i64: 2>, scalar_prefetch = 0 : i64, scratch_operands = 1 : i64, tpu.core_type = #tpu.core_type<tc>, window_params = [{transform_indices = @transform_0, window_bounds = array<i64: 1, 16, 16, 16>}, {transform_indices = @transform_1, window_bounds = array<i64: 1, 16, 16, 16>}, {pipeline_mode = #tpu.pipeline_mode<synchronous>, transform_indices = @transform_2, window_bounds = array<i64: 2, 16, 2>}, {pipeline_mode = #tpu.pipeline_mode<synchronous>, transform_indices = @transform_3, window_bounds = array<i64: 2, 16>}, {pipeline_mode = #tpu.pipeline_mode<synchronous>, transform_indices = @transform_4, window_bounds = array<i64: 16, 8>}, {pipeline_mode = #tpu.pipeline_mode<synchronous>, transform_indices = @transform_5, window_bounds = array<i64: 9, 8, 8>}, {pipeline_mode = #tpu.pipeline_mode<synchronous>, transform_indices = @transform_6, window_bounds = array<i64: 1, 8>}, {transform_indices = @transform_7, window_bounds = array<i64: 1, 16, 16, 8>}, {transform_indices = @transform_8, window_bounds = array<i64: 1, 16, 16, 8>}, {transform_indices = @transform_9, window_bounds = array<i64: 1, 1, 8>}, {transform_indices = @transform_10, window_bounds = array<i64: 1, 1, 8>}]} {
    %c0 = arith.constant 0 : index
    %c0_0 = arith.constant 0 : index
    %c0_1 = arith.constant 0 : index
    %c0_2 = arith.constant 0 : index
    %0 = vector.load %arg1[%c0, %c0_0, %c0_1, %c0_2] : memref<1x16x16x16xbf16, #tpu.memory_space<vmem>>, vector<1x16x16x16xbf16>
    %1 = vector.shape_cast %0 : vector<1x16x16x16xbf16> to vector<16x16x16xbf16>
    %2 = vector.shape_cast %1 : vector<16x16x16xbf16> to vector<256x16xbf16>
    %3 = arith.extf %2 : vector<256x16xbf16> to vector<256x16xf32>
    %c0_3 = arith.constant 0 : index
    %c0_4 = arith.constant 0 : index
    %c0_5 = arith.constant 0 : index
    %c0_6 = arith.constant 0 : index
    %4 = vector.load %arg2[%c0_3, %c0_4, %c0_5, %c0_6] : memref<1x16x16x16xbf16, #tpu.memory_space<vmem>>, vector<1x16x16x16xbf16>
    %5 = vector.shape_cast %4 : vector<1x16x16x16xbf16> to vector<16x16x16xbf16>
    %6 = vector.shape_cast %5 : vector<16x16x16xbf16> to vector<256x16xbf16>
    %7 = arith.extf %6 : vector<256x16xbf16> to vector<256x16xf32>
    %cst = arith.constant dense<0.000000e+00> : vector<16xf32>
    %8 = vector.multi_reduction <add>, %3, %cst [0] : vector<256x16xf32> to vector<16xf32>
    %9 = vector.shape_cast %8 : vector<16xf32> to vector<1x16xf32>
    %cst_7 = arith.constant 3.906250e-03 : f32
    %10 = vector.broadcast %cst_7 : f32 to vector<1x16xf32>
    %11 = arith.mulf %9, %10 : vector<1x16xf32>
    %cst_8 = arith.constant dense<0.000000e+00> : vector<16xf32>
    %12 = vector.multi_reduction <add>, %7, %cst_8 [0] : vector<256x16xf32> to vector<16xf32>
    %13 = vector.shape_cast %12 : vector<16xf32> to vector<1x16xf32>
    %cst_9 = arith.constant 3.906250e-03 : f32
    %14 = vector.broadcast %cst_9 : f32 to vector<1x16xf32>
    %15 = arith.mulf %13, %14 : vector<1x16xf32>
    %c0_10 = arith.constant 0 : index
    %c0_11 = arith.constant 0 : index
    %c0_12 = arith.constant 0 : index
    %16 = vector.load %arg3[%c0_10, %c0_11, %c0_12] : memref<2x16x2xf32, #tpu.memory_space<vmem>>, vector<1x16x2xf32>
    %17 = vector.shape_cast %16 : vector<1x16x2xf32> to vector<16x2xf32>
    %cst_13 = arith.constant dense<0.000000e+00> : vector<1x2xf32>
    %18 = tpu.matmul %11, %17, %cst_13 {dimension_numbers = #tpu.dot_dimension_numbers<[1], [0], [0], [1], [0, 0, 1, 1], [], []>} : vector<1x16xf32>, vector<16x2xf32>, vector<1x2xf32> -> vector<1x2xf32>
    %c1 = arith.constant 1 : index
    %c0_14 = arith.constant 0 : index
    %c0_15 = arith.constant 0 : index
    %19 = vector.load %arg3[%c1, %c0_14, %c0_15] : memref<2x16x2xf32, #tpu.memory_space<vmem>>, vector<1x16x2xf32>
    %20 = vector.shape_cast %19 : vector<1x16x2xf32> to vector<16x2xf32>
    %cst_16 = arith.constant dense<0.000000e+00> : vector<1x2xf32>
    %21 = tpu.matmul %15, %20, %cst_16 {dimension_numbers = #tpu.dot_dimension_numbers<[1], [0], [0], [1], [0, 0, 1, 1], [], []>} : vector<1x16xf32>, vector<16x2xf32>, vector<1x2xf32> -> vector<1x2xf32>
    %22 = arith.addf %18, %21 : vector<1x2xf32>
    %cst_17 = arith.constant 0.000000e+00 : f32
    %23 = vector.broadcast %cst_17 : f32 to vector<1x2xf32>
    %24 = arith.maximumf %22, %23 : vector<1x2xf32>
    %c0_18 = arith.constant 0 : index
    %c0_19 = arith.constant 0 : index
    %25 = vector.load %arg4[%c0_18, %c0_19] : memref<2x16xf32, #tpu.memory_space<vmem>>, vector<2x16xf32>
    %cst_20 = arith.constant dense<0.000000e+00> : vector<1x16xf32>
    %26 = tpu.matmul %24, %25, %cst_20 {dimension_numbers = #tpu.dot_dimension_numbers<[1], [0], [0], [1], [0, 0, 1, 1], [], []>} : vector<1x2xf32>, vector<2x16xf32>, vector<1x16xf32> -> vector<1x16xf32>
    %cst_21 = arith.constant 0.000000e+00 : f32
    %27 = vector.broadcast %cst_21 : f32 to vector<1x16xf32>
    %28 = arith.subf %27, %26 : vector<1x16xf32>
    %29 = math.exp %28 : vector<1x16xf32>
    %cst_22 = arith.constant 1.000000e+00 : f32
    %30 = vector.broadcast %cst_22 : f32 to vector<1x16xf32>
    %31 = arith.addf %30, %29 : vector<1x16xf32>
    %cst_23 = arith.constant 1.000000e+00 : f32
    %32 = vector.broadcast %cst_23 : f32 to vector<1x16xf32>
    %33 = arith.divf %32, %31 : vector<1x16xf32>
    %34 = vector.broadcast %33 : vector<1x16xf32> to vector<256x16xf32>
    %35 = arith.mulf %3, %34 : vector<256x16xf32>
    %36 = arith.addf %35, %7 : vector<256x16xf32>
    %37 = arith.truncf %36 : vector<256x16xf32> to vector<256x16xbf16>
    %c0_24 = arith.constant 0 : index
    %c0_25 = arith.constant 0 : index
    %38 = vector.load %arg5[%c0_24, %c0_25] : memref<16x8xbf16, #tpu.memory_space<vmem>>, vector<16x8xbf16>
    %cst_26 = arith.constant dense<0.000000e+00> : vector<256x8xf32>
    %39 = tpu.matmul %37, %38, %cst_26 {dimension_numbers = #tpu.dot_dimension_numbers<[1], [0], [0], [1], [0, 0, 1, 1], [], []>} : vector<256x16xbf16>, vector<16x8xbf16>, vector<256x8xf32> -> vector<256x8xf32>
    %40 = vector.shape_cast %39 : vector<256x8xf32> to vector<16x16x8xf32>
    %41 = arith.truncf %40 : vector<16x16x8xf32> to vector<16x16x8xbf16>
    %c0_27 = arith.constant 0 : index
    %c0_28 = arith.constant 0 : index
    %c0_29 = arith.constant 0 : index
    %c0_30 = arith.constant 0 : index
    %42 = vector.load %arg8[%c0_27, %c0_28, %c0_29, %c0_30] : memref<1x16x16x8xbf16, #tpu.memory_space<vmem>>, vector<1x16x16x8xbf16>
    %43 = vector.shape_cast %42 : vector<1x16x16x8xbf16> to vector<16x16x8xbf16>
    %44 = vector.shape_cast %41 : vector<16x16x8xbf16> to vector<1x16x16x8xbf16>
    tpu.vector_store %arg8[%c0_27, %c0_28, %c0_29, %c0_30], %44 {strides = array<i32>} : memref<1x16x16x8xbf16, #tpu.memory_space<vmem>>, vector<1x16x16x8xbf16>,
    %cst_31 = arith.constant 0.000000e+00 : f32
    %45 = vector.broadcast %cst_31 : f32 to vector<20x20x8xf32>
    %c0_32 = arith.constant 0 : index
    %c0_33 = arith.constant 0 : index
    %c0_34 = arith.constant 0 : index
    %46 = vector.load %arg12[%c0_32, %c0_33, %c0_34] : memref<20x20x8xf32, #tpu.memory_space<vmem>>, vector<20x20x8xf32>
    tpu.vector_store %arg12[%c0_32, %c0_33, %c0_34], %45 {strides = array<i32>} : memref<20x20x8xf32, #tpu.memory_space<vmem>>, vector<20x20x8xf32>,
    %47 = vector.shape_cast %39 : vector<256x8xf32> to vector<16x16x8xf32>
    %c2 = arith.constant 2 : index
    %c2_35 = arith.constant 2 : index
    %c0_36 = arith.constant 0 : index
    %48 = vector.load %arg12[%c2, %c2_35, %c0_36] : memref<20x20x8xf32, #tpu.memory_space<vmem>>, vector<16x16x8xf32>
    tpu.vector_store %arg12[%c2, %c2_35, %c0_36], %47 {strides = array<i32>} : memref<20x20x8xf32, #tpu.memory_space<vmem>>, vector<16x16x8xf32>,
    %cst_37 = arith.constant 0.000000e+00 : f32
    %49 = vector.broadcast %cst_37 : f32 to vector<256x8xf32>
    %c0_38 = arith.constant 0 : index
    %c0_39 = arith.constant 0 : index
    %c0_40 = arith.constant 0 : index
    %50 = vector.load %arg12[%c0_38, %c0_39, %c0_40] : memref<20x20x8xf32, #tpu.memory_space<vmem>>, vector<16x16x8xf32>
    %51 = vector.shape_cast %50 : vector<16x16x8xf32> to vector<256x8xf32>
    %52 = arith.truncf %51 : vector<256x8xf32> to vector<256x8xbf16>
    %c0_41 = arith.constant 0 : index
    %c0_42 = arith.constant 0 : index
    %c0_43 = arith.constant 0 : index
    %53 = vector.load %arg6[%c0_41, %c0_42, %c0_43] : memref<9x8x8xbf16, #tpu.memory_space<vmem>>, vector<1x8x8xbf16>
    %54 = vector.shape_cast %53 : vector<1x8x8xbf16> to vector<8x8xbf16>
    %cst_44 = arith.constant dense<0.000000e+00> : vector<256x8xf32>
    %55 = tpu.matmul %52, %54, %cst_44 {dimension_numbers = #tpu.dot_dimension_numbers<[1], [0], [0], [1], [0, 0, 1, 1], [], []>} : vector<256x8xbf16>, vector<8x8xbf16>, vector<256x8xf32> -> vector<256x8xf32>
    %56 = arith.addf %49, %55 : vector<256x8xf32>
    %c0_45 = arith.constant 0 : index
    %c2_46 = arith.constant 2 : index
    %c0_47 = arith.constant 0 : index
    %57 = vector.load %arg12[%c0_45, %c2_46, %c0_47] : memref<20x20x8xf32, #tpu.memory_space<vmem>>, vector<16x16x8xf32>
    %58 = vector.shape_cast %57 : vector<16x16x8xf32> to vector<256x8xf32>
    %59 = arith.truncf %58 : vector<256x8xf32> to vector<256x8xbf16>
    %c1_48 = arith.constant 1 : index
    %c0_49 = arith.constant 0 : index
    %c0_50 = arith.constant 0 : index
    %60 = vector.load %arg6[%c1_48, %c0_49, %c0_50] : memref<9x8x8xbf16, #tpu.memory_space<vmem>>, vector<1x8x8xbf16>
    %61 = vector.shape_cast %60 : vector<1x8x8xbf16> to vector<8x8xbf16>
    %cst_51 = arith.constant dense<0.000000e+00> : vector<256x8xf32>
    %62 = tpu.matmul %59, %61, %cst_51 {dimension_numbers = #tpu.dot_dimension_numbers<[1], [0], [0], [1], [0, 0, 1, 1], [], []>} : vector<256x8xbf16>, vector<8x8xbf16>, vector<256x8xf32> -> vector<256x8xf32>
    %63 = arith.addf %56, %62 : vector<256x8xf32>
    %c0_52 = arith.constant 0 : index
    %c4 = arith.constant 4 : index
    %c0_53 = arith.constant 0 : index
    %64 = vector.load %arg12[%c0_52, %c4, %c0_53] : memref<20x20x8xf32, #tpu.memory_space<vmem>>, vector<16x16x8xf32>
    %65 = vector.shape_cast %64 : vector<16x16x8xf32> to vector<256x8xf32>
    %66 = arith.truncf %65 : vector<256x8xf32> to vector<256x8xbf16>
    %c2_54 = arith.constant 2 : index
    %c0_55 = arith.constant 0 : index
    %c0_56 = arith.constant 0 : index
    %67 = vector.load %arg6[%c2_54, %c0_55, %c0_56] : memref<9x8x8xbf16, #tpu.memory_space<vmem>>, vector<1x8x8xbf16>
    %68 = vector.shape_cast %67 : vector<1x8x8xbf16> to vector<8x8xbf16>
    %cst_57 = arith.constant dense<0.000000e+00> : vector<256x8xf32>
    %69 = tpu.matmul %66, %68, %cst_57 {dimension_numbers = #tpu.dot_dimension_numbers<[1], [0], [0], [1], [0, 0, 1, 1], [], []>} : vector<256x8xbf16>, vector<8x8xbf16>, vector<256x8xf32> -> vector<256x8xf32>
    %70 = arith.addf %63, %69 : vector<256x8xf32>
    %c2_58 = arith.constant 2 : index
    %c0_59 = arith.constant 0 : index
    %c0_60 = arith.constant 0 : index
    %71 = vector.load %arg12[%c2_58, %c0_59, %c0_60] : memref<20x20x8xf32, #tpu.memory_space<vmem>>, vector<16x16x8xf32>
    %72 = vector.shape_cast %71 : vector<16x16x8xf32> to vector<256x8xf32>
    %73 = arith.truncf %72 : vector<256x8xf32> to vector<256x8xbf16>
    %c3 = arith.constant 3 : index
    %c0_61 = arith.constant 0 : index
    %c0_62 = arith.constant 0 : index
    %74 = vector.load %arg6[%c3, %c0_61, %c0_62] : memref<9x8x8xbf16, #tpu.memory_space<vmem>>, vector<1x8x8xbf16>
    %75 = vector.shape_cast %74 : vector<1x8x8xbf16> to vector<8x8xbf16>
    %cst_63 = arith.constant dense<0.000000e+00> : vector<256x8xf32>
    %76 = tpu.matmul %73, %75, %cst_63 {dimension_numbers = #tpu.dot_dimension_numbers<[1], [0], [0], [1], [0, 0, 1, 1], [], []>} : vector<256x8xbf16>, vector<8x8xbf16>, vector<256x8xf32> -> vector<256x8xf32>
    %77 = arith.addf %70, %76 : vector<256x8xf32>
    %c2_64 = arith.constant 2 : index
    %c2_65 = arith.constant 2 : index
    %c0_66 = arith.constant 0 : index
    %78 = vector.load %arg12[%c2_64, %c2_65, %c0_66] : memref<20x20x8xf32, #tpu.memory_space<vmem>>, vector<16x16x8xf32>
    %79 = vector.shape_cast %78 : vector<16x16x8xf32> to vector<256x8xf32>
    %80 = arith.truncf %79 : vector<256x8xf32> to vector<256x8xbf16>
    %c4_67 = arith.constant 4 : index
    %c0_68 = arith.constant 0 : index
    %c0_69 = arith.constant 0 : index
    %81 = vector.load %arg6[%c4_67, %c0_68, %c0_69] : memref<9x8x8xbf16, #tpu.memory_space<vmem>>, vector<1x8x8xbf16>
    %82 = vector.shape_cast %81 : vector<1x8x8xbf16> to vector<8x8xbf16>
    %cst_70 = arith.constant dense<0.000000e+00> : vector<256x8xf32>
    %83 = tpu.matmul %80, %82, %cst_70 {dimension_numbers = #tpu.dot_dimension_numbers<[1], [0], [0], [1], [0, 0, 1, 1], [], []>} : vector<256x8xbf16>, vector<8x8xbf16>, vector<256x8xf32> -> vector<256x8xf32>
    %84 = arith.addf %77, %83 : vector<256x8xf32>
    %c2_71 = arith.constant 2 : index
    %c4_72 = arith.constant 4 : index
    %c0_73 = arith.constant 0 : index
    %85 = vector.load %arg12[%c2_71, %c4_72, %c0_73] : memref<20x20x8xf32, #tpu.memory_space<vmem>>, vector<16x16x8xf32>
    %86 = vector.shape_cast %85 : vector<16x16x8xf32> to vector<256x8xf32>
    %87 = arith.truncf %86 : vector<256x8xf32> to vector<256x8xbf16>
    %c5 = arith.constant 5 : index
    %c0_74 = arith.constant 0 : index
    %c0_75 = arith.constant 0 : index
    %88 = vector.load %arg6[%c5, %c0_74, %c0_75] : memref<9x8x8xbf16, #tpu.memory_space<vmem>>, vector<1x8x8xbf16>
    %89 = vector.shape_cast %88 : vector<1x8x8xbf16> to vector<8x8xbf16>
    %cst_76 = arith.constant dense<0.000000e+00> : vector<256x8xf32>
    %90 = tpu.matmul %87, %89, %cst_76 {dimension_numbers = #tpu.dot_dimension_numbers<[1], [0], [0], [1], [0, 0, 1, 1], [], []>} : vector<256x8xbf16>, vector<8x8xbf16>, vector<256x8xf32> -> vector<256x8xf32>
    %91 = arith.addf %84, %90 : vector<256x8xf32>
    %c4_77 = arith.constant 4 : index
    %c0_78 = arith.constant 0 : index
    %c0_79 = arith.constant 0 : index
    %92 = vector.load %arg12[%c4_77, %c0_78, %c0_79] : memref<20x20x8xf32, #tpu.memory_space<vmem>>, vector<16x16x8xf32>
    %93 = vector.shape_cast %92 : vector<16x16x8xf32> to vector<256x8xf32>
    %94 = arith.truncf %93 : vector<256x8xf32> to vector<256x8xbf16>
    %c6 = arith.constant 6 : index
    %c0_80 = arith.constant 0 : index
    %c0_81 = arith.constant 0 : index
    %95 = vector.load %arg6[%c6, %c0_80, %c0_81] : memref<9x8x8xbf16, #tpu.memory_space<vmem>>, vector<1x8x8xbf16>
    %96 = vector.shape_cast %95 : vector<1x8x8xbf16> to vector<8x8xbf16>
    %cst_82 = arith.constant dense<0.000000e+00> : vector<256x8xf32>
    %97 = tpu.matmul %94, %96, %cst_82 {dimension_numbers = #tpu.dot_dimension_numbers<[1], [0], [0], [1], [0, 0, 1, 1], [], []>} : vector<256x8xbf16>, vector<8x8xbf16>, vector<256x8xf32> -> vector<256x8xf32>
    %98 = arith.addf %91, %97 : vector<256x8xf32>
    %c4_83 = arith.constant 4 : index
    %c2_84 = arith.constant 2 : index
    %c0_85 = arith.constant 0 : index
    %99 = vector.load %arg12[%c4_83, %c2_84, %c0_85] : memref<20x20x8xf32, #tpu.memory_space<vmem>>, vector<16x16x8xf32>
    %100 = vector.shape_cast %99 : vector<16x16x8xf32> to vector<256x8xf32>
    %101 = arith.truncf %100 : vector<256x8xf32> to vector<256x8xbf16>
    %c7 = arith.constant 7 : index
    %c0_86 = arith.constant 0 : index
    %c0_87 = arith.constant 0 : index
    %102 = vector.load %arg6[%c7, %c0_86, %c0_87] : memref<9x8x8xbf16, #tpu.memory_space<vmem>>, vector<1x8x8xbf16>
    %103 = vector.shape_cast %102 : vector<1x8x8xbf16> to vector<8x8xbf16>
    %cst_88 = arith.constant dense<0.000000e+00> : vector<256x8xf32>
    %104 = tpu.matmul %101, %103, %cst_88 {dimension_numbers = #tpu.dot_dimension_numbers<[1], [0], [0], [1], [0, 0, 1, 1], [], []>} : vector<256x8xbf16>, vector<8x8xbf16>, vector<256x8xf32> -> vector<256x8xf32>
    %105 = arith.addf %98, %104 : vector<256x8xf32>
    %c4_89 = arith.constant 4 : index
    %c4_90 = arith.constant 4 : index
    %c0_91 = arith.constant 0 : index
    %106 = vector.load %arg12[%c4_89, %c4_90, %c0_91] : memref<20x20x8xf32, #tpu.memory_space<vmem>>, vector<16x16x8xf32>
    %107 = vector.shape_cast %106 : vector<16x16x8xf32> to vector<256x8xf32>
    %108 = arith.truncf %107 : vector<256x8xf32> to vector<256x8xbf16>
    %c8 = arith.constant 8 : index
    %c0_92 = arith.constant 0 : index
    %c0_93 = arith.constant 0 : index
    %109 = vector.load %arg6[%c8, %c0_92, %c0_93] : memref<9x8x8xbf16, #tpu.memory_space<vmem>>, vector<1x8x8xbf16>
    %110 = vector.shape_cast %109 : vector<1x8x8xbf16> to vector<8x8xbf16>
    %cst_94 = arith.constant dense<0.000000e+00> : vector<256x8xf32>
    %111 = tpu.matmul %108, %110, %cst_94 {dimension_numbers = #tpu.dot_dimension_numbers<[1], [0], [0], [1], [0, 0, 1, 1], [], []>} : vector<256x8xbf16>, vector<8x8xbf16>, vector<256x8xf32> -> vector<256x8xf32>
    %112 = arith.addf %105, %111 : vector<256x8xf32>
    %c0_95 = arith.constant 0 : index
    %c0_96 = arith.constant 0 : index
    %113 = vector.load %arg7[%c0_95, %c0_96] : memref<1x8xf32, #tpu.memory_space<vmem>>, vector<1x8xf32>
    %114 = vector.broadcast %113 : vector<1x8xf32> to vector<256x8xf32>
    %115 = arith.addf %112, %114 : vector<256x8xf32>
    %cst_97 = arith.constant dense<0.000000e+00> : vector<8xf32>
    %116 = vector.multi_reduction <add>, %115, %cst_97 [0] : vector<256x8xf32> to vector<8xf32>
    %117 = vector.shape_cast %116 : vector<8xf32> to vector<1x8xf32>
    %c0_98 = arith.constant 0 : index
    %c0_99 = arith.constant 0 : index
    %c0_100 = arith.constant 0 : index
    %118 = vector.load %arg10[%c0_98, %c0_99, %c0_100] : memref<1x1x8xf32, #tpu.memory_space<vmem>>, vector<1x1x8xf32>
    %119 = vector.shape_cast %118 : vector<1x1x8xf32> to vector<1x8xf32>
    %120 = vector.shape_cast %117 : vector<1x8xf32> to vector<1x1x8xf32>
    tpu.vector_store %arg10[%c0_98, %c0_99, %c0_100], %120 {strides = array<i32>} : memref<1x1x8xf32, #tpu.memory_space<vmem>>, vector<1x1x8xf32>,
    %121 = arith.mulf %115, %115 : vector<256x8xf32>
    %cst_101 = arith.constant dense<0.000000e+00> : vector<8xf32>
    %122 = vector.multi_reduction <add>, %121, %cst_101 [0] : vector<256x8xf32> to vector<8xf32>
    %123 = vector.shape_cast %122 : vector<8xf32> to vector<1x8xf32>
    %c0_102 = arith.constant 0 : index
    %c0_103 = arith.constant 0 : index
    %c0_104 = arith.constant 0 : index
    %124 = vector.load %arg11[%c0_102, %c0_103, %c0_104] : memref<1x1x8xf32, #tpu.memory_space<vmem>>, vector<1x1x8xf32>
    %125 = vector.shape_cast %124 : vector<1x1x8xf32> to vector<1x8xf32>
    %126 = vector.shape_cast %123 : vector<1x8xf32> to vector<1x1x8xf32>
    tpu.vector_store %arg11[%c0_102, %c0_103, %c0_104], %126 {strides = array<i32>} : memref<1x1x8xf32, #tpu.memory_space<vmem>>, vector<1x1x8xf32>,
    %127 = vector.shape_cast %115 : vector<256x8xf32> to vector<16x16x8xf32>
    %128 = arith.truncf %127 : vector<16x16x8xf32> to vector<16x16x8xbf16>
    %c0_105 = arith.constant 0 : index
    %c0_106 = arith.constant 0 : index
    %c0_107 = arith.constant 0 : index
    %c0_108 = arith.constant 0 : index
    %129 = vector.load %arg9[%c0_105, %c0_106, %c0_107, %c0_108] : memref<1x16x16x8xbf16, #tpu.memory_space<vmem>>, vector<1x16x16x8xbf16>
    %130 = vector.shape_cast %129 : vector<1x16x16x8xbf16> to vector<16x16x8xbf16>
    %131 = vector.shape_cast %128 : vector<16x16x8xbf16> to vector<1x16x16x8xbf16>
    tpu.vector_store %arg9[%c0_105, %c0_106, %c0_107, %c0_108], %131 {strides = array<i32>} : memref<1x16x16x8xbf16, #tpu.memory_space<vmem>>, vector<1x16x16x8xbf16>,
    return
  }
  func.func @transform_0(%arg0: i32) -> (i32, i32, i32, i32) {
    %c0_i32 = arith.constant 0 : i32
    %c0_i32_0 = arith.constant 0 : i32
    %c0_i32_1 = arith.constant 0 : i32
    %c0_i32_2 = arith.constant 0 : i32
    return %arg0, %c0_i32, %c0_i32_0, %c0_i32_1 : i32, i32, i32, i32
  }
  func.func @transform_1(%arg0: i32) -> (i32, i32, i32, i32) {
    %c0_i32 = arith.constant 0 : i32
    %c0_i32_0 = arith.constant 0 : i32
    %c0_i32_1 = arith.constant 0 : i32
    %c0_i32_2 = arith.constant 0 : i32
    return %arg0, %c0_i32, %c0_i32_0, %c0_i32_1 : i32, i32, i32, i32
  }
  func.func @transform_2(%arg0: i32) -> (i32, i32, i32) {
    %c0_i32 = arith.constant 0 : i32
    %c0_i32_0 = arith.constant 0 : i32
    %c0_i32_1 = arith.constant 0 : i32
    %c0_i32_2 = arith.constant 0 : i32
    return %c0_i32, %c0_i32_0, %c0_i32_1 : i32, i32, i32
  }
  func.func @transform_3(%arg0: i32) -> (i32, i32) {
    %c0_i32 = arith.constant 0 : i32
    %c0_i32_0 = arith.constant 0 : i32
    %c0_i32_1 = arith.constant 0 : i32
    return %c0_i32, %c0_i32_0 : i32, i32
  }
  func.func @transform_4(%arg0: i32) -> (i32, i32) {
    %c0_i32 = arith.constant 0 : i32
    %c0_i32_0 = arith.constant 0 : i32
    %c0_i32_1 = arith.constant 0 : i32
    return %c0_i32, %c0_i32_0 : i32, i32
  }
  func.func @transform_5(%arg0: i32) -> (i32, i32, i32) {
    %c0_i32 = arith.constant 0 : i32
    %c0_i32_0 = arith.constant 0 : i32
    %c0_i32_1 = arith.constant 0 : i32
    %c0_i32_2 = arith.constant 0 : i32
    return %c0_i32, %c0_i32_0, %c0_i32_1 : i32, i32, i32
  }
  func.func @transform_6(%arg0: i32) -> (i32, i32) {
    %c0_i32 = arith.constant 0 : i32
    %c0_i32_0 = arith.constant 0 : i32
    %c0_i32_1 = arith.constant 0 : i32
    return %c0_i32, %c0_i32_0 : i32, i32
  }
  func.func @transform_7(%arg0: i32) -> (i32, i32, i32, i32) {
    %c0_i32 = arith.constant 0 : i32
    %c0_i32_0 = arith.constant 0 : i32
    %c0_i32_1 = arith.constant 0 : i32
    %c0_i32_2 = arith.constant 0 : i32
    return %arg0, %c0_i32, %c0_i32_0, %c0_i32_1 : i32, i32, i32, i32
  }
  func.func @transform_8(%arg0: i32) -> (i32, i32, i32, i32) {
    %c0_i32 = arith.constant 0 : i32
    %c0_i32_0 = arith.constant 0 : i32
    %c0_i32_1 = arith.constant 0 : i32
    %c0_i32_2 = arith.constant 0 : i32
    return %arg0, %c0_i32, %c0_i32_0, %c0_i32_1 : i32, i32, i32, i32
  }
  func.func @transform_9(%arg0: i32) -> (i32, i32, i32) {
    %c0_i32 = arith.constant 0 : i32
    %c0_i32_0 = arith.constant 0 : i32
    %c0_i32_1 = arith.constant 0 : i32
    return %arg0, %c0_i32, %c0_i32_0 : i32, i32, i32
  }
  func.func @transform_10(%arg0: i32) -> (i32, i32, i32) {
    %c0_i32 = arith.constant 0 : i32
    %c0_i32_0 = arith.constant 0 : i32
    %c0_i32_1 = arith.constant 0 : i32
    return %arg0, %c0_i32, %c0_i32_0 : i32, i32, i32
  }
}

module attributes {stable_mosaic.version = 11 : i64} {
  func.func @_bn_relu_conv3_res_kernel(%arg0: i32, %arg1: memref<1x16x16x8xbf16, #tpu.memory_space<vmem>>, %arg2: memref<1x16x16x8xbf16, #tpu.memory_space<vmem>>, %arg3: memref<1x8xf32, #tpu.memory_space<vmem>>, %arg4: memref<1x8xf32, #tpu.memory_space<vmem>>, %arg5: memref<9x8x8xbf16, #tpu.memory_space<vmem>>, %arg6: memref<1x16x16x8xf32, #tpu.memory_space<vmem>>, %arg7: memref<20x20x8xf32, #tpu.memory_space<vmem>>) attributes {dimension_semantics = [#tpu.dimension_semantics<parallel>], iteration_bounds = array<i64: 2>, scalar_prefetch = 0 : i64, scratch_operands = 1 : i64, tpu.core_type = #tpu.core_type<tc>, window_params = [{transform_indices = @transform_0, window_bounds = array<i64: 1, 16, 16, 8>}, {transform_indices = @transform_1, window_bounds = array<i64: 1, 16, 16, 8>}, {pipeline_mode = #tpu.pipeline_mode<synchronous>, transform_indices = @transform_2, window_bounds = array<i64: 1, 8>}, {pipeline_mode = #tpu.pipeline_mode<synchronous>, transform_indices = @transform_3, window_bounds = array<i64: 1, 8>}, {pipeline_mode = #tpu.pipeline_mode<synchronous>, transform_indices = @transform_4, window_bounds = array<i64: 9, 8, 8>}, {transform_indices = @transform_5, window_bounds = array<i64: 1, 16, 16, 8>}]} {
    %c0 = arith.constant 0 : index
    %c0_0 = arith.constant 0 : index
    %c0_1 = arith.constant 0 : index
    %c0_2 = arith.constant 0 : index
    %0 = vector.load %arg1[%c0, %c0_0, %c0_1, %c0_2] : memref<1x16x16x8xbf16, #tpu.memory_space<vmem>>, vector<1x16x16x8xbf16>
    %1 = vector.shape_cast %0 : vector<1x16x16x8xbf16> to vector<16x16x8xbf16>
    %2 = vector.shape_cast %1 : vector<16x16x8xbf16> to vector<256x8xbf16>
    %3 = arith.extf %2 : vector<256x8xbf16> to vector<256x8xf32>
    %c0_3 = arith.constant 0 : index
    %c0_4 = arith.constant 0 : index
    %4 = vector.load %arg3[%c0_3, %c0_4] : memref<1x8xf32, #tpu.memory_space<vmem>>, vector<1x8xf32>
    %5 = vector.broadcast %4 : vector<1x8xf32> to vector<256x8xf32>
    %6 = arith.mulf %3, %5 : vector<256x8xf32>
    %c0_5 = arith.constant 0 : index
    %c0_6 = arith.constant 0 : index
    %7 = vector.load %arg4[%c0_5, %c0_6] : memref<1x8xf32, #tpu.memory_space<vmem>>, vector<1x8xf32>
    %8 = vector.broadcast %7 : vector<1x8xf32> to vector<256x8xf32>
    %9 = arith.addf %6, %8 : vector<256x8xf32>
    %cst = arith.constant 0.000000e+00 : f32
    %10 = vector.broadcast %cst : f32 to vector<256x8xf32>
    %11 = arith.maximumf %9, %10 : vector<256x8xf32>
    %cst_7 = arith.constant 0.000000e+00 : f32
    %12 = vector.broadcast %cst_7 : f32 to vector<20x20x8xf32>
    %c0_8 = arith.constant 0 : index
    %c0_9 = arith.constant 0 : index
    %c0_10 = arith.constant 0 : index
    %13 = vector.load %arg7[%c0_8, %c0_9, %c0_10] : memref<20x20x8xf32, #tpu.memory_space<vmem>>, vector<20x20x8xf32>
    tpu.vector_store %arg7[%c0_8, %c0_9, %c0_10], %12 {strides = array<i32>} : memref<20x20x8xf32, #tpu.memory_space<vmem>>, vector<20x20x8xf32>,
    %14 = vector.shape_cast %11 : vector<256x8xf32> to vector<16x16x8xf32>
    %c2 = arith.constant 2 : index
    %c2_11 = arith.constant 2 : index
    %c0_12 = arith.constant 0 : index
    %15 = vector.load %arg7[%c2, %c2_11, %c0_12] : memref<20x20x8xf32, #tpu.memory_space<vmem>>, vector<16x16x8xf32>
    tpu.vector_store %arg7[%c2, %c2_11, %c0_12], %14 {strides = array<i32>} : memref<20x20x8xf32, #tpu.memory_space<vmem>>, vector<16x16x8xf32>,
    %cst_13 = arith.constant 0.000000e+00 : f32
    %16 = vector.broadcast %cst_13 : f32 to vector<256x8xf32>
    %c0_14 = arith.constant 0 : index
    %c0_15 = arith.constant 0 : index
    %c0_16 = arith.constant 0 : index
    %17 = vector.load %arg7[%c0_14, %c0_15, %c0_16] : memref<20x20x8xf32, #tpu.memory_space<vmem>>, vector<16x16x8xf32>
    %18 = vector.shape_cast %17 : vector<16x16x8xf32> to vector<256x8xf32>
    %19 = arith.truncf %18 : vector<256x8xf32> to vector<256x8xbf16>
    %c0_17 = arith.constant 0 : index
    %c0_18 = arith.constant 0 : index
    %c0_19 = arith.constant 0 : index
    %20 = vector.load %arg5[%c0_17, %c0_18, %c0_19] : memref<9x8x8xbf16, #tpu.memory_space<vmem>>, vector<1x8x8xbf16>
    %21 = vector.shape_cast %20 : vector<1x8x8xbf16> to vector<8x8xbf16>
    %cst_20 = arith.constant dense<0.000000e+00> : vector<256x8xf32>
    %22 = tpu.matmul %19, %21, %cst_20 {dimension_numbers = #tpu.dot_dimension_numbers<[1], [0], [0], [1], [0, 0, 1, 1], [], []>} : vector<256x8xbf16>, vector<8x8xbf16>, vector<256x8xf32> -> vector<256x8xf32>
    %23 = arith.addf %16, %22 : vector<256x8xf32>
    %c0_21 = arith.constant 0 : index
    %c2_22 = arith.constant 2 : index
    %c0_23 = arith.constant 0 : index
    %24 = vector.load %arg7[%c0_21, %c2_22, %c0_23] : memref<20x20x8xf32, #tpu.memory_space<vmem>>, vector<16x16x8xf32>
    %25 = vector.shape_cast %24 : vector<16x16x8xf32> to vector<256x8xf32>
    %26 = arith.truncf %25 : vector<256x8xf32> to vector<256x8xbf16>
    %c1 = arith.constant 1 : index
    %c0_24 = arith.constant 0 : index
    %c0_25 = arith.constant 0 : index
    %27 = vector.load %arg5[%c1, %c0_24, %c0_25] : memref<9x8x8xbf16, #tpu.memory_space<vmem>>, vector<1x8x8xbf16>
    %28 = vector.shape_cast %27 : vector<1x8x8xbf16> to vector<8x8xbf16>
    %cst_26 = arith.constant dense<0.000000e+00> : vector<256x8xf32>
    %29 = tpu.matmul %26, %28, %cst_26 {dimension_numbers = #tpu.dot_dimension_numbers<[1], [0], [0], [1], [0, 0, 1, 1], [], []>} : vector<256x8xbf16>, vector<8x8xbf16>, vector<256x8xf32> -> vector<256x8xf32>
    %30 = arith.addf %23, %29 : vector<256x8xf32>
    %c0_27 = arith.constant 0 : index
    %c4 = arith.constant 4 : index
    %c0_28 = arith.constant 0 : index
    %31 = vector.load %arg7[%c0_27, %c4, %c0_28] : memref<20x20x8xf32, #tpu.memory_space<vmem>>, vector<16x16x8xf32>
    %32 = vector.shape_cast %31 : vector<16x16x8xf32> to vector<256x8xf32>
    %33 = arith.truncf %32 : vector<256x8xf32> to vector<256x8xbf16>
    %c2_29 = arith.constant 2 : index
    %c0_30 = arith.constant 0 : index
    %c0_31 = arith.constant 0 : index
    %34 = vector.load %arg5[%c2_29, %c0_30, %c0_31] : memref<9x8x8xbf16, #tpu.memory_space<vmem>>, vector<1x8x8xbf16>
    %35 = vector.shape_cast %34 : vector<1x8x8xbf16> to vector<8x8xbf16>
    %cst_32 = arith.constant dense<0.000000e+00> : vector<256x8xf32>
    %36 = tpu.matmul %33, %35, %cst_32 {dimension_numbers = #tpu.dot_dimension_numbers<[1], [0], [0], [1], [0, 0, 1, 1], [], []>} : vector<256x8xbf16>, vector<8x8xbf16>, vector<256x8xf32> -> vector<256x8xf32>
    %37 = arith.addf %30, %36 : vector<256x8xf32>
    %c2_33 = arith.constant 2 : index
    %c0_34 = arith.constant 0 : index
    %c0_35 = arith.constant 0 : index
    %38 = vector.load %arg7[%c2_33, %c0_34, %c0_35] : memref<20x20x8xf32, #tpu.memory_space<vmem>>, vector<16x16x8xf32>
    %39 = vector.shape_cast %38 : vector<16x16x8xf32> to vector<256x8xf32>
    %40 = arith.truncf %39 : vector<256x8xf32> to vector<256x8xbf16>
    %c3 = arith.constant 3 : index
    %c0_36 = arith.constant 0 : index
    %c0_37 = arith.constant 0 : index
    %41 = vector.load %arg5[%c3, %c0_36, %c0_37] : memref<9x8x8xbf16, #tpu.memory_space<vmem>>, vector<1x8x8xbf16>
    %42 = vector.shape_cast %41 : vector<1x8x8xbf16> to vector<8x8xbf16>
    %cst_38 = arith.constant dense<0.000000e+00> : vector<256x8xf32>
    %43 = tpu.matmul %40, %42, %cst_38 {dimension_numbers = #tpu.dot_dimension_numbers<[1], [0], [0], [1], [0, 0, 1, 1], [], []>} : vector<256x8xbf16>, vector<8x8xbf16>, vector<256x8xf32> -> vector<256x8xf32>
    %44 = arith.addf %37, %43 : vector<256x8xf32>
    %c2_39 = arith.constant 2 : index
    %c2_40 = arith.constant 2 : index
    %c0_41 = arith.constant 0 : index
    %45 = vector.load %arg7[%c2_39, %c2_40, %c0_41] : memref<20x20x8xf32, #tpu.memory_space<vmem>>, vector<16x16x8xf32>
    %46 = vector.shape_cast %45 : vector<16x16x8xf32> to vector<256x8xf32>
    %47 = arith.truncf %46 : vector<256x8xf32> to vector<256x8xbf16>
    %c4_42 = arith.constant 4 : index
    %c0_43 = arith.constant 0 : index
    %c0_44 = arith.constant 0 : index
    %48 = vector.load %arg5[%c4_42, %c0_43, %c0_44] : memref<9x8x8xbf16, #tpu.memory_space<vmem>>, vector<1x8x8xbf16>
    %49 = vector.shape_cast %48 : vector<1x8x8xbf16> to vector<8x8xbf16>
    %cst_45 = arith.constant dense<0.000000e+00> : vector<256x8xf32>
    %50 = tpu.matmul %47, %49, %cst_45 {dimension_numbers = #tpu.dot_dimension_numbers<[1], [0], [0], [1], [0, 0, 1, 1], [], []>} : vector<256x8xbf16>, vector<8x8xbf16>, vector<256x8xf32> -> vector<256x8xf32>
    %51 = arith.addf %44, %50 : vector<256x8xf32>
    %c2_46 = arith.constant 2 : index
    %c4_47 = arith.constant 4 : index
    %c0_48 = arith.constant 0 : index
    %52 = vector.load %arg7[%c2_46, %c4_47, %c0_48] : memref<20x20x8xf32, #tpu.memory_space<vmem>>, vector<16x16x8xf32>
    %53 = vector.shape_cast %52 : vector<16x16x8xf32> to vector<256x8xf32>
    %54 = arith.truncf %53 : vector<256x8xf32> to vector<256x8xbf16>
    %c5 = arith.constant 5 : index
    %c0_49 = arith.constant 0 : index
    %c0_50 = arith.constant 0 : index
    %55 = vector.load %arg5[%c5, %c0_49, %c0_50] : memref<9x8x8xbf16, #tpu.memory_space<vmem>>, vector<1x8x8xbf16>
    %56 = vector.shape_cast %55 : vector<1x8x8xbf16> to vector<8x8xbf16>
    %cst_51 = arith.constant dense<0.000000e+00> : vector<256x8xf32>
    %57 = tpu.matmul %54, %56, %cst_51 {dimension_numbers = #tpu.dot_dimension_numbers<[1], [0], [0], [1], [0, 0, 1, 1], [], []>} : vector<256x8xbf16>, vector<8x8xbf16>, vector<256x8xf32> -> vector<256x8xf32>
    %58 = arith.addf %51, %57 : vector<256x8xf32>
    %c4_52 = arith.constant 4 : index
    %c0_53 = arith.constant 0 : index
    %c0_54 = arith.constant 0 : index
    %59 = vector.load %arg7[%c4_52, %c0_53, %c0_54] : memref<20x20x8xf32, #tpu.memory_space<vmem>>, vector<16x16x8xf32>
    %60 = vector.shape_cast %59 : vector<16x16x8xf32> to vector<256x8xf32>
    %61 = arith.truncf %60 : vector<256x8xf32> to vector<256x8xbf16>
    %c6 = arith.constant 6 : index
    %c0_55 = arith.constant 0 : index
    %c0_56 = arith.constant 0 : index
    %62 = vector.load %arg5[%c6, %c0_55, %c0_56] : memref<9x8x8xbf16, #tpu.memory_space<vmem>>, vector<1x8x8xbf16>
    %63 = vector.shape_cast %62 : vector<1x8x8xbf16> to vector<8x8xbf16>
    %cst_57 = arith.constant dense<0.000000e+00> : vector<256x8xf32>
    %64 = tpu.matmul %61, %63, %cst_57 {dimension_numbers = #tpu.dot_dimension_numbers<[1], [0], [0], [1], [0, 0, 1, 1], [], []>} : vector<256x8xbf16>, vector<8x8xbf16>, vector<256x8xf32> -> vector<256x8xf32>
    %65 = arith.addf %58, %64 : vector<256x8xf32>
    %c4_58 = arith.constant 4 : index
    %c2_59 = arith.constant 2 : index
    %c0_60 = arith.constant 0 : index
    %66 = vector.load %arg7[%c4_58, %c2_59, %c0_60] : memref<20x20x8xf32, #tpu.memory_space<vmem>>, vector<16x16x8xf32>
    %67 = vector.shape_cast %66 : vector<16x16x8xf32> to vector<256x8xf32>
    %68 = arith.truncf %67 : vector<256x8xf32> to vector<256x8xbf16>
    %c7 = arith.constant 7 : index
    %c0_61 = arith.constant 0 : index
    %c0_62 = arith.constant 0 : index
    %69 = vector.load %arg5[%c7, %c0_61, %c0_62] : memref<9x8x8xbf16, #tpu.memory_space<vmem>>, vector<1x8x8xbf16>
    %70 = vector.shape_cast %69 : vector<1x8x8xbf16> to vector<8x8xbf16>
    %cst_63 = arith.constant dense<0.000000e+00> : vector<256x8xf32>
    %71 = tpu.matmul %68, %70, %cst_63 {dimension_numbers = #tpu.dot_dimension_numbers<[1], [0], [0], [1], [0, 0, 1, 1], [], []>} : vector<256x8xbf16>, vector<8x8xbf16>, vector<256x8xf32> -> vector<256x8xf32>
    %72 = arith.addf %65, %71 : vector<256x8xf32>
    %c4_64 = arith.constant 4 : index
    %c4_65 = arith.constant 4 : index
    %c0_66 = arith.constant 0 : index
    %73 = vector.load %arg7[%c4_64, %c4_65, %c0_66] : memref<20x20x8xf32, #tpu.memory_space<vmem>>, vector<16x16x8xf32>
    %74 = vector.shape_cast %73 : vector<16x16x8xf32> to vector<256x8xf32>
    %75 = arith.truncf %74 : vector<256x8xf32> to vector<256x8xbf16>
    %c8 = arith.constant 8 : index
    %c0_67 = arith.constant 0 : index
    %c0_68 = arith.constant 0 : index
    %76 = vector.load %arg5[%c8, %c0_67, %c0_68] : memref<9x8x8xbf16, #tpu.memory_space<vmem>>, vector<1x8x8xbf16>
    %77 = vector.shape_cast %76 : vector<1x8x8xbf16> to vector<8x8xbf16>
    %cst_69 = arith.constant dense<0.000000e+00> : vector<256x8xf32>
    %78 = tpu.matmul %75, %77, %cst_69 {dimension_numbers = #tpu.dot_dimension_numbers<[1], [0], [0], [1], [0, 0, 1, 1], [], []>} : vector<256x8xbf16>, vector<8x8xbf16>, vector<256x8xf32> -> vector<256x8xf32>
    %79 = arith.addf %72, %78 : vector<256x8xf32>
    %c0_70 = arith.constant 0 : index
    %c0_71 = arith.constant 0 : index
    %c0_72 = arith.constant 0 : index
    %c0_73 = arith.constant 0 : index
    %80 = vector.load %arg2[%c0_70, %c0_71, %c0_72, %c0_73] : memref<1x16x16x8xbf16, #tpu.memory_space<vmem>>, vector<1x16x16x8xbf16>
    %81 = vector.shape_cast %80 : vector<1x16x16x8xbf16> to vector<16x16x8xbf16>
    %82 = vector.shape_cast %81 : vector<16x16x8xbf16> to vector<256x8xbf16>
    %83 = arith.extf %82 : vector<256x8xbf16> to vector<256x8xf32>
    %84 = arith.addf %79, %83 : vector<256x8xf32>
    %cst_74 = arith.constant 0.000000e+00 : f32
    %85 = vector.broadcast %cst_74 : f32 to vector<256x8xf32>
    %86 = arith.maximumf %84, %85 : vector<256x8xf32>
    %87 = vector.shape_cast %86 : vector<256x8xf32> to vector<16x16x8xf32>
    %c0_75 = arith.constant 0 : index
    %c0_76 = arith.constant 0 : index
    %c0_77 = arith.constant 0 : index
    %c0_78 = arith.constant 0 : index
    %88 = vector.load %arg6[%c0_75, %c0_76, %c0_77, %c0_78] : memref<1x16x16x8xf32, #tpu.memory_space<vmem>>, vector<1x16x16x8xf32>
    %89 = vector.shape_cast %88 : vector<1x16x16x8xf32> to vector<16x16x8xf32>
    %90 = vector.shape_cast %87 : vector<16x16x8xf32> to vector<1x16x16x8xf32>
    tpu.vector_store %arg6[%c0_75, %c0_76, %c0_77, %c0_78], %90 {strides = array<i32>} : memref<1x16x16x8xf32, #tpu.memory_space<vmem>>, vector<1x16x16x8xf32>,
    return
  }
  func.func @transform_0(%arg0: i32) -> (i32, i32, i32, i32) {
    %c0_i32 = arith.constant 0 : i32
    %c0_i32_0 = arith.constant 0 : i32
    %c0_i32_1 = arith.constant 0 : i32
    %c0_i32_2 = arith.constant 0 : i32
    return %arg0, %c0_i32, %c0_i32_0, %c0_i32_1 : i32, i32, i32, i32
  }
  func.func @transform_1(%arg0: i32) -> (i32, i32, i32, i32) {
    %c0_i32 = arith.constant 0 : i32
    %c0_i32_0 = arith.constant 0 : i32
    %c0_i32_1 = arith.constant 0 : i32
    %c0_i32_2 = arith.constant 0 : i32
    return %arg0, %c0_i32, %c0_i32_0, %c0_i32_1 : i32, i32, i32, i32
  }
  func.func @transform_2(%arg0: i32) -> (i32, i32) {
    %c0_i32 = arith.constant 0 : i32
    %c0_i32_0 = arith.constant 0 : i32
    %c0_i32_1 = arith.constant 0 : i32
    return %c0_i32, %c0_i32_0 : i32, i32
  }
  func.func @transform_3(%arg0: i32) -> (i32, i32) {
    %c0_i32 = arith.constant 0 : i32
    %c0_i32_0 = arith.constant 0 : i32
    %c0_i32_1 = arith.constant 0 : i32
    return %c0_i32, %c0_i32_0 : i32, i32
  }
  func.func @transform_4(%arg0: i32) -> (i32, i32, i32) {
    %c0_i32 = arith.constant 0 : i32
    %c0_i32_0 = arith.constant 0 : i32
    %c0_i32_1 = arith.constant 0 : i32
    %c0_i32_2 = arith.constant 0 : i32
    return %c0_i32, %c0_i32_0, %c0_i32_1 : i32, i32, i32
  }
  func.func @transform_5(%arg0: i32) -> (i32, i32, i32, i32) {
    %c0_i32 = arith.constant 0 : i32
    %c0_i32_0 = arith.constant 0 : i32
    %c0_i32_1 = arith.constant 0 : i32
    %c0_i32_2 = arith.constant 0 : i32
    return %arg0, %c0_i32, %c0_i32_0, %c0_i32_1 : i32, i32, i32, i32
  }
}

module attributes {stable_mosaic.version = 11 : i64} {
  func.func @_bn_finalize_kernel(%arg0: memref<2x8xf32, #tpu.memory_space<vmem>>, %arg1: memref<2x8xf32, #tpu.memory_space<vmem>>, %arg2: memref<1x8xf32, #tpu.memory_space<vmem>>, %arg3: memref<1x8xf32, #tpu.memory_space<vmem>>, %arg4: memref<1x8xf32, #tpu.memory_space<vmem>>, %arg5: memref<1x8xf32, #tpu.memory_space<vmem>>) attributes {dimension_semantics = [], scalar_prefetch = 0 : i64, scratch_operands = 0 : i64, tpu.core_type = #tpu.core_type<tc>} {
    %c0 = arith.constant 0 : index
    %c0_0 = arith.constant 0 : index
    %0 = vector.load %arg0[%c0, %c0_0] : memref<2x8xf32, #tpu.memory_space<vmem>>, vector<2x8xf32>
    %cst = arith.constant dense<0.000000e+00> : vector<8xf32>
    %1 = vector.multi_reduction <add>, %0, %cst [0] : vector<2x8xf32> to vector<8xf32>
    %2 = vector.shape_cast %1 : vector<8xf32> to vector<1x8xf32>
    %cst_1 = arith.constant 0.001953125 : f32
    %3 = vector.broadcast %cst_1 : f32 to vector<1x8xf32>
    %4 = arith.mulf %2, %3 : vector<1x8xf32>
    %c0_2 = arith.constant 0 : index
    %c0_3 = arith.constant 0 : index
    %5 = vector.load %arg1[%c0_2, %c0_3] : memref<2x8xf32, #tpu.memory_space<vmem>>, vector<2x8xf32>
    %cst_4 = arith.constant dense<0.000000e+00> : vector<8xf32>
    %6 = vector.multi_reduction <add>, %5, %cst_4 [0] : vector<2x8xf32> to vector<8xf32>
    %7 = vector.shape_cast %6 : vector<8xf32> to vector<1x8xf32>
    %cst_5 = arith.constant 0.001953125 : f32
    %8 = vector.broadcast %cst_5 : f32 to vector<1x8xf32>
    %9 = arith.mulf %7, %8 : vector<1x8xf32>
    %10 = arith.mulf %4, %4 : vector<1x8xf32>
    %11 = arith.subf %9, %10 : vector<1x8xf32>
    %cst_6 = arith.constant 0.000000e+00 : f32
    %12 = vector.broadcast %cst_6 : f32 to vector<1x8xf32>
    %13 = arith.maximumf %11, %12 : vector<1x8xf32>
    %cst_7 = arith.constant 9.99999974E-6 : f32
    %14 = vector.broadcast %cst_7 : f32 to vector<1x8xf32>
    %15 = arith.addf %13, %14 : vector<1x8xf32>
    %16 = math.rsqrt %15 : vector<1x8xf32>
    %c0_8 = arith.constant 0 : index
    %c0_9 = arith.constant 0 : index
    %17 = vector.load %arg2[%c0_8, %c0_9] : memref<1x8xf32, #tpu.memory_space<vmem>>, vector<1x8xf32>
    %18 = arith.mulf %17, %16 : vector<1x8xf32>
    %c0_10 = arith.constant 0 : index
    %c0_11 = arith.constant 0 : index
    %19 = vector.load %arg4[%c0_10, %c0_11] : memref<1x8xf32, #tpu.memory_space<vmem>>, vector<1x8xf32>
    tpu.vector_store %arg4[%c0_10, %c0_11], %18 {strides = array<i32>} : memref<1x8xf32, #tpu.memory_space<vmem>>, vector<1x8xf32>,
    %c0_12 = arith.constant 0 : index
    %c0_13 = arith.constant 0 : index
    %20 = vector.load %arg3[%c0_12, %c0_13] : memref<1x8xf32, #tpu.memory_space<vmem>>, vector<1x8xf32>
    %21 = arith.mulf %4, %18 : vector<1x8xf32>
    %22 = arith.subf %20, %21 : vector<1x8xf32>
    %c0_14 = arith.constant 0 : index
    %c0_15 = arith.constant 0 : index
    %23 = vector.load %arg5[%c0_14, %c0_15] : memref<1x8xf32, #tpu.memory_space<vmem>>, vector<1x8xf32>
    tpu.vector_store %arg5[%c0_14, %c0_15], %22 {strides = array<i32>} : memref<1x8xf32, #tpu.memory_space<vmem>>, vector<1x8xf32>,
    return
  }
}

</mosaic_0001>

<llo_original>
// kernel: a_call__.4
$region0: #{a_call__.4}
  #allocation0 [shape = 'u32[]', space=smem, size = 0x4, offset = 0x4, fixed_abs, tag = 'smem constant byte address 0x4 - core index']
  #allocation1 [shape = 'u32[144,128]{1,0:T(1,128)}', space=vmem, size = 0x12000, scoped, tag = 'internal scratch']
  %s0 = inlined_call_operand.vmem [shape: f32[2,8], index: 0, kind: input, shape index: {}]
  %s1 = inlined_call_operand.vmem [shape: f32[2,8], index: 1, kind: input, shape index: {}]
  %s2 = inlined_call_operand.vmem [shape: f32[1,8], index: 2, kind: input, shape index: {}]
  %s3 = inlined_call_operand.vmem [shape: f32[1,8], index: 3, kind: input, shape index: {}]
  %s4 = inlined_call_operand.vmem [shape: f32[1,8], index: 4, kind: output, shape index: {0}]
  %s5 = inlined_call_operand.vmem [shape: f32[1,8], index: 5, kind: output, shape index: {1}]
  %6 = xla_tuple %s4, %s5
  %s7 = sld [smem:[#allocation0]]
  $region34: #{a_call__.4} parent=0
    _
  %s9 = ssub.s32 1, %s7
  %s10 = scalar_select 0, %s9, %s7
  // Predicated region
  $region2: #{a_call__.4} parent=0 // pred_check
    _
  $region3: #{a_call__.4} parent=0 // pred_check_branch
    %12 = sbr.rel (0) target = $region5
  $region4: #{a_call__.4} parent=0 // pred_region
    _
  $region5: #{a_call__.4} parent=0 // pred_fallthru
    _
  // Predicated region
  $region6: #{a_call__.4} parent=0 // pred_check
    _
  $region7: #{a_call__.4} parent=0 // pred_check_branch
    %14 = sbr.rel (0) target = $region9
  $region8: #{a_call__.4} parent=0 // pred_region
    _
  $region9: #{a_call__.4} parent=0 // pred_fallthru
    _
  // Predicated region
  $region10: #{a_call__.4} parent=0 // pred_check
    _
  $region11: #{a_call__.4} parent=0 // pred_check_branch
    %16 = sbr.rel (0) target = $region13
  $region12: #{a_call__.4} parent=0 // pred_region
    _
  $region13: #{a_call__.4} parent=0 // pred_fallthru
    _
  // Predicated region
  $region14: #{a_call__.4} parent=0 // pred_check
    _
  $region15: #{a_call__.4} parent=0 // pred_check_branch
    %18 = sbr.rel (0) target = $region17
  $region16: #{a_call__.4} parent=0 // pred_region
    _
  $region17: #{a_call__.4} parent=0 // pred_fallthru
    _
  %v19 = vld [vmem:[%s0] sm:$0x3]
  %vm20 = vcmask 58368
  %v21 = vsel %vm20, %v19, 0.0
  %v22 = vrot.slane %v21, 4
  %v23 = vadd.f32 %v21, %v22
  %v24 = vrot.slane %v23, 2
  %v25 = vadd.f32 %v23, %v24
  %v26 = vrot.slane %v25, 1
  %v27 = vadd.f32 %v25, %v26
  %v28 = vmul.f32 %v27, 0.001953125
  %v29 = vld [vmem:[%s1] sm:$0x3]
  %v30 = vsel %vm20, %v29, 0.0
  %v31 = vrot.slane %v30, 4
  %v32 = vadd.f32 %v30, %v31
  %v33 = vrot.slane %v32, 2
  %v34 = vadd.f32 %v32, %v33
  %v35 = vrot.slane %v34, 1
  %v36 = vadd.f32 %v34, %v35
  %v37 = vmul.f32 %v36, 0.001953125
  %v38 = vmul.f32 %v28, %v28
  %v39 = vsub.f32 %v37, %v38
  %v40 = vmax.f32 %v39, 0.0
  %v41 = vadd.f32 %v40, 1e-05
  %v42 = vrsqrt.pop %v41
  %v43 = vld [vmem:[%s2] sm:$0x1]
  %v44 = vmul.f32 %v43, %v42
  %vm45 = vcmask 57344
  %46 = vst.msk [vmem:[%s4] sm:$0x1] %vm45, %v44
  %v47 = vld [vmem:[%s3] sm:$0x1]
  %v48 = vmul.f32 %v28, %v44
  %v49 = vsub.f32 %v47, %v48
  %50 = vst.msk [vmem:[%s5] sm:$0x1] %vm45, %v49
  // Predicated region
  $region18: #{a_call__.4} parent=0 // pred_check
    _
  $region19: #{a_call__.4} parent=0 // pred_check_branch
    %52 = sbr.rel (0) target = $region21
  $region20: #{a_call__.4} parent=0 // pred_region
    _
  $region21: #{a_call__.4} parent=0 // pred_fallthru
    _
  // Predicated region
  $region22: #{a_call__.4} parent=0 // pred_check
    _
  $region23: #{a_call__.4} parent=0 // pred_check_branch
    %54 = sbr.rel (0) target = $region25
  $region24: #{a_call__.4} parent=0 // pred_region
    _
  $region25: #{a_call__.4} parent=0 // pred_fallthru
    _
  // Predicated region
  $region26: #{a_call__.4} parent=0 // pred_check
    _
  $region27: #{a_call__.4} parent=0 // pred_check_branch
    %56 = sbr.rel (0) target = $region29
  $region28: #{a_call__.4} parent=0 // pred_region
    _
  $region29: #{a_call__.4} parent=0 // pred_fallthru
    _
  // Predicated region
  $region30: #{a_call__.4} parent=0 // pred_check
    _
  $region31: #{a_call__.4} parent=0 // pred_check_branch
    %58 = sbr.rel (0) target = $region33
  $region32: #{a_call__.4} parent=0 // pred_region
    _
  $region33: #{a_call__.4} parent=0 // pred_fallthru
    _

// kernel: a_call__.5
$region0: #{a_call__.5}
  #allocation0 [shape = 'u32[]', space=smem, size = 0x4, offset = 0x4, fixed_abs, tag = 'smem constant byte address 0x4 - core index']
  #allocation1 [shape = 'u32[144,128]{1,0:T(1,128)}', space=vmem, size = 0x12000, scoped, tag = 'internal scratch']
  #allocation2 [shape = 'f32[20,20,8]{2,1,0:T(8,128)}', space=vmem, size = 0x3c000, scoped, tag = 'scratch operand']
  %s0 = inlined_call_operand.vmem [shape: bf16[2,16,16,8], index: 0, kind: input, shape index: {}]
  %s1 = inlined_call_operand.vmem [shape: bf16[2,16,16,8], index: 1, kind: input, shape index: {}]
  %s2 = inlined_call_operand.vmem [shape: f32[1,8], index: 2, kind: input, shape index: {}]
  %s3 = inlined_call_operand.vmem [shape: f32[1,8], index: 3, kind: input, shape index: {}]
  %s4 = inlined_call_operand.vmem [shape: bf16[9,8,8], index: 4, kind: input, shape index: {}]
  %s5 = inlined_call_operand.vmem [shape: f32[2,16,16,8], index: 5, kind: output, shape index: {}]
  %s6 = sld [smem:[#allocation0]]
  $region53: #{a_call__.5} parent=0
    _
  %s8 = ssub.s32 1, %s6
  %s9 = scalar_select 0, %s8, %s6
  loop: start=0, step=1, limit=4
  $region2: #{a_call__.5} parent=0 // loop_pre_header
    _
  $region3: #{a_call__.5} parent=0 // loop_header
    %s11 = sphi 0, %s15
    %p12 = scmp.ge.s32.totalorder %s11, 4
    %s21 = sphi 0, %s23
    %s24 = sphi 0, %s21
    %s25 = sphi 0, %s24
    %s41 = sphi 0, %s25
    %s47 = sphi 0, %s49
    %s50 = sphi 0, %s47
    %s51 = sphi 0, %s50
    %s67 = sphi 0, %s51
    %s71 = sphi 0, %s71
    %s73 = sphi 0, %s71
    %s74 = sphi 0, %s73
    %s88 = sphi 0, %s74
    %s92 = sphi 0, %s92
    %s94 = sphi 0, %s92
    %s95 = sphi 0, %s94
    %s109 = sphi 0, %s95
    %s113 = sphi 0, %s113
    %s115 = sphi 0, %s113
    %s116 = sphi 0, %s115
    %s130 = sphi 0, %s116
    %s136 = sphi 0, %s138
    %s139 = sphi 0, %s136
    %s140 = sphi 0, %s139
    %s156 = sphi 0, %s140
  $region4: #{a_call__.5} parent=0 // loop_header_branch
    %14 = sbr.rel (%p12) target = $region8
  $region5: #{a_call__.5} parent=0 // loop_body
    %s16 = ssub.s32 %s11, 1
    %s17 = ssub.s32 %s11, 2
    %s18 = sadd.s32 %s11, 1
    %s19 = ssub.s32 %s11, %s18
    %p20 = scmp.eq.s32.totalorder %s19, 0
    %s22 = sadd.s32 %s21, 1
    %s23 = scalar_select %p20, %s21, %s22
    %p26 = pneg %p20
    %p27 = scmp.eq.s32.totalorder %s11, 1
    %p28 = por %p26, %p27
    %p29 = scmp.ne.s32.totalorder %s21, %s24
    %p30 = scmp.eq.s32.totalorder %s11, 0
    %p31 = por %p29, %p30
    %p32 = scmp.ne.s32.totalorder %s21, %s24
    %p33 = scmp.eq.s32.totalorder %s16, 1
    %p34 = por %p32, %p33
    %p35 = scmp.ne.s32.totalorder %s24, %s25
    %p36 = scmp.eq.s32.totalorder %s16, 0
    %p37 = por %p35, %p36
    %p38 = scmp.ne.s32.totalorder %s24, %s25
    %p39 = scmp.eq.s32.totalorder %s17, 1
    %p40 = por %p38, %p39
    %p42 = scmp.ne.s32.totalorder %s25, %s41
    %p43 = scmp.eq.s32.totalorder %s17, 0
    %p44 = por %p42, %p43
    %s45 = ssub.s32 %s11, %s18
    %p46 = scmp.eq.s32.totalorder %s45, 0
    %s48 = sadd.s32 %s47, 1
    %s49 = scalar_select %p46, %s47, %s48
    %p52 = pneg %p46
    %p53 = scmp.eq.s32.totalorder %s11, 1
    %p54 = por %p52, %p53
    %p55 = scmp.ne.s32.totalorder %s47, %s50
    %p56 = scmp.eq.s32.totalorder %s11, 0
    %p57 = por %p55, %p56
    %p58 = scmp.ne.s32.totalorder %s47, %s50
    %p59 = scmp.eq.s32.totalorder %s16, 1
    %p60 = por %p58, %p59
    %p61 = scmp.ne.s32.totalorder %s50, %s51
    %p62 = scmp.eq.s32.totalorder %s16, 0
    %p63 = por %p61, %p62
    %p64 = scmp.ne.s32.totalorder %s50, %s51
    %p65 = scmp.eq.s32.totalorder %s17, 1
    %p66 = por %p64, %p65
    %p68 = scmp.ne.s32.totalorder %s51, %s67
    %p69 = scmp.eq.s32.totalorder %s17, 0
    %p70 = por %p68, %p69
    %s72 = sadd.s32 %s71, 1
    %p75 = scmp.eq.s32.totalorder %s11, 1
    %p76 = scmp.ne.s32.totalorder %s71, %s73
    %p77 = scmp.eq.s32.totalorder %s11, 0
    %p78 = por %p76, %p77
    %p79 = scmp.ne.s32.totalorder %s71, %s73
    %p80 = scmp.eq.s32.totalorder %s16, 1
    %p81 = por %p79, %p80
    %p82 = scmp.ne.s32.totalorder %s73, %s74
    %p83 = scmp.eq.s32.totalorder %s16, 0
    %p84 = por %p82, %p83
    %p85 = scmp.ne.s32.totalorder %s73, %s74
    %p86 = scmp.eq.s32.totalorder %s17, 1
    %p87 = por %p85, %p86
    %p89 = scmp.ne.s32.totalorder %s74, %s88
    %p90 = scmp.eq.s32.totalorder %s17, 0
    %p91 = por %p89, %p90
    %s93 = sadd.s32 %s92, 1
    %p96 = scmp.eq.s32.totalorder %s11, 1
    %p97 = scmp.ne.s32.totalorder %s92, %s94
    %p98 = scmp.eq.s32.totalorder %s11, 0
    %p99 = por %p97, %p98
    %p100 = scmp.ne.s32.totalorder %s92, %s94
    %p101 = scmp.eq.s32.totalorder %s16, 1
    %p102 = por %p100, %p101
    %p103 = scmp.ne.s32.totalorder %s94, %s95
    %p104 = scmp.eq.s32.totalorder %s16, 0
    %p105 = por %p103, %p104
    %p106 = scmp.ne.s32.totalorder %s94, %s95
    %p107 = scmp.eq.s32.totalorder %s17, 1
    %p108 = por %p106, %p107
    %p110 = scmp.ne.s32.totalorder %s95, %s109
    %p111 = scmp.eq.s32.totalorder %s17, 0
    %p112 = por %p110, %p111
    %s114 = sadd.s32 %s113, 1
    %p117 = scmp.eq.s32.totalorder %s11, 1
    %p118 = scmp.ne.s32.totalorder %s113, %s115
    %p119 = scmp.eq.s32.totalorder %s11, 0
    %p120 = por %p118, %p119
    %p121 = scmp.ne.s32.totalorder %s113, %s115
    %p122 = scmp.eq.s32.totalorder %s16, 1
    %p123 = por %p121, %p122
    %p124 = scmp.ne.s32.totalorder %s115, %s116
    %p125 = scmp.eq.s32.totalorder %s16, 0
    %p126 = por %p124, %p125
    %p127 = scmp.ne.s32.totalorder %s115, %s116
    %p128 = scmp.eq.s32.totalorder %s17, 1
    %p129 = por %p127, %p128
    %p131 = scmp.ne.s32.totalorder %s116, %s130
    %p132 = scmp.eq.s32.totalorder %s17, 0
    %p133 = por %p131, %p132
    %s134 = ssub.s32 %s11, %s18
    %p135 = scmp.eq.s32.totalorder %s134, 0
    %s137 = sadd.s32 %s136, 1
    %s138 = scalar_select %p135, %s136, %s137
    %p141 = pneg %p135
    %p142 = scmp.eq.s32.totalorder %s11, 1
    %p143 = por %p141, %p142
    %p144 = scmp.ne.s32.totalorder %s136, %s139
    %p145 = scmp.eq.s32.totalorder %s11, 0
    %p146 = por %p144, %p145
    %p147 = scmp.ne.s32.totalorder %s136, %s139
    %p148 = scmp.eq.s32.totalorder %s16, 1
    %p149 = por %p147, %p148
    %p150 = scmp.ne.s32.totalorder %s139, %s140
    %p151 = scmp.eq.s32.totalorder %s16, 0
    %p152 = por %p150, %p151
    %p153 = scmp.ne.s32.totalorder %s139, %s140
    %p154 = scmp.eq.s32.totalorder %s17, 1
    %p155 = por %p153, %p154
    %p157 = scmp.ne.s32.totalorder %s140, %s156
    %p158 = scmp.eq.s32.totalorder %s17, 0
    %p159 = por %p157, %p158
    %p160 = scmp.le.s32.totalorder 1, %s11
    %p161 = scmp.lt.s32.totalorder %s11, 3
    %p162 = pnand %p160, %p161
    %p163 = pneg %p162
    // Predicated region
    $region9: #{a_call__.5} parent=5 // pred_check
      _
    $region10: #{a_call__.5} parent=5 // pred_check_branch
      %165 = sbr.rel (%p162) target = $region12
    $region11: #{a_call__.5} parent=5 // pred_region
      %s166 = ssub.s32 %s11, 1
      // Predicated region
      $region13: #{a_call__.5} parent=11 // pred_check
        %p167 = pneg %p84
      $region14: #{a_call__.5} parent=11 // pred_check_branch
        %169 = sbr.rel (%p167) target = $region16
      $region15: #{a_call__.5} parent=11 // pred_region
        _
      $region16: #{a_call__.5} parent=11 // pred_fallthru
        _
      // Predicated region
      $region17: #{a_call__.5} parent=11 // pred_check
        %p170 = pneg %p105
      $region18: #{a_call__.5} parent=11 // pred_check_branch
        %172 = sbr.rel (%p170) target = $region20
      $region19: #{a_call__.5} parent=11 // pred_region
        _
      $region20: #{a_call__.5} parent=11 // pred_fallthru
        _
      // Predicated region
      $region21: #{a_call__.5} parent=11 // pred_check
        %p173 = pneg %p126
      $region22: #{a_call__.5} parent=11 // pred_check_branch
        %175 = sbr.rel (%p173) target = $region24
      $region23: #{a_call__.5} parent=11 // pred_region
        _
      $region24: #{a_call__.5} parent=11 // pred_fallthru
        _
    $region12: #{a_call__.5} parent=5 // pred_fallthru
      _
    %p176 = scmp.lt.s32.totalorder %s11, 2
    // Predicated region
    $region25: #{a_call__.5} parent=5 // pred_check
      %p177 = pneg %p176
    $region26: #{a_call__.5} parent=5 // pred_check_branch
      %179 = sbr.rel (%p177) target = $region28
    $region27: #{a_call__.5} parent=5 // pred_region
      // Predicated region
      $region29: #{a_call__.5} parent=27 // pred_check
        %p180 = pneg %p31
      $region30: #{a_call__.5} parent=27 // pred_check_branch
        %182 = sbr.rel (%p180) target = $region32
      $region31: #{a_call__.5} parent=27 // pred_region
        %p183 = scmp.lt.s32.totalorder %s11, 1
        %s184 = scalar_select %p183, %s11, 1
        %s185 = smul.addr %s184, 32
        %s186 = smul.addr %s185, 4
        %s187 = scalar_lea.vmem %s0, %s186
      $region32: #{a_call__.5} parent=27 // pred_fallthru
        _
      // Predicated region
      $region33: #{a_call__.5} parent=27 // pred_check
        %p188 = pneg %p57
      $region34: #{a_call__.5} parent=27 // pred_check_branch
        %190 = sbr.rel (%p188) target = $region36
      $region35: #{a_call__.5} parent=27 // pred_region
        %p191 = scmp.lt.s32.totalorder %s11, 1
        %s192 = scalar_select %p191, %s11, 1
        %s193 = smul.addr %s192, 32
        %s194 = smul.addr %s193, 4
        %s195 = scalar_lea.vmem %s1, %s194
      $region36: #{a_call__.5} parent=27 // pred_fallthru
        _
    $region28: #{a_call__.5} parent=5 // pred_fallthru
      _
    %p196 = scmp.le.s32.totalorder 1, %s11
    %p197 = scmp.lt.s32.totalorder %s11, 3
    %p198 = pnand %p196, %p197
    %p199 = pneg %p198
    // Predicated region
    $region37: #{a_call__.5} parent=5 // pred_check
      _
    $region38: #{a_call__.5} parent=5 // pred_check_branch
      %201 = sbr.rel (%p198) target = $region40
    $region39: #{a_call__.5} parent=5 // pred_region
      %s202 = ssub.s32 %s11, 1
      %p203 = scmp.lt.s32.totalorder %s16, 1
      %s204 = scalar_select %p203, %s16, 1
      %s205 = smul.addr %s204, 32
      %s206 = smul.addr %s205, 4
      %s207 = scalar_lea.vmem %s0, %s206
      %p208 = pneg %p37
      %p209 = pneg %p34
      %p210 = scmp.lt.s32.totalorder %s16, 1
      %s211 = scalar_select %p210, %s16, 1
      %s212 = smul.addr %s211, 32
      %s213 = smul.addr %s212, 4
      %s214 = scalar_lea.vmem %s1, %s213
      %p215 = pneg %p63
      %p216 = pneg %p60
      %p217 = pneg %p84
      %p218 = pneg %p81
      %p219 = pneg %p105
      %p220 = pneg %p102
      %p221 = pneg %p126
      %p222 = pneg %p123
      %p223 = pneg %p152
      %p224 = pneg %p149
      %p225 = scmp.lt.s32.totalorder %s16, 1
      %s226 = scalar_select %p225, %s16, 1
      %s227 = smul.addr %s226, 32
      %s228 = smul.addr %s227, 8
      %s229 = scalar_lea.vmem %s5, %s228
      %p230 = scmp.lt.s32.totalorder %s16, 1
      %s231 = scalar_select %p230, %s16, 1
      %s232 = smul.addr %s231, 32
      %s233 = smul.addr %s232, 4
      %s234 = scalar_lea.vmem %s0, %s233
      %p235 = scmp.lt.s32.totalorder %s16, 1
      %s236 = scalar_select %p235, %s16, 1
      %s237 = smul.addr %s236, 32
      %s238 = smul.addr %s237, 4
      %s239 = scalar_lea.vmem %s1, %s238
      %p240 = scmp.lt.s32.totalorder %s16, 1
      %s241 = scalar_select %p240, %s16, 1
      %s242 = smul.addr %s241, 32
      %s243 = smul.addr %s242, 8
      %s244 = scalar_lea.vmem %s5, %s243
      %v246 = vld [vmem:[%s234] sm:$0xf]
      %v247 = vld [vmem:[%s234 + $0x4] sm:$0xf]
      %v248 = vld [vmem:[%s234 + $0x8] sm:$0xf]
      %v249 = vld [vmem:[%s234 + $0xc] sm:$0xf]
      %v250 = vld [vmem:[%s234 + $0x10] sm:$0xf]
      %v251 = vld [vmem:[%s234 + $0x14] sm:$0xf]
      %v252 = vld [vmem:[%s234 + $0x18] sm:$0xf]
      %v253 = vld [vmem:[%s234 + $0x1c] sm:$0xf]
      %v254 = vld [vmem:[%s234 + $0x20] sm:$0xf]
      %v255 = vld [vmem:[%s234 + $0x24] sm:$0xf]
      %v256 = vld [vmem:[%s234 + $0x28] sm:$0xf]
      %v257 = vld [vmem:[%s234 + $0x2c] sm:$0xf]
      %v258 = vld [vmem:[%s234 + $0x30] sm:$0xf]
      %v259 = vld [vmem:[%s234 + $0x34] sm:$0xf]
      %v260 = vld [vmem:[%s234 + $0x38] sm:$0xf]
      %v261 = vld [vmem:[%s234 + $0x3c] sm:$0xf]
      %v262 = vld [vmem:[%s234 + $0x40] sm:$0xf]
      %v263 = vld [vmem:[%s234 + $0x44] sm:$0xf]
      %v264 = vld [vmem:[%s234 + $0x48] sm:$0xf]
      %v265 = vld [vmem:[%s234 + $0x4c] sm:$0xf]
      %v266 = vld [vmem:[%s234 + $0x50] sm:$0xf]
      %v267 = vld [vmem:[%s234 + $0x54] sm:$0xf]
      %v268 = vld [vmem:[%s234 + $0x58] sm:$0xf]
      %v269 = vld [vmem:[%s234 + $0x5c] sm:$0xf]
      %v270 = vld [vmem:[%s234 + $0x60] sm:$0xf]
      %v271 = vld [vmem:[%s234 + $0x64] sm:$0xf]
      %v272 = vld [vmem:[%s234 + $0x68] sm:$0xf]
      %v273 = vld [vmem:[%s234 + $0x6c] sm:$0xf]
      %v274 = vld [vmem:[%s234 + $0x70] sm:$0xf]
      %v275 = vld [vmem:[%s234 + $0x74] sm:$0xf]
      %v276 = vld [vmem:[%s234 + $0x78] sm:$0xf]
      %v277 = vld [vmem:[%s234 + $0x7c] sm:$0xf]
      %v278 = vunpack.c.l.bf16 %v246
      %v279 = vunpack.c.l.bf16 %v247
      %v280 = vunpack.c.l.bf16 %v248
      %v281 = vunpack.c.l.bf16 %v249
      %v282 = vunpack.c.l.bf16 %v250
      %v283 = vunpack.c.l.bf16 %v251
      %v284 = vunpack.c.l.bf16 %v252
      %v285 = vunpack.c.l.bf16 %v253
      %v286 = vunpack.c.l.bf16 %v254
      %v287 = vunpack.c.l.bf16 %v255
      %v288 = vunpack.c.l.bf16 %v256
      %v289 = vunpack.c.l.bf16 %v257
      %v290 = vunpack.c.l.bf16 %v258
      %v291 = vunpack.c.l.bf16 %v259
      %v292 = vunpack.c.l.bf16 %v260
      %v293 = vunpack.c.l.bf16 %v261
      %v294 = vunpack.c.l.bf16 %v262
      %v295 = vunpack.c.l.bf16 %v263
      %v296 = vunpack.c.l.bf16 %v264
      %v297 = vunpack.c.l.bf16 %v265
      %v298 = vunpack.c.l.bf16 %v266
      %v299 = vunpack.c.l.bf16 %v267
      %v300 = vunpack.c.l.bf16 %v268
      %v301 = vunpack.c.l.bf16 %v269
      %v302 = vunpack.c.l.bf16 %v270
      %v303 = vunpack.c.l.bf16 %v271
      %v304 = vunpack.c.l.bf16 %v272
      %v305 = vunpack.c.l.bf16 %v273
      %v306 = vunpack.c.l.bf16 %v274
      %v307 = vunpack.c.l.bf16 %v275
      %v308 = vunpack.c.l.bf16 %v276
      %v309 = vunpack.c.l.bf16 %v277
      %v310 = vld [vmem:[%s2] sm:$0x1]
      %v312 = vlaneseq
      %v313 = vshrl.u32 %v312, 7
      %v314 = vsub.s32 0, %v313
      %v315 = vrot.slane %v310, %v314
      %v317 = vmul.f32 %v278, %v315
      %v318 = vmul.f32 %v279, %v315
      %v319 = vmul.f32 %v280, %v315
      %v320 = vmul.f32 %v281, %v315
      %v321 = vmul.f32 %v282, %v315
      %v322 = vmul.f32 %v283, %v315
      %v323 = vmul.f32 %v284, %v315
      %v324 = vmul.f32 %v285, %v315
      %v325 = vmul.f32 %v286, %v315
      %v326 = vmul.f32 %v287, %v315
      %v327 = vmul.f32 %v288, %v315
      %v328 = vmul.f32 %v289, %v315
      %v329 = vmul.f32 %v290, %v315
      %v330 = vmul.f32 %v291, %v315
      %v331 = vmul.f32 %v292, %v315
      %v332 = vmul.f32 %v293, %v315
      %v333 = vmul.f32 %v294, %v315
      %v334 = vmul.f32 %v295, %v315
      %v335 = vmul.f32 %v296, %v315
      %v336 = vmul.f32 %v297, %v315
      %v337 = vmul.f32 %v298, %v315
      %v338 = vmul.f32 %v299, %v315
      %v339 = vmul.f32 %v300, %v315
      %v340 = vmul.f32 %v301, %v315
      %v341 = vmul.f32 %v302, %v315
      %v342 = vmul.f32 %v303, %v315
      %v343 = vmul.f32 %v304, %v315
      %v344 = vmul.f32 %v305, %v315
      %v345 = vmul.f32 %v306, %v315
      %v346 = vmul.f32 %v307, %v315
      %v347 = vmul.f32 %v308, %v315
      %v348 = vmul.f32 %v309, %v315
      %v349 = vld [vmem:[%s3] sm:$0x1]
      %v351 = vlaneseq
      %v352 = vshrl.u32 %v351, 7
      %v353 = vsub.s32 0, %v352
      %v354 = vrot.slane %v349, %v353
      %v356 = vadd.f32 %v317, %v354
      %v357 = vadd.f32 %v318, %v354
      %v358 = vadd.f32 %v319, %v354
      %v359 = vadd.f32 %v320, %v354
      %v360 = vadd.f32 %v321, %v354
      %v361 = vadd.f32 %v322, %v354
      %v362 = vadd.f32 %v323, %v354
      %v363 = vadd.f32 %v324, %v354
      %v364 = vadd.f32 %v325, %v354
      %v365 = vadd.f32 %v326, %v354
      %v366 = vadd.f32 %v327, %v354
      %v367 = vadd.f32 %v328, %v354
      %v368 = vadd.f32 %v329, %v354
      %v369 = vadd.f32 %v330, %v354
      %v370 = vadd.f32 %v331, %v354
      %v371 = vadd.f32 %v332, %v354
      %v372 = vadd.f32 %v333, %v354
      %v373 = vadd.f32 %v334, %v354
      %v374 = vadd.f32 %v335, %v354
      %v375 = vadd.f32 %v336, %v354
      %v376 = vadd.f32 %v337, %v354
      %v377 = vadd.f32 %v338, %v354
      %v378 = vadd.f32 %v339, %v354
      %v379 = vadd.f32 %v340, %v354
      %v380 = vadd.f32 %v341, %v354
      %v381 = vadd.f32 %v342, %v354
      %v382 = vadd.f32 %v343, %v354
      %v383 = vadd.f32 %v344, %v354
      %v384 = vadd.f32 %v345, %v354
      %v385 = vadd.f32 %v346, %v354
      %v386 = vadd.f32 %v347, %v354
      %v387 = vadd.f32 %v348, %v354
      %v388 = vmax.f32 %v356, 0.0
      %v389 = vmax.f32 %v357, 0.0
      %v390 = vmax.f32 %v358, 0.0
      %v391 = vmax.f32 %v359, 0.0
      %v392 = vmax.f32 %v360, 0.0
      %v393 = vmax.f32 %v361, 0.0
      %v394 = vmax.f32 %v362, 0.0
      %v395 = vmax.f32 %v363, 0.0
      %v396 = vmax.f32 %v364, 0.0
      %v397 = vmax.f32 %v365, 0.0
      %v398 = vmax.f32 %v366, 0.0
      %v399 = vmax.f32 %v367, 0.0
      %v400 = vmax.f32 %v368, 0.0
      %v401 = vmax.f32 %v369, 0.0
      %v402 = vmax.f32 %v370, 0.0
      %v403 = vmax.f32 %v371, 0.0
      %v404 = vmax.f32 %v372, 0.0
      %v405 = vmax.f32 %v373, 0.0
      %v406 = vmax.f32 %v374, 0.0
      %v407 = vmax.f32 %v375, 0.0
      %v408 = vmax.f32 %v376, 0.0
      %v409 = vmax.f32 %v377, 0.0
      %v410 = vmax.f32 %v378, 0.0
      %v411 = vmax.f32 %v379, 0.0
      %v412 = vmax.f32 %v380, 0.0
      %v413 = vmax.f32 %v381, 0.0
      %v414 = vmax.f32 %v382, 0.0
      %v415 = vmax.f32 %v383, 0.0
      %v416 = vmax.f32 %v384, 0.0
      %v417 = vmax.f32 %v385, 0.0
      %v418 = vmax.f32 %v386, 0.0
      %v419 = vmax.f32 %v387, 0.0
      %vm420 = vcmask 64512
      %421 = vst.msk [vmem:[#allocation2] sm:$0xff] %vm420, 0.0
      %422 = vst.msk [vmem:[#allocation2 + $0x8] sm:$0xff] %vm420, 0.0
      %vm423 = vcmask 60416
      %424 = vst.msk [vmem:[#allocation2 + $0x10] sm:$0xf] %vm423, 0.0
      %425 = vst.msk [vmem:[#allocation2 + $0x18] sm:$0xff] %vm420, 0.0
      %426 = vst.msk [vmem:[#allocation2 + $0x20] sm:$0xff] %vm420, 0.0
      %427 = vst.msk [vmem:[#allocation2 + $0x28] sm:$0xf] %vm423, 0.0
      %428 = vst.msk [vmem:[#allocation2 + $0x30] sm:$0xff] %vm420, 0.0
      %429 = vst.msk [vmem:[#allocation2 + $0x38] sm:$0xff] %vm420, 0.0
      %430 = vst.msk [vmem:[#allocation2 + $0x40] sm:$0xf] %vm423, 0.0
      %431 = vst.msk [vmem:[#allocation2 + $0x48] sm:$0xff] %vm420, 0.0
      %432 = vst.msk [vmem:[#allocation2 + $0x50] sm:$0xff] %vm420, 0.0
      %433 = vst.msk [vmem:[#allocation2 + $0x58] sm:$0xf] %vm423, 0.0
      %434 = vst.msk [vmem:[#allocation2 + $0x60] sm:$0xff] %vm420, 0.0
      %435 = vst.msk [vmem:[#allocation2 + $0x68] sm:$0xff] %vm420, 0.0
      %436 = vst.msk [vmem:[#allocation2 + $0x70] sm:$0xf] %vm423, 0.0
      %437 = vst.msk [vmem:[#allocation2 + $0x78] sm:$0xff] %vm420, 0.0
      %438 = vst.msk [vmem:[#allocation2 + $0x80] sm:$0xff] %vm420, 0.0
      %439 = vst.msk [vmem:[#allocation2 + $0x88] sm:$0xf] %vm423, 0.0
      %440 = vst.msk [vmem:[#allocation2 + $0x90] sm:$0xff] %vm420, 0.0
      %441 = vst.msk [vmem:[#allocation2 + $0x98] sm:$0xff] %vm420, 0.0
      %442 = vst.msk [vmem:[#allocation2 + $0xa0] sm:$0xf] %vm423, 0.0
      %443 = vst.msk [vmem:[#allocation2 + $0xa8] sm:$0xff] %vm420, 0.0
      %444 = vst.msk [vmem:[#allocation2 + $0xb0] sm:$0xff] %vm420, 0.0
      %445 = vst.msk [vmem:[#allocation2 + $0xb8] sm:$0xf] %vm423, 0.0
      %446 = vst.msk [vmem:[#allocation2 + $0xc0] sm:$0xff] %vm420, 0.0
      %447 = vst.msk [vmem:[#allocation2 + $0xc8] sm:$0xff] %vm420, 0.0
      %448 = vst.msk [vmem:[#allocation2 + $0xd0] sm:$0xf] %vm423, 0.0
      %449 = vst.msk [vmem:[#allocation2 + $0xd8] sm:$0xff] %vm420, 0.0
      %450 = vst.msk [vmem:[#allocation2 + $0xe0] sm:$0xff] %vm420, 0.0
      %451 = vst.msk [vmem:[#allocation2 + $0xe8] sm:$0xf] %vm423, 0.0
      %452 = vst.msk [vmem:[#allocation2 + $0xf0] sm:$0xff] %vm420, 0.0
      %453 = vst.msk [vmem:[#allocation2 + $0xf8] sm:$0xff] %vm420, 0.0
      %454 = vst.msk [vmem:[#allocation2 + $0x100] sm:$0xf] %vm423, 0.0
      %455 = vst.msk [vmem:[#allocation2 + $0x108] sm:$0xff] %vm420, 0.0
      %456 = vst.msk [vmem:[#allocation2 + $0x110] sm:$0xff] %vm420, 0.0
      %457 = vst.msk [vmem:[#allocation2 + $0x118] sm:$0xf] %vm423, 0.0
      %458 = vst.msk [vmem:[#allocation2 + $0x120] sm:$0xff] %vm420, 0.0
      %459 = vst.msk [vmem:[#allocation2 + $0x128] sm:$0xff] %vm420, 0.0
      %460 = vst.msk [vmem:[#allocation2 + $0x130] sm:$0xf] %vm423, 0.0
      %461 = vst.msk [vmem:[#allocation2 + $0x138] sm:$0xff] %vm420, 0.0
      %462 = vst.msk [vmem:[#allocation2 + $0x140] sm:$0xff] %vm420, 0.0
      %463 = vst.msk [vmem:[#allocation2 + $0x148] sm:$0xf] %vm423, 0.0
      %464 = vst.msk [vmem:[#allocation2 + $0x150] sm:$0xff] %vm420, 0.0
      %465 = vst.msk [vmem:[#allocation2 + $0x158] sm:$0xff] %vm420, 0.0
      %466 = vst.msk [vmem:[#allocation2 + $0x160] sm:$0xf] %vm423, 0.0
      %467 = vst.msk [vmem:[#allocation2 + $0x168] sm:$0xff] %vm420, 0.0
      %468 = vst.msk [vmem:[#allocation2 + $0x170] sm:$0xff] %vm420, 0.0
      %469 = vst.msk [vmem:[#allocation2 + $0x178] sm:$0xf] %vm423, 0.0
      %470 = vst.msk [vmem:[#allocation2 + $0x180] sm:$0xff] %vm420, 0.0
      %471 = vst.msk [vmem:[#allocation2 + $0x188] sm:$0xff] %vm420, 0.0
      %472 = vst.msk [vmem:[#allocation2 + $0x190] sm:$0xf] %vm423, 0.0
      %473 = vst.msk [vmem:[#allocation2 + $0x198] sm:$0xff] %vm420, 0.0
      %474 = vst.msk [vmem:[#allocation2 + $0x1a0] sm:$0xff] %vm420, 0.0
      %475 = vst.msk [vmem:[#allocation2 + $0x1a8] sm:$0xf] %vm423, 0.0
      %476 = vst.msk [vmem:[#allocation2 + $0x1b0] sm:$0xff] %vm420, 0.0
      %477 = vst.msk [vmem:[#allocation2 + $0x1b8] sm:$0xff] %vm420, 0.0
      %478 = vst.msk [vmem:[#allocation2 + $0x1c0] sm:$0xf] %vm423, 0.0
      %479 = vst.msk [vmem:[#allocation2 + $0x1c8] sm:$0xff] %vm420, 0.0
      %480 = vst.msk [vmem:[#allocation2 + $0x1d0] sm:$0xff] %vm420, 0.0
      %481 = vst.msk [vmem:[#allocation2 + $0x1d8] sm:$0xf] %vm423, 0.0
      %s482 = scalar_lea.vmem [#allocation2], 48
      %483 = vst.msk [vmem:[%s482 + $0x2] sm:$0xff] %vm420, %v388
      %484 = vst.msk [vmem:[%s482 + $0xa] sm:$0xff] %vm420, %v389
      %485 = vst.msk [vmem:[%s482 + $0x1a] sm:$0xff] %vm420, %v390
      %486 = vst.msk [vmem:[%s482 + $0x22] sm:$0xff] %vm420, %v391
      %487 = vst.msk [vmem:[%s482 + $0x32] sm:$0xff] %vm420, %v392
      %488 = vst.msk [vmem:[%s482 + $0x3a] sm:$0xff] %vm420, %v393
      %489 = vst.msk [vmem:[%s482 + $0x4a] sm:$0xff] %vm420, %v394
      %490 = vst.msk [vmem:[%s482 + $0x52] sm:$0xff] %vm420, %v395
      %491 = vst.msk [vmem:[%s482 + $0x62] sm:$0xff] %vm420, %v396
      %492 = vst.msk [vmem:[%s482 + $0x6a] sm:$0xff] %vm420, %v397
      %493 = vst.msk [vmem:[%s482 + $0x7a] sm:$0xff] %vm420, %v398
      %494 = vst.msk [vmem:[%s482 + $0x82] sm:$0xff] %vm420, %v399
      %495 = vst.msk [vmem:[%s482 + $0x92] sm:$0xff] %vm420, %v400
      %496 = vst.msk [vmem:[%s482 + $0x9a] sm:$0xff] %vm420, %v401
      %497 = vst.msk [vmem:[%s482 + $0xaa] sm:$0xff] %vm420, %v402
      %498 = vst.msk [vmem:[%s482 + $0xb2] sm:$0xff] %vm420, %v403
      %499 = vst.msk [vmem:[%s482 + $0xc2] sm:$0xff] %vm420, %v404
      %500 = vst.msk [vmem:[%s482 + $0xca] sm:$0xff] %vm420, %v405
      %501 = vst.msk [vmem:[%s482 + $0xda] sm:$0xff] %vm420, %v406
      %502 = vst.msk [vmem:[%s482 + $0xe2] sm:$0xff] %vm420, %v407
      %503 = vst.msk [vmem:[%s482 + $0xf2] sm:$0xff] %vm420, %v408
      %504 = vst.msk [vmem:[%s482 + $0xfa] sm:$0xff] %vm420, %v409
      %505 = vst.msk [vmem:[%s482 + $0x10a] sm:$0xff] %vm420, %v410
      %506 = vst.msk [vmem:[%s482 + $0x112] sm:$0xff] %vm420, %v411
      %507 = vst.msk [vmem:[%s482 + $0x122] sm:$0xff] %vm420, %v412
      %508 = vst.msk [vmem:[%s482 + $0x12a] sm:$0xff] %vm420, %v413
      %509 = vst.msk [vmem:[%s482 + $0x13a] sm:$0xff] %vm420, %v414
      %510 = vst.msk [vmem:[%s482 + $0x142] sm:$0xff] %vm420, %v415
      %511 = vst.msk [vmem:[%s482 + $0x152] sm:$0xff] %vm420, %v416
      %512 = vst.msk [vmem:[%s482 + $0x15a] sm:$0xff] %vm420, %v417
      %513 = vst.msk [vmem:[%s482 + $0x16a] sm:$0xff] %vm420, %v418
      %514 = vst.msk [vmem:[%s482 + $0x172] sm:$0xff] %vm420, %v419
      %v515 = vld [vmem:[#allocation2] sm:$0xff]
      %v516 = vld [vmem:[#allocation2 + $0x8] sm:$0xff]
      %v517 = vld [vmem:[#allocation2 + $0x18] sm:$0xff]
      %v518 = vld [vmem:[#allocation2 + $0x20] sm:$0xff]
      %v519 = vld [vmem:[#allocation2 + $0x30] sm:$0xff]
      %v520 = vld [vmem:[#allocation2 + $0x38] sm:$0xff]
      %v521 = vld [vmem:[#allocation2 + $0x48] sm:$0xff]
      %v522 = vld [vmem:[#allocation2 + $0x50] sm:$0xff]
      %v523 = vld [vmem:[#allocation2 + $0x60] sm:$0xff]
      %v524 = vld [vmem:[#allocation2 + $0x68] sm:$0xff]
      %v525 = vld [vmem:[#allocation2 + $0x78] sm:$0xff]
      %v526 = vld [vmem:[#allocation2 + $0x80] sm:$0xff]
      %v527 = vld [vmem:[#allocation2 + $0x90] sm:$0xff]
      %v528 = vld [vmem:[#allocation2 + $0x98] sm:$0xff]
      %v529 = vld [vmem:[#allocation2 + $0xa8] sm:$0xff]
      %v530 = vld [vmem:[#allocation2 + $0xb0] sm:$0xff]
      %v531 = vld [vmem:[#allocation2 + $0xc0] sm:$0xff]
      %v532 = vld [vmem:[#allocation2 + $0xc8] sm:$0xff]
      %v533 = vld [vmem:[#allocation2 + $0xd8] sm:$0xff]
      %v534 = vld [vmem:[#allocation2 + $0xe0] sm:$0xff]
      %v535 = vld [vmem:[#allocation2 + $0xf0] sm:$0xff]
      %v536 = vld [vmem:[#allocation2 + $0xf8] sm:$0xff]
      %v537 = vld [vmem:[#allocation2 + $0x108] sm:$0xff]
      %v538 = vld [vmem:[#allocation2 + $0x110] sm:$0xff]
      %v539 = vld [vmem:[#allocation2 + $0x120] sm:$0xff]
      %v540 = vld [vmem:[#allocation2 + $0x128] sm:$0xff]
      %v541 = vld [vmem:[#allocation2 + $0x138] sm:$0xff]
      %v542 = vld [vmem:[#allocation2 + $0x140] sm:$0xff]
      %v543 = vld [vmem:[#allocation2 + $0x150] sm:$0xff]
      %v544 = vld [vmem:[#allocation2 + $0x158] sm:$0xff]
      %v545 = vld [vmem:[#allocation2 + $0x168] sm:$0xff]
      %v546 = vld [vmem:[#allocation2 + $0x170] sm:$0xff]
      %v547 = vpack.c.bf16 %v516, %v515
      %v548 = vpack.c.bf16 %v518, %v517
      %v549 = vpack.c.bf16 %v520, %v519
      %v550 = vpack.c.bf16 %v522, %v521
      %v551 = vpack.c.bf16 %v524, %v523
      %v552 = vpack.c.bf16 %v526, %v525
      %v553 = vpack.c.bf16 %v528, %v527
      %v554 = vpack.c.bf16 %v530, %v529
      %v555 = vpack.c.bf16 %v532, %v531
      %v556 = vpack.c.bf16 %v534, %v533
      %v557 = vpack.c.bf16 %v536, %v535
      %v558 = vpack.c.bf16 %v538, %v537
      %v559 = vpack.c.bf16 %v540, %v539
      %v560 = vpack.c.bf16 %v542, %v541
      %v561 = vpack.c.bf16 %v544, %v543
      %v562 = vpack.c.bf16 %v546, %v545
      %v563 = vld [vmem:[%s4] sm:$0xf]
      %v564 = vld [vmem:[#allocation2 + $0x2] sm:$0xff]
      %v565 = vld [vmem:[#allocation2 + $0xa] sm:$0xff]
      %v566 = vld [vmem:[#allocation2 + $0x1a] sm:$0xff]
      %v567 = vld [vmem:[#allocation2 + $0x22] sm:$0xff]
      %v568 = vld [vmem:[#allocation2 + $0x32] sm:$0xff]
      %v569 = vld [vmem:[#allocation2 + $0x3a] sm:$0xff]
      %v570 = vld [vmem:[#allocation2 + $0x4a] sm:$0xff]
      %v571 = vld [vmem:[#allocation2 + $0x52] sm:$0xff]
      %v572 = vld [vmem:[#allocation2 + $0x62] sm:$0xff]
      %v573 = vld [vmem:[#allocation2 + $0x6a] sm:$0xff]
      %v574 = vld [vmem:[#allocation2 + $0x7a] sm:$0xff]
      %v575 = vld [vmem:[#allocation2 + $0x82] sm:$0xff]
      %v576 = vld [vmem:[#allocation2 + $0x92] sm:$0xff]
      %v577 = vld [vmem:[#allocation2 + $0x9a] sm:$0xff]
      %v578 = vld [vmem:[#allocation2 + $0xaa] sm:$0xff]
      %v579 = vld [vmem:[#allocation2 + $0xb2] sm:$0xff]
      %v580 = vld [vmem:[#allocation2 + $0xc2] sm:$0xff]
      %v581 = vld [vmem:[#allocation2 + $0xca] sm:$0xff]
      %v582 = vld [vmem:[#allocation2 + $0xda] sm:$0xff]
      %v583 = vld [vmem:[#allocation2 + $0xe2] sm:$0xff]
      %v584 = vld [vmem:[#allocation2 + $0xf2] sm:$0xff]
      %v585 = vld [vmem:[#allocation2 + $0xfa] sm:$0xff]
      %v586 = vld [vmem:[#allocation2 + $0x10a] sm:$0xff]
      %v587 = vld [vmem:[#allocation2 + $0x112] sm:$0xff]
      %v588 = vld [vmem:[#allocation2 + $0x122] sm:$0xff]
      %v589 = vld [vmem:[#allocation2 + $0x12a] sm:$0xff]
      %v590 = vld [vmem:[#allocation2 + $0x13a] sm:$0xff]
      %v591 = vld [vmem:[#allocation2 + $0x142] sm:$0xff]
      %v592 = vld [vmem:[#allocation2 + $0x152] sm:$0xff]
      %v593 = vld [vmem:[#allocation2 + $0x15a] sm:$0xff]
      %v594 = vld [vmem:[#allocation2 + $0x16a] sm:$0xff]
      %v595 = vld [vmem:[#allocation2 + $0x172] sm:$0xff]
      %v596 = vpack.c.bf16 %v565, %v564
      %v597 = vpack.c.bf16 %v567, %v566
      %v598 = vpack.c.bf16 %v569, %v568
      %v599 = vpack.c.bf16 %v571, %v570
      %v600 = vpack.c.bf16 %v573, %v572
      %v601 = vpack.c.bf16 %v575, %v574
      %v602 = vpack.c.bf16 %v577, %v576
      %v603 = vpack.c.bf16 %v579, %v578
      %v604 = vpack.c.bf16 %v581, %v580
      %v605 = vpack.c.bf16 %v583, %v582
      %v606 = vpack.c.bf16 %v585, %v584
      %v607 = vpack.c.bf16 %v587, %v586
      %v608 = vpack.c.bf16 %v589, %v588
      %v609 = vpack.c.bf16 %v591, %v590
      %v610 = vpack.c.bf16 %v593, %v592
      %v611 = vpack.c.bf16 %v595, %v594
      %s612 = scalar_lea.vmem %s4, 4
      %v613 = vld [vmem:[%s612] sm:$0xf]
      %v615 = vsel %vm420, %v596, 0
      %v618 = vsel %vm420, %v597, 0
      %v621 = vsel %vm420, %v598, 0
      %v624 = vsel %vm420, %v599, 0
      %v627 = vsel %vm420, %v600, 0
      %v630 = vsel %vm420, %v601, 0
      %v633 = vsel %vm420, %v602, 0
      %v636 = vsel %vm420, %v603, 0
      %v639 = vsel %vm420, %v604, 0
      %v642 = vsel %vm420, %v605, 0
      %v645 = vsel %vm420, %v606, 0
      %v648 = vsel %vm420, %v607, 0
      %v651 = vsel %vm420, %v608, 0
      %v654 = vsel %vm420, %v609, 0
      %v657 = vsel %vm420, %v610, 0
      %v660 = vsel %vm420, %v611, 0
      %vm662 = vcmask 1043456
      %v664 = vsel %vm662, %v613, 0
      %666 = vmatprep.subr.bf16.mxu0 0
      %667 = vmatpush1.bf16.msra.mxu0 %v664
      %668 = vmatprep.subr.bf16.mxu0 0
      %669 = vmatpush1.bf16.msra.mxu0 0
      %670 = vmatprep.subr.bf16.mxu0 0
      %671 = vmatpush1.bf16.msra.mxu0 0
      %672 = vmatprep.subr.bf16.mxu0 0
      %673 = vmatpush1.bf16.msra.mxu0 0
      %674 = vmatprep.subr.bf16.mxu0 0
      %675 = vmatpush1.bf16.msra.mxu0 0
      %676 = vmatprep.subr.bf16.mxu0 0
      %677 = vmatpush1.bf16.msra.mxu0 0
      %678 = vmatprep.subr.bf16.mxu0 0
      %679 = vmatpush1.bf16.msra.mxu0 0
      %680 = vmatprep.subr.bf16.mxu0 0
      %681 = vmatpush1.bf16.msra.mxu0 0
      %682 = vmatprep.subr.bf16.mxu0 0
      %683 = vmatpush1.bf16.msra.mxu0 0
      %684 = vmatprep.subr.bf16.mxu0 0
      %685 = vmatpush1.bf16.msra.mxu0 0
      %686 = vmatprep.subr.bf16.mxu0 0
      %687 = vmatpush1.bf16.msra.mxu0 0
      %688 = vmatprep.subr.bf16.mxu0 0
      %689 = vmatpush1.bf16.msra.mxu0 0
      %690 = vmatprep.subr.bf16.mxu0 0
      %691 = vmatpush1.bf16.msra.mxu0 0
      %692 = vmatprep.subr.bf16.mxu0 0
      %693 = vmatpush1.bf16.msra.mxu0 0
      %694 = vmatprep.subr.bf16.mxu0 0
      %695 = vmatpush1.bf16.msra.mxu0 0
      %696 = vmatprep.subr.bf16.mxu0 0
      %697 = vmatpush1.bf16.msra.mxu0 0
      %698 = vmatprep.mubr.bf16.mxu0 0
      %699 = vmatmul.mubr.bf16.gmra.mrb[0].mxu0 %v615
      %v700 = vpop.f32.mrb[0].mxu0
      %v701 = vadd.f32 0.0, %v700
      %v702 = vpop.f32.mrb[0].mxu0
      %v703 = vpop.f32.mrb[0].mxu0
      %v704 = vadd.f32 0.0, %v703
      %v705 = vpop.f32.mrb[0].mxu0
      %706 = vmatprep.mubr.bf16.mxu0 0
      %707 = vmatmul.mubr.bf16.gmra.mrb[0].mxu0 %v618
      %v708 = vpop.f32.mrb[0].mxu0
      %v709 = vadd.f32 0.0, %v708
      %v710 = vpop.f32.mrb[0].mxu0
      %v711 = vpop.f32.mrb[0].mxu0
      %v712 = vadd.f32 0.0, %v711
      %v713 = vpop.f32.mrb[0].mxu0
      %714 = vmatprep.mubr.bf16.mxu0 0
      %715 = vmatmul.mubr.bf16.gmra.mrb[0].mxu0 %v621
      %v716 = vpop.f32.mrb[0].mxu0
      %v717 = vadd.f32 0.0, %v716
      %v718 = vpop.f32.mrb[0].mxu0
      %v719 = vpop.f32.mrb[0].mxu0
      %v720 = vadd.f32 0.0, %v719
      %v721 = vpop.f32.mrb[0].mxu0
      %722 = vmatprep.mubr.bf16.mxu0 0
      %723 = vmatmul.mubr.bf16.gmra.mrb[0].mxu0 %v624
      %v724 = vpop.f32.mrb[0].mxu0
      %v725 = vadd.f32 0.0, %v724
      %v726 = vpop.f32.mrb[0].mxu0
      %v727 = vpop.f32.mrb[0].mxu0
      %v728 = vadd.f32 0.0, %v727
      %v729 = vpop.f32.mrb[0].mxu0
      %730 = vmatprep.mubr.bf16.mxu0 0
      %731 = vmatmul.mubr.bf16.gmra.mrb[0].mxu0 %v627
      %v732 = vpop.f32.mrb[0].mxu0
      %v733 = vadd.f32 0.0, %v732
      %v734 = vpop.f32.mrb[0].mxu0
      %v735 = vpop.f32.mrb[0].mxu0
      %v736 = vadd.f32 0.0, %v735
      %v737 = vpop.f32.mrb[0].mxu0
      %738 = vmatprep.mubr.bf16.mxu0 0
      %739 = vmatmul.mubr.bf16.gmra.mrb[0].mxu0 %v630
      %v740 = vpop.f32.mrb[0].mxu0
      %v741 = vadd.f32 0.0, %v740
      %v742 = vpop.f32.mrb[0].mxu0
      %v743 = vpop.f32.mrb[0].mxu0
      %v744 = vadd.f32 0.0, %v743
      %v745 = vpop.f32.mrb[0].mxu0
      %746 = vmatprep.mubr.bf16.mxu0 0
      %747 = vmatmul.mubr.bf16.gmra.mrb[0].mxu0 %v633
      %v748 = vpop.f32.mrb[0].mxu0
      %v749 = vadd.f32 0.0, %v748
      %v750 = vpop.f32.mrb[0].mxu0
      %v751 = vpop.f32.mrb[0].mxu0
      %v752 = vadd.f32 0.0, %v751
      %v753 = vpop.f32.mrb[0].mxu0
      %754 = vmatprep.mubr.bf16.mxu0 0
      %755 = vmatmul.mubr.bf16.gmra.mrb[0].mxu0 %v636
      %v756 = vpop.f32.mrb[0].mxu0
      %v757 = vadd.f32 0.0, %v756
      %v758 = vpop.f32.mrb[0].mxu0
      %v759 = vpop.f32.mrb[0].mxu0
      %v760 = vadd.f32 0.0, %v759
      %v761 = vpop.f32.mrb[0].mxu0
      %762 = vmatprep.mubr.bf16.mxu0 0
      %763 = vmatmul.mubr.bf16.gmra.mrb[0].mxu0 %v639
      %v764 = vpop.f32.mrb[0].mxu0
      %v765 = vadd.f32 0.0, %v764
      %v766 = vpop.f32.mrb[0].mxu0
      %v767 = vpop.f32.mrb[0].mxu0
      %v768 = vadd.f32 0.0, %v767
      %v769 = vpop.f32.mrb[0].mxu0
      %770 = vmatprep.mubr.bf16.mxu0 0
      %771 = vmatmul.mubr.bf16.gmra.mrb[0].mxu0 %v642
      %v772 = vpop.f32.mrb[0].mxu0
      %v773 = vadd.f32 0.0, %v772
      %v774 = vpop.f32.mrb[0].mxu0
      %v775 = vpop.f32.mrb[0].mxu0
      %v776 = vadd.f32 0.0, %v775
      %v777 = vpop.f32.mrb[0].mxu0
      %778 = vmatprep.mubr.bf16.mxu0 0
      %779 = vmatmul.mubr.bf16.gmra.mrb[0].mxu0 %v645
      %v780 = vpop.f32.mrb[0].mxu0
      %v781 = vadd.f32 0.0, %v780
      %v782 = vpop.f32.mrb[0].mxu0
      %v783 = vpop.f32.mrb[0].mxu0
      %v784 = vadd.f32 0.0, %v783
      %v785 = vpop.f32.mrb[0].mxu0
      %786 = vmatprep.mubr.bf16.mxu0 0
      %787 = vmatmul.mubr.bf16.gmra.mrb[0].mxu0 %v648
      %v788 = vpop.f32.mrb[0].mxu0
      %v789 = vadd.f32 0.0, %v788
      %v790 = vpop.f32.mrb[0].mxu0
      %v791 = vpop.f32.mrb[0].mxu0
      %v792 = vadd.f32 0.0, %v791
      %v793 = vpop.f32.mrb[0].mxu0
      %794 = vmatprep.mubr.bf16.mxu0 0
      %795 = vmatmul.mubr.bf16.gmra.mrb[0].mxu0 %v651
      %v796 = vpop.f32.mrb[0].mxu0
      %v797 = vadd.f32 0.0, %v796
      %v798 = vpop.f32.mrb[0].mxu0
      %v799 = vpop.f32.mrb[0].mxu0
      %v800 = vadd.f32 0.0, %v799
      %v801 = vpop.f32.mrb[0].mxu0
      %802 = vmatprep.mubr.bf16.mxu0 0
      %803 = vmatmul.mubr.bf16.gmra.mrb[0].mxu0 %v654
      %v804 = vpop.f32.mrb[0].mxu0
      %v805 = vadd.f32 0.0, %v804
      %v806 = vpop.f32.mrb[0].mxu0
      %v807 = vpop.f32.mrb[0].mxu0
      %v808 = vadd.f32 0.0, %v807
      %v809 = vpop.f32.mrb[0].mxu0
      %810 = vmatprep.mubr.bf16.mxu0 0
      %811 = vmatmul.mubr.bf16.gmra.mrb[0].mxu0 %v657
      %v812 = vpop.f32.mrb[0].mxu0
      %v813 = vadd.f32 0.0, %v812
      %v814 = vpop.f32.mrb[0].mxu0
      %v815 = vpop.f32.mrb[0].mxu0
      %v816 = vadd.f32 0.0, %v815
      %v817 = vpop.f32.mrb[0].mxu0
      %818 = vmatprep.mubr.bf16.mxu0 0
      %819 = vmatmul.mubr.bf16.gmra.mrb[0].mxu0 %v660
      %v820 = vpop.f32.mrb[0].mxu0
      %v821 = vadd.f32 0.0, %v820
      %v822 = vpop.f32.mrb[0].mxu0
      %v823 = vpop.f32.mrb[0].mxu0
      %v824 = vadd.f32 0.0, %v823
      %v825 = vpop.f32.mrb[0].mxu0
      %826 = vdwg.mxu0
      %v828 = vsel %vm420, %v547, 0
      %v831 = vsel %vm420, %v548, 0
      %v834 = vsel %vm420, %v549, 0
      %v837 = vsel %vm420, %v550, 0
      %v840 = vsel %vm420, %v551, 0
      %v843 = vsel %vm420, %v552, 0
      %v846 = vsel %vm420, %v553, 0
      %v849 = vsel %vm420, %v554, 0
      %v852 = vsel %vm420, %v555, 0
      %v855 = vsel %vm420, %v556, 0
      %v858 = vsel %vm420, %v557, 0
      %v861 = vsel %vm420, %v558, 0
      %v864 = vsel %vm420, %v559, 0
      %v867 = vsel %vm420, %v560, 0
      %v870 = vsel %vm420, %v561, 0
      %v873 = vsel %vm420, %v562, 0
      %v876 = vsel %vm662, %v563, 0
      %878 = vmatprep.subr.bf16.mxu0 0
      %879 = vmatpush1.bf16.msra.mxu0 %v876
      %880 = vmatprep.subr.bf16.mxu0 0
      %881 = vmatpush1.bf16.msra.mxu0 0
      %882 = vmatprep.subr.bf16.mxu0 0
      %883 = vmatpush1.bf16.msra.mxu0 0
      %884 = vmatprep.subr.bf16.mxu0 0
      %885 = vmatpush1.bf16.msra.mxu0 0
      %886 = vmatprep.subr.bf16.mxu0 0
      %887 = vmatpush1.bf16.msra.mxu0 0
      %888 = vmatprep.subr.bf16.mxu0 0
      %889 = vmatpush1.bf16.msra.mxu0 0
      %890 = vmatprep.subr.bf16.mxu0 0
      %891 = vmatpush1.bf16.msra.mxu0 0
      %892 = vmatprep.subr.bf16.mxu0 0
      %893 = vmatpush1.bf16.msra.mxu0 0
      %894 = vmatprep.subr.bf16.mxu0 0
      %895 = vmatpush1.bf16.msra.mxu0 0
      %896 = vmatprep.subr.bf16.mxu0 0
      %897 = vmatpush1.bf16.msra.mxu0 0
      %898 = vmatprep.subr.bf16.mxu0 0
      %899 = vmatpush1.bf16.msra.mxu0 0
      %900 = vmatprep.subr.bf16.mxu0 0
      %901 = vmatpush1.bf16.msra.mxu0 0
      %902 = vmatprep.subr.bf16.mxu0 0
      %903 = vmatpush1.bf16.msra.mxu0 0
      %904 = vmatprep.subr.bf16.mxu0 0
      %905 = vmatpush1.bf16.msra.mxu0 0
      %906 = vmatprep.subr.bf16.mxu0 0
      %907 = vmatpush1.bf16.msra.mxu0 0
      %908 = vmatprep.subr.bf16.mxu0 0
      %909 = vmatpush1.bf16.msra.mxu0 0
      %910 = vmatprep.mubr.bf16.mxu0 0
      %911 = vmatmul.mubr.bf16.gmra.mrb[0].mxu0 %v828
      %v912 = vpop.f32.mrb[0].mxu0
      %v913 = vadd.f32 %v701, %v912
      %v914 = vpop.f32.mrb[0].mxu0
      %v915 = vpop.f32.mrb[0].mxu0
      %v916 = vadd.f32 %v704, %v915
      %v917 = vpop.f32.mrb[0].mxu0
      %918 = vmatprep.mubr.bf16.mxu0 0
      %919 = vmatmul.mubr.bf16.gmra.mrb[0].mxu0 %v831
      %v920 = vpop.f32.mrb[0].mxu0
      %v921 = vadd.f32 %v709, %v920
      %v922 = vpop.f32.mrb[0].mxu0
      %v923 = vpop.f32.mrb[0].mxu0
      %v924 = vadd.f32 %v712, %v923
      %v925 = vpop.f32.mrb[0].mxu0
      %926 = vmatprep.mubr.bf16.mxu0 0
      %927 = vmatmul.mubr.bf16.gmra.mrb[0].mxu0 %v834
      %v928 = vpop.f32.mrb[0].mxu0
      %v929 = vadd.f32 %v717, %v928
      %v930 = vpop.f32.mrb[0].mxu0
      %v931 = vpop.f32.mrb[0].mxu0
      %v932 = vadd.f32 %v720, %v931
      %v933 = vpop.f32.mrb[0].mxu0
      %934 = vmatprep.mubr.bf16.mxu0 0
      %935 = vmatmul.mubr.bf16.gmra.mrb[0].mxu0 %v837
      %v936 = vpop.f32.mrb[0].mxu0
      %v937 = vadd.f32 %v725, %v936
      %v938 = vpop.f32.mrb[0].mxu0
      %v939 = vpop.f32.mrb[0].mxu0
      %v940 = vadd.f32 %v728, %v939
      %v941 = vpop.f32.mrb[0].mxu0
      %942 = vmatprep.mubr.bf16.mxu0 0
      %943 = vmatmul.mubr.bf16.gmra.mrb[0].mxu0 %v840
      %v944 = vpop.f32.mrb[0].mxu0
      %v945 = vadd.f32 %v733, %v944
      %v946 = vpop.f32.mrb[0].mxu0
      %v947 = vpop.f32.mrb[0].mxu0
      %v948 = vadd.f32 %v736, %v947
      %v949 = vpop.f32.mrb[0].mxu0
      %950 = vmatprep.mubr.bf16.mxu0 0
      %951 = vmatmul.mubr.bf16.gmra.mrb[0].mxu0 %v843
      %v952 = vpop.f32.mrb[0].mxu0
      %v953 = vadd.f32 %v741, %v952
      %v954 = vpop.f32.mrb[0].mxu0
      %v955 = vpop.f32.mrb[0].mxu0
      %v956 = vadd.f32 %v744, %v955
      %v957 = vpop.f32.mrb[0].mxu0
      %958 = vmatprep.mubr.bf16.mxu0 0
      %959 = vmatmul.mubr.bf16.gmra.mrb[0].mxu0 %v846
      %v960 = vpop.f32.mrb[0].mxu0
      %v961 = vadd.f32 %v749, %v960
      %v962 = vpop.f32.mrb[0].mxu0
      %v963 = vpop.f32.mrb[0].mxu0
      %v964 = vadd.f32 %v752, %v963
      %v965 = vpop.f32.mrb[0].mxu0
      %966 = vmatprep.mubr.bf16.mxu0 0
      %967 = vmatmul.mubr.bf16.gmra.mrb[0].mxu0 %v849
      %v968 = vpop.f32.mrb[0].mxu0
      %v969 = vadd.f32 %v757, %v968
      %v970 = vpop.f32.mrb[0].mxu0
      %v971 = vpop.f32.mrb[0].mxu0
      %v972 = vadd.f32 %v760, %v971
      %v973 = vpop.f32.mrb[0].mxu0
      %974 = vmatprep.mubr.bf16.mxu0 0
      %975 = vmatmul.mubr.bf16.gmra.mrb[0].mxu0 %v852
      %v976 = vpop.f32.mrb[0].mxu0
      %v977 = vadd.f32 %v765, %v976
      %v978 = vpop.f32.mrb[0].mxu0
      %v979 = vpop.f32.mrb[0].mxu0
      %v980 = vadd.f32 %v768, %v979
      %v981 = vpop.f32.mrb[0].mxu0
      %982 = vmatprep.mubr.bf16.mxu0 0
      %983 = vmatmul.mubr.bf16.gmra.mrb[0].mxu0 %v855
      %v984 = vpop.f32.mrb[0].mxu0
      %v985 = vadd.f32 %v773, %v984
      %v986 = vpop.f32.mrb[0].mxu0
      %v987 = vpop.f32.mrb[0].mxu0
      %v988 = vadd.f32 %v776, %v987
      %v989 = vpop.f32.mrb[0].mxu0
      %990 = vmatprep.mubr.bf16.mxu0 0
      %991 = vmatmul.mubr.bf16.gmra.mrb[0].mxu0 %v858
      %v992 = vpop.f32.mrb[0].mxu0
      %v993 = vadd.f32 %v781, %v992
      %v994 = vpop.f32.mrb[0].mxu0
      %v995 = vpop.f32.mrb[0].mxu0
      %v996 = vadd.f32 %v784, %v995
      %v997 = vpop.f32.mrb[0].mxu0
      %998 = vmatprep.mubr.bf16.mxu0 0
      %999 = vmatmul.mubr.bf16.gmra.mrb[0].mxu0 %v861
      %v1000 = vpop.f32.mrb[0].mxu0
      %v1001 = vadd.f32 %v789, %v1000
      %v1002 = vpop.f32.mrb[0].mxu0
      %v1003 = vpop.f32.mrb[0].mxu0
      %v1004 = vadd.f32 %v792, %v1003
      %v1005 = vpop.f32.mrb[0].mxu0
      %1006 = vmatprep.mubr.bf16.mxu0 0
      %1007 = vmatmul.mubr.bf16.gmra.mrb[0].mxu0 %v864
      %v1008 = vpop.f32.mrb[0].mxu0
      %v1009 = vadd.f32 %v797, %v1008
      %v1010 = vpop.f32.mrb[0].mxu0
      %v1011 = vpop.f32.mrb[0].mxu0
      %v1012 = vadd.f32 %v800, %v1011
      %v1013 = vpop.f32.mrb[0].mxu0
      %1014 = vmatprep.mubr.bf16.mxu0 0
      %1015 = vmatmul.mubr.bf16.gmra.mrb[0].mxu0 %v867
      %v1016 = vpop.f32.mrb[0].mxu0
      %v1017 = vadd.f32 %v805, %v1016
      %v1018 = vpop.f32.mrb[0].mxu0
      %v1019 = vpop.f32.mrb[0].mxu0
      %v1020 = vadd.f32 %v808, %v1019
      %v1021 = vpop.f32.mrb[0].mxu0
      %1022 = vmatprep.mubr.bf16.mxu0 0
      %1023 = vmatmul.mubr.bf16.gmra.mrb[0].mxu0 %v870
      %v1024 = vpop.f32.mrb[0].mxu0
      %v1025 = vadd.f32 %v813, %v1024
      %v1026 = vpop.f32.mrb[0].mxu0
      %v1027 = vpop.f32.mrb[0].mxu0
      %v1028 = vadd.f32 %v816, %v1027
      %v1029 = vpop.f32.mrb[0].mxu0
      %1030 = vmatprep.mubr.bf16.mxu0 0
      %1031 = vmatmul.mubr.bf16.gmra.mrb[0].mxu0 %v873
      %v1032 = vpop.f32.mrb[0].mxu0
      %v1033 = vadd.f32 %v821, %v1032
      %v1034 = vpop.f32.mrb[0].mxu0
      %v1035 = vpop.f32.mrb[0].mxu0
      %v1036 = vadd.f32 %v824, %v1035
      %v1037 = vpop.f32.mrb[0].mxu0
      %1038 = vdwg.mxu0
      %v1039 = vld [vmem:[#allocation2 + $0x4] sm:$0xff]
      %v1040 = vld [vmem:[#allocation2 + $0xc] sm:$0xff]
      %v1041 = vld [vmem:[#allocation2 + $0x1c] sm:$0xff]
      %v1042 = vld [vmem:[#allocation2 + $0x24] sm:$0xff]
      %v1043 = vld [vmem:[#allocation2 + $0x34] sm:$0xff]
      %v1044 = vld [vmem:[#allocation2 + $0x3c] sm:$0xff]
      %v1045 = vld [vmem:[#allocation2 + $0x4c] sm:$0xff]
      %v1046 = vld [vmem:[#allocation2 + $0x54] sm:$0xff]
      %v1047 = vld [vmem:[#allocation2 + $0x64] sm:$0xff]
      %v1048 = vld [vmem:[#allocation2 + $0x6c] sm:$0xff]
      %v1049 = vld [vmem:[#allocation2 + $0x7c] sm:$0xff]
      %v1050 = vld [vmem:[#allocation2 + $0x84] sm:$0xff]
      %v1051 = vld [vmem:[#allocation2 + $0x94] sm:$0xff]
      %v1052 = vld [vmem:[#allocation2 + $0x9c] sm:$0xff]
      %v1053 = vld [vmem:[#allocation2 + $0xac] sm:$0xff]
      %v1054 = vld [vmem:[#allocation2 + $0xb4] sm:$0xff]
      %v1055 = vld [vmem:[#allocation2 + $0xc4] sm:$0xff]
      %v1056 = vld [vmem:[#allocation2 + $0xcc] sm:$0xff]
      %v1057 = vld [vmem:[#allocation2 + $0xdc] sm:$0xff]
      %v1058 = vld [vmem:[#allocation2 + $0xe4] sm:$0xff]
      %v1059 = vld [vmem:[#allocation2 + $0xf4] sm:$0xff]
      %v1060 = vld [vmem:[#allocation2 + $0xfc] sm:$0xff]
      %v1061 = vld [vmem:[#allocation2 + $0x10c] sm:$0xff]
      %v1062 = vld [vmem:[#allocation2 + $0x114] sm:$0xff]
      %v1063 = vld [vmem:[#allocation2 + $0x124] sm:$0xff]
      %v1064 = vld [vmem:[#allocation2 + $0x12c] sm:$0xff]
      %v1065 = vld [vmem:[#allocation2 + $0x13c] sm:$0xff]
      %v1066 = vld [vmem:[#allocation2 + $0x144] sm:$0xff]
      %v1067 = vld [vmem:[#allocation2 + $0x154] sm:$0xff]
      %v1068 = vld [vmem:[#allocation2 + $0x15c] sm:$0xff]
      %v1069 = vld [vmem:[#allocation2 + $0x16c] sm:$0xff]
      %v1070 = vld [vmem:[#allocation2 + $0x174] sm:$0xff]
      %v1071 = vpack.c.bf16 %v1040, %v1039
      %v1072 = vpack.c.bf16 %v1042, %v1041
      %v1073 = vpack.c.bf16 %v1044, %v1043
      %v1074 = vpack.c.bf16 %v1046, %v1045
      %v1075 = vpack.c.bf16 %v1048, %v1047
      %v1076 = vpack.c.bf16 %v1050, %v1049
      %v1077 = vpack.c.bf16 %v1052, %v1051
      %v1078 = vpack.c.bf16 %v1054, %v1053
      %v1079 = vpack.c.bf16 %v1056, %v1055
      %v1080 = vpack.c.bf16 %v1058, %v1057
      %v1081 = vpack.c.bf16 %v1060, %v1059
      %v1082 = vpack.c.bf16 %v1062, %v1061
      %v1083 = vpack.c.bf16 %v1064, %v1063
      %v1084 = vpack.c.bf16 %v1066, %v1065
      %v1085 = vpack.c.bf16 %v1068, %v1067
      %v1086 = vpack.c.bf16 %v1070, %v1069
      %s1087 = scalar_lea.vmem %s4, 8
      %v1088 = vld [vmem:[%s1087] sm:$0xf]
      %v1090 = vsel %vm420, %v1071, 0
      %v1093 = vsel %vm420, %v1072, 0
      %v1096 = vsel %vm420, %v1073, 0
      %v1099 = vsel %vm420, %v1074, 0
      %v1102 = vsel %vm420, %v1075, 0
      %v1105 = vsel %vm420, %v1076, 0
      %v1108 = vsel %vm420, %v1077, 0
      %v1111 = vsel %vm420, %v1078, 0
      %v1114 = vsel %vm420, %v1079, 0
      %v1117 = vsel %vm420, %v1080, 0
      %v1120 = vsel %vm420, %v1081, 0
      %v1123 = vsel %vm420, %v1082, 0
      %v1126 = vsel %vm420, %v1083, 0
      %v1129 = vsel %vm420, %v1084, 0
      %v1132 = vsel %vm420, %v1085, 0
      %v1135 = vsel %vm420, %v1086, 0
      %v1138 = vsel %vm662, %v1088, 0
      %1140 = vmatprep.subr.bf16.mxu0 0
      %1141 = vmatpush1.bf16.msra.mxu0 %v1138
      %1142 = vmatprep.subr.bf16.mxu0 0
      %1143 = vmatpush1.bf16.msra.mxu0 0
      %1144 = vmatprep.subr.bf16.mxu0 0
      %1145 = vmatpush1.bf16.msra.mxu0 0
      %1146 = vmatprep.subr.bf16.mxu0 0
      %1147 = vmatpush1.bf16.msra.mxu0 0
      %1148 = vmatprep.subr.bf16.mxu0 0
      %1149 = vmatpush1.bf16.msra.mxu0 0
      %1150 = vmatprep.subr.bf16.mxu0 0
      %1151 = vmatpush1.bf16.msra.mxu0 0
      %1152 = vmatprep.subr.bf16.mxu0 0
      %1153 = vmatpush1.bf16.msra.mxu0 0
      %1154 = vmatprep.subr.bf16.mxu0 0
      %1155 = vmatpush1.bf16.msra.mxu0 0
      %1156 = vmatprep.subr.bf16.mxu0 0
      %1157 = vmatpush1.bf16.msra.mxu0 0
      %1158 = vmatprep.subr.bf16.mxu0 0
      %1159 = vmatpush1.bf16.msra.mxu0 0
      %1160 = vmatprep.subr.bf16.mxu0 0
      %1161 = vmatpush1.bf16.msra.mxu0 0
      %1162 = vmatprep.subr.bf16.mxu0 0
      %1163 = vmatpush1.bf16.msra.mxu0 0
      %1164 = vmatprep.subr.bf16.mxu0 0
      %1165 = vmatpush1.bf16.msra.mxu0 0
      %1166 = vmatprep.subr.bf16.mxu0 0
      %1167 = vmatpush1.bf16.msra.mxu0 0
      %1168 = vmatprep.subr.bf16.mxu0 0
      %1169 = vmatpush1.bf16.msra.mxu0 0
      %1170 = vmatprep.subr.bf16.mxu0 0
      %1171 = vmatpush1.bf16.msra.mxu0 0
      %1172 = vmatprep.mubr.bf16.mxu0 0
      %1173 = vmatmul.mubr.bf16.gmra.mrb[0].mxu0 %v1090
      %v1174 = vpop.f32.mrb[0].mxu0
      %v1175 = vadd.f32 0.0, %v1174
      %v1176 = vpop.f32.mrb[0].mxu0
      %v1177 = vpop.f32.mrb[0].mxu0
      %v1178 = vadd.f32 0.0, %v1177
      %v1179 = vpop.f32.mrb[0].mxu0
      %1180 = vmatprep.mubr.bf16.mxu0 0
      %1181 = vmatmul.mubr.bf16.gmra.mrb[0].mxu0 %v1093
      %v1182 = vpop.f32.mrb[0].mxu0
      %v1183 = vadd.f32 0.0, %v1182
      %v1184 = vpop.f32.mrb[0].mxu0
      %v1185 = vpop.f32.mrb[0].mxu0
      %v1186 = vadd.f32 0.0, %v1185
      %v1187 = vpop.f32.mrb[0].mxu0
      %1188 = vmatprep.mubr.bf16.mxu0 0
      %1189 = vmatmul.mubr.bf16.gmra.mrb[0].mxu0 %v1096
      %v1190 = vpop.f32.mrb[0].mxu0
      %v1191 = vadd.f32 0.0, %v1190
      %v1192 = vpop.f32.mrb[0].mxu0
      %v1193 = vpop.f32.mrb[0].mxu0
      %v1194 = vadd.f32 0.0, %v1193
      %v1195 = vpop.f32.mrb[0].mxu0
      %1196 = vmatprep.mubr.bf16.mxu0 0
      %1197 = vmatmul.mubr.bf16.gmra.mrb[0].mxu0 %v1099
      %v1198 = vpop.f32.mrb[0].mxu0
      %v1199 = vadd.f32 0.0, %v1198
      %v1200 = vpop.f32.mrb[0].mxu0
      %v1201 = vpop.f32.mrb[0].mxu0
      %v1202 = vadd.f32 0.0, %v1201
      %v1203 = vpop.f32.mrb[0].mxu0
      %1204 = vmatprep.mubr.bf16.mxu0 0
      %1205 = vmatmul.mubr.bf16.gmra.mrb[0].mxu0 %v1102
      %v1206 = vpop.f32.mrb[0].mxu0
      %v1207 = vadd.f32 0.0, %v1206
      %v1208 = vpop.f32.mrb[0].mxu0
      %v1209 = vpop.f32.mrb[0].mxu0
      %v1210 = vadd.f32 0.0, %v1209
      %v1211 = vpop.f32.mrb[0].mxu0
      %1212 = vmatprep.mubr.bf16.mxu0 0
      %1213 = vmatmul.mubr.bf16.gmra.mrb[0].mxu0 %v1105
      %v1214 = vpop.f32.mrb[0].mxu0
      %v1215 = vadd.f32 0.0, %v1214
      %v1216 = vpop.f32.mrb[0].mxu0
      %v1217 = vpop.f32.mrb[0].mxu0
      %v1218 = vadd.f32 0.0, %v1217
      %v1219 = vpop.f32.mrb[0].mxu0
      %1220 = vmatprep.mubr.bf16.mxu0 0
      %1221 = vmatmul.mubr.bf16.gmra.mrb[0].mxu0 %v1108
      %v1222 = vpop.f32.mrb[0].mxu0
      %v1223 = vadd.f32 0.0, %v1222
      %v1224 = vpop.f32.mrb[0].mxu0
      %v1225 = vpop.f32.mrb[0].mxu0
      %v1226 = vadd.f32 0.0, %v1225
      %v1227 = vpop.f32.mrb[0].mxu0
      %1228 = vmatprep.mubr.bf16.mxu0 0
      %1229 = vmatmul.mubr.bf16.gmra.mrb[0].mxu0 %v1111
      %v1230 = vpop.f32.mrb[0].mxu0
      %v1231 = vadd.f32 0.0, %v1230
      %v1232 = vpop.f32.mrb[0].mxu0
      %v1233 = vpop.f32.mrb[0].mxu0
      %v1234 = vadd.f32 0.0, %v1233
      %v1235 = vpop.f32.mrb[0].mxu0
      %1236 = vmatprep.mubr.bf16.mxu0 0
      %1237 = vmatmul.mubr.bf16.gmra.mrb[0].mxu0 %v1114
      %v1238 = vpop.f32.mrb[0].mxu0
      %v1239 = vadd.f32 0.0, %v1238
      %v1240 = vpop.f32.mrb[0].mxu0
      %v1241 = vpop.f32.mrb[0].mxu0
      %v1242 = vadd.f32 0.0, %v1241
      %v1243 = vpop.f32.mrb[0].mxu0
      %1244 = vmatprep.mubr.bf16.mxu0 0
      %1245 = vmatmul.mubr.bf16.gmra.mrb[0].mxu0 %v1117
      %v1246 = vpop.f32.mrb[0].mxu0
      %v1247 = vadd.f32 0.0, %v1246
      %v1248 = vpop.f32.mrb[0].mxu0
      %v1249 = vpop.f32.mrb[0].mxu0
      %v1250 = vadd.f32 0.0, %v1249
      %v1251 = vpop.f32.mrb[0].mxu0
      %1252 = vmatprep.mubr.bf16.mxu0 0
      %1253 = vmatmul.mubr.bf16.gmra.mrb[0].mxu0 %v1120
      %v1254 = vpop.f32.mrb[0].mxu0
      %v1255 = vadd.f32 0.0, %v1254
      %v1256 = vpop.f32.mrb[0].mxu0
      %v1257 = vpop.f32.mrb[0].mxu0
      %v1258 = vadd.f32 0.0, %v1257
      %v1259 = vpop.f32.mrb[0].mxu0
      %1260 = vmatprep.mubr.bf16.mxu0 0
      %1261 = vmatmul.mubr.bf16.gmra.mrb[0].mxu0 %v1123
      %v1262 = vpop.f32.mrb[0].mxu0
      %v1263 = vadd.f32 0.0, %v1262
      %v1264 = vpop.f32.mrb[0].mxu0
      %v1265 = vpop.f32.mrb[0].mxu0
      %v1266 = vadd.f32 0.0, %v1265
      %v1267 = vpop.f32.mrb[0].mxu0
      %1268 = vmatprep.mubr.bf16.mxu0 0
      %1269 = vmatmul.mubr.bf16.gmra.mrb[0].mxu0 %v1126
      %v1270 = vpop.f32.mrb[0].mxu0
      %v1271 = vadd.f32 0.0, %v1270
      %v1272 = vpop.f32.mrb[0].mxu0
      %v1273 = vpop.f32.mrb[0].mxu0
      %v1274 = vadd.f32 0.0, %v1273
      %v1275 = vpop.f32.mrb[0].mxu0
      %1276 = vmatprep.mubr.bf16.mxu0 0
      %1277 = vmatmul.mubr.bf16.gmra.mrb[0].mxu0 %v1129
      %v1278 = vpop.f32.mrb[0].mxu0
      %v1279 = vadd.f32 0.0, %v1278
      %v1280 = vpop.f32.mrb[0].mxu0
      %v1281 = vpop.f32.mrb[0].mxu0
      %v1282 = vadd.f32 0.0, %v1281
      %v1283 = vpop.f32.mrb[0].mxu0
      %1284 = vmatprep.mubr.bf16.mxu0 0
      %1285 = vmatmul.mubr.bf16.gmra.mrb[0].mxu0 %v1132
      %v1286 = vpop.f32.mrb[0].mxu0
      %v1287 = vadd.f32 0.0, %v1286
      %v1288 = vpop.f32.mrb[0].mxu0
      %v1289 = vpop.f32.mrb[0].mxu0
      %v1290 = vadd.f32 0.0, %v1289
      %v1291 = vpop.f32.mrb[0].mxu0
      %1292 = vmatprep.mubr.bf16.mxu0 0
      %1293 = vmatmul.mubr.bf16.gmra.mrb[0].mxu0 %v1135
      %v1294 = vpop.f32.mrb[0].mxu0
      %v1295 = vadd.f32 0.0, %v1294
      %v1296 = vpop.f32.mrb[0].mxu0
      %v1297 = vpop.f32.mrb[0].mxu0
      %v1298 = vadd.f32 0.0, %v1297
      %v1299 = vpop.f32.mrb[0].mxu0
      %1300 = vdwg.mxu0
      %v1301 = vadd.f32 %v913, %v1175
      %v1302 = vadd.f32 %v916, %v1178
      %v1303 = vadd.f32 %v921, %v1183
      %v1304 = vadd.f32 %v924, %v1186
      %v1305 = vadd.f32 %v929, %v1191
      %v1306 = vadd.f32 %v932, %v1194
      %v1307 = vadd.f32 %v937, %v1199
      %v1308 = vadd.f32 %v940, %v1202
      %v1309 = vadd.f32 %v945, %v1207
      %v1310 = vadd.f32 %v948, %v1210
      %v1311 = vadd.f32 %v953, %v1215
      %v1312 = vadd.f32 %v956, %v1218
      %v1313 = vadd.f32 %v961, %v1223
      %v1314 = vadd.f32 %v964, %v1226
      %v1315 = vadd.f32 %v969, %v1231
      %v1316 = vadd.f32 %v972, %v1234
      %v1317 = vadd.f32 %v977, %v1239
      %v1318 = vadd.f32 %v980, %v1242
      %v1319 = vadd.f32 %v985, %v1247
      %v1320 = vadd.f32 %v988, %v1250
      %v1321 = vadd.f32 %v993, %v1255
      %v1322 = vadd.f32 %v996, %v1258
      %v1323 = vadd.f32 %v1001, %v1263
      %v1324 = vadd.f32 %v1004, %v1266
      %v1325 = vadd.f32 %v1009, %v1271
      %v1326 = vadd.f32 %v1012, %v1274
      %v1327 = vadd.f32 %v1017, %v1279
      %v1328 = vadd.f32 %v1020, %v1282
      %v1329 = vadd.f32 %v1025, %v1287
      %v1330 = vadd.f32 %v1028, %v1290
      %v1331 = vadd.f32 %v1033, %v1295
      %v1332 = vadd.f32 %v1036, %v1298
      %v1333 = vld [vmem:[%s482] sm:$0xff]
      %v1334 = vld [vmem:[%s482 + $0x8] sm:$0xff]
      %v1335 = vld [vmem:[%s482 + $0x18] sm:$0xff]
      %v1336 = vld [vmem:[%s482 + $0x20] sm:$0xff]
      %v1337 = vld [vmem:[%s482 + $0x30] sm:$0xff]
      %v1338 = vld [vmem:[%s482 + $0x38] sm:$0xff]
      %v1339 = vld [vmem:[%s482 + $0x48] sm:$0xff]
      %v1340 = vld [vmem:[%s482 + $0x50] sm:$0xff]
      %v1341 = vld [vmem:[%s482 + $0x60] sm:$0xff]
      %v1342 = vld [vmem:[%s482 + $0x68] sm:$0xff]
      %v1343 = vld [vmem:[%s482 + $0x78] sm:$0xff]
      %v1344 = vld [vmem:[%s482 + $0x80] sm:$0xff]
      %v1345 = vld [vmem:[%s482 + $0x90] sm:$0xff]
      %v1346 = vld [vmem:[%s482 + $0x98] sm:$0xff]
      %v1347 = vld [vmem:[%s482 + $0xa8] sm:$0xff]
      %v1348 = vld [vmem:[%s482 + $0xb0] sm:$0xff]
      %v1349 = vld [vmem:[%s482 + $0xc0] sm:$0xff]
      %v1350 = vld [vmem:[%s482 + $0xc8] sm:$0xff]
      %v1351 = vld [vmem:[%s482 + $0xd8] sm:$0xff]
      %v1352 = vld [vmem:[%s482 + $0xe0] sm:$0xff]
      %v1353 = vld [vmem:[%s482 + $0xf0] sm:$0xff]
      %v1354 = vld [vmem:[%s482 + $0xf8] sm:$0xff]
      %v1355 = vld [vmem:[%s482 + $0x108] sm:$0xff]
      %v1356 = vld [vmem:[%s482 + $0x110] sm:$0xff]
      %v1357 = vld [vmem:[%s482 + $0x120] sm:$0xff]
      %v1358 = vld [vmem:[%s482 + $0x128] sm:$0xff]
      %v1359 = vld [vmem:[%s482 + $0x138] sm:$0xff]
      %v1360 = vld [vmem:[%s482 + $0x140] sm:$0xff]
      %v1361 = vld [vmem:[%s482 + $0x150] sm:$0xff]
      %v1362 = vld [vmem:[%s482 + $0x158] sm:$0xff]
      %v1363 = vld [vmem:[%s482 + $0x168] sm:$0xff]
      %v1364 = vld [vmem:[%s482 + $0x170] sm:$0xff]
      %v1365 = vpack.c.bf16 %v1334, %v1333
      %v1366 = vpack.c.bf16 %v1336, %v1335
      %v1367 = vpack.c.bf16 %v1338, %v1337
      %v1368 = vpack.c.bf16 %v1340, %v1339
      %v1369 = vpack.c.bf16 %v1342, %v1341
      %v1370 = vpack.c.bf16 %v1344, %v1343
      %v1371 = vpack.c.bf16 %v1346, %v1345
      %v1372 = vpack.c.bf16 %v1348, %v1347
      %v1373 = vpack.c.bf16 %v1350, %v1349
      %v1374 = vpack.c.bf16 %v1352, %v1351
      %v1375 = vpack.c.bf16 %v1354, %v1353
      %v1376 = vpack.c.bf16 %v1356, %v1355
      %v1377 = vpack.c.bf16 %v1358, %v1357
      %v1378 = vpack.c.bf16 %v1360, %v1359
      %v1379 = vpack.c.bf16 %v1362, %v1361
      %v1380 = vpack.c.bf16 %v1364, %v1363
      %s1381 = scalar_lea.vmem %s4, 12
      %v1382 = vld [vmem:[%s1381] sm:$0xf]
      %v1384 = vsel %vm420, %v1365, 0
      %v1387 = vsel %vm420, %v1366, 0
      %v1390 = vsel %vm420, %v1367, 0
      %v1393 = vsel %vm420, %v1368, 0
      %v1396 = vsel %vm420, %v1369, 0
      %v1399 = vsel %vm420, %v1370, 0
      %v1402 = vsel %vm420, %v1371, 0
      %v1405 = vsel %vm420, %v1372, 0
      %v1408 = vsel %vm420, %v1373, 0
      %v1411 = vsel %vm420, %v1374, 0
      %v1414 = vsel %vm420, %v1375, 0
      %v1417 = vsel %vm420, %v1376, 0
      %v1420 = vsel %vm420, %v1377, 0
      %v1423 = vsel %vm420, %v1378, 0
      %v1426 = vsel %vm420, %v1379, 0
      %v1429 = vsel %vm420, %v1380, 0
      %v1432 = vsel %vm662, %v1382, 0
      %1434 = vmatprep.subr.bf16.mxu0 0
      %1435 = vmatpush1.bf16.msra.mxu0 %v1432
      %1436 = vmatprep.subr.bf16.mxu0 0
      %1437 = vmatpush1.bf16.msra.mxu0 0
      %1438 = vmatprep.subr.bf16.mxu0 0
      %1439 = vmatpush1.bf16.msra.mxu0 0
      %1440 = vmatprep.subr.bf16.mxu0 0
      %1441 = vmatpush1.bf16.msra.mxu0 0
      %1442 = vmatprep.subr.bf16.mxu0 0
      %1443 = vmatpush1.bf16.msra.mxu0 0
      %1444 = vmatprep.subr.bf16.mxu0 0
      %1445 = vmatpush1.bf16.msra.mxu0 0
      %1446 = vmatprep.subr.bf16.mxu0 0
      %1447 = vmatpush1.bf16.msra.mxu0 0
      %1448 = vmatprep.subr.bf16.mxu0 0
      %1449 = vmatpush1.bf16.msra.mxu0 0
      %1450 = vmatprep.subr.bf16.mxu0 0
      %1451 = vmatpush1.bf16.msra.mxu0 0
      %1452 = vmatprep.subr.bf16.mxu0 0
      %1453 = vmatpush1.bf16.msra.mxu0 0
      %1454 = vmatprep.subr.bf16.mxu0 0
      %1455 = vmatpush1.bf16.msra.mxu0 0
      %1456 = vmatprep.subr.bf16.mxu0 0
      %1457 = vmatpush1.bf16.msra.mxu0 0
      %1458 = vmatprep.subr.bf16.mxu0 0
      %1459 = vmatpush1.bf16.msra.mxu0 0
      %1460 = vmatprep.subr.bf16.mxu0 0
      %1461 = vmatpush1.bf16.msra.mxu0 0
      %1462 = vmatprep.subr.bf16.mxu0 0
      %1463 = vmatpush1.bf16.msra.mxu0 0
      %1464 = vmatprep.subr.bf16.mxu0 0
      %1465 = vmatpush1.bf16.msra.mxu0 0
      %1466 = vmatprep.mubr.bf16.mxu0 0
      %1467 = vmatmul.mubr.bf16.gmra.mrb[0].mxu0 %v1384
      %v1468 = vpop.f32.mrb[0].mxu0
      %v1469 = vadd.f32 0.0, %v1468
      %v1470 = vpop.f32.mrb[0].mxu0
      %v1471 = vpop.f32.mrb[0].mxu0
      %v1472 = vadd.f32 0.0, %v1471
      %v1473 = vpop.f32.mrb[0].mxu0
      %1474 = vmatprep.mubr.bf16.mxu0 0
      %1475 = vmatmul.mubr.bf16.gmra.mrb[0].mxu0 %v1387
      %v1476 = vpop.f32.mrb[0].mxu0
      %v1477 = vadd.f32 0.0, %v1476
      %v1478 = vpop.f32.mrb[0].mxu0
      %v1479 = vpop.f32.mrb[0].mxu0
      %v1480 = vadd.f32 0.0, %v1479
      %v1481 = vpop.f32.mrb[0].mxu0
      %1482 = vmatprep.mubr.bf16.mxu0 0
      %1483 = vmatmul.mubr.bf16.gmra.mrb[0].mxu0 %v1390
      %v1484 = vpop.f32.mrb[0].mxu0
      %v1485 = vadd.f32 0.0, %v1484
      %v1486 = vpop.f32.mrb[0].mxu0
      %v1487 = vpop.f32.mrb[0].mxu0
      %v1488 = vadd.f32 0.0, %v1487
      %v1489 = vpop.f32.mrb[0].mxu0
      %1490 = vmatprep.mubr.bf16.mxu0 0
      %1491 = vmatmul.mubr.bf16.gmra.mrb[0].mxu0 %v1393
      %v1492 = vpop.f32.mrb[0].mxu0
      %v1493 = vadd.f32 0.0, %v1492
      %v1494 = vpop.f32.mrb[0].mxu0
      %v1495 = vpop.f32.mrb[0].mxu0
      %v1496 = vadd.f32 0.0, %v1495
      %v1497 = vpop.f32.mrb[0].mxu0
      %1498 = vmatprep.mubr.bf16.mxu0 0
      %1499 = vmatmul.mubr.bf16.gmra.mrb[0].mxu0 %v1396
      %v1500 = vpop.f32.mrb[0].mxu0
      %v1501 = vadd.f32 0.0, %v1500
      %v1502 = vpop.f32.mrb[0].mxu0
      %v1503 = vpop.f32.mrb[0].mxu0
      %v1504 = vadd.f32 0.0, %v1503
      %v1505 = vpop.f32.mrb[0].mxu0
      %1506 = vmatprep.mubr.bf16.mxu0 0
      %1507 = vmatmul.mubr.bf16.gmra.mrb[0].mxu0 %v1399
      %v1508 = vpop.f32.mrb[0].mxu0
      %v1509 = vadd.f32 0.0, %v1508
      %v1510 = vpop.f32.mrb[0].mxu0
      %v1511 = vpop.f32.mrb[0].mxu0
      %v1512 = vadd.f32 0.0, %v1511
      %v1513 = vpop.f32.mrb[0].mxu0
      %1514 = vmatprep.mubr.bf16.mxu0 0
      %1515 = vmatmul.mubr.bf16.gmra.mrb[0].mxu0 %v1402
      %v1516 = vpop.f32.mrb[0].mxu0
      %v1517 = vadd.f32 0.0, %v1516
      %v1518 = vpop.f32.mrb[0].mxu0
      %v1519 = vpop.f32.mrb[0].mxu0
      %v1520 = vadd.f32 0.0, %v1519
      %v1521 = vpop.f32.mrb[0].mxu0
      %1522 = vmatprep.mubr.bf16.mxu0 0
      %1523 = vmatmul.mubr.bf16.gmra.mrb[0].mxu0 %v1405
      %v1524 = vpop.f32.mrb[0].mxu0
      %v1525 = vadd.f32 0.0, %v1524
      %v1526 = vpop.f32.mrb[0].mxu0
      %v1527 = vpop.f32.mrb[0].mxu0
      %v1528 = vadd.f32 0.0, %v1527
      %v1529 = vpop.f32.mrb[0].mxu0
      %1530 = vmatprep.mubr.bf16.mxu0 0
      %1531 = vmatmul.mubr.bf16.gmra.mrb[0].mxu0 %v1408
      %v1532 = vpop.f32.mrb[0].mxu0
      %v1533 = vadd.f32 0.0, %v1532
      %v1534 = vpop.f32.mrb[0].mxu0
      %v1535 = vpop.f32.mrb[0].mxu0
      %v1536 = vadd.f32 0.0, %v1535
      %v1537 = vpop.f32.mrb[0].mxu0
      %1538 = vmatprep.mubr.bf16.mxu0 0
      %1539 = vmatmul.mubr.bf16.gmra.mrb[0].mxu0 %v1411
      %v1540 = vpop.f32.mrb[0].mxu0
      %v1541 = vadd.f32 0.0, %v1540
      %v1542 = vpop.f32.mrb[0].mxu0
      %v1543 = vpop.f32.mrb[0].mxu0
      %v1544 = vadd.f32 0.0, %v1543
      %v1545 = vpop.f32.mrb[0].mxu0
      %1546 = vmatprep.mubr.bf16.mxu0 0
      %1547 = vmatmul.mubr.bf16.gmra.mrb[0].mxu0 %v1414
      %v1548 = vpop.f32.mrb[0].mxu0
      %v1549 = vadd.f32 0.0, %v1548
      %v1550 = vpop.f32.mrb[0].mxu0
      %v1551 = vpop.f32.mrb[0].mxu0
      %v1552 = vadd.f32 0.0, %v1551
      %v1553 = vpop.f32.mrb[0].mxu0
      %1554 = vmatprep.mubr.bf16.mxu0 0
      %1555 = vmatmul.mubr.bf16.gmra.mrb[0].mxu0 %v1417
      %v1556 = vpop.f32.mrb[0].mxu0
      %v1557 = vadd.f32 0.0, %v1556
      %v1558 = vpop.f32.mrb[0].mxu0
      %v1559 = vpop.f32.mrb[0].mxu0
      %v1560 = vadd.f32 0.0, %v1559
      %v1561 = vpop.f32.mrb[0].mxu0
      %1562 = vmatprep.mubr.bf16.mxu0 0
      %1563 = vmatmul.mubr.bf16.gmra.mrb[0].mxu0 %v1420
      %v1564 = vpop.f32.mrb[0].mxu0
      %v1565 = vadd.f32 0.0, %v1564
      %v1566 = vpop.f32.mrb[0].mxu0
      %v1567 = vpop.f32.mrb[0].mxu0
      %v1568 = vadd.f32 0.0, %v1567
      %v1569 = vpop.f32.mrb[0].mxu0
      %1570 = vmatprep.mubr.bf16.mxu0 0
      %1571 = vmatmul.mubr.bf16.gmra.mrb[0].mxu0 %v1423
      %v1572 = vpop.f32.mrb[0].mxu0
      %v1573 = vadd.f32 0.0, %v1572
      %v1574 = vpop.f32.mrb[0].mxu0
      %v1575 = vpop.f32.mrb[0].mxu0
      %v1576 = vadd.f32 0.0, %v1575
      %v1577 = vpop.f32.mrb[0].mxu0
      %1578 = vmatprep.mubr.bf16.mxu0 0
      %1579 = vmatmul.mubr.bf16.gmra.mrb[0].mxu0 %v1426
      %v1580 = vpop.f32.mrb[0].mxu0
      %v1581 = vadd.f32 0.0, %v1580
      %v1582 = vpop.f32.mrb[0].mxu0
      %v1583 = vpop.f32.mrb[0].mxu0
      %v1584 = vadd.f32 0.0, %v1583
      %v1585 = vpop.f32.mrb[0].mxu0
      %1586 = vmatprep.mubr.bf16.mxu0 0
      %1587 = vmatmul.mubr.bf16.gmra.mrb[0].mxu0 %v1429
      %v1588 = vpop.f32.mrb[0].mxu0
      %v1589 = vadd.f32 0.0, %v1588
      %v1590 = vpop.f32.mrb[0].mxu0
      %v1591 = vpop.f32.mrb[0].mxu0
      %v1592 = vadd.f32 0.0, %v1591
      %v1593 = vpop.f32.mrb[0].mxu0
      %1594 = vdwg.mxu0
      %v1595 = vadd.f32 %v1301, %v1469
      %v1596 = vadd.f32 %v1302, %v1472
      %v1597 = vadd.f32 %v1303, %v1477
      %v1598 = vadd.f32 %v1304, %v1480
      %v1599 = vadd.f32 %v1305, %v1485
      %v1600 = vadd.f32 %v1306, %v1488
      %v1601 = vadd.f32 %v1307, %v1493
      %v1602 = vadd.f32 %v1308, %v1496
      %v1603 = vadd.f32 %v1309, %v1501
      %v1604 = vadd.f32 %v1310, %v1504
      %v1605 = vadd.f32 %v1311, %v1509
      %v1606 = vadd.f32 %v1312, %v1512
      %v1607 = vadd.f32 %v1313, %v1517
      %v1608 = vadd.f32 %v1314, %v1520
      %v1609 = vadd.f32 %v1315, %v1525
      %v1610 = vadd.f32 %v1316, %v1528
      %v1611 = vadd.f32 %v1317, %v1533
      %v1612 = vadd.f32 %v1318, %v1536
      %v1613 = vadd.f32 %v1319, %v1541
      %v1614 = vadd.f32 %v1320, %v1544
      %v1615 = vadd.f32 %v1321, %v1549
      %v1616 = vadd.f32 %v1322, %v1552
      %v1617 = vadd.f32 %v1323, %v1557
      %v1618 = vadd.f32 %v1324, %v1560
      %v1619 = vadd.f32 %v1325, %v1565
      %v1620 = vadd.f32 %v1326, %v1568
      %v1621 = vadd.f32 %v1327, %v1573
      %v1622 = vadd.f32 %v1328, %v1576
      %v1623 = vadd.f32 %v1329, %v1581
      %v1624 = vadd.f32 %v1330, %v1584
      %v1625 = vadd.f32 %v1331, %v1589
      %v1626 = vadd.f32 %v1332, %v1592
      %v1627 = vld [vmem:[%s482 + $0x2] sm:$0xff]
      %v1628 = vld [vmem:[%s482 + $0xa] sm:$0xff]
      %v1629 = vld [vmem:[%s482 + $0x1a] sm:$0xff]
      %v1630 = vld [vmem:[%s482 + $0x22] sm:$0xff]
      %v1631 = vld [vmem:[%s482 + $0x32] sm:$0xff]
      %v1632 = vld [vmem:[%s482 + $0x3a] sm:$0xff]
      %v1633 = vld [vmem:[%s482 + $0x4a] sm:$0xff]
      %v1634 = vld [vmem:[%s482 + $0x52] sm:$0xff]
      %v1635 = vld [vmem:[%s482 + $0x62] sm:$0xff]
      %v1636 = vld [vmem:[%s482 + $0x6a] sm:$0xff]
      %v1637 = vld [vmem:[%s482 + $0x7a] sm:$0xff]
      %v1638 = vld [vmem:[%s482 + $0x82] sm:$0xff]
      %v1639 = vld [vmem:[%s482 + $0x92] sm:$0xff]
      %v1640 = vld [vmem:[%s482 + $0x9a] sm:$0xff]
      %v1641 = vld [vmem:[%s482 + $0xaa] sm:$0xff]
      %v1642 = vld [vmem:[%s482 + $0xb2] sm:$0xff]
      %v1643 = vld [vmem:[%s482 + $0xc2] sm:$0xff]
      %v1644 = vld [vmem:[%s482 + $0xca] sm:$0xff]
      %v1645 = vld [vmem:[%s482 + $0xda] sm:$0xff]
      %v1646 = vld [vmem:[%s482 + $0xe2] sm:$0xff]
      %v1647 = vld [vmem:[%s482 + $0xf2] sm:$0xff]
      %v1648 = vld [vmem:[%s482 + $0xfa] sm:$0xff]
      %v1649 = vld [vmem:[%s482 + $0x10a] sm:$0xff]
      %v1650 = vld [vmem:[%s482 + $0x112] sm:$0xff]
      %v1651 = vld [vmem:[%s482 + $0x122] sm:$0xff]
      %v1652 = vld [vmem:[%s482 + $0x12a] sm:$0xff]
      %v1653 = vld [vmem:[%s482 + $0x13a] sm:$0xff]
      %v1654 = vld [vmem:[%s482 + $0x142] sm:$0xff]
      %v1655 = vld [vmem:[%s482 + $0x152] sm:$0xff]
      %v1656 = vld [vmem:[%s482 + $0x15a] sm:$0xff]
      %v1657 = vld [vmem:[%s482 + $0x16a] sm:$0xff]
      %v1658 = vld [vmem:[%s482 + $0x172] sm:$0xff]
      %v1659 = vpack.c.bf16 %v1628, %v1627
      %v1660 = vpack.c.bf16 %v1630, %v1629
      %v1661 = vpack.c.bf16 %v1632, %v1631
      %v1662 = vpack.c.bf16 %v1634, %v1633
      %v1663 = vpack.c.bf16 %v1636, %v1635
      %v1664 = vpack.c.bf16 %v1638, %v1637
      %v1665 = vpack.c.bf16 %v1640, %v1639
      %v1666 = vpack.c.bf16 %v1642, %v1641
      %v1667 = vpack.c.bf16 %v1644, %v1643
      %v1668 = vpack.c.bf16 %v1646, %v1645
      %v1669 = vpack.c.bf16 %v1648, %v1647
      %v1670 = vpack.c.bf16 %v1650, %v1649
      %v1671 = vpack.c.bf16 %v1652, %v1651
      %v1672 = vpack.c.bf16 %v1654, %v1653
      %v1673 = vpack.c.bf16 %v1656, %v1655
      %v1674 = vpack.c.bf16 %v1658, %v1657
      %s1675 = scalar_lea.vmem %s4, 16
      %v1676 = vld [vmem:[%s1675] sm:$0xf]
      %v1678 = vsel %vm420, %v1659, 0
      %v1681 = vsel %vm420, %v1660, 0
      %v1684 = vsel %vm420, %v1661, 0
      %v1687 = vsel %vm420, %v1662, 0
      %v1690 = vsel %vm420, %v1663, 0
      %v1693 = vsel %vm420, %v1664, 0
      %v1696 = vsel %vm420, %v1665, 0
      %v1699 = vsel %vm420, %v1666, 0
      %v1702 = vsel %vm420, %v1667, 0
      %v1705 = vsel %vm420, %v1668, 0
      %v1708 = vsel %vm420, %v1669, 0
      %v1711 = vsel %vm420, %v1670, 0
      %v1714 = vsel %vm420, %v1671, 0
      %v1717 = vsel %vm420, %v1672, 0
      %v1720 = vsel %vm420, %v1673, 0
      %v1723 = vsel %vm420, %v1674, 0
      %v1726 = vsel %vm662, %v1676, 0
      %1728 = vmatprep.subr.bf16.mxu0 0
      %1729 = vmatpush1.bf16.msra.mxu0 %v1726
      %1730 = vmatprep.subr.bf16.mxu0 0
      %1731 = vmatpush1.bf16.msra.mxu0 0
      %1732 = vmatprep.subr.bf16.mxu0 0
      %1733 = vmatpush1.bf16.msra.mxu0 0
      %1734 = vmatprep.subr.bf16.mxu0 0
      %1735 = vmatpush1.bf16.msra.mxu0 0
      %1736 = vmatprep.subr.bf16.mxu0 0
      %1737 = vmatpush1.bf16.msra.mxu0 0
      %1738 = vmatprep.subr.bf16.mxu0 0
      %1739 = vmatpush1.bf16.msra.mxu0 0
      %1740 = vmatprep.subr.bf16.mxu0 0
      %1741 = vmatpush1.bf16.msra.mxu0 0
      %1742 = vmatprep.subr.bf16.mxu0 0
      %1743 = vmatpush1.bf16.msra.mxu0 0
      %1744 = vmatprep.subr.bf16.mxu0 0
      %1745 = vmatpush1.bf16.msra.mxu0 0
      %1746 = vmatprep.subr.bf16.mxu0 0
      %1747 = vmatpush1.bf16.msra.mxu0 0
      %1748 = vmatprep.subr.bf16.mxu0 0
      %1749 = vmatpush1.bf16.msra.mxu0 0
      %1750 = vmatprep.subr.bf16.mxu0 0
      %1751 = vmatpush1.bf16.msra.mxu0 0
      %1752 = vmatprep.subr.bf16.mxu0 0
      %1753 = vmatpush1.bf16.msra.mxu0 0
      %1754 = vmatprep.subr.bf16.mxu0 0
      %1755 = vmatpush1.bf16.msra.mxu0 0
      %1756 = vmatprep.subr.bf16.mxu0 0
      %1757 = vmatpush1.bf16.msra.mxu0 0
      %1758 = vmatprep.subr.bf16.mxu0 0
      %1759 = vmatpush1.bf16.msra.mxu0 0
      %1760 = vmatprep.mubr.bf16.mxu0 0
      %1761 = vmatmul.mubr.bf16.gmra.mrb[0].mxu0 %v1678
      %v1762 = vpop.f32.mrb[0].mxu0
      %v1763 = vadd.f32 0.0, %v1762
      %v1764 = vpop.f32.mrb[0].mxu0
      %v1765 = vpop.f32.mrb[0].mxu0
      %v1766 = vadd.f32 0.0, %v1765
      %v1767 = vpop.f32.mrb[0].mxu0
      %1768 = vmatprep.mubr.bf16.mxu0 0
      %1769 = vmatmul.mubr.bf16.gmra.mrb[0].mxu0 %v1681
      %v1770 = vpop.f32.mrb[0].mxu0
      %v1771 = vadd.f32 0.0, %v1770
      %v1772 = vpop.f32.mrb[0].mxu0
      %v1773 = vpop.f32.mrb[0].mxu0
      %v1774 = vadd.f32 0.0, %v1773
      %v1775 = vpop.f32.mrb[0].mxu0
      %1776 = vmatprep.mubr.bf16.mxu0 0
      %1777 = vmatmul.mubr.bf16.gmra.mrb[0].mxu0 %v1684
      %v1778 = vpop.f32.mrb[0].mxu0
      %v1779 = vadd.f32 0.0, %v1778
      %v1780 = vpop.f32.mrb[0].mxu0
      %v1781 = vpop.f32.mrb[0].mxu0
      %v1782 = vadd.f32 0.0, %v1781
      %v1783 = vpop.f32.mrb[0].mxu0
      %1784 = vmatprep.mubr.bf16.mxu0 0
      %1785 = vmatmul.mubr.bf16.gmra.mrb[0].mxu0 %v1687
      %v1786 = vpop.f32.mrb[0].mxu0
      %v1787 = vadd.f32 0.0, %v1786
      %v1788 = vpop.f32.mrb[0].mxu0
      %v1789 = vpop.f32.mrb[0].mxu0
      %v1790 = vadd.f32 0.0, %v1789
      %v1791 = vpop.f32.mrb[0].mxu0
      %1792 = vmatprep.mubr.bf16.mxu0 0
      %1793 = vmatmul.mubr.bf16.gmra.mrb[0].mxu0 %v1690
      %v1794 = vpop.f32.mrb[0].mxu0
      %v1795 = vadd.f32 0.0, %v1794
      %v1796 = vpop.f32.mrb[0].mxu0
      %v1797 = vpop.f32.mrb[0].mxu0
      %v1798 = vadd.f32 0.0, %v1797
      %v1799 = vpop.f32.mrb[0].mxu0
      %1800 = vmatprep.mubr.bf16.mxu0 0
      %1801 = vmatmul.mubr.bf16.gmra.mrb[0].mxu0 %v1693
      %v1802 = vpop.f32.mrb[0].mxu0
      %v1803 = vadd.f32 0.0, %v1802
      %v1804 = vpop.f32.mrb[0].mxu0
      %v1805 = vpop.f32.mrb[0].mxu0
      %v1806 = vadd.f32 0.0, %v1805
      %v1807 = vpop.f32.mrb[0].mxu0
      %1808 = vmatprep.mubr.bf16.mxu0 0
      %1809 = vmatmul.mubr.bf16.gmra.mrb[0].mxu0 %v1696
      %v1810 = vpop.f32.mrb[0].mxu0
      %v1811 = vadd.f32 0.0, %v1810
      %v1812 = vpop.f32.mrb[0].mxu0
      %v1813 = vpop.f32.mrb[0].mxu0
      %v1814 = vadd.f32 0.0, %v1813
      %v1815 = vpop.f32.mrb[0].mxu0
      %1816 = vmatprep.mubr.bf16.mxu0 0
      %1817 = vmatmul.mubr.bf16.gmra.mrb[0].mxu0 %v1699
      %v1818 = vpop.f32.mrb[0].mxu0
      %v1819 = vadd.f32 0.0, %v1818
      %v1820 = vpop.f32.mrb[0].mxu0
      %v1821 = vpop.f32.mrb[0].mxu0
      %v1822 = vadd.f32 0.0, %v1821
      %v1823 = vpop.f32.mrb[0].mxu0
      %1824 = vmatprep.mubr.bf16.mxu0 0
      %1825 = vmatmul.mubr.bf16.gmra.mrb[0].mxu0 %v1702
      %v1826 = vpop.f32.mrb[0].mxu0
      %v1827 = vadd.f32 0.0, %v1826
      %v1828 = vpop.f32.mrb[0].mxu0
      %v1829 = vpop.f32.mrb[0].mxu0
      %v1830 = vadd.f32 0.0, %v1829
      %v1831 = vpop.f32.mrb[0].mxu0
      %1832 = vmatprep.mubr.bf16.mxu0 0
      %1833 = vmatmul.mubr.bf16.gmra.mrb[0].mxu0 %v1705
      %v1834 = vpop.f32.mrb[0].mxu0
      %v1835 = vadd.f32 0.0, %v1834
      %v1836 = vpop.f32.mrb[0].mxu0
      %v1837 = vpop.f32.mrb[0].mxu0
      %v1838 = vadd.f32 0.0, %v1837
      %v1839 = vpop.f32.mrb[0].mxu0
      %1840 = vmatprep.mubr.bf16.mxu0 0
      %1841 = vmatmul.mubr.bf16.gmra.mrb[0].mxu0 %v1708
      %v1842 = vpop.f32.mrb[0].mxu0
      %v1843 = vadd.f32 0.0, %v1842
      %v1844 = vpop.f32.mrb[0].mxu0
      %v1845 = vpop.f32.mrb[0].mxu0
      %v1846 = vadd.f32 0.0, %v1845
      %v1847 = vpop.f32.mrb[0].mxu0
      %1848 = vmatprep.mubr.bf16.mxu0 0
      %1849 = vmatmul.mubr.bf16.gmra.mrb[0].mxu0 %v1711
      %v1850 = vpop.f32.mrb[0].mxu0
      %v1851 = vadd.f32 0.0, %v1850
      %v1852 = vpop.f32.mrb[0].mxu0
      %v1853 = vpop.f32.mrb[0].mxu0
      %v1854 = vadd.f32 0.0, %v1853
      %v1855 = vpop.f32.mrb[0].mxu0
      %1856 = vmatprep.mubr.bf16.mxu0 0
      %1857 = vmatmul.mubr.bf16.gmra.mrb[0].mxu0 %v1714
      %v1858 = vpop.f32.mrb[0].mxu0
      %v1859 = vadd.f32 0.0, %v1858
      %v1860 = vpop.f32.mrb[0].mxu0
      %v1861 = vpop.f32.mrb[0].mxu0
      %v1862 = vadd.f32 0.0, %v1861
      %v1863 = vpop.f32.mrb[0].mxu0
      %1864 = vmatprep.mubr.bf16.mxu0 0
      %1865 = vmatmul.mubr.bf16.gmra.mrb[0].mxu0 %v1717
      %v1866 = vpop.f32.mrb[0].mxu0
      %v1867 = vadd.f32 0.0, %v1866
      %v1868 = vpop.f32.mrb[0].mxu0
      %v1869 = vpop.f32.mrb[0].mxu0
      %v1870 = vadd.f32 0.0, %v1869
      %v1871 = vpop.f32.mrb[0].mxu0
      %1872 = vmatprep.mubr.bf16.mxu0 0
      %1873 = vmatmul.mubr.bf16.gmra.mrb[0].mxu0 %v1720
      %v1874 = vpop.f32.mrb[0].mxu0
      %v1875 = vadd.f32 0.0, %v1874
      %v1876 = vpop.f32.mrb[0].mxu0
      %v1877 = vpop.f32.mrb[0].mxu0
      %v1878 = vadd.f32 0.0, %v1877
      %v1879 = vpop.f32.mrb[0].mxu0
      %1880 = vmatprep.mubr.bf16.mxu0 0
      %1881 = vmatmul.mubr.bf16.gmra.mrb[0].mxu0 %v1723
      %v1882 = vpop.f32.mrb[0].mxu0
      %v1883 = vadd.f32 0.0, %v1882
      %v1884 = vpop.f32.mrb[0].mxu0
      %v1885 = vpop.f32.mrb[0].mxu0
      %v1886 = vadd.f32 0.0, %v1885
      %v1887 = vpop.f32.mrb[0].mxu0
      %1888 = vdwg.mxu0
      %v1889 = vadd.f32 %v1595, %v1763
      %v1890 = vadd.f32 %v1596, %v1766
      %v1891 = vadd.f32 %v1597, %v1771
      %v1892 = vadd.f32 %v1598, %v1774
      %v1893 = vadd.f32 %v1599, %v1779
      %v1894 = vadd.f32 %v1600, %v1782
      %v1895 = vadd.f32 %v1601, %v1787
      %v1896 = vadd.f32 %v1602, %v1790
      %v1897 = vadd.f32 %v1603, %v1795
      %v1898 = vadd.f32 %v1604, %v1798
      %v1899 = vadd.f32 %v1605, %v1803
      %v1900 = vadd.f32 %v1606, %v1806
      %v1901 = vadd.f32 %v1607, %v1811
      %v1902 = vadd.f32 %v1608, %v1814
      %v1903 = vadd.f32 %v1609, %v1819
      %v1904 = vadd.f32 %v1610, %v1822
      %v1905 = vadd.f32 %v1611, %v1827
      %v1906 = vadd.f32 %v1612, %v1830
      %v1907 = vadd.f32 %v1613, %v1835
      %v1908 = vadd.f32 %v1614, %v1838
      %v1909 = vadd.f32 %v1615, %v1843
      %v1910 = vadd.f32 %v1616, %v1846
      %v1911 = vadd.f32 %v1617, %v1851
      %v1912 = vadd.f32 %v1618, %v1854
      %v1913 = vadd.f32 %v1619, %v1859
      %v1914 = vadd.f32 %v1620, %v1862
      %v1915 = vadd.f32 %v1621, %v1867
      %v1916 = vadd.f32 %v1622, %v1870
      %v1917 = vadd.f32 %v1623, %v1875
      %v1918 = vadd.f32 %v1624, %v1878
      %v1919 = vadd.f32 %v1625, %v1883
      %v1920 = vadd.f32 %v1626, %v1886
      %v1921 = vld [vmem:[%s482 + $0x4] sm:$0xff]
      %v1922 = vld [vmem:[%s482 + $0xc] sm:$0xff]
      %v1923 = vld [vmem:[%s482 + $0x1c] sm:$0xff]
      %v1924 = vld [vmem:[%s482 + $0x24] sm:$0xff]
      %v1925 = vld [vmem:[%s482 + $0x34] sm:$0xff]
      %v1926 = vld [vmem:[%s482 + $0x3c] sm:$0xff]
      %v1927 = vld [vmem:[%s482 + $0x4c] sm:$0xff]
      %v1928 = vld [vmem:[%s482 + $0x54] sm:$0xff]
      %v1929 = vld [vmem:[%s482 + $0x64] sm:$0xff]
      %v1930 = vld [vmem:[%s482 + $0x6c] sm:$0xff]
      %v1931 = vld [vmem:[%s482 + $0x7c] sm:$0xff]
      %v1932 = vld [vmem:[%s482 + $0x84] sm:$0xff]
      %v1933 = vld [vmem:[%s482 + $0x94] sm:$0xff]
      %v1934 = vld [vmem:[%s482 + $0x9c] sm:$0xff]
      %v1935 = vld [vmem:[%s482 + $0xac] sm:$0xff]
      %v1936 = vld [vmem:[%s482 + $0xb4] sm:$0xff]
      %v1937 = vld [vmem:[%s482 + $0xc4] sm:$0xff]
      %v1938 = vld [vmem:[%s482 + $0xcc] sm:$0xff]
      %v1939 = vld [vmem:[%s482 + $0xdc] sm:$0xff]
      %v1940 = vld [vmem:[%s482 + $0xe4] sm:$0xff]
      %v1941 = vld [vmem:[%s482 + $0xf4] sm:$0xff]
      %v1942 = vld [vmem:[%s482 + $0xfc] sm:$0xff]
      %v1943 = vld [vmem:[%s482 + $0x10c] sm:$0xff]
      %v1944 = vld [vmem:[%s482 + $0x114] sm:$0xff]
      %v1945 = vld [vmem:[%s482 + $0x124] sm:$0xff]
      %v1946 = vld [vmem:[%s482 + $0x12c] sm:$0xff]
      %v1947 = vld [vmem:[%s482 + $0x13c] sm:$0xff]
      %v1948 = vld [vmem:[%s482 + $0x144] sm:$0xff]
      %v1949 = vld [vmem:[%s482 + $0x154] sm:$0xff]
      %v1950 = vld [vmem:[%s482 + $0x15c] sm:$0xff]
      %v1951 = vld [vmem:[%s482 + $0x16c] sm:$0xff]
      %v1952 = vld [vmem:[%s482 + $0x174] sm:$0xff]
      %v1953 = vpack.c.bf16 %v1922, %v1921
      %v1954 = vpack.c.bf16 %v1924, %v1923
      %v1955 = vpack.c.bf16 %v1926, %v1925
      %v1956 = vpack.c.bf16 %v1928, %v1927
      %v1957 = vpack.c.bf16 %v1930, %v1929
      %v1958 = vpack.c.bf16 %v1932, %v1931
      %v1959 = vpack.c.bf16 %v1934, %v1933
      %v1960 = vpack.c.bf16 %v1936, %v1935
      %v1961 = vpack.c.bf16 %v1938, %v1937
      %v1962 = vpack.c.bf16 %v1940, %v1939
      %v1963 = vpack.c.bf16 %v1942, %v1941
      %v1964 = vpack.c.bf16 %v1944, %v1943
      %v1965 = vpack.c.bf16 %v1946, %v1945
      %v1966 = vpack.c.bf16 %v1948, %v1947
      %v1967 = vpack.c.bf16 %v1950, %v1949
      %v1968 = vpack.c.bf16 %v1952, %v1951
      %s1969 = scalar_lea.vmem %s4, 20
      %v1970 = vld [vmem:[%s1969] sm:$0xf]
      %v1972 = vsel %vm420, %v1953, 0
      %v1975 = vsel %vm420, %v1954, 0
      %v1978 = vsel %vm420, %v1955, 0
      %v1981 = vsel %vm420, %v1956, 0
      %v1984 = vsel %vm420, %v1957, 0
      %v1987 = vsel %vm420, %v1958, 0
      %v1990 = vsel %vm420, %v1959, 0
      %v1993 = vsel %vm420, %v1960, 0
      %v1996 = vsel %vm420, %v1961, 0
      %v1999 = vsel %vm420, %v1962, 0
      %v2002 = vsel %vm420, %v1963, 0
      %v2005 = vsel %vm420, %v1964, 0
      %v2008 = vsel %vm420, %v1965, 0
      %v2011 = vsel %vm420, %v1966, 0
      %v2014 = vsel %vm420, %v1967, 0
      %v2017 = vsel %vm420, %v1968, 0
      %v2020 = vsel %vm662, %v1970, 0
      %2022 = vmatprep.subr.bf16.mxu0 0
      %2023 = vmatpush1.bf16.msra.mxu0 %v2020
      %2024 = vmatprep.subr.bf16.mxu0 0
      %2025 = vmatpush1.bf16.msra.mxu0 0
      %2026 = vmatprep.subr.bf16.mxu0 0
      %2027 = vmatpush1.bf16.msra.mxu0 0
      %2028 = vmatprep.subr.bf16.mxu0 0
      %2029 = vmatpush1.bf16.msra.mxu0 0
      %2030 = vmatprep.subr.bf16.mxu0 0
      %2031 = vmatpush1.bf16.msra.mxu0 0
      %2032 = vmatprep.subr.bf16.mxu0 0
      %2033 = vmatpush1.bf16.msra.mxu0 0
      %2034 = vmatprep.subr.bf16.mxu0 0
      %2035 = vmatpush1.bf16.msra.mxu0 0
      %2036 = vmatprep.subr.bf16.mxu0 0
      %2037 = vmatpush1.bf16.msra.mxu0 0
      %2038 = vmatprep.subr.bf16.mxu0 0
      %2039 = vmatpush1.bf16.msra.mxu0 0
      %2040 = vmatprep.subr.bf16.mxu0 0
      %2041 = vmatpush1.bf16.msra.mxu0 0
      %2042 = vmatprep.subr.bf16.mxu0 0
      %2043 = vmatpush1.bf16.msra.mxu0 0
      %2044 = vmatprep.subr.bf16.mxu0 0
      %2045 = vmatpush1.bf16.msra.mxu0 0
      %2046 = vmatprep.subr.bf16.mxu0 0
      %2047 = vmatpush1.bf16.msra.mxu0 0
      %2048 = vmatprep.subr.bf16.mxu0 0
      %2049 = vmatpush1.bf16.msra.mxu0 0
      %2050 = vmatprep.subr.bf16.mxu0 0
      %2051 = vmatpush1.bf16.msra.mxu0 0
      %2052 = vmatprep.subr.bf16.mxu0 0
      %2053 = vmatpush1.bf16.msra.mxu0 0
      %2054 = vmatprep.mubr.bf16.mxu0 0
      %2055 = vmatmul.mubr.bf16.gmra.mrb[0].mxu0 %v1972
      %v2056 = vpop.f32.mrb[0].mxu0
      %v2057 = vadd.f32 0.0, %v2056
      %v2058 = vpop.f32.mrb[0].mxu0
      %v2059 = vpop.f32.mrb[0].mxu0
      %v2060 = vadd.f32 0.0, %v2059
      %v2061 = vpop.f32.mrb[0].mxu0
      %2062 = vmatprep.mubr.bf16.mxu0 0
      %2063 = vmatmul.mubr.bf16.gmra.mrb[0].mxu0 %v1975
      %v2064 = vpop.f32.mrb[0].mxu0
      %v2065 = vadd.f32 0.0, %v2064
      %v2066 = vpop.f32.mrb[0].mxu0
      %v2067 = vpop.f32.mrb[0].mxu0
      %v2068 = vadd.f32 0.0, %v2067
      %v2069 = vpop.f32.mrb[0].mxu0
      %2070 = vmatprep.mubr.bf16.mxu0 0
      %2071 = vmatmul.mubr.bf16.gmra.mrb[0].mxu0 %v1978
      %v2072 = vpop.f32.mrb[0].mxu0
      %v2073 = vadd.f32 0.0, %v2072
      %v2074 = vpop.f32.mrb[0].mxu0
      %v2075 = vpop.f32.mrb[0].mxu0
      %v2076 = vadd.f32 0.0, %v2075
      %v2077 = vpop.f32.mrb[0].mxu0
      %2078 = vmatprep.mubr.bf16.mxu0 0
      %2079 = vmatmul.mubr.bf16.gmra.mrb[0].mxu0 %v1981
      %v2080 = vpop.f32.mrb[0].mxu0
      %v2081 = vadd.f32 0.0, %v2080
      %v2082 = vpop.f32.mrb[0].mxu0
      %v2083 = vpop.f32.mrb[0].mxu0
      %v2084 = vadd.f32 0.0, %v2083
      %v2085 = vpop.f32.mrb[0].mxu0
      %2086 = vmatprep.mubr.bf16.mxu0 0
      %2087 = vmatmul.mubr.bf16.gmra.mrb[0].mxu0 %v1984
      %v2088 = vpop.f32.mrb[0].mxu0
      %v2089 = vadd.f32 0.0, %v2088
      %v2090 = vpop.f32.mrb[0].mxu0
      %v2091 = vpop.f32.mrb[0].mxu0
      %v2092 = vadd.f32 0.0, %v2091
      %v2093 = vpop.f32.mrb[0].mxu0
      %2094 = vmatprep.mubr.bf16.mxu0 0
      %2095 = vmatmul.mubr.bf16.gmra.mrb[0].mxu0 %v1987
      %v2096 = vpop.f32.mrb[0].mxu0
      %v2097 = vadd.f32 0.0, %v2096
      %v2098 = vpop.f32.mrb[0].mxu0
      %v2099 = vpop.f32.mrb[0].mxu0
      %v2100 = vadd.f32 0.0, %v2099
      %v2101 = vpop.f32.mrb[0].mxu0
      %2102 = vmatprep.mubr.bf16.mxu0 0
      %2103 = vmatmul.mubr.bf16.gmra.mrb[0].mxu0 %v1990
      %v2104 = vpop.f32.mrb[0].mxu0
      %v2105 = vadd.f32 0.0, %v2104
      %v2106 = vpop.f32.mrb[0].mxu0
      %v2107 = vpop.f32.mrb[0].mxu0
      %v2108 = vadd.f32 0.0, %v2107
      %v2109 = vpop.f32.mrb[0].mxu0
      %2110 = vmatprep.mubr.bf16.mxu0 0
      %2111 = vmatmul.mubr.bf16.gmra.mrb[0].mxu0 %v1993
      %v2112 = vpop.f32.mrb[0].mxu0
      %v2113 = vadd.f32 0.0, %v2112
      %v2114 = vpop.f32.mrb[0].mxu0
      %v2115 = vpop.f32.mrb[0].mxu0
      %v2116 = vadd.f32 0.0, %v2115
      %v2117 = vpop.f32.mrb[0].mxu0
      %2118 = vmatprep.mubr.bf16.mxu0 0
      %2119 = vmatmul.mubr.bf16.gmra.mrb[0].mxu0 %v1996
      %v2120 = vpop.f32.mrb[0].mxu0
      %v2121 = vadd.f32 0.0, %v2120
      %v2122 = vpop.f32.mrb[0].mxu0
      %v2123 = vpop.f32.mrb[0].mxu0
      %v2124 = vadd.f32 0.0, %v2123
      %v2125 = vpop.f32.mrb[0].mxu0
      %2126 = vmatprep.mubr.bf16.mxu0 0
      %2127 = vmatmul.mubr.bf16.gmra.mrb[0].mxu0 %v1999
      %v2128 = vpop.f32.mrb[0].mxu0
      %v2129 = vadd.f32 0.0, %v2128
      %v2130 = vpop.f32.mrb[0].mxu0
      %v2131 = vpop.f32.mrb[0].mxu0
      %v2132 = vadd.f32 0.0, %v2131
      %v2133 = vpop.f32.mrb[0].mxu0
      %2134 = vmatprep.mubr.bf16.mxu0 0
      %2135 = vmatmul.mubr.bf16.gmra.mrb[0].mxu0 %v2002
      %v2136 = vpop.f32.mrb[0].mxu0
      %v2137 = vadd.f32 0.0, %v2136
      %v2138 = vpop.f32.mrb[0].mxu0
      %v2139 = vpop.f32.mrb[0].mxu0
      %v2140 = vadd.f32 0.0, %v2139
      %v2141 = vpop.f32.mrb[0].mxu0
      %2142 = vmatprep.mubr.bf16.mxu0 0
      %2143 = vmatmul.mubr.bf16.gmra.mrb[0].mxu0 %v2005
      %v2144 = vpop.f32.mrb[0].mxu0
      %v2145 = vadd.f32 0.0, %v2144
      %v2146 = vpop.f32.mrb[0].mxu0
      %v2147 = vpop.f32.mrb[0].mxu0
      %v2148 = vadd.f32 0.0, %v2147
      %v2149 = vpop.f32.mrb[0].mxu0
      %2150 = vmatprep.mubr.bf16.mxu0 0
      %2151 = vmatmul.mubr.bf16.gmra.mrb[0].mxu0 %v2008
      %v2152 = vpop.f32.mrb[0].mxu0
      %v2153 = vadd.f32 0.0, %v2152
      %v2154 = vpop.f32.mrb[0].mxu0
      %v2155 = vpop.f32.mrb[0].mxu0
      %v2156 = vadd.f32 0.0, %v2155
      %v2157 = vpop.f32.mrb[0].mxu0
      %2158 = vmatprep.mubr.bf16.mxu0 0
      %2159 = vmatmul.mubr.bf16.gmra.mrb[0].mxu0 %v2011
      %v2160 = vpop.f32.mrb[0].mxu0
      %v2161 = vadd.f32 0.0, %v2160
      %v2162 = vpop.f32.mrb[0].mxu0
      %v2163 = vpop.f32.mrb[0].mxu0
      %v2164 = vadd.f32 0.0, %v2163
      %v2165 = vpop.f32.mrb[0].mxu0
      %2166 = vmatprep.mubr.bf16.mxu0 0
      %2167 = vmatmul.mubr.bf16.gmra.mrb[0].mxu0 %v2014
      %v2168 = vpop.f32.mrb[0].mxu0
      %v2169 = vadd.f32 0.0, %v2168
      %v2170 = vpop.f32.mrb[0].mxu0
      %v2171 = vpop.f32.mrb[0].mxu0
      %v2172 = vadd.f32 0.0, %v2171
      %v2173 = vpop.f32.mrb[0].mxu0
      %2174 = vmatprep.mubr.bf16.mxu0 0
      %2175 = vmatmul.mubr.bf16.gmra.mrb[0].mxu0 %v2017
      %v2176 = vpop.f32.mrb[0].mxu0
      %v2177 = vadd.f32 0.0, %v2176
      %v2178 = vpop.f32.mrb[0].mxu0
      %v2179 = vpop.f32.mrb[0].mxu0
      %v2180 = vadd.f32 0.0, %v2179
      %v2181 = vpop.f32.mrb[0].mxu0
      %2182 = vdwg.mxu0
      %v2183 = vadd.f32 %v1889, %v2057
      %v2184 = vadd.f32 %v1890, %v2060
      %v2185 = vadd.f32 %v1891, %v2065
      %v2186 = vadd.f32 %v1892, %v2068
      %v2187 = vadd.f32 %v1893, %v2073
      %v2188 = vadd.f32 %v1894, %v2076
      %v2189 = vadd.f32 %v1895, %v2081
      %v2190 = vadd.f32 %v1896, %v2084
      %v2191 = vadd.f32 %v1897, %v2089
      %v2192 = vadd.f32 %v1898, %v2092
      %v2193 = vadd.f32 %v1899, %v2097
      %v2194 = vadd.f32 %v1900, %v2100
      %v2195 = vadd.f32 %v1901, %v2105
      %v2196 = vadd.f32 %v1902, %v2108
      %v2197 = vadd.f32 %v1903, %v2113
      %v2198 = vadd.f32 %v1904, %v2116
      %v2199 = vadd.f32 %v1905, %v2121
      %v2200 = vadd.f32 %v1906, %v2124
      %v2201 = vadd.f32 %v1907, %v2129
      %v2202 = vadd.f32 %v1908, %v2132
      %v2203 = vadd.f32 %v1909, %v2137
      %v2204 = vadd.f32 %v1910, %v2140
      %v2205 = vadd.f32 %v1911, %v2145
      %v2206 = vadd.f32 %v1912, %v2148
      %v2207 = vadd.f32 %v1913, %v2153
      %v2208 = vadd.f32 %v1914, %v2156
      %v2209 = vadd.f32 %v1915, %v2161
      %v2210 = vadd.f32 %v1916, %v2164
      %v2211 = vadd.f32 %v1917, %v2169
      %v2212 = vadd.f32 %v1918, %v2172
      %v2213 = vadd.f32 %v1919, %v2177
      %v2214 = vadd.f32 %v1920, %v2180
      %s2215 = scalar_lea.vmem [#allocation2], 96
      %v2216 = vld [vmem:[%s2215] sm:$0xff]
      %v2217 = vld [vmem:[%s2215 + $0x8] sm:$0xff]
      %v2218 = vld [vmem:[%s2215 + $0x18] sm:$0xff]
      %v2219 = vld [vmem:[%s2215 + $0x20] sm:$0xff]
      %v2220 = vld [vmem:[%s2215 + $0x30] sm:$0xff]
      %v2221 = vld [vmem:[%s2215 + $0x38] sm:$0xff]
      %v2222 = vld [vmem:[%s2215 + $0x48] sm:$0xff]
      %v2223 = vld [vmem:[%s2215 + $0x50] sm:$0xff]
      %v2224 = vld [vmem:[%s2215 + $0x60] sm:$0xff]
      %v2225 = vld [vmem:[%s2215 + $0x68] sm:$0xff]
      %v2226 = vld [vmem:[%s2215 + $0x78] sm:$0xff]
      %v2227 = vld [vmem:[%s2215 + $0x80] sm:$0xff]
      %v2228 = vld [vmem:[%s2215 + $0x90] sm:$0xff]
      %v2229 = vld [vmem:[%s2215 + $0x98] sm:$0xff]
      %v2230 = vld [vmem:[%s2215 + $0xa8] sm:$0xff]
      %v2231 = vld [vmem:[%s2215 + $0xb0] sm:$0xff]
      %v2232 = vld [vmem:[%s2215 + $0xc0] sm:$0xff]
      %v2233 = vld [vmem:[%s2215 + $0xc8] sm:$0xff]
      %v2234 = vld [vmem:[%s2215 + $0xd8] sm:$0xff]
      %v2235 = vld [vmem:[%s2215 + $0xe0] sm:$0xff]
      %v2236 = vld [vmem:[%s2215 + $0xf0] sm:$0xff]
      %v2237 = vld [vmem:[%s2215 + $0xf8] sm:$0xff]
      %v2238 = vld [vmem:[%s2215 + $0x108] sm:$0xff]
      %v2239 = vld [vmem:[%s2215 + $0x110] sm:$0xff]
      %v2240 = vld [vmem:[%s2215 + $0x120] sm:$0xff]
      %v2241 = vld [vmem:[%s2215 + $0x128] sm:$0xff]
      %v2242 = vld [vmem:[%s2215 + $0x138] sm:$0xff]
      %v2243 = vld [vmem:[%s2215 + $0x140] sm:$0xff]
      %v2244 = vld [vmem:[%s2215 + $0x150] sm:$0xff]
      %v2245 = vld [vmem:[%s2215 + $0x158] sm:$0xff]
      %v2246 = vld [vmem:[%s2215 + $0x168] sm:$0xff]
      %v2247 = vld [vmem:[%s2215 + $0x170] sm:$0xff]
      %v2248 = vpack.c.bf16 %v2217, %v2216
      %v2249 = vpack.c.bf16 %v2219, %v2218
      %v2250 = vpack.c.bf16 %v2221, %v2220
      %v2251 = vpack.c.bf16 %v2223, %v2222
      %v2252 = vpack.c.bf16 %v2225, %v2224
      %v2253 = vpack.c.bf16 %v2227, %v2226
      %v2254 = vpack.c.bf16 %v2229, %v2228
      %v2255 = vpack.c.bf16 %v2231, %v2230
      %v2256 = vpack.c.bf16 %v2233, %v2232
      %v2257 = vpack.c.bf16 %v2235, %v2234
      %v2258 = vpack.c.bf16 %v2237, %v2236
      %v2259 = vpack.c.bf16 %v2239, %v2238
      %v2260 = vpack.c.bf16 %v2241, %v2240
      %v2261 = vpack.c.bf16 %v2243, %v2242
      %v2262 = vpack.c.bf16 %v2245, %v2244
      %v2263 = vpack.c.bf16 %v2247, %v2246
      %s2264 = scalar_lea.vmem %s4, 24
      %v2265 = vld [vmem:[%s2264] sm:$0xf]
      %v2267 = vsel %vm420, %v2248, 0
      %v2270 = vsel %vm420, %v2249, 0
      %v2273 = vsel %vm420, %v2250, 0
      %v2276 = vsel %vm420, %v2251, 0
      %v2279 = vsel %vm420, %v2252, 0
      %v2282 = vsel %vm420, %v2253, 0
      %v2285 = vsel %vm420, %v2254, 0
      %v2288 = vsel %vm420, %v2255, 0
      %v2291 = vsel %vm420, %v2256, 0
      %v2294 = vsel %vm420, %v2257, 0
      %v2297 = vsel %vm420, %v2258, 0
      %v2300 = vsel %vm420, %v2259, 0
      %v2303 = vsel %vm420, %v2260, 0
      %v2306 = vsel %vm420, %v2261, 0
      %v2309 = vsel %vm420, %v2262, 0
      %v2312 = vsel %vm420, %v2263, 0
      %v2315 = vsel %vm662, %v2265, 0
      %2317 = vmatprep.subr.bf16.mxu0 0
      %2318 = vmatpush1.bf16.msra.mxu0 %v2315
      %2319 = vmatprep.subr.bf16.mxu0 0
      %2320 = vmatpush1.bf16.msra.mxu0 0
      %2321 = vmatprep.subr.bf16.mxu0 0
      %2322 = vmatpush1.bf16.msra.mxu0 0
      %2323 = vmatprep.subr.bf16.mxu0 0
      %2324 = vmatpush1.bf16.msra.mxu0 0
      %2325 = vmatprep.subr.bf16.mxu0 0
      %2326 = vmatpush1.bf16.msra.mxu0 0
      %2327 = vmatprep.subr.bf16.mxu0 0
      %2328 = vmatpush1.bf16.msra.mxu0 0
      %2329 = vmatprep.subr.bf16.mxu0 0
      %2330 = vmatpush1.bf16.msra.mxu0 0
      %2331 = vmatprep.subr.bf16.mxu0 0
      %2332 = vmatpush1.bf16.msra.mxu0 0
      %2333 = vmatprep.subr.bf16.mxu0 0
      %2334 = vmatpush1.bf16.msra.mxu0 0
      %2335 = vmatprep.subr.bf16.mxu0 0
      %2336 = vmatpush1.bf16.msra.mxu0 0
      %2337 = vmatprep.subr.bf16.mxu0 0
      %2338 = vmatpush1.bf16.msra.mxu0 0
      %2339 = vmatprep.subr.bf16.mxu0 0
      %2340 = vmatpush1.bf16.msra.mxu0 0
      %2341 = vmatprep.subr.bf16.mxu0 0
      %2342 = vmatpush1.bf16.msra.mxu0 0
      %2343 = vmatprep.subr.bf16.mxu0 0
      %2344 = vmatpush1.bf16.msra.mxu0 0
      %2345 = vmatprep.subr.bf16.mxu0 0
      %2346 = vmatpush1.bf16.msra.mxu0 0
      %2347 = vmatprep.subr.bf16.mxu0 0
      %2348 = vmatpush1.bf16.msra.mxu0 0
      %2349 = vmatprep.mubr.bf16.mxu0 0
      %2350 = vmatmul.mubr.bf16.gmra.mrb[0].mxu0 %v2267
      %v2351 = vpop.f32.mrb[0].mxu0
      %v2352 = vadd.f32 0.0, %v2351
      %v2353 = vpop.f32.mrb[0].mxu0
      %v2354 = vpop.f32.mrb[0].mxu0
      %v2355 = vadd.f32 0.0, %v2354
      %v2356 = vpop.f32.mrb[0].mxu0
      %2357 = vmatprep.mubr.bf16.mxu0 0
      %2358 = vmatmul.mubr.bf16.gmra.mrb[0].mxu0 %v2270
      %v2359 = vpop.f32.mrb[0].mxu0
      %v2360 = vadd.f32 0.0, %v2359
      %v2361 = vpop.f32.mrb[0].mxu0
      %v2362 = vpop.f32.mrb[0].mxu0
      %v2363 = vadd.f32 0.0, %v2362
      %v2364 = vpop.f32.mrb[0].mxu0
      %2365 = vmatprep.mubr.bf16.mxu0 0
      %2366 = vmatmul.mubr.bf16.gmra.mrb[0].mxu0 %v2273
      %v2367 = vpop.f32.mrb[0].mxu0
      %v2368 = vadd.f32 0.0, %v2367
      %v2369 = vpop.f32.mrb[0].mxu0
      %v2370 = vpop.f32.mrb[0].mxu0
      %v2371 = vadd.f32 0.0, %v2370
      %v2372 = vpop.f32.mrb[0].mxu0
      %2373 = vmatprep.mubr.bf16.mxu0 0
      %2374 = vmatmul.mubr.bf16.gmra.mrb[0].mxu0 %v2276
      %v2375 = vpop.f32.mrb[0].mxu0
      %v2376 = vadd.f32 0.0, %v2375
      %v2377 = vpop.f32.mrb[0].mxu0
      %v2378 = vpop.f32.mrb[0].mxu0
      %v2379 = vadd.f32 0.0, %v2378
      %v2380 = vpop.f32.mrb[0].mxu0
      %2381 = vmatprep.mubr.bf16.mxu0 0
      %2382 = vmatmul.mubr.bf16.gmra.mrb[0].mxu0 %v2279
      %v2383 = vpop.f32.mrb[0].mxu0
      %v2384 = vadd.f32 0.0, %v2383
      %v2385 = vpop.f32.mrb[0].mxu0
      %v2386 = vpop.f32.mrb[0].mxu0
      %v2387 = vadd.f32 0.0, %v2386
      %v2388 = vpop.f32.mrb[0].mxu0
      %2389 = vmatprep.mubr.bf16.mxu0 0
      %2390 = vmatmul.mubr.bf16.gmra.mrb[0].mxu0 %v2282
      %v2391 = vpop.f32.mrb[0].mxu0
      %v2392 = vadd.f32 0.0, %v2391
      %v2393 = vpop.f32.mrb[0].mxu0
      %v2394 = vpop.f32.mrb[0].mxu0
      %v2395 = vadd.f32 0.0, %v2394
      %v2396 = vpop.f32.mrb[0].mxu0
      %2397 = vmatprep.mubr.bf16.mxu0 0
      %2398 = vmatmul.mubr.bf16.gmra.mrb[0].mxu0 %v2285
      %v2399 = vpop.f32.mrb[0].mxu0
      %v2400 = vadd.f32 0.0, %v2399
      %v2401 = vpop.f32.mrb[0].mxu0
      %v2402 = vpop.f32.mrb[0].mxu0
      %v2403 = vadd.f32 0.0, %v2402
      %v2404 = vpop.f32.mrb[0].mxu0
      %2405 = vmatprep.mubr.bf16.mxu0 0
      %2406 = vmatmul.mubr.bf16.gmra.mrb[0].mxu0 %v2288
      %v2407 = vpop.f32.mrb[0].mxu0
      %v2408 = vadd.f32 0.0, %v2407
      %v2409 = vpop.f32.mrb[0].mxu0
      %v2410 = vpop.f32.mrb[0].mxu0
      %v2411 = vadd.f32 0.0, %v2410
      %v2412 = vpop.f32.mrb[0].mxu0
      %2413 = vmatprep.mubr.bf16.mxu0 0
      %2414 = vmatmul.mubr.bf16.gmra.mrb[0].mxu0 %v2291
      %v2415 = vpop.f32.mrb[0].mxu0
      %v2416 = vadd.f32 0.0, %v2415
      %v2417 = vpop.f32.mrb[0].mxu0
      %v2418 = vpop.f32.mrb[0].mxu0
      %v2419 = vadd.f32 0.0, %v2418
      %v2420 = vpop.f32.mrb[0].mxu0
      %2421 = vmatprep.mubr.bf16.mxu0 0
      %2422 = vmatmul.mubr.bf16.gmra.mrb[0].mxu0 %v2294
      %v2423 = vpop.f32.mrb[0].mxu0
      %v2424 = vadd.f32 0.0, %v2423
      %v2425 = vpop.f32.mrb[0].mxu0
      %v2426 = vpop.f32.mrb[0].mxu0
      %v2427 = vadd.f32 0.0, %v2426
      %v2428 = vpop.f32.mrb[0].mxu0
      %2429 = vmatprep.mubr.bf16.mxu0 0
      %2430 = vmatmul.mubr.bf16.gmra.mrb[0].mxu0 %v2297
      %v2431 = vpop.f32.mrb[0].mxu0
      %v2432 = vadd.f32 0.0, %v2431
      %v2433 = vpop.f32.mrb[0].mxu0
      %v2434 = vpop.f32.mrb[0].mxu0
      %v2435 = vadd.f32 0.0, %v2434
      %v2436 = vpop.f32.mrb[0].mxu0
      %2437 = vmatprep.mubr.bf16.mxu0 0
      %2438 = vmatmul.mubr.bf16.gmra.mrb[0].mxu0 %v2300
      %v2439 = vpop.f32.mrb[0].mxu0
      %v2440 = vadd.f32 0.0, %v2439
      %v2441 = vpop.f32.mrb[0].mxu0
      %v2442 = vpop.f32.mrb[0].mxu0
      %v2443 = vadd.f32 0.0, %v2442
      %v2444 = vpop.f32.mrb[0].mxu0
      %2445 = vmatprep.mubr.bf16.mxu0 0
      %2446 = vmatmul.mubr.bf16.gmra.mrb[0].mxu0 %v2303
      %v2447 = vpop.f32.mrb[0].mxu0
      %v2448 = vadd.f32 0.0, %v2447
      %v2449 = vpop.f32.mrb[0].mxu0
      %v2450 = vpop.f32.mrb[0].mxu0
      %v2451 = vadd.f32 0.0, %v2450
      %v2452 = vpop.f32.mrb[0].mxu0
      %2453 = vmatprep.mubr.bf16.mxu0 0
      %2454 = vmatmul.mubr.bf16.gmra.mrb[0].mxu0 %v2306
      %v2455 = vpop.f32.mrb[0].mxu0
      %v2456 = vadd.f32 0.0, %v2455
      %v2457 = vpop.f32.mrb[0].mxu0
      %v2458 = vpop.f32.mrb[0].mxu0
      %v2459 = vadd.f32 0.0, %v2458
      %v2460 = vpop.f32.mrb[0].mxu0
      %2461 = vmatprep.mubr.bf16.mxu0 0
      %2462 = vmatmul.mubr.bf16.gmra.mrb[0].mxu0 %v2309
      %v2463 = vpop.f32.mrb[0].mxu0
      %v2464 = vadd.f32 0.0, %v2463
      %v2465 = vpop.f32.mrb[0].mxu0
      %v2466 = vpop.f32.mrb[0].mxu0
      %v2467 = vadd.f32 0.0, %v2466
      %v2468 = vpop.f32.mrb[0].mxu0
      %2469 = vmatprep.mubr.bf16.mxu0 0
      %2470 = vmatmul.mubr.bf16.gmra.mrb[0].mxu0 %v2312
      %v2471 = vpop.f32.mrb[0].mxu0
      %v2472 = vadd.f32 0.0, %v2471
      %v2473 = vpop.f32.mrb[0].mxu0
      %v2474 = vpop.f32.mrb[0].mxu0
      %v2475 = vadd.f32 0.0, %v2474
      %v2476 = vpop.f32.mrb[0].mxu0
      %2477 = vdwg.mxu0
      %v2478 = vadd.f32 %v2183, %v2352
      %v2479 = vadd.f32 %v2184, %v2355
      %v2480 = vadd.f32 %v2185, %v2360
      %v2481 = vadd.f32 %v2186, %v2363
      %v2482 = vadd.f32 %v2187, %v2368
      %v2483 = vadd.f32 %v2188, %v2371
      %v2484 = vadd.f32 %v2189, %v2376
      %v2485 = vadd.f32 %v2190, %v2379
      %v2486 = vadd.f32 %v2191, %v2384
      %v2487 = vadd.f32 %v2192, %v2387
      %v2488 = vadd.f32 %v2193, %v2392
      %v2489 = vadd.f32 %v2194, %v2395
      %v2490 = vadd.f32 %v2195, %v2400
      %v2491 = vadd.f32 %v2196, %v2403
      %v2492 = vadd.f32 %v2197, %v2408
      %v2493 = vadd.f32 %v2198, %v2411
      %v2494 = vadd.f32 %v2199, %v2416
      %v2495 = vadd.f32 %v2200, %v2419
      %v2496 = vadd.f32 %v2201, %v2424
      %v2497 = vadd.f32 %v2202, %v2427
      %v2498 = vadd.f32 %v2203, %v2432
      %v2499 = vadd.f32 %v2204, %v2435
      %v2500 = vadd.f32 %v2205, %v2440
      %v2501 = vadd.f32 %v2206, %v2443
      %v2502 = vadd.f32 %v2207, %v2448
      %v2503 = vadd.f32 %v2208, %v2451
      %v2504 = vadd.f32 %v2209, %v2456
      %v2505 = vadd.f32 %v2210, %v2459
      %v2506 = vadd.f32 %v2211, %v2464
      %v2507 = vadd.f32 %v2212, %v2467
      %v2508 = vadd.f32 %v2213, %v2472
      %v2509 = vadd.f32 %v2214, %v2475
      %v2510 = vld [vmem:[%s2215 + $0x2] sm:$0xff]
      %v2511 = vld [vmem:[%s2215 + $0xa] sm:$0xff]
      %v2512 = vld [vmem:[%s2215 + $0x1a] sm:$0xff]
      %v2513 = vld [vmem:[%s2215 + $0x22] sm:$0xff]
      %v2514 = vld [vmem:[%s2215 + $0x32] sm:$0xff]
      %v2515 = vld [vmem:[%s2215 + $0x3a] sm:$0xff]
      %v2516 = vld [vmem:[%s2215 + $0x4a] sm:$0xff]
      %v2517 = vld [vmem:[%s2215 + $0x52] sm:$0xff]
      %v2518 = vld [vmem:[%s2215 + $0x62] sm:$0xff]
      %v2519 = vld [vmem:[%s2215 + $0x6a] sm:$0xff]
      %v2520 = vld [vmem:[%s2215 + $0x7a] sm:$0xff]
      %v2521 = vld [vmem:[%s2215 + $0x82] sm:$0xff]
      %v2522 = vld [vmem:[%s2215 + $0x92] sm:$0xff]
      %v2523 = vld [vmem:[%s2215 + $0x9a] sm:$0xff]
      %v2524 = vld [vmem:[%s2215 + $0xaa] sm:$0xff]
      %v2525 = vld [vmem:[%s2215 + $0xb2] sm:$0xff]
      %v2526 = vld [vmem:[%s2215 + $0xc2] sm:$0xff]
      %v2527 = vld [vmem:[%s2215 + $0xca] sm:$0xff]
      %v2528 = vld [vmem:[%s2215 + $0xda] sm:$0xff]
      %v2529 = vld [vmem:[%s2215 + $0xe2] sm:$0xff]
      %v2530 = vld [vmem:[%s2215 + $0xf2] sm:$0xff]
      %v2531 = vld [vmem:[%s2215 + $0xfa] sm:$0xff]
      %v2532 = vld [vmem:[%s2215 + $0x10a] sm:$0xff]
      %v2533 = vld [vmem:[%s2215 + $0x112] sm:$0xff]
      %v2534 = vld [vmem:[%s2215 + $0x122] sm:$0xff]
      %v2535 = vld [vmem:[%s2215 + $0x12a] sm:$0xff]
      %v2536 = vld [vmem:[%s2215 + $0x13a] sm:$0xff]
      %v2537 = vld [vmem:[%s2215 + $0x142] sm:$0xff]
      %v2538 = vld [vmem:[%s2215 + $0x152] sm:$0xff]
      %v2539 = vld [vmem:[%s2215 + $0x15a] sm:$0xff]
      %v2540 = vld [vmem:[%s2215 + $0x16a] sm:$0xff]
      %v2541 = vld [vmem:[%s2215 + $0x172] sm:$0xff]
      %v2542 = vpack.c.bf16 %v2511, %v2510
      %v2543 = vpack.c.bf16 %v2513, %v2512
      %v2544 = vpack.c.bf16 %v2515, %v2514
      %v2545 = vpack.c.bf16 %v2517, %v2516
      %v2546 = vpack.c.bf16 %v2519, %v2518
      %v2547 = vpack.c.bf16 %v2521, %v2520
      %v2548 = vpack.c.bf16 %v2523, %v2522
      %v2549 = vpack.c.bf16 %v2525, %v2524
      %v2550 = vpack.c.bf16 %v2527, %v2526
      %v2551 = vpack.c.bf16 %v2529, %v2528
      %v2552 = vpack.c.bf16 %v2531, %v2530
      %v2553 = vpack.c.bf16 %v2533, %v2532
      %v2554 = vpack.c.bf16 %v2535, %v2534
      %v2555 = vpack.c.bf16 %v2537, %v2536
      %v2556 = vpack.c.bf16 %v2539, %v2538
      %v2557 = vpack.c.bf16 %v2541, %v2540
      %s2558 = scalar_lea.vmem %s4, 28
      %v2559 = vld [vmem:[%s2558] sm:$0xf]
      %v2561 = vsel %vm420, %v2542, 0
      %v2564 = vsel %vm420, %v2543, 0
      %v2567 = vsel %vm420, %v2544, 0
      %v2570 = vsel %vm420, %v2545, 0
      %v2573 = vsel %vm420, %v2546, 0
      %v2576 = vsel %vm420, %v2547, 0
      %v2579 = vsel %vm420, %v2548, 0
      %v2582 = vsel %vm420, %v2549, 0
      %v2585 = vsel %vm420, %v2550, 0
      %v2588 = vsel %vm420, %v2551, 0
      %v2591 = vsel %vm420, %v2552, 0
      %v2594 = vsel %vm420, %v2553, 0
      %v2597 = vsel %vm420, %v2554, 0
      %v2600 = vsel %vm420, %v2555, 0
      %v2603 = vsel %vm420, %v2556, 0
      %v2606 = vsel %vm420, %v2557, 0
      %v2609 = vsel %vm662, %v2559, 0
      %2611 = vmatprep.subr.bf16.mxu0 0
      %2612 = vmatpush1.bf16.msra.mxu0 %v2609
      %2613 = vmatprep.subr.bf16.mxu0 0
      %2614 = vmatpush1.bf16.msra.mxu0 0
      %2615 = vmatprep.subr.bf16.mxu0 0
      %2616 = vmatpush1.bf16.msra.mxu0 0
      %2617 = vmatprep.subr.bf16.mxu0 0
      %2618 = vmatpush1.bf16.msra.mxu0 0
      %2619 = vmatprep.subr.bf16.mxu0 0
      %2620 = vmatpush1.bf16.msra.mxu0 0
      %2621 = vmatprep.subr.bf16.mxu0 0
      %2622 = vmatpush1.bf16.msra.mxu0 0
      %2623 = vmatprep.subr.bf16.mxu0 0
      %2624 = vmatpush1.bf16.msra.mxu0 0
      %2625 = vmatprep.subr.bf16.mxu0 0
      %2626 = vmatpush1.bf16.msra.mxu0 0
      %2627 = vmatprep.subr.bf16.mxu0 0
      %2628 = vmatpush1.bf16.msra.mxu0 0
      %2629 = vmatprep.subr.bf16.mxu0 0
      %2630 = vmatpush1.bf16.msra.mxu0 0
      %2631 = vmatprep.subr.bf16.mxu0 0
      %2632 = vmatpush1.bf16.msra.mxu0 0
      %2633 = vmatprep.subr.bf16.mxu0 0
      %2634 = vmatpush1.bf16.msra.mxu0 0
      %2635 = vmatprep.subr.bf16.mxu0 0
      %2636 = vmatpush1.bf16.msra.mxu0 0
      %2637 = vmatprep.subr.bf16.mxu0 0
      %2638 = vmatpush1.bf16.msra.mxu0 0
      %2639 = vmatprep.subr.bf16.mxu0 0
      %2640 = vmatpush1.bf16.msra.mxu0 0
      %2641 = vmatprep.subr.bf16.mxu0 0
      %2642 = vmatpush1.bf16.msra.mxu0 0
      %2643 = vmatprep.mubr.bf16.mxu0 0
      %2644 = vmatmul.mubr.bf16.gmra.mrb[0].mxu0 %v2561
      %v2645 = vpop.f32.mrb[0].mxu0
      %v2646 = vadd.f32 0.0, %v2645
      %v2647 = vpop.f32.mrb[0].mxu0
      %v2648 = vpop.f32.mrb[0].mxu0
      %v2649 = vadd.f32 0.0, %v2648
      %v2650 = vpop.f32.mrb[0].mxu0
      %2651 = vmatprep.mubr.bf16.mxu0 0
      %2652 = vmatmul.mubr.bf16.gmra.mrb[0].mxu0 %v2564
      %v2653 = vpop.f32.mrb[0].mxu0
      %v2654 = vadd.f32 0.0, %v2653
      %v2655 = vpop.f32.mrb[0].mxu0
      %v2656 = vpop.f32.mrb[0].mxu0
      %v2657 = vadd.f32 0.0, %v2656
      %v2658 = vpop.f32.mrb[0].mxu0
      %2659 = vmatprep.mubr.bf16.mxu0 0
      %2660 = vmatmul.mubr.bf16.gmra.mrb[0].mxu0 %v2567
      %v2661 = vpop.f32.mrb[0].mxu0
      %v2662 = vadd.f32 0.0, %v2661
      %v2663 = vpop.f32.mrb[0].mxu0
      %v2664 = vpop.f32.mrb[0].mxu0
      %v2665 = vadd.f32 0.0, %v2664
      %v2666 = vpop.f32.mrb[0].mxu0
      %2667 = vmatprep.mubr.bf16.mxu0 0
      %2668 = vmatmul.mubr.bf16.gmra.mrb[0].mxu0 %v2570
      %v2669 = vpop.f32.mrb[0].mxu0
      %v2670 = vadd.f32 0.0, %v2669
      %v2671 = vpop.f32.mrb[0].mxu0
      %v2672 = vpop.f32.mrb[0].mxu0
      %v2673 = vadd.f32 0.0, %v2672
      %v2674 = vpop.f32.mrb[0].mxu0
      %2675 = vmatprep.mubr.bf16.mxu0 0
      %2676 = vmatmul.mubr.bf16.gmra.mrb[0].mxu0 %v2573
      %v2677 = vpop.f32.mrb[0].mxu0
      %v2678 = vadd.f32 0.0, %v2677
      %v2679 = vpop.f32.mrb[0].mxu0
      %v2680 = vpop.f32.mrb[0].mxu0
      %v2681 = vadd.f32 0.0, %v2680
      %v2682 = vpop.f32.mrb[0].mxu0
      %2683 = vmatprep.mubr.bf16.mxu0 0
      %2684 = vmatmul.mubr.bf16.gmra.mrb[0].mxu0 %v2576
      %v2685 = vpop.f32.mrb[0].mxu0
      %v2686 = vadd.f32 0.0, %v2685
      %v2687 = vpop.f32.mrb[0].mxu0
      %v2688 = vpop.f32.mrb[0].mxu0
      %v2689 = vadd.f32 0.0, %v2688
      %v2690 = vpop.f32.mrb[0].mxu0
      %2691 = vmatprep.mubr.bf16.mxu0 0
      %2692 = vmatmul.mubr.bf16.gmra.mrb[0].mxu0 %v2579
      %v2693 = vpop.f32.mrb[0].mxu0
      %v2694 = vadd.f32 0.0, %v2693
      %v2695 = vpop.f32.mrb[0].mxu0
      %v2696 = vpop.f32.mrb[0].mxu0
      %v2697 = vadd.f32 0.0, %v2696
      %v2698 = vpop.f32.mrb[0].mxu0
      %2699 = vmatprep.mubr.bf16.mxu0 0
      %2700 = vmatmul.mubr.bf16.gmra.mrb[0].mxu0 %v2582
      %v2701 = vpop.f32.mrb[0].mxu0
      %v2702 = vadd.f32 0.0, %v2701
      %v2703 = vpop.f32.mrb[0].mxu0
      %v2704 = vpop.f32.mrb[0].mxu0
      %v2705 = vadd.f32 0.0, %v2704
      %v2706 = vpop.f32.mrb[0].mxu0
      %2707 = vmatprep.mubr.bf16.mxu0 0
      %2708 = vmatmul.mubr.bf16.gmra.mrb[0].mxu0 %v2585
      %v2709 = vpop.f32.mrb[0].mxu0
      %v2710 = vadd.f32 0.0, %v2709
      %v2711 = vpop.f32.mrb[0].mxu0
      %v2712 = vpop.f32.mrb[0].mxu0
      %v2713 = vadd.f32 0.0, %v2712
      %v2714 = vpop.f32.mrb[0].mxu0
      %2715 = vmatprep.mubr.bf16.mxu0 0
      %2716 = vmatmul.mubr.bf16.gmra.mrb[0].mxu0 %v2588
      %v2717 = vpop.f32.mrb[0].mxu0
      %v2718 = vadd.f32 0.0, %v2717
      %v2719 = vpop.f32.mrb[0].mxu0
      %v2720 = vpop.f32.mrb[0].mxu0
      %v2721 = vadd.f32 0.0, %v2720
      %v2722 = vpop.f32.mrb[0].mxu0
      %2723 = vmatprep.mubr.bf16.mxu0 0
      %2724 = vmatmul.mubr.bf16.gmra.mrb[0].mxu0 %v2591
      %v2725 = vpop.f32.mrb[0].mxu0
      %v2726 = vadd.f32 0.0, %v2725
      %v2727 = vpop.f32.mrb[0].mxu0
      %v2728 = vpop.f32.mrb[0].mxu0
      %v2729 = vadd.f32 0.0, %v2728
      %v2730 = vpop.f32.mrb[0].mxu0
      %2731 = vmatprep.mubr.bf16.mxu0 0
      %2732 = vmatmul.mubr.bf16.gmra.mrb[0].mxu0 %v2594
      %v2733 = vpop.f32.mrb[0].mxu0
      %v2734 = vadd.f32 0.0, %v2733
      %v2735 = vpop.f32.mrb[0].mxu0
      %v2736 = vpop.f32.mrb[0].mxu0
      %v2737 = vadd.f32 0.0, %v2736
      %v2738 = vpop.f32.mrb[0].mxu0
      %2739 = vmatprep.mubr.bf16.mxu0 0
      %2740 = vmatmul.mubr.bf16.gmra.mrb[0].mxu0 %v2597
      %v2741 = vpop.f32.mrb[0].mxu0
      %v2742 = vadd.f32 0.0, %v2741
      %v2743 = vpop.f32.mrb[0].mxu0
      %v2744 = vpop.f32.mrb[0].mxu0
      %v2745 = vadd.f32 0.0, %v2744
      %v2746 = vpop.f32.mrb[0].mxu0
      %2747 = vmatprep.mubr.bf16.mxu0 0
      %2748 = vmatmul.mubr.bf16.gmra.mrb[0].mxu0 %v2600
      %v2749 = vpop.f32.mrb[0].mxu0
      %v2750 = vadd.f32 0.0, %v2749
      %v2751 = vpop.f32.mrb[0].mxu0
      %v2752 = vpop.f32.mrb[0].mxu0
      %v2753 = vadd.f32 0.0, %v2752
      %v2754 = vpop.f32.mrb[0].mxu0
      %2755 = vmatprep.mubr.bf16.mxu0 0
      %2756 = vmatmul.mubr.bf16.gmra.mrb[0].mxu0 %v2603
      %v2757 = vpop.f32.mrb[0].mxu0
      %v2758 = vadd.f32 0.0, %v2757
      %v2759 = vpop.f32.mrb[0].mxu0
      %v2760 = vpop.f32.mrb[0].mxu0
      %v2761 = vadd.f32 0.0, %v2760
      %v2762 = vpop.f32.mrb[0].mxu0
      %2763 = vmatprep.mubr.bf16.mxu0 0
      %2764 = vmatmul.mubr.bf16.gmra.mrb[0].mxu0 %v2606
      %v2765 = vpop.f32.mrb[0].mxu0
      %v2766 = vadd.f32 0.0, %v2765
      %v2767 = vpop.f32.mrb[0].mxu0
      %v2768 = vpop.f32.mrb[0].mxu0
      %v2769 = vadd.f32 0.0, %v2768
      %v2770 = vpop.f32.mrb[0].mxu0
      %2771 = vdwg.mxu0
      %v2772 = vadd.f32 %v2478, %v2646
      %v2773 = vadd.f32 %v2479, %v2649
      %v2774 = vadd.f32 %v2480, %v2654
      %v2775 = vadd.f32 %v2481, %v2657
      %v2776 = vadd.f32 %v2482, %v2662
      %v2777 = vadd.f32 %v2483, %v2665
      %v2778 = vadd.f32 %v2484, %v2670
      %v2779 = vadd.f32 %v2485, %v2673
      %v2780 = vadd.f32 %v2486, %v2678
      %v2781 = vadd.f32 %v2487, %v2681
      %v2782 = vadd.f32 %v2488, %v2686
      %v2783 = vadd.f32 %v2489, %v2689
      %v2784 = vadd.f32 %v2490, %v2694
      %v2785 = vadd.f32 %v2491, %v2697
      %v2786 = vadd.f32 %v2492, %v2702
      %v2787 = vadd.f32 %v2493, %v2705
      %v2788 = vadd.f32 %v2494, %v2710
      %v2789 = vadd.f32 %v2495, %v2713
      %v2790 = vadd.f32 %v2496, %v2718
      %v2791 = vadd.f32 %v2497, %v2721
      %v2792 = vadd.f32 %v2498, %v2726
      %v2793 = vadd.f32 %v2499, %v2729
      %v2794 = vadd.f32 %v2500, %v2734
      %v2795 = vadd.f32 %v2501, %v2737
      %v2796 = vadd.f32 %v2502, %v2742
      %v2797 = vadd.f32 %v2503, %v2745
      %v2798 = vadd.f32 %v2504, %v2750
      %v2799 = vadd.f32 %v2505, %v2753
      %v2800 = vadd.f32 %v2506, %v2758
      %v2801 = vadd.f32 %v2507, %v2761
      %v2802 = vadd.f32 %v2508, %v2766
      %v2803 = vadd.f32 %v2509, %v2769
      %v2804 = vld [vmem:[%s2215 + $0x4] sm:$0xff]
      %v2805 = vld [vmem:[%s2215 + $0xc] sm:$0xff]
      %v2806 = vld [vmem:[%s2215 + $0x1c] sm:$0xff]
      %v2807 = vld [vmem:[%s2215 + $0x24] sm:$0xff]
      %v2808 = vld [vmem:[%s2215 + $0x34] sm:$0xff]
      %v2809 = vld [vmem:[%s2215 + $0x3c] sm:$0xff]
      %v2810 = vld [vmem:[%s2215 + $0x4c] sm:$0xff]
      %v2811 = vld [vmem:[%s2215 + $0x54] sm:$0xff]
      %v2812 = vld [vmem:[%s2215 + $0x64] sm:$0xff]
      %v2813 = vld [vmem:[%s2215 + $0x6c] sm:$0xff]
      %v2814 = vld [vmem:[%s2215 + $0x7c] sm:$0xff]
      %v2815 = vld [vmem:[%s2215 + $0x84] sm:$0xff]
      %v2816 = vld [vmem:[%s2215 + $0x94] sm:$0xff]
      %v2817 = vld [vmem:[%s2215 + $0x9c] sm:$0xff]
      %v2818 = vld [vmem:[%s2215 + $0xac] sm:$0xff]
      %v2819 = vld [vmem:[%s2215 + $0xb4] sm:$0xff]
      %v2820 = vld [vmem:[%s2215 + $0xc4] sm:$0xff]
      %v2821 = vld [vmem:[%s2215 + $0xcc] sm:$0xff]
      %v2822 = vld [vmem:[%s2215 + $0xdc] sm:$0xff]
      %v2823 = vld [vmem:[%s2215 + $0xe4] sm:$0xff]
      %v2824 = vld [vmem:[%s2215 + $0xf4] sm:$0xff]
      %v2825 = vld [vmem:[%s2215 + $0xfc] sm:$0xff]
      %v2826 = vld [vmem:[%s2215 + $0x10c] sm:$0xff]
      %v2827 = vld [vmem:[%s2215 + $0x114] sm:$0xff]
      %v2828 = vld [vmem:[%s2215 + $0x124] sm:$0xff]
      %v2829 = vld [vmem:[%s2215 + $0x12c] sm:$0xff]
      %v2830 = vld [vmem:[%s2215 + $0x13c] sm:$0xff]
      %v2831 = vld [vmem:[%s2215 + $0x144] sm:$0xff]
      %v2832 = vld [vmem:[%s2215 + $0x154] sm:$0xff]
      %v2833 = vld [vmem:[%s2215 + $0x15c] sm:$0xff]
      %v2834 = vld [vmem:[%s2215 + $0x16c] sm:$0xff]
      %v2835 = vld [vmem:[%s2215 + $0x174] sm:$0xff]
      %v2836 = vpack.c.bf16 %v2805, %v2804
      %v2837 = vpack.c.bf16 %v2807, %v2806
      %v2838 = vpack.c.bf16 %v2809, %v2808
      %v2839 = vpack.c.bf16 %v2811, %v2810
      %v2840 = vpack.c.bf16 %v2813, %v2812
      %v2841 = vpack.c.bf16 %v2815, %v2814
      %v2842 = vpack.c.bf16 %v2817, %v2816
      %v2843 = vpack.c.bf16 %v2819, %v2818
      %v2844 = vpack.c.bf16 %v2821, %v2820
      %v2845 = vpack.c.bf16 %v2823, %v2822
      %v2846 = vpack.c.bf16 %v2825, %v2824
      %v2847 = vpack.c.bf16 %v2827, %v2826
      %v2848 = vpack.c.bf16 %v2829, %v2828
      %v2849 = vpack.c.bf16 %v2831, %v2830
      %v2850 = vpack.c.bf16 %v2833, %v2832
      %v2851 = vpack.c.bf16 %v2835, %v2834
      %s2852 = scalar_lea.vmem %s4, 32
      %v2853 = vld [vmem:[%s2852] sm:$0xf]
      %v2855 = vsel %vm420, %v2836, 0
      %v2858 = vsel %vm420, %v2837, 0
      %v2861 = vsel %vm420, %v2838, 0
      %v2864 = vsel %vm420, %v2839, 0
      %v2867 = vsel %vm420, %v2840, 0
      %v2870 = vsel %vm420, %v2841, 0
      %v2873 = vsel %vm420, %v2842, 0
      %v2876 = vsel %vm420, %v2843, 0
      %v2879 = vsel %vm420, %v2844, 0
      %v2882 = vsel %vm420, %v2845, 0
      %v2885 = vsel %vm420, %v2846, 0
      %v2888 = vsel %vm420, %v2847, 0
      %v2891 = vsel %vm420, %v2848, 0
      %v2894 = vsel %vm420, %v2849, 0
      %v2897 = vsel %vm420, %v2850, 0
      %v2900 = vsel %vm420, %v2851, 0
      %v2903 = vsel %vm662, %v2853, 0
      %2905 = vmatprep.subr.bf16.mxu0 0
      %2906 = vmatpush1.bf16.msra.mxu0 %v2903
      %2907 = vmatprep.subr.bf16.mxu0 0
      %2908 = vmatpush1.bf16.msra.mxu0 0
      %2909 = vmatprep.subr.bf16.mxu0 0
      %2910 = vmatpush1.bf16.msra.mxu0 0
      %2911 = vmatprep.subr.bf16.mxu0 0
      %2912 = vmatpush1.bf16.msra.mxu0 0
      %2913 = vmatprep.subr.bf16.mxu0 0
      %2914 = vmatpush1.bf16.msra.mxu0 0
      %2915 = vmatprep.subr.bf16.mxu0 0
      %2916 = vmatpush1.bf16.msra.mxu0 0
      %2917 = vmatprep.subr.bf16.mxu0 0
      %2918 = vmatpush1.bf16.msra.mxu0 0
      %2919 = vmatprep.subr.bf16.mxu0 0
      %2920 = vmatpush1.bf16.msra.mxu0 0
      %2921 = vmatprep.subr.bf16.mxu0 0
      %2922 = vmatpush1.bf16.msra.mxu0 0
      %2923 = vmatprep.subr.bf16.mxu0 0
      %2924 = vmatpush1.bf16.msra.mxu0 0
      %2925 = vmatprep.subr.bf16.mxu0 0
      %2926 = vmatpush1.bf16.msra.mxu0 0
      %2927 = vmatprep.subr.bf16.mxu0 0
      %2928 = vmatpush1.bf16.msra.mxu0 0
      %2929 = vmatprep.subr.bf16.mxu0 0
      %2930 = vmatpush1.bf16.msra.mxu0 0
      %2931 = vmatprep.subr.bf16.mxu0 0
      %2932 = vmatpush1.bf16.msra.mxu0 0
      %2933 = vmatprep.subr.bf16.mxu0 0
      %2934 = vmatpush1.bf16.msra.mxu0 0
      %2935 = vmatprep.subr.bf16.mxu0 0
      %2936 = vmatpush1.bf16.msra.mxu0 0
      %2937 = vmatprep.mubr.bf16.mxu0 0
      %2938 = vmatmul.mubr.bf16.gmra.mrb[0].mxu0 %v2855
      %v2939 = vpop.f32.mrb[0].mxu0
      %v2940 = vadd.f32 0.0, %v2939
      %v2941 = vpop.f32.mrb[0].mxu0
      %v2942 = vpop.f32.mrb[0].mxu0
      %v2943 = vadd.f32 0.0, %v2942
      %v2944 = vpop.f32.mrb[0].mxu0
      %2945 = vmatprep.mubr.bf16.mxu0 0
      %2946 = vmatmul.mubr.bf16.gmra.mrb[0].mxu0 %v2858
      %v2947 = vpop.f32.mrb[0].mxu0
      %v2948 = vadd.f32 0.0, %v2947
      %v2949 = vpop.f32.mrb[0].mxu0
      %v2950 = vpop.f32.mrb[0].mxu0
      %v2951 = vadd.f32 0.0, %v2950
      %v2952 = vpop.f32.mrb[0].mxu0
      %2953 = vmatprep.mubr.bf16.mxu0 0
      %2954 = vmatmul.mubr.bf16.gmra.mrb[0].mxu0 %v2861
      %v2955 = vpop.f32.mrb[0].mxu0
      %v2956 = vadd.f32 0.0, %v2955
      %v2957 = vpop.f32.mrb[0].mxu0
      %v2958 = vpop.f32.mrb[0].mxu0
      %v2959 = vadd.f32 0.0, %v2958
      %v2960 = vpop.f32.mrb[0].mxu0
      %2961 = vmatprep.mubr.bf16.mxu0 0
      %2962 = vmatmul.mubr.bf16.gmra.mrb[0].mxu0 %v2864
      %v2963 = vpop.f32.mrb[0].mxu0
      %v2964 = vadd.f32 0.0, %v2963
      %v2965 = vpop.f32.mrb[0].mxu0
      %v2966 = vpop.f32.mrb[0].mxu0
      %v2967 = vadd.f32 0.0, %v2966
      %v2968 = vpop.f32.mrb[0].mxu0
      %2969 = vmatprep.mubr.bf16.mxu0 0
      %2970 = vmatmul.mubr.bf16.gmra.mrb[0].mxu0 %v2867
      %v2971 = vpop.f32.mrb[0].mxu0
      %v2972 = vadd.f32 0.0, %v2971
      %v2973 = vpop.f32.mrb[0].mxu0
      %v2974 = vpop.f32.mrb[0].mxu0
      %v2975 = vadd.f32 0.0, %v2974
      %v2976 = vpop.f32.mrb[0].mxu0
      %2977 = vmatprep.mubr.bf16.mxu0 0
      %2978 = vmatmul.mubr.bf16.gmra.mrb[0].mxu0 %v2870
      %v2979 = vpop.f32.mrb[0].mxu0
      %v2980 = vadd.f32 0.0, %v2979
      %v2981 = vpop.f32.mrb[0].mxu0
      %v2982 = vpop.f32.mrb[0].mxu0
      %v2983 = vadd.f32 0.0, %v2982
      %v2984 = vpop.f32.mrb[0].mxu0
      %2985 = vmatprep.mubr.bf16.mxu0 0
      %2986 = vmatmul.mubr.bf16.gmra.mrb[0].mxu0 %v2873
      %v2987 = vpop.f32.mrb[0].mxu0
      %v2988 = vadd.f32 0.0, %v2987
      %v2989 = vpop.f32.mrb[0].mxu0
      %v2990 = vpop.f32.mrb[0].mxu0
      %v2991 = vadd.f32 0.0, %v2990
      %v2992 = vpop.f32.mrb[0].mxu0
      %2993 = vmatprep.mubr.bf16.mxu0 0
      %2994 = vmatmul.mubr.bf16.gmra.mrb[0].mxu0 %v2876
      %v2995 = vpop.f32.mrb[0].mxu0
      %v2996 = vadd.f32 0.0, %v2995
      %v2997 = vpop.f32.mrb[0].mxu0
      %v2998 = vpop.f32.mrb[0].mxu0
      %v2999 = vadd.f32 0.0, %v2998
      %v3000 = vpop.f32.mrb[0].mxu0
      %3001 = vmatprep.mubr.bf16.mxu0 0
      %3002 = vmatmul.mubr.bf16.gmra.mrb[0].mxu0 %v2879
      %v3003 = vpop.f32.mrb[0].mxu0
      %v3004 = vadd.f32 0.0, %v3003
      %v3005 = vpop.f32.mrb[0].mxu0
      %v3006 = vpop.f32.mrb[0].mxu0
      %v3007 = vadd.f32 0.0, %v3006
      %v3008 = vpop.f32.mrb[0].mxu0
      %3009 = vmatprep.mubr.bf16.mxu0 0
      %3010 = vmatmul.mubr.bf16.gmra.mrb[0].mxu0 %v2882
      %v3011 = vpop.f32.mrb[0].mxu0
      %v3012 = vadd.f32 0.0, %v3011
      %v3013 = vpop.f32.mrb[0].mxu0
      %v3014 = vpop.f32.mrb[0].mxu0
      %v3015 = vadd.f32 0.0, %v3014
      %v3016 = vpop.f32.mrb[0].mxu0
      %3017 = vmatprep.mubr.bf16.mxu0 0
      %3018 = vmatmul.mubr.bf16.gmra.mrb[0].mxu0 %v2885
      %v3019 = vpop.f32.mrb[0].mxu0
      %v3020 = vadd.f32 0.0, %v3019
      %v3021 = vpop.f32.mrb[0].mxu0
      %v3022 = vpop.f32.mrb[0].mxu0
      %v3023 = vadd.f32 0.0, %v3022
      %v3024 = vpop.f32.mrb[0].mxu0
      %3025 = vmatprep.mubr.bf16.mxu0 0
      %3026 = vmatmul.mubr.bf16.gmra.mrb[0].mxu0 %v2888
      %v3027 = vpop.f32.mrb[0].mxu0
      %v3028 = vadd.f32 0.0, %v3027
      %v3029 = vpop.f32.mrb[0].mxu0
      %v3030 = vpop.f32.mrb[0].mxu0
      %v3031 = vadd.f32 0.0, %v3030
      %v3032 = vpop.f32.mrb[0].mxu0
      %3033 = vmatprep.mubr.bf16.mxu0 0
      %3034 = vmatmul.mubr.bf16.gmra.mrb[0].mxu0 %v2891
      %v3035 = vpop.f32.mrb[0].mxu0
      %v3036 = vadd.f32 0.0, %v3035
      %v3037 = vpop.f32.mrb[0].mxu0
      %v3038 = vpop.f32.mrb[0].mxu0
      %v3039 = vadd.f32 0.0, %v3038
      %v3040 = vpop.f32.mrb[0].mxu0
      %3041 = vmatprep.mubr.bf16.mxu0 0
      %3042 = vmatmul.mubr.bf16.gmra.mrb[0].mxu0 %v2894
      %v3043 = vpop.f32.mrb[0].mxu0
      %v3044 = vadd.f32 0.0, %v3043
      %v3045 = vpop.f32.mrb[0].mxu0
      %v3046 = vpop.f32.mrb[0].mxu0
      %v3047 = vadd.f32 0.0, %v3046
      %v3048 = vpop.f32.mrb[0].mxu0
      %3049 = vmatprep.mubr.bf16.mxu0 0
      %3050 = vmatmul.mubr.bf16.gmra.mrb[0].mxu0 %v2897
      %v3051 = vpop.f32.mrb[0].mxu0
      %v3052 = vadd.f32 0.0, %v3051
      %v3053 = vpop.f32.mrb[0].mxu0
      %v3054 = vpop.f32.mrb[0].mxu0
      %v3055 = vadd.f32 0.0, %v3054
      %v3056 = vpop.f32.mrb[0].mxu0
      %3057 = vmatprep.mubr.bf16.mxu0 0
      %3058 = vmatmul.mubr.bf16.gmra.mrb[0].mxu0 %v2900
      %v3059 = vpop.f32.mrb[0].mxu0
      %v3060 = vadd.f32 0.0, %v3059
      %v3061 = vpop.f32.mrb[0].mxu0
      %v3062 = vpop.f32.mrb[0].mxu0
      %v3063 = vadd.f32 0.0, %v3062
      %v3064 = vpop.f32.mrb[0].mxu0
      %3065 = vdwg.mxu0
      %v3066 = vadd.f32 %v2772, %v2940
      %v3067 = vadd.f32 %v2773, %v2943
      %v3068 = vadd.f32 %v2774, %v2948
      %v3069 = vadd.f32 %v2775, %v2951
      %v3070 = vadd.f32 %v2776, %v2956
      %v3071 = vadd.f32 %v2777, %v2959
      %v3072 = vadd.f32 %v2778, %v2964
      %v3073 = vadd.f32 %v2779, %v2967
      %v3074 = vadd.f32 %v2780, %v2972
      %v3075 = vadd.f32 %v2781, %v2975
      %v3076 = vadd.f32 %v2782, %v2980
      %v3077 = vadd.f32 %v2783, %v2983
      %v3078 = vadd.f32 %v2784, %v2988
      %v3079 = vadd.f32 %v2785, %v2991
      %v3080 = vadd.f32 %v2786, %v2996
      %v3081 = vadd.f32 %v2787, %v2999
      %v3082 = vadd.f32 %v2788, %v3004
      %v3083 = vadd.f32 %v2789, %v3007
      %v3084 = vadd.f32 %v2790, %v3012
      %v3085 = vadd.f32 %v2791, %v3015
      %v3086 = vadd.f32 %v2792, %v3020
      %v3087 = vadd.f32 %v2793, %v3023
      %v3088 = vadd.f32 %v2794, %v3028
      %v3089 = vadd.f32 %v2795, %v3031
      %v3090 = vadd.f32 %v2796, %v3036
      %v3091 = vadd.f32 %v2797, %v3039
      %v3092 = vadd.f32 %v2798, %v3044
      %v3093 = vadd.f32 %v2799, %v3047
      %v3094 = vadd.f32 %v2800, %v3052
      %v3095 = vadd.f32 %v2801, %v3055
      %v3096 = vadd.f32 %v2802, %v3060
      %v3097 = vadd.f32 %v2803, %v3063
      %v3098 = vld [vmem:[%s239] sm:$0xf]
      %v3099 = vld [vmem:[%s239 + $0x4] sm:$0xf]
      %v3100 = vld [vmem:[%s239 + $0x8] sm:$0xf]
      %v3101 = vld [vmem:[%s239 + $0xc] sm:$0xf]
      %v3102 = vld [vmem:[%s239 + $0x10] sm:$0xf]
      %v3103 = vld [vmem:[%s239 + $0x14] sm:$0xf]
      %v3104 = vld [vmem:[%s239 + $0x18] sm:$0xf]
      %v3105 = vld [vmem:[%s239 + $0x1c] sm:$0xf]
      %v3106 = vld [vmem:[%s239 + $0x20] sm:$0xf]
      %v3107 = vld [vmem:[%s239 + $0x24] sm:$0xf]
      %v3108 = vld [vmem:[%s239 + $0x28] sm:$0xf]
      %v3109 = vld [vmem:[%s239 + $0x2c] sm:$0xf]
      %v3110 = vld [vmem:[%s239 + $0x30] sm:$0xf]
      %v3111 = vld [vmem:[%s239 + $0x34] sm:$0xf]
      %v3112 = vld [vmem:[%s239 + $0x38] sm:$0xf]
      %v3113 = vld [vmem:[%s239 + $0x3c] sm:$0xf]
      %v3114 = vld [vmem:[%s239 + $0x40] sm:$0xf]
      %v3115 = vld [vmem:[%s239 + $0x44] sm:$0xf]
      %v3116 = vld [vmem:[%s239 + $0x48] sm:$0xf]
      %v3117 = vld [vmem:[%s239 + $0x4c] sm:$0xf]
      %v3118 = vld [vmem:[%s239 + $0x50] sm:$0xf]
      %v3119 = vld [vmem:[%s239 + $0x54] sm:$0xf]
      %v3120 = vld [vmem:[%s239 + $0x58] sm:$0xf]
      %v3121 = vld [vmem:[%s239 + $0x5c] sm:$0xf]
      %v3122 = vld [vmem:[%s239 + $0x60] sm:$0xf]
      %v3123 = vld [vmem:[%s239 + $0x64] sm:$0xf]
      %v3124 = vld [vmem:[%s239 + $0x68] sm:$0xf]
      %v3125 = vld [vmem:[%s239 + $0x6c] sm:$0xf]
      %v3126 = vld [vmem:[%s239 + $0x70] sm:$0xf]
      %v3127 = vld [vmem:[%s239 + $0x74] sm:$0xf]
      %v3128 = vld [vmem:[%s239 + $0x78] sm:$0xf]
      %v3129 = vld [vmem:[%s239 + $0x7c] sm:$0xf]
      %v3130 = vunpack.c.l.bf16 %v3098
      %v3131 = vunpack.c.l.bf16 %v3099
      %v3132 = vunpack.c.l.bf16 %v3100
      %v3133 = vunpack.c.l.bf16 %v3101
      %v3134 = vunpack.c.l.bf16 %v3102
      %v3135 = vunpack.c.l.bf16 %v3103
      %v3136 = vunpack.c.l.bf16 %v3104
      %v3137 = vunpack.c.l.bf16 %v3105
      %v3138 = vunpack.c.l.bf16 %v3106
      %v3139 = vunpack.c.l.bf16 %v3107
      %v3140 = vunpack.c.l.bf16 %v3108
      %v3141 = vunpack.c.l.bf16 %v3109
      %v3142 = vunpack.c.l.bf16 %v3110
      %v3143 = vunpack.c.l.bf16 %v3111
      %v3144 = vunpack.c.l.bf16 %v3112
      %v3145 = vunpack.c.l.bf16 %v3113
      %v3146 = vunpack.c.l.bf16 %v3114
      %v3147 = vunpack.c.l.bf16 %v3115
      %v3148 = vunpack.c.l.bf16 %v3116
      %v3149 = vunpack.c.l.bf16 %v3117
      %v3150 = vunpack.c.l.bf16 %v3118
      %v3151 = vunpack.c.l.bf16 %v3119
      %v3152 = vunpack.c.l.bf16 %v3120
      %v3153 = vunpack.c.l.bf16 %v3121
      %v3154 = vunpack.c.l.bf16 %v3122
      %v3155 = vunpack.c.l.bf16 %v3123
      %v3156 = vunpack.c.l.bf16 %v3124
      %v3157 = vunpack.c.l.bf16 %v3125
      %v3158 = vunpack.c.l.bf16 %v3126
      %v3159 = vunpack.c.l.bf16 %v3127
      %v3160 = vunpack.c.l.bf16 %v3128
      %v3161 = vunpack.c.l.bf16 %v3129
      %v3162 = vadd.f32 %v3066, %v3130
      %v3163 = vadd.f32 %v3067, %v3131
      %v3164 = vadd.f32 %v3068, %v3132
      %v3165 = vadd.f32 %v3069, %v3133
      %v3166 = vadd.f32 %v3070, %v3134
      %v3167 = vadd.f32 %v3071, %v3135
      %v3168 = vadd.f32 %v3072, %v3136
      %v3169 = vadd.f32 %v3073, %v3137
      %v3170 = vadd.f32 %v3074, %v3138
      %v3171 = vadd.f32 %v3075, %v3139
      %v3172 = vadd.f32 %v3076, %v3140
      %v3173 = vadd.f32 %v3077, %v3141
      %v3174 = vadd.f32 %v3078, %v3142
      %v3175 = vadd.f32 %v3079, %v3143
      %v3176 = vadd.f32 %v3080, %v3144
      %v3177 = vadd.f32 %v3081, %v3145
      %v3178 = vadd.f32 %v3082, %v3146
      %v3179 = vadd.f32 %v3083, %v3147
      %v3180 = vadd.f32 %v3084, %v3148
      %v3181 = vadd.f32 %v3085, %v3149
      %v3182 = vadd.f32 %v3086, %v3150
      %v3183 = vadd.f32 %v3087, %v3151
      %v3184 = vadd.f32 %v3088, %v3152
      %v3185 = vadd.f32 %v3089, %v3153
      %v3186 = vadd.f32 %v3090, %v3154
      %v3187 = vadd.f32 %v3091, %v3155
      %v3188 = vadd.f32 %v3092, %v3156
      %v3189 = vadd.f32 %v3093, %v3157
      %v3190 = vadd.f32 %v3094, %v3158
      %v3191 = vadd.f32 %v3095, %v3159
      %v3192 = vadd.f32 %v3096, %v3160
      %v3193 = vadd.f32 %v3097, %v3161
      %v3194 = vmax.f32 %v3162, 0.0
      %v3195 = vmax.f32 %v3163, 0.0
      %v3196 = vmax.f32 %v3164, 0.0
      %v3197 = vmax.f32 %v3165, 0.0
      %v3198 = vmax.f32 %v3166, 0.0
      %v3199 = vmax.f32 %v3167, 0.0
      %v3200 = vmax.f32 %v3168, 0.0
      %v3201 = vmax.f32 %v3169, 0.0
      %v3202 = vmax.f32 %v3170, 0.0
      %v3203 = vmax.f32 %v3171, 0.0
      %v3204 = vmax.f32 %v3172, 0.0
      %v3205 = vmax.f32 %v3173, 0.0
      %v3206 = vmax.f32 %v3174, 0.0
      %v3207 = vmax.f32 %v3175, 0.0
      %v3208 = vmax.f32 %v3176, 0.0
      %v3209 = vmax.f32 %v3177, 0.0
      %v3210 = vmax.f32 %v3178, 0.0
      %v3211 = vmax.f32 %v3179, 0.0
      %v3212 = vmax.f32 %v3180, 0.0
      %v3213 = vmax.f32 %v3181, 0.0
      %v3214 = vmax.f32 %v3182, 0.0
      %v3215 = vmax.f32 %v3183, 0.0
      %v3216 = vmax.f32 %v3184, 0.0
      %v3217 = vmax.f32 %v3185, 0.0
      %v3218 = vmax.f32 %v3186, 0.0
      %v3219 = vmax.f32 %v3187, 0.0
      %v3220 = vmax.f32 %v3188, 0.0
      %v3221 = vmax.f32 %v3189, 0.0
      %v3222 = vmax.f32 %v3190, 0.0
      %v3223 = vmax.f32 %v3191, 0.0
      %v3224 = vmax.f32 %v3192, 0.0
      %v3225 = vmax.f32 %v3193, 0.0
      %3226 = vst.msk [vmem:[%s244] sm:$0xff] %vm420, %v3194
      %3227 = vst.msk [vmem:[%s244 + $0x8] sm:$0xff] %vm420, %v3195
      %3228 = vst.msk [vmem:[%s244 + $0x10] sm:$0xff] %vm420, %v3196
      %3229 = vst.msk [vmem:[%s244 + $0x18] sm:$0xff] %vm420, %v3197
      %3230 = vst.msk [vmem:[%s244 + $0x20] sm:$0xff] %vm420, %v3198
      %3231 = vst.msk [vmem:[%s244 + $0x28] sm:$0xff] %vm420, %v3199
      %3232 = vst.msk [vmem:[%s244 + $0x30] sm:$0xff] %vm420, %v3200
      %3233 = vst.msk [vmem:[%s244 + $0x38] sm:$0xff] %vm420, %v3201
      %3234 = vst.msk [vmem:[%s244 + $0x40] sm:$0xff] %vm420, %v3202
      %3235 = vst.msk [vmem:[%s244 + $0x48] sm:$0xff] %vm420, %v3203
      %3236 = vst.msk [vmem:[%s244 + $0x50] sm:$0xff] %vm420, %v3204
      %3237 = vst.msk [vmem:[%s244 + $0x58] sm:$0xff] %vm420, %v3205
      %3238 = vst.msk [vmem:[%s244 + $0x60] sm:$0xff] %vm420, %v3206
      %3239 = vst.msk [vmem:[%s244 + $0x68] sm:$0xff] %vm420, %v3207
      %3240 = vst.msk [vmem:[%s244 + $0x70] sm:$0xff] %vm420, %v3208
      %3241 = vst.msk [vmem:[%s244 + $0x78] sm:$0xff] %vm420, %v3209
      %3242 = vst.msk [vmem:[%s244 + $0x80] sm:$0xff] %vm420, %v3210
      %3243 = vst.msk [vmem:[%s244 + $0x88] sm:$0xff] %vm420, %v3211
      %3244 = vst.msk [vmem:[%s244 + $0x90] sm:$0xff] %vm420, %v3212
      %3245 = vst.msk [vmem:[%s244 + $0x98] sm:$0xff] %vm420, %v3213
      %3246 = vst.msk [vmem:[%s244 + $0xa0] sm:$0xff] %vm420, %v3214
      %3247 = vst.msk [vmem:[%s244 + $0xa8] sm:$0xff] %vm420, %v3215
      %3248 = vst.msk [vmem:[%s244 + $0xb0] sm:$0xff] %vm420, %v3216
      %3249 = vst.msk [vmem:[%s244 + $0xb8] sm:$0xff] %vm420, %v3217
      %3250 = vst.msk [vmem:[%s244 + $0xc0] sm:$0xff] %vm420, %v3218
      %3251 = vst.msk [vmem:[%s244 + $0xc8] sm:$0xff] %vm420, %v3219
      %3252 = vst.msk [vmem:[%s244 + $0xd0] sm:$0xff] %vm420, %v3220
      %3253 = vst.msk [vmem:[%s244 + $0xd8] sm:$0xff] %vm420, %v3221
      %3254 = vst.msk [vmem:[%s244 + $0xe0] sm:$0xff] %vm420, %v3222
      %3255 = vst.msk [vmem:[%s244 + $0xe8] sm:$0xff] %vm420, %v3223
      %3256 = vst.msk [vmem:[%s244 + $0xf0] sm:$0xff] %vm420, %v3224
      %3257 = vst.msk [vmem:[%s244 + $0xf8] sm:$0xff] %vm420, %v3225
      %p3258 = scmp.lt.s32.totalorder %s16, 1
      %s3259 = scalar_select %p3258, %s16, 1
      %s3260 = smul.addr %s3259, 32
      %s3261 = smul.addr %s3260, 8
      %s3262 = scalar_lea.vmem %s5, %s3261
      // Predicated region
      $region41: #{a_call__.5} parent=39 // pred_check
        %p3263 = pneg %p149
      $region42: #{a_call__.5} parent=39 // pred_check_branch
        %3265 = sbr.rel (%p3263) target = $region44
      $region43: #{a_call__.5} parent=39 // pred_region
        _
      $region44: #{a_call__.5} parent=39 // pred_fallthru
        _
    $region40: #{a_call__.5} parent=5 // pred_fallthru
      _
    %p3266 = scmp.le.s32.totalorder 2, %s11
    // Predicated region
    $region45: #{a_call__.5} parent=5 // pred_check
      %p3267 = pneg %p3266
    $region46: #{a_call__.5} parent=5 // pred_check_branch
      %3269 = sbr.rel (%p3267) target = $region48
    $region47: #{a_call__.5} parent=5 // pred_region
      %s3270 = ssub.s32 %s11, 2
      // Predicated region
      $region49: #{a_call__.5} parent=47 // pred_check
        %p3271 = pneg %p155
      $region50: #{a_call__.5} parent=47 // pred_check_branch
        %3273 = sbr.rel (%p3271) target = $region52
      $region51: #{a_call__.5} parent=47 // pred_region
        %p3274 = scmp.lt.s32.totalorder %s17, 1
        %s3275 = scalar_select %p3274, %s17, 1
        %s3276 = smul.addr %s3275, 32
        %s3277 = smul.addr %s3276, 8
        %s3278 = scalar_lea.vmem %s5, %s3277
      $region52: #{a_call__.5} parent=47 // pred_fallthru
        _
    $region48: #{a_call__.5} parent=5 // pred_fallthru
      _
  $region6: #{a_call__.5} parent=0 // loop_footer
    %s15 = sadd.s32 1, %s11
  $region7: #{a_call__.5} parent=0 // loop_footer_branch
    %10 = sbr.rel target = $region3
  $region8: #{a_call__.5} parent=0 // loop_exit
    _

// kernel: a_call__.3
$region0: #{a_call__.3}
  #allocation0 [shape = 'u32[]', space=smem, size = 0x4, offset = 0x4, fixed_abs, tag = 'smem constant byte address 0x4 - core index']
  #allocation1 [shape = 'u32[144,128]{1,0:T(1,128)}', space=vmem, size = 0x12000, scoped, tag = 'internal scratch']
  #allocation2 [shape = 'f32[20,20,8]{2,1,0:T(8,128)}', space=vmem, size = 0x3c000, scoped, tag = 'scratch operand']
  %s0 = inlined_call_operand.vmem [shape: bf16[2,16,16,16], index: 0, kind: input, shape index: {}]
  %s1 = inlined_call_operand.vmem [shape: bf16[2,16,16,16], index: 1, kind: input, shape index: {}]
  %s2 = inlined_call_operand.vmem [shape: f32[2,16,2], index: 2, kind: input, shape index: {}]
  %s3 = inlined_call_operand.vmem [shape: f32[2,16], index: 3, kind: input, shape index: {}]
  %s4 = inlined_call_operand.vmem [shape: bf16[16,8], index: 4, kind: input, shape index: {}]
  %s5 = inlined_call_operand.vmem [shape: bf16[9,8,8], index: 5, kind: input, shape index: {}]
  %s6 = inlined_call_operand.vmem [shape: f32[1,8], index: 6, kind: input, shape index: {}]
  %s7 = inlined_call_operand.vmem [shape: bf16[2,16,16,8], index: 7, kind: output, shape index: {0}]
  %s8 = inlined_call_operand.vmem [shape: bf16[2,16,16,8], index: 8, kind: output, shape index: {1}]
  %s9 = inlined_call_operand.vmem [shape: f32[2,1,8], index: 9, kind: output, shape index: {2}]
  %s10 = inlined_call_operand.vmem [shape: f32[2,1,8], index: 10, kind: output, shape index: {3}]
  %11 = xla_tuple %s7, %s8, %s9, %s10
  %s12 = sld [smem:[#allocation0]]
  $region85: #{a_call__.3} parent=0
    _
  %s14 = ssub.s32 1, %s12
  %s15 = scalar_select 0, %s14, %s12
  loop: start=0, step=1, limit=4
  $region2: #{a_call__.3} parent=0 // loop_pre_header
    _
  $region3: #{a_call__.3} parent=0 // loop_header
    %s17 = sphi 0, %s21
    %p18 = scmp.ge.s32.totalorder %s17, 4
    %s27 = sphi 0, %s29
    %s30 = sphi 0, %s27
    %s31 = sphi 0, %s30
    %s47 = sphi 0, %s31
    %s53 = sphi 0, %s55
    %s56 = sphi 0, %s53
    %s57 = sphi 0, %s56
    %s73 = sphi 0, %s57
    %s77 = sphi 0, %s77
    %s79 = sphi 0, %s77
    %s80 = sphi 0, %s79
    %s94 = sphi 0, %s80
    %s98 = sphi 0, %s98
    %s100 = sphi 0, %s98
    %s101 = sphi 0, %s100
    %s115 = sphi 0, %s101
    %s119 = sphi 0, %s119
    %s121 = sphi 0, %s119
    %s122 = sphi 0, %s121
    %s136 = sphi 0, %s122
    %s140 = sphi 0, %s140
    %s142 = sphi 0, %s140
    %s143 = sphi 0, %s142
    %s157 = sphi 0, %s143
    %s161 = sphi 0, %s161
    %s163 = sphi 0, %s161
    %s164 = sphi 0, %s163
    %s178 = sphi 0, %s164
    %s184 = sphi 0, %s186
    %s187 = sphi 0, %s184
    %s188 = sphi 0, %s187
    %s204 = sphi 0, %s188
    %s210 = sphi 0, %s212
    %s213 = sphi 0, %s210
    %s214 = sphi 0, %s213
    %s230 = sphi 0, %s214
    %s236 = sphi 0, %s238
    %s239 = sphi 0, %s236
    %s240 = sphi 0, %s239
    %s256 = sphi 0, %s240
    %s262 = sphi 0, %s264
    %s265 = sphi 0, %s262
    %s266 = sphi 0, %s265
    %s282 = sphi 0, %s266
  $region4: #{a_call__.3} parent=0 // loop_header_branch
    %20 = sbr.rel (%p18) target = $region8
  $region5: #{a_call__.3} parent=0 // loop_body
    %s22 = ssub.s32 %s17, 1
    %s23 = ssub.s32 %s17, 2
    %s24 = sadd.s32 %s17, 1
    %s25 = ssub.s32 %s17, %s24
    %p26 = scmp.eq.s32.totalorder %s25, 0
    %s28 = sadd.s32 %s27, 1
    %s29 = scalar_select %p26, %s27, %s28
    %p32 = pneg %p26
    %p33 = scmp.eq.s32.totalorder %s17, 1
    %p34 = por %p32, %p33
    %p35 = scmp.ne.s32.totalorder %s27, %s30
    %p36 = scmp.eq.s32.totalorder %s17, 0
    %p37 = por %p35, %p36
    %p38 = scmp.ne.s32.totalorder %s27, %s30
    %p39 = scmp.eq.s32.totalorder %s22, 1
    %p40 = por %p38, %p39
    %p41 = scmp.ne.s32.totalorder %s30, %s31
    %p42 = scmp.eq.s32.totalorder %s22, 0
    %p43 = por %p41, %p42
    %p44 = scmp.ne.s32.totalorder %s30, %s31
    %p45 = scmp.eq.s32.totalorder %s23, 1
    %p46 = por %p44, %p45
    %p48 = scmp.ne.s32.totalorder %s31, %s47
    %p49 = scmp.eq.s32.totalorder %s23, 0
    %p50 = por %p48, %p49
    %s51 = ssub.s32 %s17, %s24
    %p52 = scmp.eq.s32.totalorder %s51, 0
    %s54 = sadd.s32 %s53, 1
    %s55 = scalar_select %p52, %s53, %s54
    %p58 = pneg %p52
    %p59 = scmp.eq.s32.totalorder %s17, 1
    %p60 = por %p58, %p59
    %p61 = scmp.ne.s32.totalorder %s53, %s56
    %p62 = scmp.eq.s32.totalorder %s17, 0
    %p63 = por %p61, %p62
    %p64 = scmp.ne.s32.totalorder %s53, %s56
    %p65 = scmp.eq.s32.totalorder %s22, 1
    %p66 = por %p64, %p65
    %p67 = scmp.ne.s32.totalorder %s56, %s57
    %p68 = scmp.eq.s32.totalorder %s22, 0
    %p69 = por %p67, %p68
    %p70 = scmp.ne.s32.totalorder %s56, %s57
    %p71 = scmp.eq.s32.totalorder %s23, 1
    %p72 = por %p70, %p71
    %p74 = scmp.ne.s32.totalorder %s57, %s73
    %p75 = scmp.eq.s32.totalorder %s23, 0
    %p76 = por %p74, %p75
    %s78 = sadd.s32 %s77, 1
    %p81 = scmp.eq.s32.totalorder %s17, 1
    %p82 = scmp.ne.s32.totalorder %s77, %s79
    %p83 = scmp.eq.s32.totalorder %s17, 0
    %p84 = por %p82, %p83
    %p85 = scmp.ne.s32.totalorder %s77, %s79
    %p86 = scmp.eq.s32.totalorder %s22, 1
    %p87 = por %p85, %p86
    %p88 = scmp.ne.s32.totalorder %s79, %s80
    %p89 = scmp.eq.s32.totalorder %s22, 0
    %p90 = por %p88, %p89
    %p91 = scmp.ne.s32.totalorder %s79, %s80
    %p92 = scmp.eq.s32.totalorder %s23, 1
    %p93 = por %p91, %p92
    %p95 = scmp.ne.s32.totalorder %s80, %s94
    %p96 = scmp.eq.s32.totalorder %s23, 0
    %p97 = por %p95, %p96
    %s99 = sadd.s32 %s98, 1
    %p102 = scmp.eq.s32.totalorder %s17, 1
    %p103 = scmp.ne.s32.totalorder %s98, %s100
    %p104 = scmp.eq.s32.totalorder %s17, 0
    %p105 = por %p103, %p104
    %p106 = scmp.ne.s32.totalorder %s98, %s100
    %p107 = scmp.eq.s32.totalorder %s22, 1
    %p108 = por %p106, %p107
    %p109 = scmp.ne.s32.totalorder %s100, %s101
    %p110 = scmp.eq.s32.totalorder %s22, 0
    %p111 = por %p109, %p110
    %p112 = scmp.ne.s32.totalorder %s100, %s101
    %p113 = scmp.eq.s32.totalorder %s23, 1
    %p114 = por %p112, %p113
    %p116 = scmp.ne.s32.totalorder %s101, %s115
    %p117 = scmp.eq.s32.totalorder %s23, 0
    %p118 = por %p116, %p117
    %s120 = sadd.s32 %s119, 1
    %p123 = scmp.eq.s32.totalorder %s17, 1
    %p124 = scmp.ne.s32.totalorder %s119, %s121
    %p125 = scmp.eq.s32.totalorder %s17, 0
    %p126 = por %p124, %p125
    %p127 = scmp.ne.s32.totalorder %s119, %s121
    %p128 = scmp.eq.s32.totalorder %s22, 1
    %p129 = por %p127, %p128
    %p130 = scmp.ne.s32.totalorder %s121, %s122
    %p131 = scmp.eq.s32.totalorder %s22, 0
    %p132 = por %p130, %p131
    %p133 = scmp.ne.s32.totalorder %s121, %s122
    %p134 = scmp.eq.s32.totalorder %s23, 1
    %p135 = por %p133, %p134
    %p137 = scmp.ne.s32.totalorder %s122, %s136
    %p138 = scmp.eq.s32.totalorder %s23, 0
    %p139 = por %p137, %p138
    %s141 = sadd.s32 %s140, 1
    %p144 = scmp.eq.s32.totalorder %s17, 1
    %p145 = scmp.ne.s32.totalorder %s140, %s142
    %p146 = scmp.eq.s32.totalorder %s17, 0
    %p147 = por %p145, %p146
    %p148 = scmp.ne.s32.totalorder %s140, %s142
    %p149 = scmp.eq.s32.totalorder %s22, 1
    %p150 = por %p148, %p149
    %p151 = scmp.ne.s32.totalorder %s142, %s143
    %p152 = scmp.eq.s32.totalorder %s22, 0
    %p153 = por %p151, %p152
    %p154 = scmp.ne.s32.totalorder %s142, %s143
    %p155 = scmp.eq.s32.totalorder %s23, 1
    %p156 = por %p154, %p155
    %p158 = scmp.ne.s32.totalorder %s143, %s157
    %p159 = scmp.eq.s32.totalorder %s23, 0
    %p160 = por %p158, %p159
    %s162 = sadd.s32 %s161, 1
    %p165 = scmp.eq.s32.totalorder %s17, 1
    %p166 = scmp.ne.s32.totalorder %s161, %s163
    %p167 = scmp.eq.s32.totalorder %s17, 0
    %p168 = por %p166, %p167
    %p169 = scmp.ne.s32.totalorder %s161, %s163
    %p170 = scmp.eq.s32.totalorder %s22, 1
    %p171 = por %p169, %p170
    %p172 = scmp.ne.s32.totalorder %s163, %s164
    %p173 = scmp.eq.s32.totalorder %s22, 0
    %p174 = por %p172, %p173
    %p175 = scmp.ne.s32.totalorder %s163, %s164
    %p176 = scmp.eq.s32.totalorder %s23, 1
    %p177 = por %p175, %p176
    %p179 = scmp.ne.s32.totalorder %s164, %s178
    %p180 = scmp.eq.s32.totalorder %s23, 0
    %p181 = por %p179, %p180
    %s182 = ssub.s32 %s17, %s24
    %p183 = scmp.eq.s32.totalorder %s182, 0
    %s185 = sadd.s32 %s184, 1
    %s186 = scalar_select %p183, %s184, %s185
    %p189 = pneg %p183
    %p190 = scmp.eq.s32.totalorder %s17, 1
    %p191 = por %p189, %p190
    %p192 = scmp.ne.s32.totalorder %s184, %s187
    %p193 = scmp.eq.s32.totalorder %s17, 0
    %p194 = por %p192, %p193
    %p195 = scmp.ne.s32.totalorder %s184, %s187
    %p196 = scmp.eq.s32.totalorder %s22, 1
    %p197 = por %p195, %p196
    %p198 = scmp.ne.s32.totalorder %s187, %s188
    %p199 = scmp.eq.s32.totalorder %s22, 0
    %p200 = por %p198, %p199
    %p201 = scmp.ne.s32.totalorder %s187, %s188
    %p202 = scmp.eq.s32.totalorder %s23, 1
    %p203 = por %p201, %p202
    %p205 = scmp.ne.s32.totalorder %s188, %s204
    %p206 = scmp.eq.s32.totalorder %s23, 0
    %p207 = por %p205, %p206
    %s208 = ssub.s32 %s17, %s24
    %p209 = scmp.eq.s32.totalorder %s208, 0
    %s211 = sadd.s32 %s210, 1
    %s212 = scalar_select %p209, %s210, %s211
    %p215 = pneg %p209
    %p216 = scmp.eq.s32.totalorder %s17, 1
    %p217 = por %p215, %p216
    %p218 = scmp.ne.s32.totalorder %s210, %s213
    %p219 = scmp.eq.s32.totalorder %s17, 0
    %p220 = por %p218, %p219
    %p221 = scmp.ne.s32.totalorder %s210, %s213
    %p222 = scmp.eq.s32.totalorder %s22, 1
    %p223 = por %p221, %p222
    %p224 = scmp.ne.s32.totalorder %s213, %s214
    %p225 = scmp.eq.s32.totalorder %s22, 0
    %p226 = por %p224, %p225
    %p227 = scmp.ne.s32.totalorder %s213, %s214
    %p228 = scmp.eq.s32.totalorder %s23, 1
    %p229 = por %p227, %p228
    %p231 = scmp.ne.s32.totalorder %s214, %s230
    %p232 = scmp.eq.s32.totalorder %s23, 0
    %p233 = por %p231, %p232
    %s234 = ssub.s32 %s17, %s24
    %p235 = scmp.eq.s32.totalorder %s234, 0
    %s237 = sadd.s32 %s236, 1
    %s238 = scalar_select %p235, %s236, %s237
    %p241 = pneg %p235
    %p242 = scmp.eq.s32.totalorder %s17, 1
    %p243 = por %p241, %p242
    %p244 = scmp.ne.s32.totalorder %s236, %s239
    %p245 = scmp.eq.s32.totalorder %s17, 0
    %p246 = por %p244, %p245
    %p247 = scmp.ne.s32.totalorder %s236, %s239
    %p248 = scmp.eq.s32.totalorder %s22, 1
    %p249 = por %p247, %p248
    %p250 = scmp.ne.s32.totalorder %s239, %s240
    %p251 = scmp.eq.s32.totalorder %s22, 0
    %p252 = por %p250, %p251
    %p253 = scmp.ne.s32.totalorder %s239, %s240
    %p254 = scmp.eq.s32.totalorder %s23, 1
    %p255 = por %p253, %p254
    %p257 = scmp.ne.s32.totalorder %s240, %s256
    %p258 = scmp.eq.s32.totalorder %s23, 0
    %p259 = por %p257, %p258
    %s260 = ssub.s32 %s17, %s24
    %p261 = scmp.eq.s32.totalorder %s260, 0
    %s263 = sadd.s32 %s262, 1
    %s264 = scalar_select %p261, %s262, %s263
    %p267 = pneg %p261
    %p268 = scmp.eq.s32.totalorder %s17, 1
    %p269 = por %p267, %p268
    %p270 = scmp.ne.s32.totalorder %s262, %s265
    %p271 = scmp.eq.s32.totalorder %s17, 0
    %p272 = por %p270, %p271
    %p273 = scmp.ne.s32.totalorder %s262, %s265
    %p274 = scmp.eq.s32.totalorder %s22, 1
    %p275 = por %p273, %p274
    %p276 = scmp.ne.s32.totalorder %s265, %s266
    %p277 = scmp.eq.s32.totalorder %s22, 0
    %p278 = por %p276, %p277
    %p279 = scmp.ne.s32.totalorder %s265, %s266
    %p280 = scmp.eq.s32.totalorder %s23, 1
    %p281 = por %p279, %p280
    %p283 = scmp.ne.s32.totalorder %s266, %s282
    %p284 = scmp.eq.s32.totalorder %s23, 0
    %p285 = por %p283, %p284
    %p286 = scmp.le.s32.totalorder 1, %s17
    %p287 = scmp.lt.s32.totalorder %s17, 3
    %p288 = pnand %p286, %p287
    %p289 = pneg %p288
    // Predicated region
    $region9: #{a_call__.3} parent=5 // pred_check
      _
    $region10: #{a_call__.3} parent=5 // pred_check_branch
      %291 = sbr.rel (%p288) target = $region12
    $region11: #{a_call__.3} parent=5 // pred_region
      %s292 = ssub.s32 %s17, 1
      // Predicated region
      $region13: #{a_call__.3} parent=11 // pred_check
        %p293 = pneg %p90
      $region14: #{a_call__.3} parent=11 // pred_check_branch
        %295 = sbr.rel (%p293) target = $region16
      $region15: #{a_call__.3} parent=11 // pred_region
        _
      $region16: #{a_call__.3} parent=11 // pred_fallthru
        _
      // Predicated region
      $region17: #{a_call__.3} parent=11 // pred_check
        %p296 = pneg %p111
      $region18: #{a_call__.3} parent=11 // pred_check_branch
        %298 = sbr.rel (%p296) target = $region20
      $region19: #{a_call__.3} parent=11 // pred_region
        _
      $region20: #{a_call__.3} parent=11 // pred_fallthru
        _
      // Predicated region
      $region21: #{a_call__.3} parent=11 // pred_check
        %p299 = pneg %p132
      $region22: #{a_call__.3} parent=11 // pred_check_branch
        %301 = sbr.rel (%p299) target = $region24
      $region23: #{a_call__.3} parent=11 // pred_region
        _
      $region24: #{a_call__.3} parent=11 // pred_fallthru
        _
      // Predicated region
      $region25: #{a_call__.3} parent=11 // pred_check
        %p302 = pneg %p153
      $region26: #{a_call__.3} parent=11 // pred_check_branch
        %304 = sbr.rel (%p302) target = $region28
      $region27: #{a_call__.3} parent=11 // pred_region
        _
      $region28: #{a_call__.3} parent=11 // pred_fallthru
        _
      // Predicated region
      $region29: #{a_call__.3} parent=11 // pred_check
        %p305 = pneg %p174
      $region30: #{a_call__.3} parent=11 // pred_check_branch
        %307 = sbr.rel (%p305) target = $region32
      $region31: #{a_call__.3} parent=11 // pred_region
        _
      $region32: #{a_call__.3} parent=11 // pred_fallthru
        _
    $region12: #{a_call__.3} parent=5 // pred_fallthru
      _
    %p308 = scmp.lt.s32.totalorder %s17, 2
    // Predicated region
    $region33: #{a_call__.3} parent=5 // pred_check
      %p309 = pneg %p308
    $region34: #{a_call__.3} parent=5 // pred_check_branch
      %311 = sbr.rel (%p309) target = $region36
    $region35: #{a_call__.3} parent=5 // pred_region
      // Predicated region
      $region37: #{a_call__.3} parent=35 // pred_check
        %p312 = pneg %p37
      $region38: #{a_call__.3} parent=35 // pred_check_branch
        %314 = sbr.rel (%p312) target = $region40
      $region39: #{a_call__.3} parent=35 // pred_region
        %p315 = scmp.lt.s32.totalorder %s17, 1
        %s316 = scalar_select %p315, %s17, 1
        %s317 = smul.addr %s316, 32
        %s318 = smul.addr %s317, 4
        %s319 = scalar_lea.vmem %s0, %s318
      $region40: #{a_call__.3} parent=35 // pred_fallthru
        _
      // Predicated region
      $region41: #{a_call__.3} parent=35 // pred_check
        %p320 = pneg %p63
      $region42: #{a_call__.3} parent=35 // pred_check_branch
        %322 = sbr.rel (%p320) target = $region44
      $region43: #{a_call__.3} parent=35 // pred_region
        %p323 = scmp.lt.s32.totalorder %s17, 1
        %s324 = scalar_select %p323, %s17, 1
        %s325 = smul.addr %s324, 32
        %s326 = smul.addr %s325, 4
        %s327 = scalar_lea.vmem %s1, %s326
      $region44: #{a_call__.3} parent=35 // pred_fallthru
        _
    $region36: #{a_call__.3} parent=5 // pred_fallthru
      _
    %p328 = scmp.le.s32.totalorder 1, %s17
    %p329 = scmp.lt.s32.totalorder %s17, 3
    %p330 = pnand %p328, %p329
    %p331 = pneg %p330
    // Predicated region
    $region45: #{a_call__.3} parent=5 // pred_check
      _
    $region46: #{a_call__.3} parent=5 // pred_check_branch
      %333 = sbr.rel (%p330) target = $region48
    $region47: #{a_call__.3} parent=5 // pred_region
      %s334 = ssub.s32 %s17, 1
      %p335 = scmp.lt.s32.totalorder %s22, 1
      %s336 = scalar_select %p335, %s22, 1
      %s337 = smul.addr %s336, 32
      %s338 = smul.addr %s337, 4
      %s339 = scalar_lea.vmem %s0, %s338
      %p340 = pneg %p43
      %p341 = pneg %p40
      %p342 = scmp.lt.s32.totalorder %s22, 1
      %s343 = scalar_select %p342, %s22, 1
      %s344 = smul.addr %s343, 32
      %s345 = smul.addr %s344, 4
      %s346 = scalar_lea.vmem %s1, %s345
      %p347 = pneg %p69
      %p348 = pneg %p66
      %p349 = pneg %p90
      %p350 = pneg %p87
      %p351 = pneg %p111
      %p352 = pneg %p108
      %p353 = pneg %p132
      %p354 = pneg %p129
      %p355 = pneg %p153
      %p356 = pneg %p150
      %p357 = pneg %p174
      %p358 = pneg %p171
      %p359 = pneg %p200
      %p360 = pneg %p197
      %p361 = scmp.lt.s32.totalorder %s22, 1
      %s362 = scalar_select %p361, %s22, 1
      %s363 = smul.addr %s362, 32
      %s364 = smul.addr %s363, 4
      %s365 = scalar_lea.vmem %s7, %s364
      %p366 = pneg %p226
      %p367 = pneg %p223
      %p368 = scmp.lt.s32.totalorder %s22, 1
      %s369 = scalar_select %p368, %s22, 1
      %s370 = smul.addr %s369, 32
      %s371 = smul.addr %s370, 4
      %s372 = scalar_lea.vmem %s8, %s371
      %p373 = pneg %p252
      %p374 = pneg %p249
      %p375 = scmp.lt.s32.totalorder %s22, 1
      %s376 = scalar_select %p375, %s22, 1
      %s377 = scalar_lea.vmem %s9, %s376
      %p378 = pneg %p278
      %p379 = pneg %p275
      %p380 = scmp.lt.s32.totalorder %s22, 1
      %s381 = scalar_select %p380, %s22, 1
      %s382 = scalar_lea.vmem %s10, %s381
      %p383 = scmp.lt.s32.totalorder %s22, 1
      %s384 = scalar_select %p383, %s22, 1
      %s385 = smul.addr %s384, 32
      %s386 = smul.addr %s385, 4
      %s387 = scalar_lea.vmem %s0, %s386
      %p388 = scmp.lt.s32.totalorder %s22, 1
      %s389 = scalar_select %p388, %s22, 1
      %s390 = smul.addr %s389, 32
      %s391 = smul.addr %s390, 4
      %s392 = scalar_lea.vmem %s1, %s391
      %p393 = scmp.lt.s32.totalorder %s22, 1
      %s394 = scalar_select %p393, %s22, 1
      %s395 = smul.addr %s394, 32
      %s396 = smul.addr %s395, 4
      %s397 = scalar_lea.vmem %s7, %s396
      %p398 = scmp.lt.s32.totalorder %s22, 1
      %s399 = scalar_select %p398, %s22, 1
      %s400 = smul.addr %s399, 32
      %s401 = smul.addr %s400, 4
      %s402 = scalar_lea.vmem %s8, %s401
      %p403 = scmp.lt.s32.totalorder %s22, 1
      %s404 = scalar_select %p403, %s22, 1
      %s405 = scalar_lea.vmem %s9, %s404
      %p406 = scmp.lt.s32.totalorder %s22, 1
      %s407 = scalar_select %p406, %s22, 1
      %s408 = scalar_lea.vmem %s10, %s407
      %v410 = vld [vmem:[%s387] sm:$0xf]
      %v411 = vld [vmem:[%s387 + $0x4] sm:$0xf]
      %v412 = vld [vmem:[%s387 + $0x8] sm:$0xf]
      %v413 = vld [vmem:[%s387 + $0xc] sm:$0xf]
      %v414 = vld [vmem:[%s387 + $0x10] sm:$0xf]
      %v415 = vld [vmem:[%s387 + $0x14] sm:$0xf]
      %v416 = vld [vmem:[%s387 + $0x18] sm:$0xf]
      %v417 = vld [vmem:[%s387 + $0x1c] sm:$0xf]
      %v418 = vld [vmem:[%s387 + $0x20] sm:$0xf]
      %v419 = vld [vmem:[%s387 + $0x24] sm:$0xf]
      %v420 = vld [vmem:[%s387 + $0x28] sm:$0xf]
      %v421 = vld [vmem:[%s387 + $0x2c] sm:$0xf]
      %v422 = vld [vmem:[%s387 + $0x30] sm:$0xf]
      %v423 = vld [vmem:[%s387 + $0x34] sm:$0xf]
      %v424 = vld [vmem:[%s387 + $0x38] sm:$0xf]
      %v425 = vld [vmem:[%s387 + $0x3c] sm:$0xf]
      %v426 = vld [vmem:[%s387 + $0x40] sm:$0xf]
      %v427 = vld [vmem:[%s387 + $0x44] sm:$0xf]
      %v428 = vld [vmem:[%s387 + $0x48] sm:$0xf]
      %v429 = vld [vmem:[%s387 + $0x4c] sm:$0xf]
      %v430 = vld [vmem:[%s387 + $0x50] sm:$0xf]
      %v431 = vld [vmem:[%s387 + $0x54] sm:$0xf]
      %v432 = vld [vmem:[%s387 + $0x58] sm:$0xf]
      %v433 = vld [vmem:[%s387 + $0x5c] sm:$0xf]
      %v434 = vld [vmem:[%s387 + $0x60] sm:$0xf]
      %v435 = vld [vmem:[%s387 + $0x64] sm:$0xf]
      %v436 = vld [vmem:[%s387 + $0x68] sm:$0xf]
      %v437 = vld [vmem:[%s387 + $0x6c] sm:$0xf]
      %v438 = vld [vmem:[%s387 + $0x70] sm:$0xf]
      %v439 = vld [vmem:[%s387 + $0x74] sm:$0xf]
      %v440 = vld [vmem:[%s387 + $0x78] sm:$0xf]
      %v441 = vld [vmem:[%s387 + $0x7c] sm:$0xf]
      %v442 = vunpack.c.l.bf16 %v410
      %v443 = vunpack.c.l.bf16 %v411
      %v444 = vunpack.c.l.bf16 %v412
      %v445 = vunpack.c.l.bf16 %v413
      %v446 = vunpack.c.l.bf16 %v414
      %v447 = vunpack.c.l.bf16 %v415
      %v448 = vunpack.c.l.bf16 %v416
      %v449 = vunpack.c.l.bf16 %v417
      %v450 = vunpack.c.l.bf16 %v418
      %v451 = vunpack.c.l.bf16 %v419
      %v452 = vunpack.c.l.bf16 %v420
      %v453 = vunpack.c.l.bf16 %v421
      %v454 = vunpack.c.l.bf16 %v422
      %v455 = vunpack.c.l.bf16 %v423
      %v456 = vunpack.c.l.bf16 %v424
      %v457 = vunpack.c.l.bf16 %v425
      %v458 = vunpack.c.l.bf16 %v426
      %v459 = vunpack.c.l.bf16 %v427
      %v460 = vunpack.c.l.bf16 %v428
      %v461 = vunpack.c.l.bf16 %v429
      %v462 = vunpack.c.l.bf16 %v430
      %v463 = vunpack.c.l.bf16 %v431
      %v464 = vunpack.c.l.bf16 %v432
      %v465 = vunpack.c.l.bf16 %v433
      %v466 = vunpack.c.l.bf16 %v434
      %v467 = vunpack.c.l.bf16 %v435
      %v468 = vunpack.c.l.bf16 %v436
      %v469 = vunpack.c.l.bf16 %v437
      %v470 = vunpack.c.l.bf16 %v438
      %v471 = vunpack.c.l.bf16 %v439
      %v472 = vunpack.c.l.bf16 %v440
      %v473 = vunpack.c.l.bf16 %v441
      %v474 = vld [vmem:[%s392] sm:$0xf]
      %v475 = vld [vmem:[%s392 + $0x4] sm:$0xf]
      %v476 = vld [vmem:[%s392 + $0x8] sm:$0xf]
      %v477 = vld [vmem:[%s392 + $0xc] sm:$0xf]
      %v478 = vld [vmem:[%s392 + $0x10] sm:$0xf]
      %v479 = vld [vmem:[%s392 + $0x14] sm:$0xf]
      %v480 = vld [vmem:[%s392 + $0x18] sm:$0xf]
      %v481 = vld [vmem:[%s392 + $0x1c] sm:$0xf]
      %v482 = vld [vmem:[%s392 + $0x20] sm:$0xf]
      %v483 = vld [vmem:[%s392 + $0x24] sm:$0xf]
      %v484 = vld [vmem:[%s392 + $0x28] sm:$0xf]
      %v485 = vld [vmem:[%s392 + $0x2c] sm:$0xf]
      %v486 = vld [vmem:[%s392 + $0x30] sm:$0xf]
      %v487 = vld [vmem:[%s392 + $0x34] sm:$0xf]
      %v488 = vld [vmem:[%s392 + $0x38] sm:$0xf]
      %v489 = vld [vmem:[%s392 + $0x3c] sm:$0xf]
      %v490 = vld [vmem:[%s392 + $0x40] sm:$0xf]
      %v491 = vld [vmem:[%s392 + $0x44] sm:$0xf]
      %v492 = vld [vmem:[%s392 + $0x48] sm:$0xf]
      %v493 = vld [vmem:[%s392 + $0x4c] sm:$0xf]
      %v494 = vld [vmem:[%s392 + $0x50] sm:$0xf]
      %v495 = vld [vmem:[%s392 + $0x54] sm:$0xf]
      %v496 = vld [vmem:[%s392 + $0x58] sm:$0xf]
      %v497 = vld [vmem:[%s392 + $0x5c] sm:$0xf]
      %v498 = vld [vmem:[%s392 + $0x60] sm:$0xf]
      %v499 = vld [vmem:[%s392 + $0x64] sm:$0xf]
      %v500 = vld [vmem:[%s392 + $0x68] sm:$0xf]
      %v501 = vld [vmem:[%s392 + $0x6c] sm:$0xf]
      %v502 = vld [vmem:[%s392 + $0x70] sm:$0xf]
      %v503 = vld [vmem:[%s392 + $0x74] sm:$0xf]
      %v504 = vld [vmem:[%s392 + $0x78] sm:$0xf]
      %v505 = vld [vmem:[%s392 + $0x7c] sm:$0xf]
      %v506 = vunpack.c.l.bf16 %v474
      %v507 = vunpack.c.l.bf16 %v475
      %v508 = vunpack.c.l.bf16 %v476
      %v509 = vunpack.c.l.bf16 %v477
      %v510 = vunpack.c.l.bf16 %v478
      %v511 = vunpack.c.l.bf16 %v479
      %v512 = vunpack.c.l.bf16 %v480
      %v513 = vunpack.c.l.bf16 %v481
      %v514 = vunpack.c.l.bf16 %v482
      %v515 = vunpack.c.l.bf16 %v483
      %v516 = vunpack.c.l.bf16 %v484
      %v517 = vunpack.c.l.bf16 %v485
      %v518 = vunpack.c.l.bf16 %v486
      %v519 = vunpack.c.l.bf16 %v487
      %v520 = vunpack.c.l.bf16 %v488
      %v521 = vunpack.c.l.bf16 %v489
      %v522 = vunpack.c.l.bf16 %v490
      %v523 = vunpack.c.l.bf16 %v491
      %v524 = vunpack.c.l.bf16 %v492
      %v525 = vunpack.c.l.bf16 %v493
      %v526 = vunpack.c.l.bf16 %v494
      %v527 = vunpack.c.l.bf16 %v495
      %v528 = vunpack.c.l.bf16 %v496
      %v529 = vunpack.c.l.bf16 %v497
      %v530 = vunpack.c.l.bf16 %v498
      %v531 = vunpack.c.l.bf16 %v499
      %v532 = vunpack.c.l.bf16 %v500
      %v533 = vunpack.c.l.bf16 %v501
      %v534 = vunpack.c.l.bf16 %v502
      %v535 = vunpack.c.l.bf16 %v503
      %v536 = vunpack.c.l.bf16 %v504
      %v537 = vunpack.c.l.bf16 %v505
      %vm538 = vcmask 130048
      %v539 = vsel %vm538, %v442, 0.0
      %v540 = vsel %vm538, %v443, 0.0
      %v541 = vadd.f32 %v539, %v540
      %v542 = vsel %vm538, %v444, 0.0
      %v543 = vadd.f32 %v541, %v542
      %v544 = vsel %vm538, %v445, 0.0
      %v545 = vadd.f32 %v543, %v544
      %v546 = vsel %vm538, %v446, 0.0
      %v547 = vadd.f32 %v545, %v546
      %v548 = vsel %vm538, %v447, 0.0
      %v549 = vadd.f32 %v547, %v548
      %v550 = vsel %vm538, %v448, 0.0
      %v551 = vadd.f32 %v549, %v550
      %v552 = vsel %vm538, %v449, 0.0
      %v553 = vadd.f32 %v551, %v552
      %v554 = vsel %vm538, %v450, 0.0
      %v555 = vadd.f32 %v553, %v554
      %v556 = vsel %vm538, %v451, 0.0
      %v557 = vadd.f32 %v555, %v556
      %v558 = vsel %vm538, %v452, 0.0
      %v559 = vadd.f32 %v557, %v558
      %v560 = vsel %vm538, %v453, 0.0
      %v561 = vadd.f32 %v559, %v560
      %v562 = vsel %vm538, %v454, 0.0
      %v563 = vadd.f32 %v561, %v562
      %v564 = vsel %vm538, %v455, 0.0
      %v565 = vadd.f32 %v563, %v564
      %v566 = vsel %vm538, %v456, 0.0
      %v567 = vadd.f32 %v565, %v566
      %v568 = vsel %vm538, %v457, 0.0
      %v569 = vadd.f32 %v567, %v568
      %v570 = vsel %vm538, %v458, 0.0
      %v571 = vadd.f32 %v569, %v570
      %v572 = vsel %vm538, %v459, 0.0
      %v573 = vadd.f32 %v571, %v572
      %v574 = vsel %vm538, %v460, 0.0
      %v575 = vadd.f32 %v573, %v574
      %v576 = vsel %vm538, %v461, 0.0
      %v577 = vadd.f32 %v575, %v576
      %v578 = vsel %vm538, %v462, 0.0
      %v579 = vadd.f32 %v577, %v578
      %v580 = vsel %vm538, %v463, 0.0
      %v581 = vadd.f32 %v579, %v580
      %v582 = vsel %vm538, %v464, 0.0
      %v583 = vadd.f32 %v581, %v582
      %v584 = vsel %vm538, %v465, 0.0
      %v585 = vadd.f32 %v583, %v584
      %v586 = vsel %vm538, %v466, 0.0
      %v587 = vadd.f32 %v585, %v586
      %v588 = vsel %vm538, %v467, 0.0
      %v589 = vadd.f32 %v587, %v588
      %v590 = vsel %vm538, %v468, 0.0
      %v591 = vadd.f32 %v589, %v590
      %v592 = vsel %vm538, %v469, 0.0
      %v593 = vadd.f32 %v591, %v592
      %v594 = vsel %vm538, %v470, 0.0
      %v595 = vadd.f32 %v593, %v594
      %v596 = vsel %vm538, %v471, 0.0
      %v597 = vadd.f32 %v595, %v596
      %v598 = vsel %vm538, %v472, 0.0
      %v599 = vadd.f32 %v597, %v598
      %v600 = vsel %vm538, %v473, 0.0
      %v601 = vadd.f32 %v599, %v600
      %v602 = vrot.slane %v601, 4
      %v603 = vadd.f32 %v601, %v602
      %v604 = vrot.slane %v603, 2
      %v605 = vadd.f32 %v603, %v604
      %v606 = vrot.slane %v605, 1
      %v607 = vadd.f32 %v605, %v606
      %v608 = vmul.f32 %v607, 0.00390625
      %v609 = vsel %vm538, %v506, 0.0
      %v610 = vsel %vm538, %v507, 0.0
      %v611 = vadd.f32 %v609, %v610
      %v612 = vsel %vm538, %v508, 0.0
      %v613 = vadd.f32 %v611, %v612
      %v614 = vsel %vm538, %v509, 0.0
      %v615 = vadd.f32 %v613, %v614
      %v616 = vsel %vm538, %v510, 0.0
      %v617 = vadd.f32 %v615, %v616
      %v618 = vsel %vm538, %v511, 0.0
      %v619 = vadd.f32 %v617, %v618
      %v620 = vsel %vm538, %v512, 0.0
      %v621 = vadd.f32 %v619, %v620
      %v622 = vsel %vm538, %v513, 0.0
      %v623 = vadd.f32 %v621, %v622
      %v624 = vsel %vm538, %v514, 0.0
      %v625 = vadd.f32 %v623, %v624
      %v626 = vsel %vm538, %v515, 0.0
      %v627 = vadd.f32 %v625, %v626
      %v628 = vsel %vm538, %v516, 0.0
      %v629 = vadd.f32 %v627, %v628
      %v630 = vsel %vm538, %v517, 0.0
      %v631 = vadd.f32 %v629, %v630
      %v632 = vsel %vm538, %v518, 0.0
      %v633 = vadd.f32 %v631, %v632
      %v634 = vsel %vm538, %v519, 0.0
      %v635 = vadd.f32 %v633, %v634
      %v636 = vsel %vm538, %v520, 0.0
      %v637 = vadd.f32 %v635, %v636
      %v638 = vsel %vm538, %v521, 0.0
      %v639 = vadd.f32 %v637, %v638
      %v640 = vsel %vm538, %v522, 0.0
      %v641 = vadd.f32 %v639, %v640
      %v642 = vsel %vm538, %v523, 0.0
      %v643 = vadd.f32 %v641, %v642
      %v644 = vsel %vm538, %v524, 0.0
      %v645 = vadd.f32 %v643, %v644
      %v646 = vsel %vm538, %v525, 0.0
      %v647 = vadd.f32 %v645, %v646
      %v648 = vsel %vm538, %v526, 0.0
      %v649 = vadd.f32 %v647, %v648
      %v650 = vsel %vm538, %v527, 0.0
      %v651 = vadd.f32 %v649, %v650
      %v652 = vsel %vm538, %v528, 0.0
      %v653 = vadd.f32 %v651, %v652
      %v654 = vsel %vm538, %v529, 0.0
      %v655 = vadd.f32 %v653, %v654
      %v656 = vsel %vm538, %v530, 0.0
      %v657 = vadd.f32 %v655, %v656
      %v658 = vsel %vm538, %v531, 0.0
      %v659 = vadd.f32 %v657, %v658
      %v660 = vsel %vm538, %v532, 0.0
      %v661 = vadd.f32 %v659, %v660
      %v662 = vsel %vm538, %v533, 0.0
      %v663 = vadd.f32 %v661, %v662
      %v664 = vsel %vm538, %v534, 0.0
      %v665 = vadd.f32 %v663, %v664
      %v666 = vsel %vm538, %v535, 0.0
      %v667 = vadd.f32 %v665, %v666
      %v668 = vsel %vm538, %v536, 0.0
      %v669 = vadd.f32 %v667, %v668
      %v670 = vsel %vm538, %v537, 0.0
      %v671 = vadd.f32 %v669, %v670
      %v672 = vrot.slane %v671, 4
      %v673 = vadd.f32 %v671, %v672
      %v674 = vrot.slane %v673, 2
      %v675 = vadd.f32 %v673, %v674
      %v676 = vrot.slane %v675, 1
      %v677 = vadd.f32 %v675, %v676
      %v678 = vmul.f32 %v677, 0.00390625
      %v679 = vld [vmem:[%s2] sm:$0xff]
      %v680 = vld [vmem:[%s2 + $0x8] sm:$0xff]
      %s681 = scalar_lea.vmem %s2, 16
      %v682 = vld [vmem:[%s681] sm:$0xff]
      %v683 = vld [vmem:[%s681 + $0x8] sm:$0xff]
      %v685 = vsel %vm538, %v678, 0
      %687 = vmatprep.subr.mxu0 0.0
      %688 = vmatpush1.msra.mxu0 %v682
      %689 = vmatprep.subr.mxu0 0.0
      %690 = vmatpush1.msra.mxu0 %v683
      %691 = vmatprep.subr.mxu0 0.0
      %692 = vmatpush1.msra.mxu0 0.0
      %693 = vmatprep.subr.mxu0 0.0
      %694 = vmatpush1.msra.mxu0 0.0
      %695 = vmatprep.subr.mxu0 0.0
      %696 = vmatpush1.msra.mxu0 0.0
      %697 = vmatprep.subr.mxu0 0.0
      %698 = vmatpush1.msra.mxu0 0.0
      %699 = vmatprep.subr.mxu0 0.0
      %700 = vmatpush1.msra.mxu0 0.0
      %701 = vmatprep.subr.mxu0 0.0
      %702 = vmatpush1.msra.mxu0 0.0
      %703 = vmatprep.subr.mxu0 0.0
      %704 = vmatpush1.msra.mxu0 0.0
      %705 = vmatprep.subr.mxu0 0.0
      %706 = vmatpush1.msra.mxu0 0.0
      %707 = vmatprep.subr.mxu0 0.0
      %708 = vmatpush1.msra.mxu0 0.0
      %709 = vmatprep.subr.mxu0 0.0
      %710 = vmatpush1.msra.mxu0 0.0
      %711 = vmatprep.subr.mxu0 0.0
      %712 = vmatpush1.msra.mxu0 0.0
      %713 = vmatprep.subr.mxu0 0.0
      %714 = vmatpush1.msra.mxu0 0.0
      %715 = vmatprep.subr.mxu0 0.0
      %716 = vmatpush1.msra.mxu0 0.0
      %717 = vmatprep.subr.mxu0 0.0
      %718 = vmatpush1.msra.mxu0 0.0
      %719 = vmatprep.subr.mxu0 0.0
      %720 = vmatpush1.msra.mxu0 0.0
      %721 = vmatprep.subr.mxu0 0.0
      %722 = vmatpush1.msra.mxu0 0.0
      %723 = vmatprep.subr.mxu0 0.0
      %724 = vmatpush1.msra.mxu0 0.0
      %725 = vmatprep.subr.mxu0 0.0
      %726 = vmatpush1.msra.mxu0 0.0
      %727 = vmatprep.subr.mxu0 0.0
      %728 = vmatpush1.msra.mxu0 0.0
      %729 = vmatprep.subr.mxu0 0.0
      %730 = vmatpush1.msra.mxu0 0.0
      %731 = vmatprep.subr.mxu0 0.0
      %732 = vmatpush1.msra.mxu0 0.0
      %733 = vmatprep.subr.mxu0 0.0
      %734 = vmatpush1.msra.mxu0 0.0
      %735 = vmatprep.subr.mxu0 0.0
      %736 = vmatpush1.msra.mxu0 0.0
      %737 = vmatprep.subr.mxu0 0.0
      %738 = vmatpush1.msra.mxu0 0.0
      %739 = vmatprep.subr.mxu0 0.0
      %740 = vmatpush1.msra.mxu0 0.0
      %741 = vmatprep.subr.mxu0 0.0
      %742 = vmatpush1.msra.mxu0 0.0
      %743 = vmatprep.subr.mxu0 0.0
      %744 = vmatpush1.msra.mxu0 0.0
      %745 = vmatprep.subr.mxu0 0.0
      %746 = vmatpush1.msra.mxu0 0.0
      %747 = vmatprep.subr.mxu0 0.0
      %748 = vmatpush1.msra.mxu0 0.0
      %749 = vmatprep.subr.mxu0 0.0
      %750 = vmatpush1.msra.mxu0 0.0
      %751 = vmatprep.mubr.f32.mxu0 0.0
      %752 = vmatmul.mubr.f32.gmra.mrb[0].mxu0 %v685
      %v753 = vpop.f32.mrb[0].mxu0
      %v754 = vadd.f32 0.0, %v753
      %v755 = vpop.f32.mrb[0].mxu0
      %756 = vdwg.mxu0
      %v758 = vsel %vm538, %v608, 0
      %760 = vmatprep.subr.mxu0 0.0
      %761 = vmatpush1.msra.mxu0 %v679
      %762 = vmatprep.subr.mxu0 0.0
      %763 = vmatpush1.msra.mxu0 %v680
      %764 = vmatprep.subr.mxu0 0.0
      %765 = vmatpush1.msra.mxu0 0.0
      %766 = vmatprep.subr.mxu0 0.0
      %767 = vmatpush1.msra.mxu0 0.0
      %768 = vmatprep.subr.mxu0 0.0
      %769 = vmatpush1.msra.mxu0 0.0
      %770 = vmatprep.subr.mxu0 0.0
      %771 = vmatpush1.msra.mxu0 0.0
      %772 = vmatprep.subr.mxu0 0.0
      %773 = vmatpush1.msra.mxu0 0.0
      %774 = vmatprep.subr.mxu0 0.0
      %775 = vmatpush1.msra.mxu0 0.0
      %776 = vmatprep.subr.mxu0 0.0
      %777 = vmatpush1.msra.mxu0 0.0
      %778 = vmatprep.subr.mxu0 0.0
      %779 = vmatpush1.msra.mxu0 0.0
      %780 = vmatprep.subr.mxu0 0.0
      %781 = vmatpush1.msra.mxu0 0.0
      %782 = vmatprep.subr.mxu0 0.0
      %783 = vmatpush1.msra.mxu0 0.0
      %784 = vmatprep.subr.mxu0 0.0
      %785 = vmatpush1.msra.mxu0 0.0
      %786 = vmatprep.subr.mxu0 0.0
      %787 = vmatpush1.msra.mxu0 0.0
      %788 = vmatprep.subr.mxu0 0.0
      %789 = vmatpush1.msra.mxu0 0.0
      %790 = vmatprep.subr.mxu0 0.0
      %791 = vmatpush1.msra.mxu0 0.0
      %792 = vmatprep.subr.mxu0 0.0
      %793 = vmatpush1.msra.mxu0 0.0
      %794 = vmatprep.subr.mxu0 0.0
      %795 = vmatpush1.msra.mxu0 0.0
      %796 = vmatprep.subr.mxu0 0.0
      %797 = vmatpush1.msra.mxu0 0.0
      %798 = vmatprep.subr.mxu0 0.0
      %799 = vmatpush1.msra.mxu0 0.0
      %800 = vmatprep.subr.mxu0 0.0
      %801 = vmatpush1.msra.mxu0 0.0
      %802 = vmatprep.subr.mxu0 0.0
      %803 = vmatpush1.msra.mxu0 0.0
      %804 = vmatprep.subr.mxu0 0.0
      %805 = vmatpush1.msra.mxu0 0.0
      %806 = vmatprep.subr.mxu0 0.0
      %807 = vmatpush1.msra.mxu0 0.0
      %808 = vmatprep.subr.mxu0 0.0
      %809 = vmatpush1.msra.mxu0 0.0
      %810 = vmatprep.subr.mxu0 0.0
      %811 = vmatpush1.msra.mxu0 0.0
      %812 = vmatprep.subr.mxu0 0.0
      %813 = vmatpush1.msra.mxu0 0.0
      %814 = vmatprep.subr.mxu0 0.0
      %815 = vmatpush1.msra.mxu0 0.0
      %816 = vmatprep.subr.mxu0 0.0
      %817 = vmatpush1.msra.mxu0 0.0
      %818 = vmatprep.subr.mxu0 0.0
      %819 = vmatpush1.msra.mxu0 0.0
      %820 = vmatprep.subr.mxu0 0.0
      %821 = vmatpush1.msra.mxu0 0.0
      %822 = vmatprep.subr.mxu0 0.0
      %823 = vmatpush1.msra.mxu0 0.0
      %824 = vmatprep.mubr.f32.mxu0 0.0
      %825 = vmatmul.mubr.f32.gmra.mrb[0].mxu0 %v758
      %v826 = vpop.f32.mrb[0].mxu0
      %v827 = vadd.f32 %v754, %v826
      %v828 = vpop.f32.mrb[0].mxu0
      %829 = vdwg.mxu0
      %v830 = vmax.f32 %v827, 0.0
      %v831 = vld [vmem:[%s3] sm:$0x3]
      %vm832 = vcmask 15360
      %v834 = vsel %vm832, %v830, 0
      %vm836 = vcmask 1041408
      %v838 = vsel %vm836, %v831, 0
      %840 = vmatprep.subr.mxu0 0.0
      %841 = vmatpush1.msra.mxu0 %v838
      %842 = vmatprep.subr.mxu0 0.0
      %843 = vmatpush1.msra.mxu0 0.0
      %844 = vmatprep.subr.mxu0 0.0
      %845 = vmatpush1.msra.mxu0 0.0
      %846 = vmatprep.subr.mxu0 0.0
      %847 = vmatpush1.msra.mxu0 0.0
      %848 = vmatprep.subr.mxu0 0.0
      %849 = vmatpush1.msra.mxu0 0.0
      %850 = vmatprep.subr.mxu0 0.0
      %851 = vmatpush1.msra.mxu0 0.0
      %852 = vmatprep.subr.mxu0 0.0
      %853 = vmatpush1.msra.mxu0 0.0
      %854 = vmatprep.subr.mxu0 0.0
      %855 = vmatpush1.msra.mxu0 0.0
      %856 = vmatprep.subr.mxu0 0.0
      %857 = vmatpush1.msra.mxu0 0.0
      %858 = vmatprep.subr.mxu0 0.0
      %859 = vmatpush1.msra.mxu0 0.0
      %860 = vmatprep.subr.mxu0 0.0
      %861 = vmatpush1.msra.mxu0 0.0
      %862 = vmatprep.subr.mxu0 0.0
      %863 = vmatpush1.msra.mxu0 0.0
      %864 = vmatprep.subr.mxu0 0.0
      %865 = vmatpush1.msra.mxu0 0.0
      %866 = vmatprep.subr.mxu0 0.0
      %867 = vmatpush1.msra.mxu0 0.0
      %868 = vmatprep.subr.mxu0 0.0
      %869 = vmatpush1.msra.mxu0 0.0
      %870 = vmatprep.subr.mxu0 0.0
      %871 = vmatpush1.msra.mxu0 0.0
      %872 = vmatprep.subr.mxu0 0.0
      %873 = vmatpush1.msra.mxu0 0.0
      %874 = vmatprep.subr.mxu0 0.0
      %875 = vmatpush1.msra.mxu0 0.0
      %876 = vmatprep.subr.mxu0 0.0
      %877 = vmatpush1.msra.mxu0 0.0
      %878 = vmatprep.subr.mxu0 0.0
      %879 = vmatpush1.msra.mxu0 0.0
      %880 = vmatprep.subr.mxu0 0.0
      %881 = vmatpush1.msra.mxu0 0.0
      %882 = vmatprep.subr.mxu0 0.0
      %883 = vmatpush1.msra.mxu0 0.0
      %884 = vmatprep.subr.mxu0 0.0
      %885 = vmatpush1.msra.mxu0 0.0
      %886 = vmatprep.subr.mxu0 0.0
      %887 = vmatpush1.msra.mxu0 0.0
      %888 = vmatprep.subr.mxu0 0.0
      %889 = vmatpush1.msra.mxu0 0.0
      %890 = vmatprep.subr.mxu0 0.0
      %891 = vmatpush1.msra.mxu0 0.0
      %892 = vmatprep.subr.mxu0 0.0
      %893 = vmatpush1.msra.mxu0 0.0
      %894 = vmatprep.subr.mxu0 0.0
      %895 = vmatpush1.msra.mxu0 0.0
      %896 = vmatprep.subr.mxu0 0.0
      %897 = vmatpush1.msra.mxu0 0.0
      %898 = vmatprep.subr.mxu0 0.0
      %899 = vmatpush1.msra.mxu0 0.0
      %900 = vmatprep.subr.mxu0 0.0
      %901 = vmatpush1.msra.mxu0 0.0
      %902 = vmatprep.subr.mxu0 0.0
      %903 = vmatpush1.msra.mxu0 0.0
      %904 = vmatprep.mubr.f32.mxu0 0.0
      %905 = vmatmul.mubr.f32.gmra.mrb[0].mxu0 %v834
      %v906 = vpop.f32.mrb[0].mxu0
      %v907 = vadd.f32 0.0, %v906
      %v908 = vpop.f32.mrb[0].mxu0
      %909 = vdwg.mxu0
      %v910 = vsub.f32 0.0, %v907
      %v911 = vmul.f32 %v910, 1.442695
      %v912 = vpow.pop %v911
      %v913 = vadd.f32 %v912, 1.0
      %v914 = vrcp.pop %v913
      %v915 = vmul.f32 1.0, %v914
      %v916 = vlaneseq
      %v917 = vshrl.u32 %v916, 7
      %v918 = vsub.s32 0, %v917
      %v919 = vrot.slane %v915, %v918
      %v920 = vmul.f32 %v442, %v919
      %v921 = vmul.f32 %v443, %v919
      %v922 = vmul.f32 %v444, %v919
      %v923 = vmul.f32 %v445, %v919
      %v924 = vmul.f32 %v446, %v919
      %v925 = vmul.f32 %v447, %v919
      %v926 = vmul.f32 %v448, %v919
      %v927 = vmul.f32 %v449, %v919
      %v928 = vmul.f32 %v450, %v919
      %v929 = vmul.f32 %v451, %v919
      %v930 = vmul.f32 %v452, %v919
      %v931 = vmul.f32 %v453, %v919
      %v932 = vmul.f32 %v454, %v919
      %v933 = vmul.f32 %v455, %v919
      %v934 = vmul.f32 %v456, %v919
      %v935 = vmul.f32 %v457, %v919
      %v936 = vmul.f32 %v458, %v919
      %v937 = vmul.f32 %v459, %v919
      %v938 = vmul.f32 %v460, %v919
      %v939 = vmul.f32 %v461, %v919
      %v940 = vmul.f32 %v462, %v919
      %v941 = vmul.f32 %v463, %v919
      %v942 = vmul.f32 %v464, %v919
      %v943 = vmul.f32 %v465, %v919
      %v944 = vmul.f32 %v466, %v919
      %v945 = vmul.f32 %v467, %v919
      %v946 = vmul.f32 %v468, %v919
      %v947 = vmul.f32 %v469, %v919
      %v948 = vmul.f32 %v470, %v919
      %v949 = vmul.f32 %v471, %v919
      %v950 = vmul.f32 %v472, %v919
      %v951 = vmul.f32 %v473, %v919
      %v952 = vadd.f32 %v920, %v506
      %v953 = vadd.f32 %v921, %v507
      %v954 = vadd.f32 %v922, %v508
      %v955 = vadd.f32 %v923, %v509
      %v956 = vadd.f32 %v924, %v510
      %v957 = vadd.f32 %v925, %v511
      %v958 = vadd.f32 %v926, %v512
      %v959 = vadd.f32 %v927, %v513
      %v960 = vadd.f32 %v928, %v514
      %v961 = vadd.f32 %v929, %v515
      %v962 = vadd.f32 %v930, %v516
      %v963 = vadd.f32 %v931, %v517
      %v964 = vadd.f32 %v932, %v518
      %v965 = vadd.f32 %v933, %v519
      %v966 = vadd.f32 %v934, %v520
      %v967 = vadd.f32 %v935, %v521
      %v968 = vadd.f32 %v936, %v522
      %v969 = vadd.f32 %v937, %v523
      %v970 = vadd.f32 %v938, %v524
      %v971 = vadd.f32 %v939, %v525
      %v972 = vadd.f32 %v940, %v526
      %v973 = vadd.f32 %v941, %v527
      %v974 = vadd.f32 %v942, %v528
      %v975 = vadd.f32 %v943, %v529
      %v976 = vadd.f32 %v944, %v530
      %v977 = vadd.f32 %v945, %v531
      %v978 = vadd.f32 %v946, %v532
      %v979 = vadd.f32 %v947, %v533
      %v980 = vadd.f32 %v948, %v534
      %v981 = vadd.f32 %v949, %v535
      %v982 = vadd.f32 %v950, %v536
      %v983 = vadd.f32 %v951, %v537
      %v984 = vpack.c.bf16 %v953, %v952
      %v985 = vpack.c.bf16 %v955, %v954
      %v986 = vpack.c.bf16 %v957, %v956
      %v987 = vpack.c.bf16 %v959, %v958
      %v988 = vpack.c.bf16 %v961, %v960
      %v989 = vpack.c.bf16 %v963, %v962
      %v990 = vpack.c.bf16 %v965, %v964
      %v991 = vpack.c.bf16 %v967, %v966
      %v992 = vpack.c.bf16 %v969, %v968
      %v993 = vpack.c.bf16 %v971, %v970
      %v994 = vpack.c.bf16 %v973, %v972
      %v995 = vpack.c.bf16 %v975, %v974
      %v996 = vpack.c.bf16 %v977, %v976
      %v997 = vpack.c.bf16 %v979, %v978
      %v998 = vpack.c.bf16 %v981, %v980
      %v999 = vpack.c.bf16 %v983, %v982
      %v1000 = vld [vmem:[%s4] sm:$0xf]
      %v1001 = vld [vmem:[%s4 + $0x4] sm:$0xf]
      %v1004 = vunpack.c.l.b16 %v1000
      %v1005 = vunpack.c.l.b16 %v1001
      %v1006 = vpack.c.b16 %v1005, %v1004
      %v1009 = vsel %vm538, %v984, 0
      %v1012 = vsel %vm538, %v985, 0
      %v1015 = vsel %vm538, %v986, 0
      %v1018 = vsel %vm538, %v987, 0
      %v1021 = vsel %vm538, %v988, 0
      %v1024 = vsel %vm538, %v989, 0
      %v1027 = vsel %vm538, %v990, 0
      %v1030 = vsel %vm538, %v991, 0
      %v1033 = vsel %vm538, %v992, 0
      %v1036 = vsel %vm538, %v993, 0
      %v1039 = vsel %vm538, %v994, 0
      %v1042 = vsel %vm538, %v995, 0
      %v1045 = vsel %vm538, %v996, 0
      %v1048 = vsel %vm538, %v997, 0
      %v1051 = vsel %vm538, %v998, 0
      %v1054 = vsel %vm538, %v999, 0
      %1056 = vmatprep.subr.bf16.mxu0 0
      %1057 = vmatpush1.bf16.msra.mxu0 %v1006
      %1058 = vmatprep.subr.bf16.mxu0 0
      %1059 = vmatpush1.bf16.msra.mxu0 0
      %1060 = vmatprep.subr.bf16.mxu0 0
      %1061 = vmatpush1.bf16.msra.mxu0 0
      %1062 = vmatprep.subr.bf16.mxu0 0
      %1063 = vmatpush1.bf16.msra.mxu0 0
      %1064 = vmatprep.subr.bf16.mxu0 0
      %1065 = vmatpush1.bf16.msra.mxu0 0
      %1066 = vmatprep.subr.bf16.mxu0 0
      %1067 = vmatpush1.bf16.msra.mxu0 0
      %1068 = vmatprep.subr.bf16.mxu0 0
      %1069 = vmatpush1.bf16.msra.mxu0 0
      %1070 = vmatprep.subr.bf16.mxu0 0
      %1071 = vmatpush1.bf16.msra.mxu0 0
      %1072 = vmatprep.subr.bf16.mxu0 0
      %1073 = vmatpush1.bf16.msra.mxu0 0
      %1074 = vmatprep.subr.bf16.mxu0 0
      %1075 = vmatpush1.bf16.msra.mxu0 0
      %1076 = vmatprep.subr.bf16.mxu0 0
      %1077 = vmatpush1.bf16.msra.mxu0 0
      %1078 = vmatprep.subr.bf16.mxu0 0
      %1079 = vmatpush1.bf16.msra.mxu0 0
      %1080 = vmatprep.subr.bf16.mxu0 0
      %1081 = vmatpush1.bf16.msra.mxu0 0
      %1082 = vmatprep.subr.bf16.mxu0 0
      %1083 = vmatpush1.bf16.msra.mxu0 0
      %1084 = vmatprep.subr.bf16.mxu0 0
      %1085 = vmatpush1.bf16.msra.mxu0 0
      %1086 = vmatprep.subr.bf16.mxu0 0
      %1087 = vmatpush1.bf16.msra.mxu0 0
      %1088 = vmatprep.mubr.bf16.mxu0 0
      %1089 = vmatmul.mubr.bf16.gmra.mrb[0].mxu0 %v1009
      %v1090 = vpop.f32.mrb[0].mxu0
      %v1091 = vadd.f32 0.0, %v1090
      %v1092 = vpop.f32.mrb[0].mxu0
      %v1093 = vpop.f32.mrb[0].mxu0
      %v1094 = vadd.f32 0.0, %v1093
      %v1095 = vpop.f32.mrb[0].mxu0
      %1096 = vmatprep.mubr.bf16.mxu0 0
      %1097 = vmatmul.mubr.bf16.gmra.mrb[0].mxu0 %v1012
      %v1098 = vpop.f32.mrb[0].mxu0
      %v1099 = vadd.f32 0.0, %v1098
      %v1100 = vpop.f32.mrb[0].mxu0
      %v1101 = vpop.f32.mrb[0].mxu0
      %v1102 = vadd.f32 0.0, %v1101
      %v1103 = vpop.f32.mrb[0].mxu0
      %1104 = vmatprep.mubr.bf16.mxu0 0
      %1105 = vmatmul.mubr.bf16.gmra.mrb[0].mxu0 %v1015
      %v1106 = vpop.f32.mrb[0].mxu0
      %v1107 = vadd.f32 0.0, %v1106
      %v1108 = vpop.f32.mrb[0].mxu0
      %v1109 = vpop.f32.mrb[0].mxu0
      %v1110 = vadd.f32 0.0, %v1109
      %v1111 = vpop.f32.mrb[0].mxu0
      %1112 = vmatprep.mubr.bf16.mxu0 0
      %1113 = vmatmul.mubr.bf16.gmra.mrb[0].mxu0 %v1018
      %v1114 = vpop.f32.mrb[0].mxu0
      %v1115 = vadd.f32 0.0, %v1114
      %v1116 = vpop.f32.mrb[0].mxu0
      %v1117 = vpop.f32.mrb[0].mxu0
      %v1118 = vadd.f32 0.0, %v1117
      %v1119 = vpop.f32.mrb[0].mxu0
      %1120 = vmatprep.mubr.bf16.mxu0 0
      %1121 = vmatmul.mubr.bf16.gmra.mrb[0].mxu0 %v1021
      %v1122 = vpop.f32.mrb[0].mxu0
      %v1123 = vadd.f32 0.0, %v1122
      %v1124 = vpop.f32.mrb[0].mxu0
      %v1125 = vpop.f32.mrb[0].mxu0
      %v1126 = vadd.f32 0.0, %v1125
      %v1127 = vpop.f32.mrb[0].mxu0
      %1128 = vmatprep.mubr.bf16.mxu0 0
      %1129 = vmatmul.mubr.bf16.gmra.mrb[0].mxu0 %v1024
      %v1130 = vpop.f32.mrb[0].mxu0
      %v1131 = vadd.f32 0.0, %v1130
      %v1132 = vpop.f32.mrb[0].mxu0
      %v1133 = vpop.f32.mrb[0].mxu0
      %v1134 = vadd.f32 0.0, %v1133
      %v1135 = vpop.f32.mrb[0].mxu0
      %1136 = vmatprep.mubr.bf16.mxu0 0
      %1137 = vmatmul.mubr.bf16.gmra.mrb[0].mxu0 %v1027
      %v1138 = vpop.f32.mrb[0].mxu0
      %v1139 = vadd.f32 0.0, %v1138
      %v1140 = vpop.f32.mrb[0].mxu0
      %v1141 = vpop.f32.mrb[0].mxu0
      %v1142 = vadd.f32 0.0, %v1141
      %v1143 = vpop.f32.mrb[0].mxu0
      %1144 = vmatprep.mubr.bf16.mxu0 0
      %1145 = vmatmul.mubr.bf16.gmra.mrb[0].mxu0 %v1030
      %v1146 = vpop.f32.mrb[0].mxu0
      %v1147 = vadd.f32 0.0, %v1146
      %v1148 = vpop.f32.mrb[0].mxu0
      %v1149 = vpop.f32.mrb[0].mxu0
      %v1150 = vadd.f32 0.0, %v1149
      %v1151 = vpop.f32.mrb[0].mxu0
      %1152 = vmatprep.mubr.bf16.mxu0 0
      %1153 = vmatmul.mubr.bf16.gmra.mrb[0].mxu0 %v1033
      %v1154 = vpop.f32.mrb[0].mxu0
      %v1155 = vadd.f32 0.0, %v1154
      %v1156 = vpop.f32.mrb[0].mxu0
      %v1157 = vpop.f32.mrb[0].mxu0
      %v1158 = vadd.f32 0.0, %v1157
      %v1159 = vpop.f32.mrb[0].mxu0
      %1160 = vmatprep.mubr.bf16.mxu0 0
      %1161 = vmatmul.mubr.bf16.gmra.mrb[0].mxu0 %v1036
      %v1162 = vpop.f32.mrb[0].mxu0
      %v1163 = vadd.f32 0.0, %v1162
      %v1164 = vpop.f32.mrb[0].mxu0
      %v1165 = vpop.f32.mrb[0].mxu0
      %v1166 = vadd.f32 0.0, %v1165
      %v1167 = vpop.f32.mrb[0].mxu0
      %1168 = vmatprep.mubr.bf16.mxu0 0
      %1169 = vmatmul.mubr.bf16.gmra.mrb[0].mxu0 %v1039
      %v1170 = vpop.f32.mrb[0].mxu0
      %v1171 = vadd.f32 0.0, %v1170
      %v1172 = vpop.f32.mrb[0].mxu0
      %v1173 = vpop.f32.mrb[0].mxu0
      %v1174 = vadd.f32 0.0, %v1173
      %v1175 = vpop.f32.mrb[0].mxu0
      %1176 = vmatprep.mubr.bf16.mxu0 0
      %1177 = vmatmul.mubr.bf16.gmra.mrb[0].mxu0 %v1042
      %v1178 = vpop.f32.mrb[0].mxu0
      %v1179 = vadd.f32 0.0, %v1178
      %v1180 = vpop.f32.mrb[0].mxu0
      %v1181 = vpop.f32.mrb[0].mxu0
      %v1182 = vadd.f32 0.0, %v1181
      %v1183 = vpop.f32.mrb[0].mxu0
      %1184 = vmatprep.mubr.bf16.mxu0 0
      %1185 = vmatmul.mubr.bf16.gmra.mrb[0].mxu0 %v1045
      %v1186 = vpop.f32.mrb[0].mxu0
      %v1187 = vadd.f32 0.0, %v1186
      %v1188 = vpop.f32.mrb[0].mxu0
      %v1189 = vpop.f32.mrb[0].mxu0
      %v1190 = vadd.f32 0.0, %v1189
      %v1191 = vpop.f32.mrb[0].mxu0
      %1192 = vmatprep.mubr.bf16.mxu0 0
      %1193 = vmatmul.mubr.bf16.gmra.mrb[0].mxu0 %v1048
      %v1194 = vpop.f32.mrb[0].mxu0
      %v1195 = vadd.f32 0.0, %v1194
      %v1196 = vpop.f32.mrb[0].mxu0
      %v1197 = vpop.f32.mrb[0].mxu0
      %v1198 = vadd.f32 0.0, %v1197
      %v1199 = vpop.f32.mrb[0].mxu0
      %1200 = vmatprep.mubr.bf16.mxu0 0
      %1201 = vmatmul.mubr.bf16.gmra.mrb[0].mxu0 %v1051
      %v1202 = vpop.f32.mrb[0].mxu0
      %v1203 = vadd.f32 0.0, %v1202
      %v1204 = vpop.f32.mrb[0].mxu0
      %v1205 = vpop.f32.mrb[0].mxu0
      %v1206 = vadd.f32 0.0, %v1205
      %v1207 = vpop.f32.mrb[0].mxu0
      %1208 = vmatprep.mubr.bf16.mxu0 0
      %1209 = vmatmul.mubr.bf16.gmra.mrb[0].mxu0 %v1054
      %v1210 = vpop.f32.mrb[0].mxu0
      %v1211 = vadd.f32 0.0, %v1210
      %v1212 = vpop.f32.mrb[0].mxu0
      %v1213 = vpop.f32.mrb[0].mxu0
      %v1214 = vadd.f32 0.0, %v1213
      %v1215 = vpop.f32.mrb[0].mxu0
      %1216 = vdwg.mxu0
      %v1217 = vpack.c.bf16 %v1094, %v1091
      %v1218 = vpack.c.bf16 %v1102, %v1099
      %v1219 = vpack.c.bf16 %v1110, %v1107
      %v1220 = vpack.c.bf16 %v1118, %v1115
      %v1221 = vpack.c.bf16 %v1126, %v1123
      %v1222 = vpack.c.bf16 %v1134, %v1131
      %v1223 = vpack.c.bf16 %v1142, %v1139
      %v1224 = vpack.c.bf16 %v1150, %v1147
      %v1225 = vpack.c.bf16 %v1158, %v1155
      %v1226 = vpack.c.bf16 %v1166, %v1163
      %v1227 = vpack.c.bf16 %v1174, %v1171
      %v1228 = vpack.c.bf16 %v1182, %v1179
      %v1229 = vpack.c.bf16 %v1190, %v1187
      %v1230 = vpack.c.bf16 %v1198, %v1195
      %v1231 = vpack.c.bf16 %v1206, %v1203
      %v1232 = vpack.c.bf16 %v1214, %v1211
      %v1249 = vunpack.c.l.b16 %v1217
      %v1250 = vunpack.c.h.b16 %v1217
      %v1251 = vunpack.c.l.b16 %v1218
      %v1252 = vunpack.c.h.b16 %v1218
      %v1253 = vunpack.c.l.b16 %v1219
      %v1254 = vunpack.c.h.b16 %v1219
      %v1255 = vunpack.c.l.b16 %v1220
      %v1256 = vunpack.c.h.b16 %v1220
      %v1257 = vunpack.c.l.b16 %v1221
      %v1258 = vunpack.c.h.b16 %v1221
      %v1259 = vunpack.c.l.b16 %v1222
      %v1260 = vunpack.c.h.b16 %v1222
      %v1261 = vunpack.c.l.b16 %v1223
      %v1262 = vunpack.c.h.b16 %v1223
      %v1263 = vunpack.c.l.b16 %v1224
      %v1264 = vunpack.c.h.b16 %v1224
      %v1265 = vunpack.c.l.b16 %v1225
      %v1266 = vunpack.c.h.b16 %v1225
      %v1267 = vunpack.c.l.b16 %v1226
      %v1268 = vunpack.c.h.b16 %v1226
      %v1269 = vunpack.c.l.b16 %v1227
      %v1270 = vunpack.c.h.b16 %v1227
      %v1271 = vunpack.c.l.b16 %v1228
      %v1272 = vunpack.c.h.b16 %v1228
      %v1273 = vunpack.c.l.b16 %v1229
      %v1274 = vunpack.c.h.b16 %v1229
      %v1275 = vunpack.c.l.b16 %v1230
      %v1276 = vunpack.c.h.b16 %v1230
      %v1277 = vunpack.c.l.b16 %v1231
      %v1278 = vunpack.c.h.b16 %v1231
      %v1279 = vunpack.c.l.b16 %v1232
      %v1280 = vunpack.c.h.b16 %v1232
      %v1281 = vpack.c.b16 %v1249, %v1249
      %v1282 = vpack.c.b16 %v1250, %v1250
      %v1283 = vpack.c.b16 %v1251, %v1251
      %v1284 = vpack.c.b16 %v1252, %v1252
      %v1285 = vpack.c.b16 %v1253, %v1253
      %v1286 = vpack.c.b16 %v1254, %v1254
      %v1287 = vpack.c.b16 %v1255, %v1255
      %v1288 = vpack.c.b16 %v1256, %v1256
      %v1289 = vpack.c.b16 %v1257, %v1257
      %v1290 = vpack.c.b16 %v1258, %v1258
      %v1291 = vpack.c.b16 %v1259, %v1259
      %v1292 = vpack.c.b16 %v1260, %v1260
      %v1293 = vpack.c.b16 %v1261, %v1261
      %v1294 = vpack.c.b16 %v1262, %v1262
      %v1295 = vpack.c.b16 %v1263, %v1263
      %v1296 = vpack.c.b16 %v1264, %v1264
      %v1297 = vpack.c.b16 %v1265, %v1265
      %v1298 = vpack.c.b16 %v1266, %v1266
      %v1299 = vpack.c.b16 %v1267, %v1267
      %v1300 = vpack.c.b16 %v1268, %v1268
      %v1301 = vpack.c.b16 %v1269, %v1269
      %v1302 = vpack.c.b16 %v1270, %v1270
      %v1303 = vpack.c.b16 %v1271, %v1271
      %v1304 = vpack.c.b16 %v1272, %v1272
      %v1305 = vpack.c.b16 %v1273, %v1273
      %v1306 = vpack.c.b16 %v1274, %v1274
      %v1307 = vpack.c.b16 %v1275, %v1275
      %v1308 = vpack.c.b16 %v1276, %v1276
      %v1309 = vpack.c.b16 %v1277, %v1277
      %v1310 = vpack.c.b16 %v1278, %v1278
      %v1311 = vpack.c.b16 %v1279, %v1279
      %v1312 = vpack.c.b16 %v1280, %v1280
      %vm1345 = vcmask 60416
      %1346 = vst.msk [vmem:[%s397] sm:$0xf] %vm1345, %v1281
      %1347 = vst.msk [vmem:[%s397 + $0x4] sm:$0xf] %vm1345, %v1282
      %1348 = vst.msk [vmem:[%s397 + $0x8] sm:$0xf] %vm1345, %v1283
      %1349 = vst.msk [vmem:[%s397 + $0xc] sm:$0xf] %vm1345, %v1284
      %1350 = vst.msk [vmem:[%s397 + $0x10] sm:$0xf] %vm1345, %v1285
      %1351 = vst.msk [vmem:[%s397 + $0x14] sm:$0xf] %vm1345, %v1286
      %1352 = vst.msk [vmem:[%s397 + $0x18] sm:$0xf] %vm1345, %v1287
      %1353 = vst.msk [vmem:[%s397 + $0x1c] sm:$0xf] %vm1345, %v1288
      %1354 = vst.msk [vmem:[%s397 + $0x20] sm:$0xf] %vm1345, %v1289
      %1355 = vst.msk [vmem:[%s397 + $0x24] sm:$0xf] %vm1345, %v1290
      %1356 = vst.msk [vmem:[%s397 + $0x28] sm:$0xf] %vm1345, %v1291
      %1357 = vst.msk [vmem:[%s397 + $0x2c] sm:$0xf] %vm1345, %v1292
      %1358 = vst.msk [vmem:[%s397 + $0x30] sm:$0xf] %vm1345, %v1293
      %1359 = vst.msk [vmem:[%s397 + $0x34] sm:$0xf] %vm1345, %v1294
      %1360 = vst.msk [vmem:[%s397 + $0x38] sm:$0xf] %vm1345, %v1295
      %1361 = vst.msk [vmem:[%s397 + $0x3c] sm:$0xf] %vm1345, %v1296
      %1362 = vst.msk [vmem:[%s397 + $0x40] sm:$0xf] %vm1345, %v1297
      %1363 = vst.msk [vmem:[%s397 + $0x44] sm:$0xf] %vm1345, %v1298
      %1364 = vst.msk [vmem:[%s397 + $0x48] sm:$0xf] %vm1345, %v1299
      %1365 = vst.msk [vmem:[%s397 + $0x4c] sm:$0xf] %vm1345, %v1300
      %1366 = vst.msk [vmem:[%s397 + $0x50] sm:$0xf] %vm1345, %v1301
      %1367 = vst.msk [vmem:[%s397 + $0x54] sm:$0xf] %vm1345, %v1302
      %1368 = vst.msk [vmem:[%s397 + $0x58] sm:$0xf] %vm1345, %v1303
      %1369 = vst.msk [vmem:[%s397 + $0x5c] sm:$0xf] %vm1345, %v1304
      %1370 = vst.msk [vmem:[%s397 + $0x60] sm:$0xf] %vm1345, %v1305
      %1371 = vst.msk [vmem:[%s397 + $0x64] sm:$0xf] %vm1345, %v1306
      %1372 = vst.msk [vmem:[%s397 + $0x68] sm:$0xf] %vm1345, %v1307
      %1373 = vst.msk [vmem:[%s397 + $0x6c] sm:$0xf] %vm1345, %v1308
      %1374 = vst.msk [vmem:[%s397 + $0x70] sm:$0xf] %vm1345, %v1309
      %1375 = vst.msk [vmem:[%s397 + $0x74] sm:$0xf] %vm1345, %v1310
      %1376 = vst.msk [vmem:[%s397 + $0x78] sm:$0xf] %vm1345, %v1311
      %1377 = vst.msk [vmem:[%s397 + $0x7c] sm:$0xf] %vm1345, %v1312
      %vm1378 = vcmask 64512
      %1379 = vst.msk [vmem:[#allocation2] sm:$0xff] %vm1378, 0.0
      %1380 = vst.msk [vmem:[#allocation2 + $0x8] sm:$0xff] %vm1378, 0.0
      %1381 = vst.msk [vmem:[#allocation2 + $0x10] sm:$0xf] %vm1345, 0.0
      %1382 = vst.msk [vmem:[#allocation2 + $0x18] sm:$0xff] %vm1378, 0.0
      %1383 = vst.msk [vmem:[#allocation2 + $0x20] sm:$0xff] %vm1378, 0.0
      %1384 = vst.msk [vmem:[#allocation2 + $0x28] sm:$0xf] %vm1345, 0.0
      %1385 = vst.msk [vmem:[#allocation2 + $0x30] sm:$0xff] %vm1378, 0.0
      %1386 = vst.msk [vmem:[#allocation2 + $0x38] sm:$0xff] %vm1378, 0.0
      %1387 = vst.msk [vmem:[#allocation2 + $0x40] sm:$0xf] %vm1345, 0.0
      %1388 = vst.msk [vmem:[#allocation2 + $0x48] sm:$0xff] %vm1378, 0.0
      %1389 = vst.msk [vmem:[#allocation2 + $0x50] sm:$0xff] %vm1378, 0.0
      %1390 = vst.msk [vmem:[#allocation2 + $0x58] sm:$0xf] %vm1345, 0.0
      %1391 = vst.msk [vmem:[#allocation2 + $0x60] sm:$0xff] %vm1378, 0.0
      %1392 = vst.msk [vmem:[#allocation2 + $0x68] sm:$0xff] %vm1378, 0.0
      %1393 = vst.msk [vmem:[#allocation2 + $0x70] sm:$0xf] %vm1345, 0.0
      %1394 = vst.msk [vmem:[#allocation2 + $0x78] sm:$0xff] %vm1378, 0.0
      %1395 = vst.msk [vmem:[#allocation2 + $0x80] sm:$0xff] %vm1378, 0.0
      %1396 = vst.msk [vmem:[#allocation2 + $0x88] sm:$0xf] %vm1345, 0.0
      %1397 = vst.msk [vmem:[#allocation2 + $0x90] sm:$0xff] %vm1378, 0.0
      %1398 = vst.msk [vmem:[#allocation2 + $0x98] sm:$0xff] %vm1378, 0.0
      %1399 = vst.msk [vmem:[#allocation2 + $0xa0] sm:$0xf] %vm1345, 0.0
      %1400 = vst.msk [vmem:[#allocation2 + $0xa8] sm:$0xff] %vm1378, 0.0
      %1401 = vst.msk [vmem:[#allocation2 + $0xb0] sm:$0xff] %vm1378, 0.0
      %1402 = vst.msk [vmem:[#allocation2 + $0xb8] sm:$0xf] %vm1345, 0.0
      %1403 = vst.msk [vmem:[#allocation2 + $0xc0] sm:$0xff] %vm1378, 0.0
      %1404 = vst.msk [vmem:[#allocation2 + $0xc8] sm:$0xff] %vm1378, 0.0
      %1405 = vst.msk [vmem:[#allocation2 + $0xd0] sm:$0xf] %vm1345, 0.0
      %1406 = vst.msk [vmem:[#allocation2 + $0xd8] sm:$0xff] %vm1378, 0.0
      %1407 = vst.msk [vmem:[#allocation2 + $0xe0] sm:$0xff] %vm1378, 0.0
      %1408 = vst.msk [vmem:[#allocation2 + $0xe8] sm:$0xf] %vm1345, 0.0
      %1409 = vst.msk [vmem:[#allocation2 + $0xf0] sm:$0xff] %vm1378, 0.0
      %1410 = vst.msk [vmem:[#allocation2 + $0xf8] sm:$0xff] %vm1378, 0.0
      %1411 = vst.msk [vmem:[#allocation2 + $0x100] sm:$0xf] %vm1345, 0.0
      %1412 = vst.msk [vmem:[#allocation2 + $0x108] sm:$0xff] %vm1378, 0.0
      %1413 = vst.msk [vmem:[#allocation2 + $0x110] sm:$0xff] %vm1378, 0.0
      %1414 = vst.msk [vmem:[#allocation2 + $0x118] sm:$0xf] %vm1345, 0.0
      %1415 = vst.msk [vmem:[#allocation2 + $0x120] sm:$0xff] %vm1378, 0.0
      %1416 = vst.msk [vmem:[#allocation2 + $0x128] sm:$0xff] %vm1378, 0.0
      %1417 = vst.msk [vmem:[#allocation2 + $0x130] sm:$0xf] %vm1345, 0.0
      %1418 = vst.msk [vmem:[#allocation2 + $0x138] sm:$0xff] %vm1378, 0.0
      %1419 = vst.msk [vmem:[#allocation2 + $0x140] sm:$0xff] %vm1378, 0.0
      %1420 = vst.msk [vmem:[#allocation2 + $0x148] sm:$0xf] %vm1345, 0.0
      %1421 = vst.msk [vmem:[#allocation2 + $0x150] sm:$0xff] %vm1378, 0.0
      %1422 = vst.msk [vmem:[#allocation2 + $0x158] sm:$0xff] %vm1378, 0.0
      %1423 = vst.msk [vmem:[#allocation2 + $0x160] sm:$0xf] %vm1345, 0.0
      %1424 = vst.msk [vmem:[#allocation2 + $0x168] sm:$0xff] %vm1378, 0.0
      %1425 = vst.msk [vmem:[#allocation2 + $0x170] sm:$0xff] %vm1378, 0.0
      %1426 = vst.msk [vmem:[#allocation2 + $0x178] sm:$0xf] %vm1345, 0.0
      %1427 = vst.msk [vmem:[#allocation2 + $0x180] sm:$0xff] %vm1378, 0.0
      %1428 = vst.msk [vmem:[#allocation2 + $0x188] sm:$0xff] %vm1378, 0.0
      %1429 = vst.msk [vmem:[#allocation2 + $0x190] sm:$0xf] %vm1345, 0.0
      %1430 = vst.msk [vmem:[#allocation2 + $0x198] sm:$0xff] %vm1378, 0.0
      %1431 = vst.msk [vmem:[#allocation2 + $0x1a0] sm:$0xff] %vm1378, 0.0
      %1432 = vst.msk [vmem:[#allocation2 + $0x1a8] sm:$0xf] %vm1345, 0.0
      %1433 = vst.msk [vmem:[#allocation2 + $0x1b0] sm:$0xff] %vm1378, 0.0
      %1434 = vst.msk [vmem:[#allocation2 + $0x1b8] sm:$0xff] %vm1378, 0.0
      %1435 = vst.msk [vmem:[#allocation2 + $0x1c0] sm:$0xf] %vm1345, 0.0
      %1436 = vst.msk [vmem:[#allocation2 + $0x1c8] sm:$0xff] %vm1378, 0.0
      %1437 = vst.msk [vmem:[#allocation2 + $0x1d0] sm:$0xff] %vm1378, 0.0
      %1438 = vst.msk [vmem:[#allocation2 + $0x1d8] sm:$0xf] %vm1345, 0.0
      %s1439 = scalar_lea.vmem [#allocation2], 48
      %1440 = vst.msk [vmem:[%s1439 + $0x2] sm:$0xff] %vm1378, %v1091
      %1441 = vst.msk [vmem:[%s1439 + $0xa] sm:$0xff] %vm1378, %v1094
      %1442 = vst.msk [vmem:[%s1439 + $0x1a] sm:$0xff] %vm1378, %v1099
      %1443 = vst.msk [vmem:[%s1439 + $0x22] sm:$0xff] %vm1378, %v1102
      %1444 = vst.msk [vmem:[%s1439 + $0x32] sm:$0xff] %vm1378, %v1107
      %1445 = vst.msk [vmem:[%s1439 + $0x3a] sm:$0xff] %vm1378, %v1110
      %1446 = vst.msk [vmem:[%s1439 + $0x4a] sm:$0xff] %vm1378, %v1115
      %1447 = vst.msk [vmem:[%s1439 + $0x52] sm:$0xff] %vm1378, %v1118
      %1448 = vst.msk [vmem:[%s1439 + $0x62] sm:$0xff] %vm1378, %v1123
      %1449 = vst.msk [vmem:[%s1439 + $0x6a] sm:$0xff] %vm1378, %v1126
      %1450 = vst.msk [vmem:[%s1439 + $0x7a] sm:$0xff] %vm1378, %v1131
      %1451 = vst.msk [vmem:[%s1439 + $0x82] sm:$0xff] %vm1378, %v1134
      %1452 = vst.msk [vmem:[%s1439 + $0x92] sm:$0xff] %vm1378, %v1139
      %1453 = vst.msk [vmem:[%s1439 + $0x9a] sm:$0xff] %vm1378, %v1142
      %1454 = vst.msk [vmem:[%s1439 + $0xaa] sm:$0xff] %vm1378, %v1147
      %1455 = vst.msk [vmem:[%s1439 + $0xb2] sm:$0xff] %vm1378, %v1150
      %1456 = vst.msk [vmem:[%s1439 + $0xc2] sm:$0xff] %vm1378, %v1155
      %1457 = vst.msk [vmem:[%s1439 + $0xca] sm:$0xff] %vm1378, %v1158
      %1458 = vst.msk [vmem:[%s1439 + $0xda] sm:$0xff] %vm1378, %v1163
      %1459 = vst.msk [vmem:[%s1439 + $0xe2] sm:$0xff] %vm1378, %v1166
      %1460 = vst.msk [vmem:[%s1439 + $0xf2] sm:$0xff] %vm1378, %v1171
      %1461 = vst.msk [vmem:[%s1439 + $0xfa] sm:$0xff] %vm1378, %v1174
      %1462 = vst.msk [vmem:[%s1439 + $0x10a] sm:$0xff] %vm1378, %v1179
      %1463 = vst.msk [vmem:[%s1439 + $0x112] sm:$0xff] %vm1378, %v1182
      %1464 = vst.msk [vmem:[%s1439 + $0x122] sm:$0xff] %vm1378, %v1187
      %1465 = vst.msk [vmem:[%s1439 + $0x12a] sm:$0xff] %vm1378, %v1190
      %1466 = vst.msk [vmem:[%s1439 + $0x13a] sm:$0xff] %vm1378, %v1195
      %1467 = vst.msk [vmem:[%s1439 + $0x142] sm:$0xff] %vm1378, %v1198
      %1468 = vst.msk [vmem:[%s1439 + $0x152] sm:$0xff] %vm1378, %v1203
      %1469 = vst.msk [vmem:[%s1439 + $0x15a] sm:$0xff] %vm1378, %v1206
      %1470 = vst.msk [vmem:[%s1439 + $0x16a] sm:$0xff] %vm1378, %v1211
      %1471 = vst.msk [vmem:[%s1439 + $0x172] sm:$0xff] %vm1378, %v1214
      %v1472 = vld [vmem:[#allocation2] sm:$0xff]
      %v1473 = vld [vmem:[#allocation2 + $0x8] sm:$0xff]
      %v1474 = vld [vmem:[#allocation2 + $0x18] sm:$0xff]
      %v1475 = vld [vmem:[#allocation2 + $0x20] sm:$0xff]
      %v1476 = vld [vmem:[#allocation2 + $0x30] sm:$0xff]
      %v1477 = vld [vmem:[#allocation2 + $0x38] sm:$0xff]
      %v1478 = vld [vmem:[#allocation2 + $0x48] sm:$0xff]
      %v1479 = vld [vmem:[#allocation2 + $0x50] sm:$0xff]
      %v1480 = vld [vmem:[#allocation2 + $0x60] sm:$0xff]
      %v1481 = vld [vmem:[#allocation2 + $0x68] sm:$0xff]
      %v1482 = vld [vmem:[#allocation2 + $0x78] sm:$0xff]
      %v1483 = vld [vmem:[#allocation2 + $0x80] sm:$0xff]
      %v1484 = vld [vmem:[#allocation2 + $0x90] sm:$0xff]
      %v1485 = vld [vmem:[#allocation2 + $0x98] sm:$0xff]
      %v1486 = vld [vmem:[#allocation2 + $0xa8] sm:$0xff]
      %v1487 = vld [vmem:[#allocation2 + $0xb0] sm:$0xff]
      %v1488 = vld [vmem:[#allocation2 + $0xc0] sm:$0xff]
      %v1489 = vld [vmem:[#allocation2 + $0xc8] sm:$0xff]
      %v1490 = vld [vmem:[#allocation2 + $0xd8] sm:$0xff]
      %v1491 = vld [vmem:[#allocation2 + $0xe0] sm:$0xff]
      %v1492 = vld [vmem:[#allocation2 + $0xf0] sm:$0xff]
      %v1493 = vld [vmem:[#allocation2 + $0xf8] sm:$0xff]
      %v1494 = vld [vmem:[#allocation2 + $0x108] sm:$0xff]
      %v1495 = vld [vmem:[#allocation2 + $0x110] sm:$0xff]
      %v1496 = vld [vmem:[#allocation2 + $0x120] sm:$0xff]
      %v1497 = vld [vmem:[#allocation2 + $0x128] sm:$0xff]
      %v1498 = vld [vmem:[#allocation2 + $0x138] sm:$0xff]
      %v1499 = vld [vmem:[#allocation2 + $0x140] sm:$0xff]
      %v1500 = vld [vmem:[#allocation2 + $0x150] sm:$0xff]
      %v1501 = vld [vmem:[#allocation2 + $0x158] sm:$0xff]
      %v1502 = vld [vmem:[#allocation2 + $0x168] sm:$0xff]
      %v1503 = vld [vmem:[#allocation2 + $0x170] sm:$0xff]
      %v1504 = vpack.c.bf16 %v1473, %v1472
      %v1505 = vpack.c.bf16 %v1475, %v1474
      %v1506 = vpack.c.bf16 %v1477, %v1476
      %v1507 = vpack.c.bf16 %v1479, %v1478
      %v1508 = vpack.c.bf16 %v1481, %v1480
      %v1509 = vpack.c.bf16 %v1483, %v1482
      %v1510 = vpack.c.bf16 %v1485, %v1484
      %v1511 = vpack.c.bf16 %v1487, %v1486
      %v1512 = vpack.c.bf16 %v1489, %v1488
      %v1513 = vpack.c.bf16 %v1491, %v1490
      %v1514 = vpack.c.bf16 %v1493, %v1492
      %v1515 = vpack.c.bf16 %v1495, %v1494
      %v1516 = vpack.c.bf16 %v1497, %v1496
      %v1517 = vpack.c.bf16 %v1499, %v1498
      %v1518 = vpack.c.bf16 %v1501, %v1500
      %v1519 = vpack.c.bf16 %v1503, %v1502
      %v1520 = vld [vmem:[%s5] sm:$0xf]
      %v1521 = vld [vmem:[#allocation2 + $0x2] sm:$0xff]
      %v1522 = vld [vmem:[#allocation2 + $0xa] sm:$0xff]
      %v1523 = vld [vmem:[#allocation2 + $0x1a] sm:$0xff]
      %v1524 = vld [vmem:[#allocation2 + $0x22] sm:$0xff]
      %v1525 = vld [vmem:[#allocation2 + $0x32] sm:$0xff]
      %v1526 = vld [vmem:[#allocation2 + $0x3a] sm:$0xff]
      %v1527 = vld [vmem:[#allocation2 + $0x4a] sm:$0xff]
      %v1528 = vld [vmem:[#allocation2 + $0x52] sm:$0xff]
      %v1529 = vld [vmem:[#allocation2 + $0x62] sm:$0xff]
      %v1530 = vld [vmem:[#allocation2 + $0x6a] sm:$0xff]
      %v1531 = vld [vmem:[#allocation2 + $0x7a] sm:$0xff]
      %v1532 = vld [vmem:[#allocation2 + $0x82] sm:$0xff]
      %v1533 = vld [vmem:[#allocation2 + $0x92] sm:$0xff]
      %v1534 = vld [vmem:[#allocation2 + $0x9a] sm:$0xff]
      %v1535 = vld [vmem:[#allocation2 + $0xaa] sm:$0xff]
      %v1536 = vld [vmem:[#allocation2 + $0xb2] sm:$0xff]
      %v1537 = vld [vmem:[#allocation2 + $0xc2] sm:$0xff]
      %v1538 = vld [vmem:[#allocation2 + $0xca] sm:$0xff]
      %v1539 = vld [vmem:[#allocation2 + $0xda] sm:$0xff]
      %v1540 = vld [vmem:[#allocation2 + $0xe2] sm:$0xff]
      %v1541 = vld [vmem:[#allocation2 + $0xf2] sm:$0xff]
      %v1542 = vld [vmem:[#allocation2 + $0xfa] sm:$0xff]
      %v1543 = vld [vmem:[#allocation2 + $0x10a] sm:$0xff]
      %v1544 = vld [vmem:[#allocation2 + $0x112] sm:$0xff]
      %v1545 = vld [vmem:[#allocation2 + $0x122] sm:$0xff]
      %v1546 = vld [vmem:[#allocation2 + $0x12a] sm:$0xff]
      %v1547 = vld [vmem:[#allocation2 + $0x13a] sm:$0xff]
      %v1548 = vld [vmem:[#allocation2 + $0x142] sm:$0xff]
      %v1549 = vld [vmem:[#allocation2 + $0x152] sm:$0xff]
      %v1550 = vld [vmem:[#allocation2 + $0x15a] sm:$0xff]
      %v1551 = vld [vmem:[#allocation2 + $0x16a] sm:$0xff]
      %v1552 = vld [vmem:[#allocation2 + $0x172] sm:$0xff]
      %v1553 = vpack.c.bf16 %v1522, %v1521
      %v1554 = vpack.c.bf16 %v1524, %v1523
      %v1555 = vpack.c.bf16 %v1526, %v1525
      %v1556 = vpack.c.bf16 %v1528, %v1527
      %v1557 = vpack.c.bf16 %v1530, %v1529
      %v1558 = vpack.c.bf16 %v1532, %v1531
      %v1559 = vpack.c.bf16 %v1534, %v1533
      %v1560 = vpack.c.bf16 %v1536, %v1535
      %v1561 = vpack.c.bf16 %v1538, %v1537
      %v1562 = vpack.c.bf16 %v1540, %v1539
      %v1563 = vpack.c.bf16 %v1542, %v1541
      %v1564 = vpack.c.bf16 %v1544, %v1543
      %v1565 = vpack.c.bf16 %v1546, %v1545
      %v1566 = vpack.c.bf16 %v1548, %v1547
      %v1567 = vpack.c.bf16 %v1550, %v1549
      %v1568 = vpack.c.bf16 %v1552, %v1551
      %s1569 = scalar_lea.vmem %s5, 4
      %v1570 = vld [vmem:[%s1569] sm:$0xf]
      %v1572 = vsel %vm1378, %v1553, 0
      %v1575 = vsel %vm1378, %v1554, 0
      %v1578 = vsel %vm1378, %v1555, 0
      %v1581 = vsel %vm1378, %v1556, 0
      %v1584 = vsel %vm1378, %v1557, 0
      %v1587 = vsel %vm1378, %v1558, 0
      %v1590 = vsel %vm1378, %v1559, 0
      %v1593 = vsel %vm1378, %v1560, 0
      %v1596 = vsel %vm1378, %v1561, 0
      %v1599 = vsel %vm1378, %v1562, 0
      %v1602 = vsel %vm1378, %v1563, 0
      %v1605 = vsel %vm1378, %v1564, 0
      %v1608 = vsel %vm1378, %v1565, 0
      %v1611 = vsel %vm1378, %v1566, 0
      %v1614 = vsel %vm1378, %v1567, 0
      %v1617 = vsel %vm1378, %v1568, 0
      %vm1619 = vcmask 1043456
      %v1621 = vsel %vm1619, %v1570, 0
      %1623 = vmatprep.subr.bf16.mxu0 0
      %1624 = vmatpush1.bf16.msra.mxu0 %v1621
      %1625 = vmatprep.subr.bf16.mxu0 0
      %1626 = vmatpush1.bf16.msra.mxu0 0
      %1627 = vmatprep.subr.bf16.mxu0 0
      %1628 = vmatpush1.bf16.msra.mxu0 0
      %1629 = vmatprep.subr.bf16.mxu0 0
      %1630 = vmatpush1.bf16.msra.mxu0 0
      %1631 = vmatprep.subr.bf16.mxu0 0
      %1632 = vmatpush1.bf16.msra.mxu0 0
      %1633 = vmatprep.subr.bf16.mxu0 0
      %1634 = vmatpush1.bf16.msra.mxu0 0
      %1635 = vmatprep.subr.bf16.mxu0 0
      %1636 = vmatpush1.bf16.msra.mxu0 0
      %1637 = vmatprep.subr.bf16.mxu0 0
      %1638 = vmatpush1.bf16.msra.mxu0 0
      %1639 = vmatprep.subr.bf16.mxu0 0
      %1640 = vmatpush1.bf16.msra.mxu0 0
      %1641 = vmatprep.subr.bf16.mxu0 0
      %1642 = vmatpush1.bf16.msra.mxu0 0
      %1643 = vmatprep.subr.bf16.mxu0 0
      %1644 = vmatpush1.bf16.msra.mxu0 0
      %1645 = vmatprep.subr.bf16.mxu0 0
      %1646 = vmatpush1.bf16.msra.mxu0 0
      %1647 = vmatprep.subr.bf16.mxu0 0
      %1648 = vmatpush1.bf16.msra.mxu0 0
      %1649 = vmatprep.subr.bf16.mxu0 0
      %1650 = vmatpush1.bf16.msra.mxu0 0
      %1651 = vmatprep.subr.bf16.mxu0 0
      %1652 = vmatpush1.bf16.msra.mxu0 0
      %1653 = vmatprep.subr.bf16.mxu0 0
      %1654 = vmatpush1.bf16.msra.mxu0 0
      %1655 = vmatprep.mubr.bf16.mxu0 0
      %1656 = vmatmul.mubr.bf16.gmra.mrb[0].mxu0 %v1572
      %v1657 = vpop.f32.mrb[0].mxu0
      %v1658 = vadd.f32 0.0, %v1657
      %v1659 = vpop.f32.mrb[0].mxu0
      %v1660 = vpop.f32.mrb[0].mxu0
      %v1661 = vadd.f32 0.0, %v1660
      %v1662 = vpop.f32.mrb[0].mxu0
      %1663 = vmatprep.mubr.bf16.mxu0 0
      %1664 = vmatmul.mubr.bf16.gmra.mrb[0].mxu0 %v1575
      %v1665 = vpop.f32.mrb[0].mxu0
      %v1666 = vadd.f32 0.0, %v1665
      %v1667 = vpop.f32.mrb[0].mxu0
      %v1668 = vpop.f32.mrb[0].mxu0
      %v1669 = vadd.f32 0.0, %v1668
      %v1670 = vpop.f32.mrb[0].mxu0
      %1671 = vmatprep.mubr.bf16.mxu0 0
      %1672 = vmatmul.mubr.bf16.gmra.mrb[0].mxu0 %v1578
      %v1673 = vpop.f32.mrb[0].mxu0
      %v1674 = vadd.f32 0.0, %v1673
      %v1675 = vpop.f32.mrb[0].mxu0
      %v1676 = vpop.f32.mrb[0].mxu0
      %v1677 = vadd.f32 0.0, %v1676
      %v1678 = vpop.f32.mrb[0].mxu0
      %1679 = vmatprep.mubr.bf16.mxu0 0
      %1680 = vmatmul.mubr.bf16.gmra.mrb[0].mxu0 %v1581
      %v1681 = vpop.f32.mrb[0].mxu0
      %v1682 = vadd.f32 0.0, %v1681
      %v1683 = vpop.f32.mrb[0].mxu0
      %v1684 = vpop.f32.mrb[0].mxu0
      %v1685 = vadd.f32 0.0, %v1684
      %v1686 = vpop.f32.mrb[0].mxu0
      %1687 = vmatprep.mubr.bf16.mxu0 0
      %1688 = vmatmul.mubr.bf16.gmra.mrb[0].mxu0 %v1584
      %v1689 = vpop.f32.mrb[0].mxu0
      %v1690 = vadd.f32 0.0, %v1689
      %v1691 = vpop.f32.mrb[0].mxu0
      %v1692 = vpop.f32.mrb[0].mxu0
      %v1693 = vadd.f32 0.0, %v1692
      %v1694 = vpop.f32.mrb[0].mxu0
      %1695 = vmatprep.mubr.bf16.mxu0 0
      %1696 = vmatmul.mubr.bf16.gmra.mrb[0].mxu0 %v1587
      %v1697 = vpop.f32.mrb[0].mxu0
      %v1698 = vadd.f32 0.0, %v1697
      %v1699 = vpop.f32.mrb[0].mxu0
      %v1700 = vpop.f32.mrb[0].mxu0
      %v1701 = vadd.f32 0.0, %v1700
      %v1702 = vpop.f32.mrb[0].mxu0
      %1703 = vmatprep.mubr.bf16.mxu0 0
      %1704 = vmatmul.mubr.bf16.gmra.mrb[0].mxu0 %v1590
      %v1705 = vpop.f32.mrb[0].mxu0
      %v1706 = vadd.f32 0.0, %v1705
      %v1707 = vpop.f32.mrb[0].mxu0
      %v1708 = vpop.f32.mrb[0].mxu0
      %v1709 = vadd.f32 0.0, %v1708
      %v1710 = vpop.f32.mrb[0].mxu0
      %1711 = vmatprep.mubr.bf16.mxu0 0
      %1712 = vmatmul.mubr.bf16.gmra.mrb[0].mxu0 %v1593
      %v1713 = vpop.f32.mrb[0].mxu0
      %v1714 = vadd.f32 0.0, %v1713
      %v1715 = vpop.f32.mrb[0].mxu0
      %v1716 = vpop.f32.mrb[0].mxu0
      %v1717 = vadd.f32 0.0, %v1716
      %v1718 = vpop.f32.mrb[0].mxu0
      %1719 = vmatprep.mubr.bf16.mxu0 0
      %1720 = vmatmul.mubr.bf16.gmra.mrb[0].mxu0 %v1596
      %v1721 = vpop.f32.mrb[0].mxu0
      %v1722 = vadd.f32 0.0, %v1721
      %v1723 = vpop.f32.mrb[0].mxu0
      %v1724 = vpop.f32.mrb[0].mxu0
      %v1725 = vadd.f32 0.0, %v1724
      %v1726 = vpop.f32.mrb[0].mxu0
      %1727 = vmatprep.mubr.bf16.mxu0 0
      %1728 = vmatmul.mubr.bf16.gmra.mrb[0].mxu0 %v1599
      %v1729 = vpop.f32.mrb[0].mxu0
      %v1730 = vadd.f32 0.0, %v1729
      %v1731 = vpop.f32.mrb[0].mxu0
      %v1732 = vpop.f32.mrb[0].mxu0
      %v1733 = vadd.f32 0.0, %v1732
      %v1734 = vpop.f32.mrb[0].mxu0
      %1735 = vmatprep.mubr.bf16.mxu0 0
      %1736 = vmatmul.mubr.bf16.gmra.mrb[0].mxu0 %v1602
      %v1737 = vpop.f32.mrb[0].mxu0
      %v1738 = vadd.f32 0.0, %v1737
      %v1739 = vpop.f32.mrb[0].mxu0
      %v1740 = vpop.f32.mrb[0].mxu0
      %v1741 = vadd.f32 0.0, %v1740
      %v1742 = vpop.f32.mrb[0].mxu0
      %1743 = vmatprep.mubr.bf16.mxu0 0
      %1744 = vmatmul.mubr.bf16.gmra.mrb[0].mxu0 %v1605
      %v1745 = vpop.f32.mrb[0].mxu0
      %v1746 = vadd.f32 0.0, %v1745
      %v1747 = vpop.f32.mrb[0].mxu0
      %v1748 = vpop.f32.mrb[0].mxu0
      %v1749 = vadd.f32 0.0, %v1748
      %v1750 = vpop.f32.mrb[0].mxu0
      %1751 = vmatprep.mubr.bf16.mxu0 0
      %1752 = vmatmul.mubr.bf16.gmra.mrb[0].mxu0 %v1608
      %v1753 = vpop.f32.mrb[0].mxu0
      %v1754 = vadd.f32 0.0, %v1753
      %v1755 = vpop.f32.mrb[0].mxu0
      %v1756 = vpop.f32.mrb[0].mxu0
      %v1757 = vadd.f32 0.0, %v1756
      %v1758 = vpop.f32.mrb[0].mxu0
      %1759 = vmatprep.mubr.bf16.mxu0 0
      %1760 = vmatmul.mubr.bf16.gmra.mrb[0].mxu0 %v1611
      %v1761 = vpop.f32.mrb[0].mxu0
      %v1762 = vadd.f32 0.0, %v1761
      %v1763 = vpop.f32.mrb[0].mxu0
      %v1764 = vpop.f32.mrb[0].mxu0
      %v1765 = vadd.f32 0.0, %v1764
      %v1766 = vpop.f32.mrb[0].mxu0
      %1767 = vmatprep.mubr.bf16.mxu0 0
      %1768 = vmatmul.mubr.bf16.gmra.mrb[0].mxu0 %v1614
      %v1769 = vpop.f32.mrb[0].mxu0
      %v1770 = vadd.f32 0.0, %v1769
      %v1771 = vpop.f32.mrb[0].mxu0
      %v1772 = vpop.f32.mrb[0].mxu0
      %v1773 = vadd.f32 0.0, %v1772
      %v1774 = vpop.f32.mrb[0].mxu0
      %1775 = vmatprep.mubr.bf16.mxu0 0
      %1776 = vmatmul.mubr.bf16.gmra.mrb[0].mxu0 %v1617
      %v1777 = vpop.f32.mrb[0].mxu0
      %v1778 = vadd.f32 0.0, %v1777
      %v1779 = vpop.f32.mrb[0].mxu0
      %v1780 = vpop.f32.mrb[0].mxu0
      %v1781 = vadd.f32 0.0, %v1780
      %v1782 = vpop.f32.mrb[0].mxu0
      %1783 = vdwg.mxu0
      %v1785 = vsel %vm1378, %v1504, 0
      %v1788 = vsel %vm1378, %v1505, 0
      %v1791 = vsel %vm1378, %v1506, 0
      %v1794 = vsel %vm1378, %v1507, 0
      %v1797 = vsel %vm1378, %v1508, 0
      %v1800 = vsel %vm1378, %v1509, 0
      %v1803 = vsel %vm1378, %v1510, 0
      %v1806 = vsel %vm1378, %v1511, 0
      %v1809 = vsel %vm1378, %v1512, 0
      %v1812 = vsel %vm1378, %v1513, 0
      %v1815 = vsel %vm1378, %v1514, 0
      %v1818 = vsel %vm1378, %v1515, 0
      %v1821 = vsel %vm1378, %v1516, 0
      %v1824 = vsel %vm1378, %v1517, 0
      %v1827 = vsel %vm1378, %v1518, 0
      %v1830 = vsel %vm1378, %v1519, 0
      %v1833 = vsel %vm1619, %v1520, 0
      %1835 = vmatprep.subr.bf16.mxu0 0
      %1836 = vmatpush1.bf16.msra.mxu0 %v1833
      %1837 = vmatprep.subr.bf16.mxu0 0
      %1838 = vmatpush1.bf16.msra.mxu0 0
      %1839 = vmatprep.subr.bf16.mxu0 0
      %1840 = vmatpush1.bf16.msra.mxu0 0
      %1841 = vmatprep.subr.bf16.mxu0 0
      %1842 = vmatpush1.bf16.msra.mxu0 0
      %1843 = vmatprep.subr.bf16.mxu0 0
      %1844 = vmatpush1.bf16.msra.mxu0 0
      %1845 = vmatprep.subr.bf16.mxu0 0
      %1846 = vmatpush1.bf16.msra.mxu0 0
      %1847 = vmatprep.subr.bf16.mxu0 0
      %1848 = vmatpush1.bf16.msra.mxu0 0
      %1849 = vmatprep.subr.bf16.mxu0 0
      %1850 = vmatpush1.bf16.msra.mxu0 0
      %1851 = vmatprep.subr.bf16.mxu0 0
      %1852 = vmatpush1.bf16.msra.mxu0 0
      %1853 = vmatprep.subr.bf16.mxu0 0
      %1854 = vmatpush1.bf16.msra.mxu0 0
      %1855 = vmatprep.subr.bf16.mxu0 0
      %1856 = vmatpush1.bf16.msra.mxu0 0
      %1857 = vmatprep.subr.bf16.mxu0 0
      %1858 = vmatpush1.bf16.msra.mxu0 0
      %1859 = vmatprep.subr.bf16.mxu0 0
      %1860 = vmatpush1.bf16.msra.mxu0 0
      %1861 = vmatprep.subr.bf16.mxu0 0
      %1862 = vmatpush1.bf16.msra.mxu0 0
      %1863 = vmatprep.subr.bf16.mxu0 0
      %1864 = vmatpush1.bf16.msra.mxu0 0
      %1865 = vmatprep.subr.bf16.mxu0 0
      %1866 = vmatpush1.bf16.msra.mxu0 0
      %1867 = vmatprep.mubr.bf16.mxu0 0
      %1868 = vmatmul.mubr.bf16.gmra.mrb[0].mxu0 %v1785
      %v1869 = vpop.f32.mrb[0].mxu0
      %v1870 = vadd.f32 %v1658, %v1869
      %v1871 = vpop.f32.mrb[0].mxu0
      %v1872 = vpop.f32.mrb[0].mxu0
      %v1873 = vadd.f32 %v1661, %v1872
      %v1874 = vpop.f32.mrb[0].mxu0
      %1875 = vmatprep.mubr.bf16.mxu0 0
      %1876 = vmatmul.mubr.bf16.gmra.mrb[0].mxu0 %v1788
      %v1877 = vpop.f32.mrb[0].mxu0
      %v1878 = vadd.f32 %v1666, %v1877
      %v1879 = vpop.f32.mrb[0].mxu0
      %v1880 = vpop.f32.mrb[0].mxu0
      %v1881 = vadd.f32 %v1669, %v1880
      %v1882 = vpop.f32.mrb[0].mxu0
      %1883 = vmatprep.mubr.bf16.mxu0 0
      %1884 = vmatmul.mubr.bf16.gmra.mrb[0].mxu0 %v1791
      %v1885 = vpop.f32.mrb[0].mxu0
      %v1886 = vadd.f32 %v1674, %v1885
      %v1887 = vpop.f32.mrb[0].mxu0
      %v1888 = vpop.f32.mrb[0].mxu0
      %v1889 = vadd.f32 %v1677, %v1888
      %v1890 = vpop.f32.mrb[0].mxu0
      %1891 = vmatprep.mubr.bf16.mxu0 0
      %1892 = vmatmul.mubr.bf16.gmra.mrb[0].mxu0 %v1794
      %v1893 = vpop.f32.mrb[0].mxu0
      %v1894 = vadd.f32 %v1682, %v1893
      %v1895 = vpop.f32.mrb[0].mxu0
      %v1896 = vpop.f32.mrb[0].mxu0
      %v1897 = vadd.f32 %v1685, %v1896
      %v1898 = vpop.f32.mrb[0].mxu0
      %1899 = vmatprep.mubr.bf16.mxu0 0
      %1900 = vmatmul.mubr.bf16.gmra.mrb[0].mxu0 %v1797
      %v1901 = vpop.f32.mrb[0].mxu0
      %v1902 = vadd.f32 %v1690, %v1901
      %v1903 = vpop.f32.mrb[0].mxu0
      %v1904 = vpop.f32.mrb[0].mxu0
      %v1905 = vadd.f32 %v1693, %v1904
      %v1906 = vpop.f32.mrb[0].mxu0
      %1907 = vmatprep.mubr.bf16.mxu0 0
      %1908 = vmatmul.mubr.bf16.gmra.mrb[0].mxu0 %v1800
      %v1909 = vpop.f32.mrb[0].mxu0
      %v1910 = vadd.f32 %v1698, %v1909
      %v1911 = vpop.f32.mrb[0].mxu0
      %v1912 = vpop.f32.mrb[0].mxu0
      %v1913 = vadd.f32 %v1701, %v1912
      %v1914 = vpop.f32.mrb[0].mxu0
      %1915 = vmatprep.mubr.bf16.mxu0 0
      %1916 = vmatmul.mubr.bf16.gmra.mrb[0].mxu0 %v1803
      %v1917 = vpop.f32.mrb[0].mxu0
      %v1918 = vadd.f32 %v1706, %v1917
      %v1919 = vpop.f32.mrb[0].mxu0
      %v1920 = vpop.f32.mrb[0].mxu0
      %v1921 = vadd.f32 %v1709, %v1920
      %v1922 = vpop.f32.mrb[0].mxu0
      %1923 = vmatprep.mubr.bf16.mxu0 0
      %1924 = vmatmul.mubr.bf16.gmra.mrb[0].mxu0 %v1806
      %v1925 = vpop.f32.mrb[0].mxu0
      %v1926 = vadd.f32 %v1714, %v1925
      %v1927 = vpop.f32.mrb[0].mxu0
      %v1928 = vpop.f32.mrb[0].mxu0
      %v1929 = vadd.f32 %v1717, %v1928
      %v1930 = vpop.f32.mrb[0].mxu0
      %1931 = vmatprep.mubr.bf16.mxu0 0
      %1932 = vmatmul.mubr.bf16.gmra.mrb[0].mxu0 %v1809
      %v1933 = vpop.f32.mrb[0].mxu0
      %v1934 = vadd.f32 %v1722, %v1933
      %v1935 = vpop.f32.mrb[0].mxu0
      %v1936 = vpop.f32.mrb[0].mxu0
      %v1937 = vadd.f32 %v1725, %v1936
      %v1938 = vpop.f32.mrb[0].mxu0
      %1939 = vmatprep.mubr.bf16.mxu0 0
      %1940 = vmatmul.mubr.bf16.gmra.mrb[0].mxu0 %v1812
      %v1941 = vpop.f32.mrb[0].mxu0
      %v1942 = vadd.f32 %v1730, %v1941
      %v1943 = vpop.f32.mrb[0].mxu0
      %v1944 = vpop.f32.mrb[0].mxu0
      %v1945 = vadd.f32 %v1733, %v1944
      %v1946 = vpop.f32.mrb[0].mxu0
      %1947 = vmatprep.mubr.bf16.mxu0 0
      %1948 = vmatmul.mubr.bf16.gmra.mrb[0].mxu0 %v1815
      %v1949 = vpop.f32.mrb[0].mxu0
      %v1950 = vadd.f32 %v1738, %v1949
      %v1951 = vpop.f32.mrb[0].mxu0
      %v1952 = vpop.f32.mrb[0].mxu0
      %v1953 = vadd.f32 %v1741, %v1952
      %v1954 = vpop.f32.mrb[0].mxu0
      %1955 = vmatprep.mubr.bf16.mxu0 0
      %1956 = vmatmul.mubr.bf16.gmra.mrb[0].mxu0 %v1818
      %v1957 = vpop.f32.mrb[0].mxu0
      %v1958 = vadd.f32 %v1746, %v1957
      %v1959 = vpop.f32.mrb[0].mxu0
      %v1960 = vpop.f32.mrb[0].mxu0
      %v1961 = vadd.f32 %v1749, %v1960
      %v1962 = vpop.f32.mrb[0].mxu0
      %1963 = vmatprep.mubr.bf16.mxu0 0
      %1964 = vmatmul.mubr.bf16.gmra.mrb[0].mxu0 %v1821
      %v1965 = vpop.f32.mrb[0].mxu0
      %v1966 = vadd.f32 %v1754, %v1965
      %v1967 = vpop.f32.mrb[0].mxu0
      %v1968 = vpop.f32.mrb[0].mxu0
      %v1969 = vadd.f32 %v1757, %v1968
      %v1970 = vpop.f32.mrb[0].mxu0
      %1971 = vmatprep.mubr.bf16.mxu0 0
      %1972 = vmatmul.mubr.bf16.gmra.mrb[0].mxu0 %v1824
      %v1973 = vpop.f32.mrb[0].mxu0
      %v1974 = vadd.f32 %v1762, %v1973
      %v1975 = vpop.f32.mrb[0].mxu0
      %v1976 = vpop.f32.mrb[0].mxu0
      %v1977 = vadd.f32 %v1765, %v1976
      %v1978 = vpop.f32.mrb[0].mxu0
      %1979 = vmatprep.mubr.bf16.mxu0 0
      %1980 = vmatmul.mubr.bf16.gmra.mrb[0].mxu0 %v1827
      %v1981 = vpop.f32.mrb[0].mxu0
      %v1982 = vadd.f32 %v1770, %v1981
      %v1983 = vpop.f32.mrb[0].mxu0
      %v1984 = vpop.f32.mrb[0].mxu0
      %v1985 = vadd.f32 %v1773, %v1984
      %v1986 = vpop.f32.mrb[0].mxu0
      %1987 = vmatprep.mubr.bf16.mxu0 0
      %1988 = vmatmul.mubr.bf16.gmra.mrb[0].mxu0 %v1830
      %v1989 = vpop.f32.mrb[0].mxu0
      %v1990 = vadd.f32 %v1778, %v1989
      %v1991 = vpop.f32.mrb[0].mxu0
      %v1992 = vpop.f32.mrb[0].mxu0
      %v1993 = vadd.f32 %v1781, %v1992
      %v1994 = vpop.f32.mrb[0].mxu0
      %1995 = vdwg.mxu0
      %v1996 = vld [vmem:[#allocation2 + $0x4] sm:$0xff]
      %v1997 = vld [vmem:[#allocation2 + $0xc] sm:$0xff]
      %v1998 = vld [vmem:[#allocation2 + $0x1c] sm:$0xff]
      %v1999 = vld [vmem:[#allocation2 + $0x24] sm:$0xff]
      %v2000 = vld [vmem:[#allocation2 + $0x34] sm:$0xff]
      %v2001 = vld [vmem:[#allocation2 + $0x3c] sm:$0xff]
      %v2002 = vld [vmem:[#allocation2 + $0x4c] sm:$0xff]
      %v2003 = vld [vmem:[#allocation2 + $0x54] sm:$0xff]
      %v2004 = vld [vmem:[#allocation2 + $0x64] sm:$0xff]
      %v2005 = vld [vmem:[#allocation2 + $0x6c] sm:$0xff]
      %v2006 = vld [vmem:[#allocation2 + $0x7c] sm:$0xff]
      %v2007 = vld [vmem:[#allocation2 + $0x84] sm:$0xff]
      %v2008 = vld [vmem:[#allocation2 + $0x94] sm:$0xff]
      %v2009 = vld [vmem:[#allocation2 + $0x9c] sm:$0xff]
      %v2010 = vld [vmem:[#allocation2 + $0xac] sm:$0xff]
      %v2011 = vld [vmem:[#allocation2 + $0xb4] sm:$0xff]
      %v2012 = vld [vmem:[#allocation2 + $0xc4] sm:$0xff]
      %v2013 = vld [vmem:[#allocation2 + $0xcc] sm:$0xff]
      %v2014 = vld [vmem:[#allocation2 + $0xdc] sm:$0xff]
      %v2015 = vld [vmem:[#allocation2 + $0xe4] sm:$0xff]
      %v2016 = vld [vmem:[#allocation2 + $0xf4] sm:$0xff]
      %v2017 = vld [vmem:[#allocation2 + $0xfc] sm:$0xff]
      %v2018 = vld [vmem:[#allocation2 + $0x10c] sm:$0xff]
      %v2019 = vld [vmem:[#allocation2 + $0x114] sm:$0xff]
      %v2020 = vld [vmem:[#allocation2 + $0x124] sm:$0xff]
      %v2021 = vld [vmem:[#allocation2 + $0x12c] sm:$0xff]
      %v2022 = vld [vmem:[#allocation2 + $0x13c] sm:$0xff]
      %v2023 = vld [vmem:[#allocation2 + $0x144] sm:$0xff]
      %v2024 = vld [vmem:[#allocation2 + $0x154] sm:$0xff]
      %v2025 = vld [vmem:[#allocation2 + $0x15c] sm:$0xff]
      %v2026 = vld [vmem:[#allocation2 + $0x16c] sm:$0xff]
      %v2027 = vld [vmem:[#allocation2 + $0x174] sm:$0xff]
      %v2028 = vpack.c.bf16 %v1997, %v1996
      %v2029 = vpack.c.bf16 %v1999, %v1998
      %v2030 = vpack.c.bf16 %v2001, %v2000
      %v2031 = vpack.c.bf16 %v2003, %v2002
      %v2032 = vpack.c.bf16 %v2005, %v2004
      %v2033 = vpack.c.bf16 %v2007, %v2006
      %v2034 = vpack.c.bf16 %v2009, %v2008
      %v2035 = vpack.c.bf16 %v2011, %v2010
      %v2036 = vpack.c.bf16 %v2013, %v2012
      %v2037 = vpack.c.bf16 %v2015, %v2014
      %v2038 = vpack.c.bf16 %v2017, %v2016
      %v2039 = vpack.c.bf16 %v2019, %v2018
      %v2040 = vpack.c.bf16 %v2021, %v2020
      %v2041 = vpack.c.bf16 %v2023, %v2022
      %v2042 = vpack.c.bf16 %v2025, %v2024
      %v2043 = vpack.c.bf16 %v2027, %v2026
      %s2044 = scalar_lea.vmem %s5, 8
      %v2045 = vld [vmem:[%s2044] sm:$0xf]
      %v2047 = vsel %vm1378, %v2028, 0
      %v2050 = vsel %vm1378, %v2029, 0
      %v2053 = vsel %vm1378, %v2030, 0
      %v2056 = vsel %vm1378, %v2031, 0
      %v2059 = vsel %vm1378, %v2032, 0
      %v2062 = vsel %vm1378, %v2033, 0
      %v2065 = vsel %vm1378, %v2034, 0
      %v2068 = vsel %vm1378, %v2035, 0
      %v2071 = vsel %vm1378, %v2036, 0
      %v2074 = vsel %vm1378, %v2037, 0
      %v2077 = vsel %vm1378, %v2038, 0
      %v2080 = vsel %vm1378, %v2039, 0
      %v2083 = vsel %vm1378, %v2040, 0
      %v2086 = vsel %vm1378, %v2041, 0
      %v2089 = vsel %vm1378, %v2042, 0
      %v2092 = vsel %vm1378, %v2043, 0
      %v2095 = vsel %vm1619, %v2045, 0
      %2097 = vmatprep.subr.bf16.mxu0 0
      %2098 = vmatpush1.bf16.msra.mxu0 %v2095
      %2099 = vmatprep.subr.bf16.mxu0 0
      %2100 = vmatpush1.bf16.msra.mxu0 0
      %2101 = vmatprep.subr.bf16.mxu0 0
      %2102 = vmatpush1.bf16.msra.mxu0 0
      %2103 = vmatprep.subr.bf16.mxu0 0
      %2104 = vmatpush1.bf16.msra.mxu0 0
      %2105 = vmatprep.subr.bf16.mxu0 0
      %2106 = vmatpush1.bf16.msra.mxu0 0
      %2107 = vmatprep.subr.bf16.mxu0 0
      %2108 = vmatpush1.bf16.msra.mxu0 0
      %2109 = vmatprep.subr.bf16.mxu0 0
      %2110 = vmatpush1.bf16.msra.mxu0 0
      %2111 = vmatprep.subr.bf16.mxu0 0
      %2112 = vmatpush1.bf16.msra.mxu0 0
      %2113 = vmatprep.subr.bf16.mxu0 0
      %2114 = vmatpush1.bf16.msra.mxu0 0
      %2115 = vmatprep.subr.bf16.mxu0 0
      %2116 = vmatpush1.bf16.msra.mxu0 0
      %2117 = vmatprep.subr.bf16.mxu0 0
      %2118 = vmatpush1.bf16.msra.mxu0 0
      %2119 = vmatprep.subr.bf16.mxu0 0
      %2120 = vmatpush1.bf16.msra.mxu0 0
      %2121 = vmatprep.subr.bf16.mxu0 0
      %2122 = vmatpush1.bf16.msra.mxu0 0
      %2123 = vmatprep.subr.bf16.mxu0 0
      %2124 = vmatpush1.bf16.msra.mxu0 0
      %2125 = vmatprep.subr.bf16.mxu0 0
      %2126 = vmatpush1.bf16.msra.mxu0 0
      %2127 = vmatprep.subr.bf16.mxu0 0
      %2128 = vmatpush1.bf16.msra.mxu0 0
      %2129 = vmatprep.mubr.bf16.mxu0 0
      %2130 = vmatmul.mubr.bf16.gmra.mrb[0].mxu0 %v2047
      %v2131 = vpop.f32.mrb[0].mxu0
      %v2132 = vadd.f32 0.0, %v2131
      %v2133 = vpop.f32.mrb[0].mxu0
      %v2134 = vpop.f32.mrb[0].mxu0
      %v2135 = vadd.f32 0.0, %v2134
      %v2136 = vpop.f32.mrb[0].mxu0
      %2137 = vmatprep.mubr.bf16.mxu0 0
      %2138 = vmatmul.mubr.bf16.gmra.mrb[0].mxu0 %v2050
      %v2139 = vpop.f32.mrb[0].mxu0
      %v2140 = vadd.f32 0.0, %v2139
      %v2141 = vpop.f32.mrb[0].mxu0
      %v2142 = vpop.f32.mrb[0].mxu0
      %v2143 = vadd.f32 0.0, %v2142
      %v2144 = vpop.f32.mrb[0].mxu0
      %2145 = vmatprep.mubr.bf16.mxu0 0
      %2146 = vmatmul.mubr.bf16.gmra.mrb[0].mxu0 %v2053
      %v2147 = vpop.f32.mrb[0].mxu0
      %v2148 = vadd.f32 0.0, %v2147
      %v2149 = vpop.f32.mrb[0].mxu0
      %v2150 = vpop.f32.mrb[0].mxu0
      %v2151 = vadd.f32 0.0, %v2150
      %v2152 = vpop.f32.mrb[0].mxu0
      %2153 = vmatprep.mubr.bf16.mxu0 0
      %2154 = vmatmul.mubr.bf16.gmra.mrb[0].mxu0 %v2056
      %v2155 = vpop.f32.mrb[0].mxu0
      %v2156 = vadd.f32 0.0, %v2155
      %v2157 = vpop.f32.mrb[0].mxu0
      %v2158 = vpop.f32.mrb[0].mxu0
      %v2159 = vadd.f32 0.0, %v2158
      %v2160 = vpop.f32.mrb[0].mxu0
      %2161 = vmatprep.mubr.bf16.mxu0 0
      %2162 = vmatmul.mubr.bf16.gmra.mrb[0].mxu0 %v2059
      %v2163 = vpop.f32.mrb[0].mxu0
      %v2164 = vadd.f32 0.0, %v2163
      %v2165 = vpop.f32.mrb[0].mxu0
      %v2166 = vpop.f32.mrb[0].mxu0
      %v2167 = vadd.f32 0.0, %v2166
      %v2168 = vpop.f32.mrb[0].mxu0
      %2169 = vmatprep.mubr.bf16.mxu0 0
      %2170 = vmatmul.mubr.bf16.gmra.mrb[0].mxu0 %v2062
      %v2171 = vpop.f32.mrb[0].mxu0
      %v2172 = vadd.f32 0.0, %v2171
      %v2173 = vpop.f32.mrb[0].mxu0
      %v2174 = vpop.f32.mrb[0].mxu0
      %v2175 = vadd.f32 0.0, %v2174
      %v2176 = vpop.f32.mrb[0].mxu0
      %2177 = vmatprep.mubr.bf16.mxu0 0
      %2178 = vmatmul.mubr.bf16.gmra.mrb[0].mxu0 %v2065
      %v2179 = vpop.f32.mrb[0].mxu0
      %v2180 = vadd.f32 0.0, %v2179
      %v2181 = vpop.f32.mrb[0].mxu0
      %v2182 = vpop.f32.mrb[0].mxu0
      %v2183 = vadd.f32 0.0, %v2182
      %v2184 = vpop.f32.mrb[0].mxu0
      %2185 = vmatprep.mubr.bf16.mxu0 0
      %2186 = vmatmul.mubr.bf16.gmra.mrb[0].mxu0 %v2068
      %v2187 = vpop.f32.mrb[0].mxu0
      %v2188 = vadd.f32 0.0, %v2187
      %v2189 = vpop.f32.mrb[0].mxu0
      %v2190 = vpop.f32.mrb[0].mxu0
      %v2191 = vadd.f32 0.0, %v2190
      %v2192 = vpop.f32.mrb[0].mxu0
      %2193 = vmatprep.mubr.bf16.mxu0 0
      %2194 = vmatmul.mubr.bf16.gmra.mrb[0].mxu0 %v2071
      %v2195 = vpop.f32.mrb[0].mxu0
      %v2196 = vadd.f32 0.0, %v2195
      %v2197 = vpop.f32.mrb[0].mxu0
      %v2198 = vpop.f32.mrb[0].mxu0
      %v2199 = vadd.f32 0.0, %v2198
      %v2200 = vpop.f32.mrb[0].mxu0
      %2201 = vmatprep.mubr.bf16.mxu0 0
      %2202 = vmatmul.mubr.bf16.gmra.mrb[0].mxu0 %v2074
      %v2203 = vpop.f32.mrb[0].mxu0
      %v2204 = vadd.f32 0.0, %v2203
      %v2205 = vpop.f32.mrb[0].mxu0
      %v2206 = vpop.f32.mrb[0].mxu0
      %v2207 = vadd.f32 0.0, %v2206
      %v2208 = vpop.f32.mrb[0].mxu0
      %2209 = vmatprep.mubr.bf16.mxu0 0
      %2210 = vmatmul.mubr.bf16.gmra.mrb[0].mxu0 %v2077
      %v2211 = vpop.f32.mrb[0].mxu0
      %v2212 = vadd.f32 0.0, %v2211
      %v2213 = vpop.f32.mrb[0].mxu0
      %v2214 = vpop.f32.mrb[0].mxu0
      %v2215 = vadd.f32 0.0, %v2214
      %v2216 = vpop.f32.mrb[0].mxu0
      %2217 = vmatprep.mubr.bf16.mxu0 0
      %2218 = vmatmul.mubr.bf16.gmra.mrb[0].mxu0 %v2080
      %v2219 = vpop.f32.mrb[0].mxu0
      %v2220 = vadd.f32 0.0, %v2219
      %v2221 = vpop.f32.mrb[0].mxu0
      %v2222 = vpop.f32.mrb[0].mxu0
      %v2223 = vadd.f32 0.0, %v2222
      %v2224 = vpop.f32.mrb[0].mxu0
      %2225 = vmatprep.mubr.bf16.mxu0 0
      %2226 = vmatmul.mubr.bf16.gmra.mrb[0].mxu0 %v2083
      %v2227 = vpop.f32.mrb[0].mxu0
      %v2228 = vadd.f32 0.0, %v2227
      %v2229 = vpop.f32.mrb[0].mxu0
      %v2230 = vpop.f32.mrb[0].mxu0
      %v2231 = vadd.f32 0.0, %v2230
      %v2232 = vpop.f32.mrb[0].mxu0
      %2233 = vmatprep.mubr.bf16.mxu0 0
      %2234 = vmatmul.mubr.bf16.gmra.mrb[0].mxu0 %v2086
      %v2235 = vpop.f32.mrb[0].mxu0
      %v2236 = vadd.f32 0.0, %v2235
      %v2237 = vpop.f32.mrb[0].mxu0
      %v2238 = vpop.f32.mrb[0].mxu0
      %v2239 = vadd.f32 0.0, %v2238
      %v2240 = vpop.f32.mrb[0].mxu0
      %2241 = vmatprep.mubr.bf16.mxu0 0
      %2242 = vmatmul.mubr.bf16.gmra.mrb[0].mxu0 %v2089
      %v2243 = vpop.f32.mrb[0].mxu0
      %v2244 = vadd.f32 0.0, %v2243
      %v2245 = vpop.f32.mrb[0].mxu0
      %v2246 = vpop.f32.mrb[0].mxu0
      %v2247 = vadd.f32 0.0, %v2246
      %v2248 = vpop.f32.mrb[0].mxu0
      %2249 = vmatprep.mubr.bf16.mxu0 0
      %2250 = vmatmul.mubr.bf16.gmra.mrb[0].mxu0 %v2092
      %v2251 = vpop.f32.mrb[0].mxu0
      %v2252 = vadd.f32 0.0, %v2251
      %v2253 = vpop.f32.mrb[0].mxu0
      %v2254 = vpop.f32.mrb[0].mxu0
      %v2255 = vadd.f32 0.0, %v2254
      %v2256 = vpop.f32.mrb[0].mxu0
      %2257 = vdwg.mxu0
      %v2258 = vadd.f32 %v1870, %v2132
      %v2259 = vadd.f32 %v1873, %v2135
      %v2260 = vadd.f32 %v1878, %v2140
      %v2261 = vadd.f32 %v1881, %v2143
      %v2262 = vadd.f32 %v1886, %v2148
      %v2263 = vadd.f32 %v1889, %v2151
      %v2264 = vadd.f32 %v1894, %v2156
      %v2265 = vadd.f32 %v1897, %v2159
      %v2266 = vadd.f32 %v1902, %v2164
      %v2267 = vadd.f32 %v1905, %v2167
      %v2268 = vadd.f32 %v1910, %v2172
      %v2269 = vadd.f32 %v1913, %v2175
      %v2270 = vadd.f32 %v1918, %v2180
      %v2271 = vadd.f32 %v1921, %v2183
      %v2272 = vadd.f32 %v1926, %v2188
      %v2273 = vadd.f32 %v1929, %v2191
      %v2274 = vadd.f32 %v1934, %v2196
      %v2275 = vadd.f32 %v1937, %v2199
      %v2276 = vadd.f32 %v1942, %v2204
      %v2277 = vadd.f32 %v1945, %v2207
      %v2278 = vadd.f32 %v1950, %v2212
      %v2279 = vadd.f32 %v1953, %v2215
      %v2280 = vadd.f32 %v1958, %v2220
      %v2281 = vadd.f32 %v1961, %v2223
      %v2282 = vadd.f32 %v1966, %v2228
      %v2283 = vadd.f32 %v1969, %v2231
      %v2284 = vadd.f32 %v1974, %v2236
      %v2285 = vadd.f32 %v1977, %v2239
      %v2286 = vadd.f32 %v1982, %v2244
      %v2287 = vadd.f32 %v1985, %v2247
      %v2288 = vadd.f32 %v1990, %v2252
      %v2289 = vadd.f32 %v1993, %v2255
      %v2290 = vld [vmem:[%s1439] sm:$0xff]
      %v2291 = vld [vmem:[%s1439 + $0x8] sm:$0xff]
      %v2292 = vld [vmem:[%s1439 + $0x18] sm:$0xff]
      %v2293 = vld [vmem:[%s1439 + $0x20] sm:$0xff]
      %v2294 = vld [vmem:[%s1439 + $0x30] sm:$0xff]
      %v2295 = vld [vmem:[%s1439 + $0x38] sm:$0xff]
      %v2296 = vld [vmem:[%s1439 + $0x48] sm:$0xff]
      %v2297 = vld [vmem:[%s1439 + $0x50] sm:$0xff]
      %v2298 = vld [vmem:[%s1439 + $0x60] sm:$0xff]
      %v2299 = vld [vmem:[%s1439 + $0x68] sm:$0xff]
      %v2300 = vld [vmem:[%s1439 + $0x78] sm:$0xff]
      %v2301 = vld [vmem:[%s1439 + $0x80] sm:$0xff]
      %v2302 = vld [vmem:[%s1439 + $0x90] sm:$0xff]
      %v2303 = vld [vmem:[%s1439 + $0x98] sm:$0xff]
      %v2304 = vld [vmem:[%s1439 + $0xa8] sm:$0xff]
      %v2305 = vld [vmem:[%s1439 + $0xb0] sm:$0xff]
      %v2306 = vld [vmem:[%s1439 + $0xc0] sm:$0xff]
      %v2307 = vld [vmem:[%s1439 + $0xc8] sm:$0xff]
      %v2308 = vld [vmem:[%s1439 + $0xd8] sm:$0xff]
      %v2309 = vld [vmem:[%s1439 + $0xe0] sm:$0xff]
      %v2310 = vld [vmem:[%s1439 + $0xf0] sm:$0xff]
      %v2311 = vld [vmem:[%s1439 + $0xf8] sm:$0xff]
      %v2312 = vld [vmem:[%s1439 + $0x108] sm:$0xff]
      %v2313 = vld [vmem:[%s1439 + $0x110] sm:$0xff]
      %v2314 = vld [vmem:[%s1439 + $0x120] sm:$0xff]
      %v2315 = vld [vmem:[%s1439 + $0x128] sm:$0xff]
      %v2316 = vld [vmem:[%s1439 + $0x138] sm:$0xff]
      %v2317 = vld [vmem:[%s1439 + $0x140] sm:$0xff]
      %v2318 = vld [vmem:[%s1439 + $0x150] sm:$0xff]
      %v2319 = vld [vmem:[%s1439 + $0x158] sm:$0xff]
      %v2320 = vld [vmem:[%s1439 + $0x168] sm:$0xff]
      %v2321 = vld [vmem:[%s1439 + $0x170] sm:$0xff]
      %v2322 = vpack.c.bf16 %v2291, %v2290
      %v2323 = vpack.c.bf16 %v2293, %v2292
      %v2324 = vpack.c.bf16 %v2295, %v2294
      %v2325 = vpack.c.bf16 %v2297, %v2296
      %v2326 = vpack.c.bf16 %v2299, %v2298
      %v2327 = vpack.c.bf16 %v2301, %v2300
      %v2328 = vpack.c.bf16 %v2303, %v2302
      %v2329 = vpack.c.bf16 %v2305, %v2304
      %v2330 = vpack.c.bf16 %v2307, %v2306
      %v2331 = vpack.c.bf16 %v2309, %v2308
      %v2332 = vpack.c.bf16 %v2311, %v2310
      %v2333 = vpack.c.bf16 %v2313, %v2312
      %v2334 = vpack.c.bf16 %v2315, %v2314
      %v2335 = vpack.c.bf16 %v2317, %v2316
      %v2336 = vpack.c.bf16 %v2319, %v2318
      %v2337 = vpack.c.bf16 %v2321, %v2320
      %s2338 = scalar_lea.vmem %s5, 12
      %v2339 = vld [vmem:[%s2338] sm:$0xf]
      %v2341 = vsel %vm1378, %v2322, 0
      %v2344 = vsel %vm1378, %v2323, 0
      %v2347 = vsel %vm1378, %v2324, 0
      %v2350 = vsel %vm1378, %v2325, 0
      %v2353 = vsel %vm1378, %v2326, 0
      %v2356 = vsel %vm1378, %v2327, 0
      %v2359 = vsel %vm1378, %v2328, 0
      %v2362 = vsel %vm1378, %v2329, 0
      %v2365 = vsel %vm1378, %v2330, 0
      %v2368 = vsel %vm1378, %v2331, 0
      %v2371 = vsel %vm1378, %v2332, 0
      %v2374 = vsel %vm1378, %v2333, 0
      %v2377 = vsel %vm1378, %v2334, 0
      %v2380 = vsel %vm1378, %v2335, 0
      %v2383 = vsel %vm1378, %v2336, 0
      %v2386 = vsel %vm1378, %v2337, 0
      %v2389 = vsel %vm1619, %v2339, 0
      %2391 = vmatprep.subr.bf16.mxu0 0
      %2392 = vmatpush1.bf16.msra.mxu0 %v2389
      %2393 = vmatprep.subr.bf16.mxu0 0
      %2394 = vmatpush1.bf16.msra.mxu0 0
      %2395 = vmatprep.subr.bf16.mxu0 0
      %2396 = vmatpush1.bf16.msra.mxu0 0
      %2397 = vmatprep.subr.bf16.mxu0 0
      %2398 = vmatpush1.bf16.msra.mxu0 0
      %2399 = vmatprep.subr.bf16.mxu0 0
      %2400 = vmatpush1.bf16.msra.mxu0 0
      %2401 = vmatprep.subr.bf16.mxu0 0
      %2402 = vmatpush1.bf16.msra.mxu0 0
      %2403 = vmatprep.subr.bf16.mxu0 0
      %2404 = vmatpush1.bf16.msra.mxu0 0
      %2405 = vmatprep.subr.bf16.mxu0 0
      %2406 = vmatpush1.bf16.msra.mxu0 0
      %2407 = vmatprep.subr.bf16.mxu0 0
      %2408 = vmatpush1.bf16.msra.mxu0 0
      %2409 = vmatprep.subr.bf16.mxu0 0
      %2410 = vmatpush1.bf16.msra.mxu0 0
      %2411 = vmatprep.subr.bf16.mxu0 0
      %2412 = vmatpush1.bf16.msra.mxu0 0
      %2413 = vmatprep.subr.bf16.mxu0 0
      %2414 = vmatpush1.bf16.msra.mxu0 0
      %2415 = vmatprep.subr.bf16.mxu0 0
      %2416 = vmatpush1.bf16.msra.mxu0 0
      %2417 = vmatprep.subr.bf16.mxu0 0
      %2418 = vmatpush1.bf16.msra.mxu0 0
      %2419 = vmatprep.subr.bf16.mxu0 0
      %2420 = vmatpush1.bf16.msra.mxu0 0
      %2421 = vmatprep.subr.bf16.mxu0 0
      %2422 = vmatpush1.bf16.msra.mxu0 0
      %2423 = vmatprep.mubr.bf16.mxu0 0
      %2424 = vmatmul.mubr.bf16.gmra.mrb[0].mxu0 %v2341
      %v2425 = vpop.f32.mrb[0].mxu0
      %v2426 = vadd.f32 0.0, %v2425
      %v2427 = vpop.f32.mrb[0].mxu0
      %v2428 = vpop.f32.mrb[0].mxu0
      %v2429 = vadd.f32 0.0, %v2428
      %v2430 = vpop.f32.mrb[0].mxu0
      %2431 = vmatprep.mubr.bf16.mxu0 0
      %2432 = vmatmul.mubr.bf16.gmra.mrb[0].mxu0 %v2344
      %v2433 = vpop.f32.mrb[0].mxu0
      %v2434 = vadd.f32 0.0, %v2433
      %v2435 = vpop.f32.mrb[0].mxu0
      %v2436 = vpop.f32.mrb[0].mxu0
      %v2437 = vadd.f32 0.0, %v2436
      %v2438 = vpop.f32.mrb[0].mxu0
      %2439 = vmatprep.mubr.bf16.mxu0 0
      %2440 = vmatmul.mubr.bf16.gmra.mrb[0].mxu0 %v2347
      %v2441 = vpop.f32.mrb[0].mxu0
      %v2442 = vadd.f32 0.0, %v2441
      %v2443 = vpop.f32.mrb[0].mxu0
      %v2444 = vpop.f32.mrb[0].mxu0
      %v2445 = vadd.f32 0.0, %v2444
      %v2446 = vpop.f32.mrb[0].mxu0
      %2447 = vmatprep.mubr.bf16.mxu0 0
      %2448 = vmatmul.mubr.bf16.gmra.mrb[0].mxu0 %v2350
      %v2449 = vpop.f32.mrb[0].mxu0
      %v2450 = vadd.f32 0.0, %v2449
      %v2451 = vpop.f32.mrb[0].mxu0
      %v2452 = vpop.f32.mrb[0].mxu0
      %v2453 = vadd.f32 0.0, %v2452
      %v2454 = vpop.f32.mrb[0].mxu0
      %2455 = vmatprep.mubr.bf16.mxu0 0
      %2456 = vmatmul.mubr.bf16.gmra.mrb[0].mxu0 %v2353
      %v2457 = vpop.f32.mrb[0].mxu0
      %v2458 = vadd.f32 0.0, %v2457
      %v2459 = vpop.f32.mrb[0].mxu0
      %v2460 = vpop.f32.mrb[0].mxu0
      %v2461 = vadd.f32 0.0, %v2460
      %v2462 = vpop.f32.mrb[0].mxu0
      %2463 = vmatprep.mubr.bf16.mxu0 0
      %2464 = vmatmul.mubr.bf16.gmra.mrb[0].mxu0 %v2356
      %v2465 = vpop.f32.mrb[0].mxu0
      %v2466 = vadd.f32 0.0, %v2465
      %v2467 = vpop.f32.mrb[0].mxu0
      %v2468 = vpop.f32.mrb[0].mxu0
      %v2469 = vadd.f32 0.0, %v2468
      %v2470 = vpop.f32.mrb[0].mxu0
      %2471 = vmatprep.mubr.bf16.mxu0 0
      %2472 = vmatmul.mubr.bf16.gmra.mrb[0].mxu0 %v2359
      %v2473 = vpop.f32.mrb[0].mxu0
      %v2474 = vadd.f32 0.0, %v2473
      %v2475 = vpop.f32.mrb[0].mxu0
      %v2476 = vpop.f32.mrb[0].mxu0
      %v2477 = vadd.f32 0.0, %v2476
      %v2478 = vpop.f32.mrb[0].mxu0
      %2479 = vmatprep.mubr.bf16.mxu0 0
      %2480 = vmatmul.mubr.bf16.gmra.mrb[0].mxu0 %v2362
      %v2481 = vpop.f32.mrb[0].mxu0
      %v2482 = vadd.f32 0.0, %v2481
      %v2483 = vpop.f32.mrb[0].mxu0
      %v2484 = vpop.f32.mrb[0].mxu0
      %v2485 = vadd.f32 0.0, %v2484
      %v2486 = vpop.f32.mrb[0].mxu0
      %2487 = vmatprep.mubr.bf16.mxu0 0
      %2488 = vmatmul.mubr.bf16.gmra.mrb[0].mxu0 %v2365
      %v2489 = vpop.f32.mrb[0].mxu0
      %v2490 = vadd.f32 0.0, %v2489
      %v2491 = vpop.f32.mrb[0].mxu0
      %v2492 = vpop.f32.mrb[0].mxu0
      %v2493 = vadd.f32 0.0, %v2492
      %v2494 = vpop.f32.mrb[0].mxu0
      %2495 = vmatprep.mubr.bf16.mxu0 0
      %2496 = vmatmul.mubr.bf16.gmra.mrb[0].mxu0 %v2368
      %v2497 = vpop.f32.mrb[0].mxu0
      %v2498 = vadd.f32 0.0, %v2497
      %v2499 = vpop.f32.mrb[0].mxu0
      %v2500 = vpop.f32.mrb[0].mxu0
      %v2501 = vadd.f32 0.0, %v2500
      %v2502 = vpop.f32.mrb[0].mxu0
      %2503 = vmatprep.mubr.bf16.mxu0 0
      %2504 = vmatmul.mubr.bf16.gmra.mrb[0].mxu0 %v2371
      %v2505 = vpop.f32.mrb[0].mxu0
      %v2506 = vadd.f32 0.0, %v2505
      %v2507 = vpop.f32.mrb[0].mxu0
      %v2508 = vpop.f32.mrb[0].mxu0
      %v2509 = vadd.f32 0.0, %v2508
      %v2510 = vpop.f32.mrb[0].mxu0
      %2511 = vmatprep.mubr.bf16.mxu0 0
      %2512 = vmatmul.mubr.bf16.gmra.mrb[0].mxu0 %v2374
      %v2513 = vpop.f32.mrb[0].mxu0
      %v2514 = vadd.f32 0.0, %v2513
      %v2515 = vpop.f32.mrb[0].mxu0
      %v2516 = vpop.f32.mrb[0].mxu0
      %v2517 = vadd.f32 0.0, %v2516
      %v2518 = vpop.f32.mrb[0].mxu0
      %2519 = vmatprep.mubr.bf16.mxu0 0
      %2520 = vmatmul.mubr.bf16.gmra.mrb[0].mxu0 %v2377
      %v2521 = vpop.f32.mrb[0].mxu0
      %v2522 = vadd.f32 0.0, %v2521
      %v2523 = vpop.f32.mrb[0].mxu0
      %v2524 = vpop.f32.mrb[0].mxu0
      %v2525 = vadd.f32 0.0, %v2524
      %v2526 = vpop.f32.mrb[0].mxu0
      %2527 = vmatprep.mubr.bf16.mxu0 0
      %2528 = vmatmul.mubr.bf16.gmra.mrb[0].mxu0 %v2380
      %v2529 = vpop.f32.mrb[0].mxu0
      %v2530 = vadd.f32 0.0, %v2529
      %v2531 = vpop.f32.mrb[0].mxu0
      %v2532 = vpop.f32.mrb[0].mxu0
      %v2533 = vadd.f32 0.0, %v2532
      %v2534 = vpop.f32.mrb[0].mxu0
      %2535 = vmatprep.mubr.bf16.mxu0 0
      %2536 = vmatmul.mubr.bf16.gmra.mrb[0].mxu0 %v2383
      %v2537 = vpop.f32.mrb[0].mxu0
      %v2538 = vadd.f32 0.0, %v2537
      %v2539 = vpop.f32.mrb[0].mxu0
      %v2540 = vpop.f32.mrb[0].mxu0
      %v2541 = vadd.f32 0.0, %v2540
      %v2542 = vpop.f32.mrb[0].mxu0
      %2543 = vmatprep.mubr.bf16.mxu0 0
      %2544 = vmatmul.mubr.bf16.gmra.mrb[0].mxu0 %v2386
      %v2545 = vpop.f32.mrb[0].mxu0
      %v2546 = vadd.f32 0.0, %v2545
      %v2547 = vpop.f32.mrb[0].mxu0
      %v2548 = vpop.f32.mrb[0].mxu0
      %v2549 = vadd.f32 0.0, %v2548
      %v2550 = vpop.f32.mrb[0].mxu0
      %2551 = vdwg.mxu0
      %v2552 = vadd.f32 %v2258, %v2426
      %v2553 = vadd.f32 %v2259, %v2429
      %v2554 = vadd.f32 %v2260, %v2434
      %v2555 = vadd.f32 %v2261, %v2437
      %v2556 = vadd.f32 %v2262, %v2442
      %v2557 = vadd.f32 %v2263, %v2445
      %v2558 = vadd.f32 %v2264, %v2450
      %v2559 = vadd.f32 %v2265, %v2453
      %v2560 = vadd.f32 %v2266, %v2458
      %v2561 = vadd.f32 %v2267, %v2461
      %v2562 = vadd.f32 %v2268, %v2466
      %v2563 = vadd.f32 %v2269, %v2469
      %v2564 = vadd.f32 %v2270, %v2474
      %v2565 = vadd.f32 %v2271, %v2477
      %v2566 = vadd.f32 %v2272, %v2482
      %v2567 = vadd.f32 %v2273, %v2485
      %v2568 = vadd.f32 %v2274, %v2490
      %v2569 = vadd.f32 %v2275, %v2493
      %v2570 = vadd.f32 %v2276, %v2498
      %v2571 = vadd.f32 %v2277, %v2501
      %v2572 = vadd.f32 %v2278, %v2506
      %v2573 = vadd.f32 %v2279, %v2509
      %v2574 = vadd.f32 %v2280, %v2514
      %v2575 = vadd.f32 %v2281, %v2517
      %v2576 = vadd.f32 %v2282, %v2522
      %v2577 = vadd.f32 %v2283, %v2525
      %v2578 = vadd.f32 %v2284, %v2530
      %v2579 = vadd.f32 %v2285, %v2533
      %v2580 = vadd.f32 %v2286, %v2538
      %v2581 = vadd.f32 %v2287, %v2541
      %v2582 = vadd.f32 %v2288, %v2546
      %v2583 = vadd.f32 %v2289, %v2549
      %v2584 = vld [vmem:[%s1439 + $0x2] sm:$0xff]
      %v2585 = vld [vmem:[%s1439 + $0xa] sm:$0xff]
      %v2586 = vld [vmem:[%s1439 + $0x1a] sm:$0xff]
      %v2587 = vld [vmem:[%s1439 + $0x22] sm:$0xff]
      %v2588 = vld [vmem:[%s1439 + $0x32] sm:$0xff]
      %v2589 = vld [vmem:[%s1439 + $0x3a] sm:$0xff]
      %v2590 = vld [vmem:[%s1439 + $0x4a] sm:$0xff]
      %v2591 = vld [vmem:[%s1439 + $0x52] sm:$0xff]
      %v2592 = vld [vmem:[%s1439 + $0x62] sm:$0xff]
      %v2593 = vld [vmem:[%s1439 + $0x6a] sm:$0xff]
      %v2594 = vld [vmem:[%s1439 + $0x7a] sm:$0xff]
      %v2595 = vld [vmem:[%s1439 + $0x82] sm:$0xff]
      %v2596 = vld [vmem:[%s1439 + $0x92] sm:$0xff]
      %v2597 = vld [vmem:[%s1439 + $0x9a] sm:$0xff]
      %v2598 = vld [vmem:[%s1439 + $0xaa] sm:$0xff]
      %v2599 = vld [vmem:[%s1439 + $0xb2] sm:$0xff]
      %v2600 = vld [vmem:[%s1439 + $0xc2] sm:$0xff]
      %v2601 = vld [vmem:[%s1439 + $0xca] sm:$0xff]
      %v2602 = vld [vmem:[%s1439 + $0xda] sm:$0xff]
      %v2603 = vld [vmem:[%s1439 + $0xe2] sm:$0xff]
      %v2604 = vld [vmem:[%s1439 + $0xf2] sm:$0xff]
      %v2605 = vld [vmem:[%s1439 + $0xfa] sm:$0xff]
      %v2606 = vld [vmem:[%s1439 + $0x10a] sm:$0xff]
      %v2607 = vld [vmem:[%s1439 + $0x112] sm:$0xff]
      %v2608 = vld [vmem:[%s1439 + $0x122] sm:$0xff]
      %v2609 = vld [vmem:[%s1439 + $0x12a] sm:$0xff]
      %v2610 = vld [vmem:[%s1439 + $0x13a] sm:$0xff]
      %v2611 = vld [vmem:[%s1439 + $0x142] sm:$0xff]
      %v2612 = vld [vmem:[%s1439 + $0x152] sm:$0xff]
      %v2613 = vld [vmem:[%s1439 + $0x15a] sm:$0xff]
      %v2614 = vld [vmem:[%s1439 + $0x16a] sm:$0xff]
      %v2615 = vld [vmem:[%s1439 + $0x172] sm:$0xff]
      %v2616 = vpack.c.bf16 %v2585, %v2584
      %v2617 = vpack.c.bf16 %v2587, %v2586
      %v2618 = vpack.c.bf16 %v2589, %v2588
      %v2619 = vpack.c.bf16 %v2591, %v2590
      %v2620 = vpack.c.bf16 %v2593, %v2592
      %v2621 = vpack.c.bf16 %v2595, %v2594
      %v2622 = vpack.c.bf16 %v2597, %v2596
      %v2623 = vpack.c.bf16 %v2599, %v2598
      %v2624 = vpack.c.bf16 %v2601, %v2600
      %v2625 = vpack.c.bf16 %v2603, %v2602
      %v2626 = vpack.c.bf16 %v2605, %v2604
      %v2627 = vpack.c.bf16 %v2607, %v2606
      %v2628 = vpack.c.bf16 %v2609, %v2608
      %v2629 = vpack.c.bf16 %v2611, %v2610
      %v2630 = vpack.c.bf16 %v2613, %v2612
      %v2631 = vpack.c.bf16 %v2615, %v2614
      %s2632 = scalar_lea.vmem %s5, 16
      %v2633 = vld [vmem:[%s2632] sm:$0xf]
      %v2635 = vsel %vm1378, %v2616, 0
      %v2638 = vsel %vm1378, %v2617, 0
      %v2641 = vsel %vm1378, %v2618, 0
      %v2644 = vsel %vm1378, %v2619, 0
      %v2647 = vsel %vm1378, %v2620, 0
      %v2650 = vsel %vm1378, %v2621, 0
      %v2653 = vsel %vm1378, %v2622, 0
      %v2656 = vsel %vm1378, %v2623, 0
      %v2659 = vsel %vm1378, %v2624, 0
      %v2662 = vsel %vm1378, %v2625, 0
      %v2665 = vsel %vm1378, %v2626, 0
      %v2668 = vsel %vm1378, %v2627, 0
      %v2671 = vsel %vm1378, %v2628, 0
      %v2674 = vsel %vm1378, %v2629, 0
      %v2677 = vsel %vm1378, %v2630, 0
      %v2680 = vsel %vm1378, %v2631, 0
      %v2683 = vsel %vm1619, %v2633, 0
      %2685 = vmatprep.subr.bf16.mxu0 0
      %2686 = vmatpush1.bf16.msra.mxu0 %v2683
      %2687 = vmatprep.subr.bf16.mxu0 0
      %2688 = vmatpush1.bf16.msra.mxu0 0
      %2689 = vmatprep.subr.bf16.mxu0 0
      %2690 = vmatpush1.bf16.msra.mxu0 0
      %2691 = vmatprep.subr.bf16.mxu0 0
      %2692 = vmatpush1.bf16.msra.mxu0 0
      %2693 = vmatprep.subr.bf16.mxu0 0
      %2694 = vmatpush1.bf16.msra.mxu0 0
      %2695 = vmatprep.subr.bf16.mxu0 0
      %2696 = vmatpush1.bf16.msra.mxu0 0
      %2697 = vmatprep.subr.bf16.mxu0 0
      %2698 = vmatpush1.bf16.msra.mxu0 0
      %2699 = vmatprep.subr.bf16.mxu0 0
      %2700 = vmatpush1.bf16.msra.mxu0 0
      %2701 = vmatprep.subr.bf16.mxu0 0
      %2702 = vmatpush1.bf16.msra.mxu0 0
      %2703 = vmatprep.subr.bf16.mxu0 0
      %2704 = vmatpush1.bf16.msra.mxu0 0
      %2705 = vmatprep.subr.bf16.mxu0 0
      %2706 = vmatpush1.bf16.msra.mxu0 0
      %2707 = vmatprep.subr.bf16.mxu0 0
      %2708 = vmatpush1.bf16.msra.mxu0 0
      %2709 = vmatprep.subr.bf16.mxu0 0
      %2710 = vmatpush1.bf16.msra.mxu0 0
      %2711 = vmatprep.subr.bf16.mxu0 0
      %2712 = vmatpush1.bf16.msra.mxu0 0
      %2713 = vmatprep.subr.bf16.mxu0 0
      %2714 = vmatpush1.bf16.msra.mxu0 0
      %2715 = vmatprep.subr.bf16.mxu0 0
      %2716 = vmatpush1.bf16.msra.mxu0 0
      %2717 = vmatprep.mubr.bf16.mxu0 0
      %2718 = vmatmul.mubr.bf16.gmra.mrb[0].mxu0 %v2635
      %v2719 = vpop.f32.mrb[0].mxu0
      %v2720 = vadd.f32 0.0, %v2719
      %v2721 = vpop.f32.mrb[0].mxu0
      %v2722 = vpop.f32.mrb[0].mxu0
      %v2723 = vadd.f32 0.0, %v2722
      %v2724 = vpop.f32.mrb[0].mxu0
      %2725 = vmatprep.mubr.bf16.mxu0 0
      %2726 = vmatmul.mubr.bf16.gmra.mrb[0].mxu0 %v2638
      %v2727 = vpop.f32.mrb[0].mxu0
      %v2728 = vadd.f32 0.0, %v2727
      %v2729 = vpop.f32.mrb[0].mxu0
      %v2730 = vpop.f32.mrb[0].mxu0
      %v2731 = vadd.f32 0.0, %v2730
      %v2732 = vpop.f32.mrb[0].mxu0
      %2733 = vmatprep.mubr.bf16.mxu0 0
      %2734 = vmatmul.mubr.bf16.gmra.mrb[0].mxu0 %v2641
      %v2735 = vpop.f32.mrb[0].mxu0
      %v2736 = vadd.f32 0.0, %v2735
      %v2737 = vpop.f32.mrb[0].mxu0
      %v2738 = vpop.f32.mrb[0].mxu0
      %v2739 = vadd.f32 0.0, %v2738
      %v2740 = vpop.f32.mrb[0].mxu0
      %2741 = vmatprep.mubr.bf16.mxu0 0
      %2742 = vmatmul.mubr.bf16.gmra.mrb[0].mxu0 %v2644
      %v2743 = vpop.f32.mrb[0].mxu0
      %v2744 = vadd.f32 0.0, %v2743
      %v2745 = vpop.f32.mrb[0].mxu0
      %v2746 = vpop.f32.mrb[0].mxu0
      %v2747 = vadd.f32 0.0, %v2746
      %v2748 = vpop.f32.mrb[0].mxu0
      %2749 = vmatprep.mubr.bf16.mxu0 0
      %2750 = vmatmul.mubr.bf16.gmra.mrb[0].mxu0 %v2647
      %v2751 = vpop.f32.mrb[0].mxu0
      %v2752 = vadd.f32 0.0, %v2751
      %v2753 = vpop.f32.mrb[0].mxu0
      %v2754 = vpop.f32.mrb[0].mxu0
      %v2755 = vadd.f32 0.0, %v2754
      %v2756 = vpop.f32.mrb[0].mxu0
      %2757 = vmatprep.mubr.bf16.mxu0 0
      %2758 = vmatmul.mubr.bf16.gmra.mrb[0].mxu0 %v2650
      %v2759 = vpop.f32.mrb[0].mxu0
      %v2760 = vadd.f32 0.0, %v2759
      %v2761 = vpop.f32.mrb[0].mxu0
      %v2762 = vpop.f32.mrb[0].mxu0
      %v2763 = vadd.f32 0.0, %v2762
      %v2764 = vpop.f32.mrb[0].mxu0
      %2765 = vmatprep.mubr.bf16.mxu0 0
      %2766 = vmatmul.mubr.bf16.gmra.mrb[0].mxu0 %v2653
      %v2767 = vpop.f32.mrb[0].mxu0
      %v2768 = vadd.f32 0.0, %v2767
      %v2769 = vpop.f32.mrb[0].mxu0
      %v2770 = vpop.f32.mrb[0].mxu0
      %v2771 = vadd.f32 0.0, %v2770
      %v2772 = vpop.f32.mrb[0].mxu0
      %2773 = vmatprep.mubr.bf16.mxu0 0
      %2774 = vmatmul.mubr.bf16.gmra.mrb[0].mxu0 %v2656
      %v2775 = vpop.f32.mrb[0].mxu0
      %v2776 = vadd.f32 0.0, %v2775
      %v2777 = vpop.f32.mrb[0].mxu0
      %v2778 = vpop.f32.mrb[0].mxu0
      %v2779 = vadd.f32 0.0, %v2778
      %v2780 = vpop.f32.mrb[0].mxu0
      %2781 = vmatprep.mubr.bf16.mxu0 0
      %2782 = vmatmul.mubr.bf16.gmra.mrb[0].mxu0 %v2659
      %v2783 = vpop.f32.mrb[0].mxu0
      %v2784 = vadd.f32 0.0, %v2783
      %v2785 = vpop.f32.mrb[0].mxu0
      %v2786 = vpop.f32.mrb[0].mxu0
      %v2787 = vadd.f32 0.0, %v2786
      %v2788 = vpop.f32.mrb[0].mxu0
      %2789 = vmatprep.mubr.bf16.mxu0 0
      %2790 = vmatmul.mubr.bf16.gmra.mrb[0].mxu0 %v2662
      %v2791 = vpop.f32.mrb[0].mxu0
      %v2792 = vadd.f32 0.0, %v2791
      %v2793 = vpop.f32.mrb[0].mxu0
      %v2794 = vpop.f32.mrb[0].mxu0
      %v2795 = vadd.f32 0.0, %v2794
      %v2796 = vpop.f32.mrb[0].mxu0
      %2797 = vmatprep.mubr.bf16.mxu0 0
      %2798 = vmatmul.mubr.bf16.gmra.mrb[0].mxu0 %v2665
      %v2799 = vpop.f32.mrb[0].mxu0
      %v2800 = vadd.f32 0.0, %v2799
      %v2801 = vpop.f32.mrb[0].mxu0
      %v2802 = vpop.f32.mrb[0].mxu0
      %v2803 = vadd.f32 0.0, %v2802
      %v2804 = vpop.f32.mrb[0].mxu0
      %2805 = vmatprep.mubr.bf16.mxu0 0
      %2806 = vmatmul.mubr.bf16.gmra.mrb[0].mxu0 %v2668
      %v2807 = vpop.f32.mrb[0].mxu0
      %v2808 = vadd.f32 0.0, %v2807
      %v2809 = vpop.f32.mrb[0].mxu0
      %v2810 = vpop.f32.mrb[0].mxu0
      %v2811 = vadd.f32 0.0, %v2810
      %v2812 = vpop.f32.mrb[0].mxu0
      %2813 = vmatprep.mubr.bf16.mxu0 0
      %2814 = vmatmul.mubr.bf16.gmra.mrb[0].mxu0 %v2671
      %v2815 = vpop.f32.mrb[0].mxu0
      %v2816 = vadd.f32 0.0, %v2815
      %v2817 = vpop.f32.mrb[0].mxu0
      %v2818 = vpop.f32.mrb[0].mxu0
      %v2819 = vadd.f32 0.0, %v2818
      %v2820 = vpop.f32.mrb[0].mxu0
      %2821 = vmatprep.mubr.bf16.mxu0 0
      %2822 = vmatmul.mubr.bf16.gmra.mrb[0].mxu0 %v2674
      %v2823 = vpop.f32.mrb[0].mxu0
      %v2824 = vadd.f32 0.0, %v2823
      %v2825 = vpop.f32.mrb[0].mxu0
      %v2826 = vpop.f32.mrb[0].mxu0
      %v2827 = vadd.f32 0.0, %v2826
      %v2828 = vpop.f32.mrb[0].mxu0
      %2829 = vmatprep.mubr.bf16.mxu0 0
      %2830 = vmatmul.mubr.bf16.gmra.mrb[0].mxu0 %v2677
      %v2831 = vpop.f32.mrb[0].mxu0
      %v2832 = vadd.f32 0.0, %v2831
      %v2833 = vpop.f32.mrb[0].mxu0
      %v2834 = vpop.f32.mrb[0].mxu0
      %v2835 = vadd.f32 0.0, %v2834
      %v2836 = vpop.f32.mrb[0].mxu0
      %2837 = vmatprep.mubr.bf16.mxu0 0
      %2838 = vmatmul.mubr.bf16.gmra.mrb[0].mxu0 %v2680
      %v2839 = vpop.f32.mrb[0].mxu0
      %v2840 = vadd.f32 0.0, %v2839
      %v2841 = vpop.f32.mrb[0].mxu0
      %v2842 = vpop.f32.mrb[0].mxu0
      %v2843 = vadd.f32 0.0, %v2842
      %v2844 = vpop.f32.mrb[0].mxu0
      %2845 = vdwg.mxu0
      %v2846 = vadd.f32 %v2552, %v2720
      %v2847 = vadd.f32 %v2553, %v2723
      %v2848 = vadd.f32 %v2554, %v2728
      %v2849 = vadd.f32 %v2555, %v2731
      %v2850 = vadd.f32 %v2556, %v2736
      %v2851 = vadd.f32 %v2557, %v2739
      %v2852 = vadd.f32 %v2558, %v2744
      %v2853 = vadd.f32 %v2559, %v2747
      %v2854 = vadd.f32 %v2560, %v2752
      %v2855 = vadd.f32 %v2561, %v2755
      %v2856 = vadd.f32 %v2562, %v2760
      %v2857 = vadd.f32 %v2563, %v2763
      %v2858 = vadd.f32 %v2564, %v2768
      %v2859 = vadd.f32 %v2565, %v2771
      %v2860 = vadd.f32 %v2566, %v2776
      %v2861 = vadd.f32 %v2567, %v2779
      %v2862 = vadd.f32 %v2568, %v2784
      %v2863 = vadd.f32 %v2569, %v2787
      %v2864 = vadd.f32 %v2570, %v2792
      %v2865 = vadd.f32 %v2571, %v2795
      %v2866 = vadd.f32 %v2572, %v2800
      %v2867 = vadd.f32 %v2573, %v2803
      %v2868 = vadd.f32 %v2574, %v2808
      %v2869 = vadd.f32 %v2575, %v2811
      %v2870 = vadd.f32 %v2576, %v2816
      %v2871 = vadd.f32 %v2577, %v2819
      %v2872 = vadd.f32 %v2578, %v2824
      %v2873 = vadd.f32 %v2579, %v2827
      %v2874 = vadd.f32 %v2580, %v2832
      %v2875 = vadd.f32 %v2581, %v2835
      %v2876 = vadd.f32 %v2582, %v2840
      %v2877 = vadd.f32 %v2583, %v2843
      %v2878 = vld [vmem:[%s1439 + $0x4] sm:$0xff]
      %v2879 = vld [vmem:[%s1439 + $0xc] sm:$0xff]
      %v2880 = vld [vmem:[%s1439 + $0x1c] sm:$0xff]
      %v2881 = vld [vmem:[%s1439 + $0x24] sm:$0xff]
      %v2882 = vld [vmem:[%s1439 + $0x34] sm:$0xff]
      %v2883 = vld [vmem:[%s1439 + $0x3c] sm:$0xff]
      %v2884 = vld [vmem:[%s1439 + $0x4c] sm:$0xff]
      %v2885 = vld [vmem:[%s1439 + $0x54] sm:$0xff]
      %v2886 = vld [vmem:[%s1439 + $0x64] sm:$0xff]
      %v2887 = vld [vmem:[%s1439 + $0x6c] sm:$0xff]
      %v2888 = vld [vmem:[%s1439 + $0x7c] sm:$0xff]
      %v2889 = vld [vmem:[%s1439 + $0x84] sm:$0xff]
      %v2890 = vld [vmem:[%s1439 + $0x94] sm:$0xff]
      %v2891 = vld [vmem:[%s1439 + $0x9c] sm:$0xff]
      %v2892 = vld [vmem:[%s1439 + $0xac] sm:$0xff]
      %v2893 = vld [vmem:[%s1439 + $0xb4] sm:$0xff]
      %v2894 = vld [vmem:[%s1439 + $0xc4] sm:$0xff]
      %v2895 = vld [vmem:[%s1439 + $0xcc] sm:$0xff]
      %v2896 = vld [vmem:[%s1439 + $0xdc] sm:$0xff]
      %v2897 = vld [vmem:[%s1439 + $0xe4] sm:$0xff]
      %v2898 = vld [vmem:[%s1439 + $0xf4] sm:$0xff]
      %v2899 = vld [vmem:[%s1439 + $0xfc] sm:$0xff]
      %v2900 = vld [vmem:[%s1439 + $0x10c] sm:$0xff]
      %v2901 = vld [vmem:[%s1439 + $0x114] sm:$0xff]
      %v2902 = vld [vmem:[%s1439 + $0x124] sm:$0xff]
      %v2903 = vld [vmem:[%s1439 + $0x12c] sm:$0xff]
      %v2904 = vld [vmem:[%s1439 + $0x13c] sm:$0xff]
      %v2905 = vld [vmem:[%s1439 + $0x144] sm:$0xff]
      %v2906 = vld [vmem:[%s1439 + $0x154] sm:$0xff]
      %v2907 = vld [vmem:[%s1439 + $0x15c] sm:$0xff]
      %v2908 = vld [vmem:[%s1439 + $0x16c] sm:$0xff]
      %v2909 = vld [vmem:[%s1439 + $0x174] sm:$0xff]
      %v2910 = vpack.c.bf16 %v2879, %v2878
      %v2911 = vpack.c.bf16 %v2881, %v2880
      %v2912 = vpack.c.bf16 %v2883, %v2882
      %v2913 = vpack.c.bf16 %v2885, %v2884
      %v2914 = vpack.c.bf16 %v2887, %v2886
      %v2915 = vpack.c.bf16 %v2889, %v2888
      %v2916 = vpack.c.bf16 %v2891, %v2890
      %v2917 = vpack.c.bf16 %v2893, %v2892
      %v2918 = vpack.c.bf16 %v2895, %v2894
      %v2919 = vpack.c.bf16 %v2897, %v2896
      %v2920 = vpack.c.bf16 %v2899, %v2898
      %v2921 = vpack.c.bf16 %v2901, %v2900
      %v2922 = vpack.c.bf16 %v2903, %v2902
      %v2923 = vpack.c.bf16 %v2905, %v2904
      %v2924 = vpack.c.bf16 %v2907, %v2906
      %v2925 = vpack.c.bf16 %v2909, %v2908
      %s2926 = scalar_lea.vmem %s5, 20
      %v2927 = vld [vmem:[%s2926] sm:$0xf]
      %v2929 = vsel %vm1378, %v2910, 0
      %v2932 = vsel %vm1378, %v2911, 0
      %v2935 = vsel %vm1378, %v2912, 0
      %v2938 = vsel %vm1378, %v2913, 0
      %v2941 = vsel %vm1378, %v2914, 0
      %v2944 = vsel %vm1378, %v2915, 0
      %v2947 = vsel %vm1378, %v2916, 0
      %v2950 = vsel %vm1378, %v2917, 0
      %v2953 = vsel %vm1378, %v2918, 0
      %v2956 = vsel %vm1378, %v2919, 0
      %v2959 = vsel %vm1378, %v2920, 0
      %v2962 = vsel %vm1378, %v2921, 0
      %v2965 = vsel %vm1378, %v2922, 0
      %v2968 = vsel %vm1378, %v2923, 0
      %v2971 = vsel %vm1378, %v2924, 0
      %v2974 = vsel %vm1378, %v2925, 0
      %v2977 = vsel %vm1619, %v2927, 0
      %2979 = vmatprep.subr.bf16.mxu0 0
      %2980 = vmatpush1.bf16.msra.mxu0 %v2977
      %2981 = vmatprep.subr.bf16.mxu0 0
      %2982 = vmatpush1.bf16.msra.mxu0 0
      %2983 = vmatprep.subr.bf16.mxu0 0
      %2984 = vmatpush1.bf16.msra.mxu0 0
      %2985 = vmatprep.subr.bf16.mxu0 0
      %2986 = vmatpush1.bf16.msra.mxu0 0
      %2987 = vmatprep.subr.bf16.mxu0 0
      %2988 = vmatpush1.bf16.msra.mxu0 0
      %2989 = vmatprep.subr.bf16.mxu0 0
      %2990 = vmatpush1.bf16.msra.mxu0 0
      %2991 = vmatprep.subr.bf16.mxu0 0
      %2992 = vmatpush1.bf16.msra.mxu0 0
      %2993 = vmatprep.subr.bf16.mxu0 0
      %2994 = vmatpush1.bf16.msra.mxu0 0
      %2995 = vmatprep.subr.bf16.mxu0 0
      %2996 = vmatpush1.bf16.msra.mxu0 0
      %2997 = vmatprep.subr.bf16.mxu0 0
      %2998 = vmatpush1.bf16.msra.mxu0 0
      %2999 = vmatprep.subr.bf16.mxu0 0
      %3000 = vmatpush1.bf16.msra.mxu0 0
      %3001 = vmatprep.subr.bf16.mxu0 0
      %3002 = vmatpush1.bf16.msra.mxu0 0
      %3003 = vmatprep.subr.bf16.mxu0 0
      %3004 = vmatpush1.bf16.msra.mxu0 0
      %3005 = vmatprep.subr.bf16.mxu0 0
      %3006 = vmatpush1.bf16.msra.mxu0 0
      %3007 = vmatprep.subr.bf16.mxu0 0
      %3008 = vmatpush1.bf16.msra.mxu0 0
      %3009 = vmatprep.subr.bf16.mxu0 0
      %3010 = vmatpush1.bf16.msra.mxu0 0
      %3011 = vmatprep.mubr.bf16.mxu0 0
      %3012 = vmatmul.mubr.bf16.gmra.mrb[0].mxu0 %v2929
      %v3013 = vpop.f32.mrb[0].mxu0
      %v3014 = vadd.f32 0.0, %v3013
      %v3015 = vpop.f32.mrb[0].mxu0
      %v3016 = vpop.f32.mrb[0].mxu0
      %v3017 = vadd.f32 0.0, %v3016
      %v3018 = vpop.f32.mrb[0].mxu0
      %3019 = vmatprep.mubr.bf16.mxu0 0
      %3020 = vmatmul.mubr.bf16.gmra.mrb[0].mxu0 %v2932
      %v3021 = vpop.f32.mrb[0].mxu0
      %v3022 = vadd.f32 0.0, %v3021
      %v3023 = vpop.f32.mrb[0].mxu0
      %v3024 = vpop.f32.mrb[0].mxu0
      %v3025 = vadd.f32 0.0, %v3024
      %v3026 = vpop.f32.mrb[0].mxu0
      %3027 = vmatprep.mubr.bf16.mxu0 0
      %3028 = vmatmul.mubr.bf16.gmra.mrb[0].mxu0 %v2935
      %v3029 = vpop.f32.mrb[0].mxu0
      %v3030 = vadd.f32 0.0, %v3029
      %v3031 = vpop.f32.mrb[0].mxu0
      %v3032 = vpop.f32.mrb[0].mxu0
      %v3033 = vadd.f32 0.0, %v3032
      %v3034 = vpop.f32.mrb[0].mxu0
      %3035 = vmatprep.mubr.bf16.mxu0 0
      %3036 = vmatmul.mubr.bf16.gmra.mrb[0].mxu0 %v2938
      %v3037 = vpop.f32.mrb[0].mxu0
      %v3038 = vadd.f32 0.0, %v3037
      %v3039 = vpop.f32.mrb[0].mxu0
      %v3040 = vpop.f32.mrb[0].mxu0
      %v3041 = vadd.f32 0.0, %v3040
      %v3042 = vpop.f32.mrb[0].mxu0
      %3043 = vmatprep.mubr.bf16.mxu0 0
      %3044 = vmatmul.mubr.bf16.gmra.mrb[0].mxu0 %v2941
      %v3045 = vpop.f32.mrb[0].mxu0
      %v3046 = vadd.f32 0.0, %v3045
      %v3047 = vpop.f32.mrb[0].mxu0
      %v3048 = vpop.f32.mrb[0].mxu0
      %v3049 = vadd.f32 0.0, %v3048
      %v3050 = vpop.f32.mrb[0].mxu0
      %3051 = vmatprep.mubr.bf16.mxu0 0
      %3052 = vmatmul.mubr.bf16.gmra.mrb[0].mxu0 %v2944
      %v3053 = vpop.f32.mrb[0].mxu0
      %v3054 = vadd.f32 0.0, %v3053
      %v3055 = vpop.f32.mrb[0].mxu0
      %v3056 = vpop.f32.mrb[0].mxu0
      %v3057 = vadd.f32 0.0, %v3056
      %v3058 = vpop.f32.mrb[0].mxu0
      %3059 = vmatprep.mubr.bf16.mxu0 0
      %3060 = vmatmul.mubr.bf16.gmra.mrb[0].mxu0 %v2947
      %v3061 = vpop.f32.mrb[0].mxu0
      %v3062 = vadd.f32 0.0, %v3061
      %v3063 = vpop.f32.mrb[0].mxu0
      %v3064 = vpop.f32.mrb[0].mxu0
      %v3065 = vadd.f32 0.0, %v3064
      %v3066 = vpop.f32.mrb[0].mxu0
      %3067 = vmatprep.mubr.bf16.mxu0 0
      %3068 = vmatmul.mubr.bf16.gmra.mrb[0].mxu0 %v2950
      %v3069 = vpop.f32.mrb[0].mxu0
      %v3070 = vadd.f32 0.0, %v3069
      %v3071 = vpop.f32.mrb[0].mxu0
      %v3072 = vpop.f32.mrb[0].mxu0
      %v3073 = vadd.f32 0.0, %v3072
      %v3074 = vpop.f32.mrb[0].mxu0
      %3075 = vmatprep.mubr.bf16.mxu0 0
      %3076 = vmatmul.mubr.bf16.gmra.mrb[0].mxu0 %v2953
      %v3077 = vpop.f32.mrb[0].mxu0
      %v3078 = vadd.f32 0.0, %v3077
      %v3079 = vpop.f32.mrb[0].mxu0
      %v3080 = vpop.f32.mrb[0].mxu0
      %v3081 = vadd.f32 0.0, %v3080
      %v3082 = vpop.f32.mrb[0].mxu0
      %3083 = vmatprep.mubr.bf16.mxu0 0
      %3084 = vmatmul.mubr.bf16.gmra.mrb[0].mxu0 %v2956
      %v3085 = vpop.f32.mrb[0].mxu0
      %v3086 = vadd.f32 0.0, %v3085
      %v3087 = vpop.f32.mrb[0].mxu0
      %v3088 = vpop.f32.mrb[0].mxu0
      %v3089 = vadd.f32 0.0, %v3088
      %v3090 = vpop.f32.mrb[0].mxu0
      %3091 = vmatprep.mubr.bf16.mxu0 0
      %3092 = vmatmul.mubr.bf16.gmra.mrb[0].mxu0 %v2959
      %v3093 = vpop.f32.mrb[0].mxu0
      %v3094 = vadd.f32 0.0, %v3093
      %v3095 = vpop.f32.mrb[0].mxu0
      %v3096 = vpop.f32.mrb[0].mxu0
      %v3097 = vadd.f32 0.0, %v3096
      %v3098 = vpop.f32.mrb[0].mxu0
      %3099 = vmatprep.mubr.bf16.mxu0 0
      %3100 = vmatmul.mubr.bf16.gmra.mrb[0].mxu0 %v2962
      %v3101 = vpop.f32.mrb[0].mxu0
      %v3102 = vadd.f32 0.0, %v3101
      %v3103 = vpop.f32.mrb[0].mxu0
      %v3104 = vpop.f32.mrb[0].mxu0
      %v3105 = vadd.f32 0.0, %v3104
      %v3106 = vpop.f32.mrb[0].mxu0
      %3107 = vmatprep.mubr.bf16.mxu0 0
      %3108 = vmatmul.mubr.bf16.gmra.mrb[0].mxu0 %v2965
      %v3109 = vpop.f32.mrb[0].mxu0
      %v3110 = vadd.f32 0.0, %v3109
      %v3111 = vpop.f32.mrb[0].mxu0
      %v3112 = vpop.f32.mrb[0].mxu0
      %v3113 = vadd.f32 0.0, %v3112
      %v3114 = vpop.f32.mrb[0].mxu0
      %3115 = vmatprep.mubr.bf16.mxu0 0
      %3116 = vmatmul.mubr.bf16.gmra.mrb[0].mxu0 %v2968
      %v3117 = vpop.f32.mrb[0].mxu0
      %v3118 = vadd.f32 0.0, %v3117
      %v3119 = vpop.f32.mrb[0].mxu0
      %v3120 = vpop.f32.mrb[0].mxu0
      %v3121 = vadd.f32 0.0, %v3120
      %v3122 = vpop.f32.mrb[0].mxu0
      %3123 = vmatprep.mubr.bf16.mxu0 0
      %3124 = vmatmul.mubr.bf16.gmra.mrb[0].mxu0 %v2971
      %v3125 = vpop.f32.mrb[0].mxu0
      %v3126 = vadd.f32 0.0, %v3125
      %v3127 = vpop.f32.mrb[0].mxu0
      %v3128 = vpop.f32.mrb[0].mxu0
      %v3129 = vadd.f32 0.0, %v3128
      %v3130 = vpop.f32.mrb[0].mxu0
      %3131 = vmatprep.mubr.bf16.mxu0 0
      %3132 = vmatmul.mubr.bf16.gmra.mrb[0].mxu0 %v2974
      %v3133 = vpop.f32.mrb[0].mxu0
      %v3134 = vadd.f32 0.0, %v3133
      %v3135 = vpop.f32.mrb[0].mxu0
      %v3136 = vpop.f32.mrb[0].mxu0
      %v3137 = vadd.f32 0.0, %v3136
      %v3138 = vpop.f32.mrb[0].mxu0
      %3139 = vdwg.mxu0
      %v3140 = vadd.f32 %v2846, %v3014
      %v3141 = vadd.f32 %v2847, %v3017
      %v3142 = vadd.f32 %v2848, %v3022
      %v3143 = vadd.f32 %v2849, %v3025
      %v3144 = vadd.f32 %v2850, %v3030
      %v3145 = vadd.f32 %v2851, %v3033
      %v3146 = vadd.f32 %v2852, %v3038
      %v3147 = vadd.f32 %v2853, %v3041
      %v3148 = vadd.f32 %v2854, %v3046
      %v3149 = vadd.f32 %v2855, %v3049
      %v3150 = vadd.f32 %v2856, %v3054
      %v3151 = vadd.f32 %v2857, %v3057
      %v3152 = vadd.f32 %v2858, %v3062
      %v3153 = vadd.f32 %v2859, %v3065
      %v3154 = vadd.f32 %v2860, %v3070
      %v3155 = vadd.f32 %v2861, %v3073
      %v3156 = vadd.f32 %v2862, %v3078
      %v3157 = vadd.f32 %v2863, %v3081
      %v3158 = vadd.f32 %v2864, %v3086
      %v3159 = vadd.f32 %v2865, %v3089
      %v3160 = vadd.f32 %v2866, %v3094
      %v3161 = vadd.f32 %v2867, %v3097
      %v3162 = vadd.f32 %v2868, %v3102
      %v3163 = vadd.f32 %v2869, %v3105
      %v3164 = vadd.f32 %v2870, %v3110
      %v3165 = vadd.f32 %v2871, %v3113
      %v3166 = vadd.f32 %v2872, %v3118
      %v3167 = vadd.f32 %v2873, %v3121
      %v3168 = vadd.f32 %v2874, %v3126
      %v3169 = vadd.f32 %v2875, %v3129
      %v3170 = vadd.f32 %v2876, %v3134
      %v3171 = vadd.f32 %v2877, %v3137
      %s3172 = scalar_lea.vmem [#allocation2], 96
      %v3173 = vld [vmem:[%s3172] sm:$0xff]
      %v3174 = vld [vmem:[%s3172 + $0x8] sm:$0xff]
      %v3175 = vld [vmem:[%s3172 + $0x18] sm:$0xff]
      %v3176 = vld [vmem:[%s3172 + $0x20] sm:$0xff]
      %v3177 = vld [vmem:[%s3172 + $0x30] sm:$0xff]
      %v3178 = vld [vmem:[%s3172 + $0x38] sm:$0xff]
      %v3179 = vld [vmem:[%s3172 + $0x48] sm:$0xff]
      %v3180 = vld [vmem:[%s3172 + $0x50] sm:$0xff]
      %v3181 = vld [vmem:[%s3172 + $0x60] sm:$0xff]
      %v3182 = vld [vmem:[%s3172 + $0x68] sm:$0xff]
      %v3183 = vld [vmem:[%s3172 + $0x78] sm:$0xff]
      %v3184 = vld [vmem:[%s3172 + $0x80] sm:$0xff]
      %v3185 = vld [vmem:[%s3172 + $0x90] sm:$0xff]
      %v3186 = vld [vmem:[%s3172 + $0x98] sm:$0xff]
      %v3187 = vld [vmem:[%s3172 + $0xa8] sm:$0xff]
      %v3188 = vld [vmem:[%s3172 + $0xb0] sm:$0xff]
      %v3189 = vld [vmem:[%s3172 + $0xc0] sm:$0xff]
      %v3190 = vld [vmem:[%s3172 + $0xc8] sm:$0xff]
      %v3191 = vld [vmem:[%s3172 + $0xd8] sm:$0xff]
      %v3192 = vld [vmem:[%s3172 + $0xe0] sm:$0xff]
      %v3193 = vld [vmem:[%s3172 + $0xf0] sm:$0xff]
      %v3194 = vld [vmem:[%s3172 + $0xf8] sm:$0xff]
      %v3195 = vld [vmem:[%s3172 + $0x108] sm:$0xff]
      %v3196 = vld [vmem:[%s3172 + $0x110] sm:$0xff]
      %v3197 = vld [vmem:[%s3172 + $0x120] sm:$0xff]
      %v3198 = vld [vmem:[%s3172 + $0x128] sm:$0xff]
      %v3199 = vld [vmem:[%s3172 + $0x138] sm:$0xff]
      %v3200 = vld [vmem:[%s3172 + $0x140] sm:$0xff]
      %v3201 = vld [vmem:[%s3172 + $0x150] sm:$0xff]
      %v3202 = vld [vmem:[%s3172 + $0x158] sm:$0xff]
      %v3203 = vld [vmem:[%s3172 + $0x168] sm:$0xff]
      %v3204 = vld [vmem:[%s3172 + $0x170] sm:$0xff]
      %v3205 = vpack.c.bf16 %v3174, %v3173
      %v3206 = vpack.c.bf16 %v3176, %v3175
      %v3207 = vpack.c.bf16 %v3178, %v3177
      %v3208 = vpack.c.bf16 %v3180, %v3179
      %v3209 = vpack.c.bf16 %v3182, %v3181
      %v3210 = vpack.c.bf16 %v3184, %v3183
      %v3211 = vpack.c.bf16 %v3186, %v3185
      %v3212 = vpack.c.bf16 %v3188, %v3187
      %v3213 = vpack.c.bf16 %v3190, %v3189
      %v3214 = vpack.c.bf16 %v3192, %v3191
      %v3215 = vpack.c.bf16 %v3194, %v3193
      %v3216 = vpack.c.bf16 %v3196, %v3195
      %v3217 = vpack.c.bf16 %v3198, %v3197
      %v3218 = vpack.c.bf16 %v3200, %v3199
      %v3219 = vpack.c.bf16 %v3202, %v3201
      %v3220 = vpack.c.bf16 %v3204, %v3203
      %s3221 = scalar_lea.vmem %s5, 24
      %v3222 = vld [vmem:[%s3221] sm:$0xf]
      %v3224 = vsel %vm1378, %v3205, 0
      %v3227 = vsel %vm1378, %v3206, 0
      %v3230 = vsel %vm1378, %v3207, 0
      %v3233 = vsel %vm1378, %v3208, 0
      %v3236 = vsel %vm1378, %v3209, 0
      %v3239 = vsel %vm1378, %v3210, 0
      %v3242 = vsel %vm1378, %v3211, 0
      %v3245 = vsel %vm1378, %v3212, 0
      %v3248 = vsel %vm1378, %v3213, 0
      %v3251 = vsel %vm1378, %v3214, 0
      %v3254 = vsel %vm1378, %v3215, 0
      %v3257 = vsel %vm1378, %v3216, 0
      %v3260 = vsel %vm1378, %v3217, 0
      %v3263 = vsel %vm1378, %v3218, 0
      %v3266 = vsel %vm1378, %v3219, 0
      %v3269 = vsel %vm1378, %v3220, 0
      %v3272 = vsel %vm1619, %v3222, 0
      %3274 = vmatprep.subr.bf16.mxu0 0
      %3275 = vmatpush1.bf16.msra.mxu0 %v3272
      %3276 = vmatprep.subr.bf16.mxu0 0
      %3277 = vmatpush1.bf16.msra.mxu0 0
      %3278 = vmatprep.subr.bf16.mxu0 0
      %3279 = vmatpush1.bf16.msra.mxu0 0
      %3280 = vmatprep.subr.bf16.mxu0 0
      %3281 = vmatpush1.bf16.msra.mxu0 0
      %3282 = vmatprep.subr.bf16.mxu0 0
      %3283 = vmatpush1.bf16.msra.mxu0 0
      %3284 = vmatprep.subr.bf16.mxu0 0
      %3285 = vmatpush1.bf16.msra.mxu0 0
      %3286 = vmatprep.subr.bf16.mxu0 0
      %3287 = vmatpush1.bf16.msra.mxu0 0
      %3288 = vmatprep.subr.bf16.mxu0 0
      %3289 = vmatpush1.bf16.msra.mxu0 0
      %3290 = vmatprep.subr.bf16.mxu0 0
      %3291 = vmatpush1.bf16.msra.mxu0 0
      %3292 = vmatprep.subr.bf16.mxu0 0
      %3293 = vmatpush1.bf16.msra.mxu0 0
      %3294 = vmatprep.subr.bf16.mxu0 0
      %3295 = vmatpush1.bf16.msra.mxu0 0
      %3296 = vmatprep.subr.bf16.mxu0 0
      %3297 = vmatpush1.bf16.msra.mxu0 0
      %3298 = vmatprep.subr.bf16.mxu0 0
      %3299 = vmatpush1.bf16.msra.mxu0 0
      %3300 = vmatprep.subr.bf16.mxu0 0
      %3301 = vmatpush1.bf16.msra.mxu0 0
      %3302 = vmatprep.subr.bf16.mxu0 0
      %3303 = vmatpush1.bf16.msra.mxu0 0
      %3304 = vmatprep.subr.bf16.mxu0 0
      %3305 = vmatpush1.bf16.msra.mxu0 0
      %3306 = vmatprep.mubr.bf16.mxu0 0
      %3307 = vmatmul.mubr.bf16.gmra.mrb[0].mxu0 %v3224
      %v3308 = vpop.f32.mrb[0].mxu0
      %v3309 = vadd.f32 0.0, %v3308
      %v3310 = vpop.f32.mrb[0].mxu0
      %v3311 = vpop.f32.mrb[0].mxu0
      %v3312 = vadd.f32 0.0, %v3311
      %v3313 = vpop.f32.mrb[0].mxu0
      %3314 = vmatprep.mubr.bf16.mxu0 0
      %3315 = vmatmul.mubr.bf16.gmra.mrb[0].mxu0 %v3227
      %v3316 = vpop.f32.mrb[0].mxu0
      %v3317 = vadd.f32 0.0, %v3316
      %v3318 = vpop.f32.mrb[0].mxu0
      %v3319 = vpop.f32.mrb[0].mxu0
      %v3320 = vadd.f32 0.0, %v3319
      %v3321 = vpop.f32.mrb[0].mxu0
      %3322 = vmatprep.mubr.bf16.mxu0 0
      %3323 = vmatmul.mubr.bf16.gmra.mrb[0].mxu0 %v3230
      %v3324 = vpop.f32.mrb[0].mxu0
      %v3325 = vadd.f32 0.0, %v3324
      %v3326 = vpop.f32.mrb[0].mxu0
      %v3327 = vpop.f32.mrb[0].mxu0
      %v3328 = vadd.f32 0.0, %v3327
      %v3329 = vpop.f32.mrb[0].mxu0
      %3330 = vmatprep.mubr.bf16.mxu0 0
      %3331 = vmatmul.mubr.bf16.gmra.mrb[0].mxu0 %v3233
      %v3332 = vpop.f32.mrb[0].mxu0
      %v3333 = vadd.f32 0.0, %v3332
      %v3334 = vpop.f32.mrb[0].mxu0
      %v3335 = vpop.f32.mrb[0].mxu0
      %v3336 = vadd.f32 0.0, %v3335
      %v3337 = vpop.f32.mrb[0].mxu0
      %3338 = vmatprep.mubr.bf16.mxu0 0
      %3339 = vmatmul.mubr.bf16.gmra.mrb[0].mxu0 %v3236
      %v3340 = vpop.f32.mrb[0].mxu0
      %v3341 = vadd.f32 0.0, %v3340
      %v3342 = vpop.f32.mrb[0].mxu0
      %v3343 = vpop.f32.mrb[0].mxu0
      %v3344 = vadd.f32 0.0, %v3343
      %v3345 = vpop.f32.mrb[0].mxu0
      %3346 = vmatprep.mubr.bf16.mxu0 0
      %3347 = vmatmul.mubr.bf16.gmra.mrb[0].mxu0 %v3239
      %v3348 = vpop.f32.mrb[0].mxu0
      %v3349 = vadd.f32 0.0, %v3348
      %v3350 = vpop.f32.mrb[0].mxu0
      %v3351 = vpop.f32.mrb[0].mxu0
      %v3352 = vadd.f32 0.0, %v3351
      %v3353 = vpop.f32.mrb[0].mxu0
      %3354 = vmatprep.mubr.bf16.mxu0 0
      %3355 = vmatmul.mubr.bf16.gmra.mrb[0].mxu0 %v3242
      %v3356 = vpop.f32.mrb[0].mxu0
      %v3357 = vadd.f32 0.0, %v3356
      %v3358 = vpop.f32.mrb[0].mxu0
      %v3359 = vpop.f32.mrb[0].mxu0
      %v3360 = vadd.f32 0.0, %v3359
      %v3361 = vpop.f32.mrb[0].mxu0
      %3362 = vmatprep.mubr.bf16.mxu0 0
      %3363 = vmatmul.mubr.bf16.gmra.mrb[0].mxu0 %v3245
      %v3364 = vpop.f32.mrb[0].mxu0
      %v3365 = vadd.f32 0.0, %v3364
      %v3366 = vpop.f32.mrb[0].mxu0
      %v3367 = vpop.f32.mrb[0].mxu0
      %v3368 = vadd.f32 0.0, %v3367
      %v3369 = vpop.f32.mrb[0].mxu0
      %3370 = vmatprep.mubr.bf16.mxu0 0
      %3371 = vmatmul.mubr.bf16.gmra.mrb[0].mxu0 %v3248
      %v3372 = vpop.f32.mrb[0].mxu0
      %v3373 = vadd.f32 0.0, %v3372
      %v3374 = vpop.f32.mrb[0].mxu0
      %v3375 = vpop.f32.mrb[0].mxu0
      %v3376 = vadd.f32 0.0, %v3375
      %v3377 = vpop.f32.mrb[0].mxu0
      %3378 = vmatprep.mubr.bf16.mxu0 0
      %3379 = vmatmul.mubr.bf16.gmra.mrb[0].mxu0 %v3251
      %v3380 = vpop.f32.mrb[0].mxu0
      %v3381 = vadd.f32 0.0, %v3380
      %v3382 = vpop.f32.mrb[0].mxu0
      %v3383 = vpop.f32.mrb[0].mxu0
      %v3384 = vadd.f32 0.0, %v3383
      %v3385 = vpop.f32.mrb[0].mxu0
      %3386 = vmatprep.mubr.bf16.mxu0 0
      %3387 = vmatmul.mubr.bf16.gmra.mrb[0].mxu0 %v3254
      %v3388 = vpop.f32.mrb[0].mxu0
      %v3389 = vadd.f32 0.0, %v3388
      %v3390 = vpop.f32.mrb[0].mxu0
      %v3391 = vpop.f32.mrb[0].mxu0
      %v3392 = vadd.f32 0.0, %v3391
      %v3393 = vpop.f32.mrb[0].mxu0
      %3394 = vmatprep.mubr.bf16.mxu0 0
      %3395 = vmatmul.mubr.bf16.gmra.mrb[0].mxu0 %v3257
      %v3396 = vpop.f32.mrb[0].mxu0
      %v3397 = vadd.f32 0.0, %v3396
      %v3398 = vpop.f32.mrb[0].mxu0
      %v3399 = vpop.f32.mrb[0].mxu0
      %v3400 = vadd.f32 0.0, %v3399
      %v3401 = vpop.f32.mrb[0].mxu0
      %3402 = vmatprep.mubr.bf16.mxu0 0
      %3403 = vmatmul.mubr.bf16.gmra.mrb[0].mxu0 %v3260
      %v3404 = vpop.f32.mrb[0].mxu0
      %v3405 = vadd.f32 0.0, %v3404
      %v3406 = vpop.f32.mrb[0].mxu0
      %v3407 = vpop.f32.mrb[0].mxu0
      %v3408 = vadd.f32 0.0, %v3407
      %v3409 = vpop.f32.mrb[0].mxu0
      %3410 = vmatprep.mubr.bf16.mxu0 0
      %3411 = vmatmul.mubr.bf16.gmra.mrb[0].mxu0 %v3263
      %v3412 = vpop.f32.mrb[0].mxu0
      %v3413 = vadd.f32 0.0, %v3412
      %v3414 = vpop.f32.mrb[0].mxu0
      %v3415 = vpop.f32.mrb[0].mxu0
      %v3416 = vadd.f32 0.0, %v3415
      %v3417 = vpop.f32.mrb[0].mxu0
      %3418 = vmatprep.mubr.bf16.mxu0 0
      %3419 = vmatmul.mubr.bf16.gmra.mrb[0].mxu0 %v3266
      %v3420 = vpop.f32.mrb[0].mxu0
      %v3421 = vadd.f32 0.0, %v3420
      %v3422 = vpop.f32.mrb[0].mxu0
      %v3423 = vpop.f32.mrb[0].mxu0
      %v3424 = vadd.f32 0.0, %v3423
      %v3425 = vpop.f32.mrb[0].mxu0
      %3426 = vmatprep.mubr.bf16.mxu0 0
      %3427 = vmatmul.mubr.bf16.gmra.mrb[0].mxu0 %v3269
      %v3428 = vpop.f32.mrb[0].mxu0
      %v3429 = vadd.f32 0.0, %v3428
      %v3430 = vpop.f32.mrb[0].mxu0
      %v3431 = vpop.f32.mrb[0].mxu0
      %v3432 = vadd.f32 0.0, %v3431
      %v3433 = vpop.f32.mrb[0].mxu0
      %3434 = vdwg.mxu0
      %v3435 = vadd.f32 %v3140, %v3309
      %v3436 = vadd.f32 %v3141, %v3312
      %v3437 = vadd.f32 %v3142, %v3317
      %v3438 = vadd.f32 %v3143, %v3320
      %v3439 = vadd.f32 %v3144, %v3325
      %v3440 = vadd.f32 %v3145, %v3328
      %v3441 = vadd.f32 %v3146, %v3333
      %v3442 = vadd.f32 %v3147, %v3336
      %v3443 = vadd.f32 %v3148, %v3341
      %v3444 = vadd.f32 %v3149, %v3344
      %v3445 = vadd.f32 %v3150, %v3349
      %v3446 = vadd.f32 %v3151, %v3352
      %v3447 = vadd.f32 %v3152, %v3357
      %v3448 = vadd.f32 %v3153, %v3360
      %v3449 = vadd.f32 %v3154, %v3365
      %v3450 = vadd.f32 %v3155, %v3368
      %v3451 = vadd.f32 %v3156, %v3373
      %v3452 = vadd.f32 %v3157, %v3376
      %v3453 = vadd.f32 %v3158, %v3381
      %v3454 = vadd.f32 %v3159, %v3384
      %v3455 = vadd.f32 %v3160, %v3389
      %v3456 = vadd.f32 %v3161, %v3392
      %v3457 = vadd.f32 %v3162, %v3397
      %v3458 = vadd.f32 %v3163, %v3400
      %v3459 = vadd.f32 %v3164, %v3405
      %v3460 = vadd.f32 %v3165, %v3408
      %v3461 = vadd.f32 %v3166, %v3413
      %v3462 = vadd.f32 %v3167, %v3416
      %v3463 = vadd.f32 %v3168, %v3421
      %v3464 = vadd.f32 %v3169, %v3424
      %v3465 = vadd.f32 %v3170, %v3429
      %v3466 = vadd.f32 %v3171, %v3432
      %v3467 = vld [vmem:[%s3172 + $0x2] sm:$0xff]
      %v3468 = vld [vmem:[%s3172 + $0xa] sm:$0xff]
      %v3469 = vld [vmem:[%s3172 + $0x1a] sm:$0xff]
      %v3470 = vld [vmem:[%s3172 + $0x22] sm:$0xff]
      %v3471 = vld [vmem:[%s3172 + $0x32] sm:$0xff]
      %v3472 = vld [vmem:[%s3172 + $0x3a] sm:$0xff]
      %v3473 = vld [vmem:[%s3172 + $0x4a] sm:$0xff]
      %v3474 = vld [vmem:[%s3172 + $0x52] sm:$0xff]
      %v3475 = vld [vmem:[%s3172 + $0x62] sm:$0xff]
      %v3476 = vld [vmem:[%s3172 + $0x6a] sm:$0xff]
      %v3477 = vld [vmem:[%s3172 + $0x7a] sm:$0xff]
      %v3478 = vld [vmem:[%s3172 + $0x82] sm:$0xff]
      %v3479 = vld [vmem:[%s3172 + $0x92] sm:$0xff]
      %v3480 = vld [vmem:[%s3172 + $0x9a] sm:$0xff]
      %v3481 = vld [vmem:[%s3172 + $0xaa] sm:$0xff]
      %v3482 = vld [vmem:[%s3172 + $0xb2] sm:$0xff]
      %v3483 = vld [vmem:[%s3172 + $0xc2] sm:$0xff]
      %v3484 = vld [vmem:[%s3172 + $0xca] sm:$0xff]
      %v3485 = vld [vmem:[%s3172 + $0xda] sm:$0xff]
      %v3486 = vld [vmem:[%s3172 + $0xe2] sm:$0xff]
      %v3487 = vld [vmem:[%s3172 + $0xf2] sm:$0xff]
      %v3488 = vld [vmem:[%s3172 + $0xfa] sm:$0xff]
      %v3489 = vld [vmem:[%s3172 + $0x10a] sm:$0xff]
      %v3490 = vld [vmem:[%s3172 + $0x112] sm:$0xff]
      %v3491 = vld [vmem:[%s3172 + $0x122] sm:$0xff]
      %v3492 = vld [vmem:[%s3172 + $0x12a] sm:$0xff]
      %v3493 = vld [vmem:[%s3172 + $0x13a] sm:$0xff]
      %v3494 = vld [vmem:[%s3172 + $0x142] sm:$0xff]
      %v3495 = vld [vmem:[%s3172 + $0x152] sm:$0xff]
      %v3496 = vld [vmem:[%s3172 + $0x15a] sm:$0xff]
      %v3497 = vld [vmem:[%s3172 + $0x16a] sm:$0xff]
      %v3498 = vld [vmem:[%s3172 + $0x172] sm:$0xff]
      %v3499 = vpack.c.bf16 %v3468, %v3467
      %v3500 = vpack.c.bf16 %v3470, %v3469
      %v3501 = vpack.c.bf16 %v3472, %v3471
      %v3502 = vpack.c.bf16 %v3474, %v3473
      %v3503 = vpack.c.bf16 %v3476, %v3475
      %v3504 = vpack.c.bf16 %v3478, %v3477
      %v3505 = vpack.c.bf16 %v3480, %v3479
      %v3506 = vpack.c.bf16 %v3482, %v3481
      %v3507 = vpack.c.bf16 %v3484, %v3483
      %v3508 = vpack.c.bf16 %v3486, %v3485
      %v3509 = vpack.c.bf16 %v3488, %v3487
      %v3510 = vpack.c.bf16 %v3490, %v3489
      %v3511 = vpack.c.bf16 %v3492, %v3491
      %v3512 = vpack.c.bf16 %v3494, %v3493
      %v3513 = vpack.c.bf16 %v3496, %v3495
      %v3514 = vpack.c.bf16 %v3498, %v3497
      %s3515 = scalar_lea.vmem %s5, 28
      %v3516 = vld [vmem:[%s3515] sm:$0xf]
      %v3518 = vsel %vm1378, %v3499, 0
      %v3521 = vsel %vm1378, %v3500, 0
      %v3524 = vsel %vm1378, %v3501, 0
      %v3527 = vsel %vm1378, %v3502, 0
      %v3530 = vsel %vm1378, %v3503, 0
      %v3533 = vsel %vm1378, %v3504, 0
      %v3536 = vsel %vm1378, %v3505, 0
      %v3539 = vsel %vm1378, %v3506, 0
      %v3542 = vsel %vm1378, %v3507, 0
      %v3545 = vsel %vm1378, %v3508, 0
      %v3548 = vsel %vm1378, %v3509, 0
      %v3551 = vsel %vm1378, %v3510, 0
      %v3554 = vsel %vm1378, %v3511, 0
      %v3557 = vsel %vm1378, %v3512, 0
      %v3560 = vsel %vm1378, %v3513, 0
      %v3563 = vsel %vm1378, %v3514, 0
      %v3566 = vsel %vm1619, %v3516, 0
      %3568 = vmatprep.subr.bf16.mxu0 0
      %3569 = vmatpush1.bf16.msra.mxu0 %v3566
      %3570 = vmatprep.subr.bf16.mxu0 0
      %3571 = vmatpush1.bf16.msra.mxu0 0
      %3572 = vmatprep.subr.bf16.mxu0 0
      %3573 = vmatpush1.bf16.msra.mxu0 0
      %3574 = vmatprep.subr.bf16.mxu0 0
      %3575 = vmatpush1.bf16.msra.mxu0 0
      %3576 = vmatprep.subr.bf16.mxu0 0
      %3577 = vmatpush1.bf16.msra.mxu0 0
      %3578 = vmatprep.subr.bf16.mxu0 0
      %3579 = vmatpush1.bf16.msra.mxu0 0
      %3580 = vmatprep.subr.bf16.mxu0 0
      %3581 = vmatpush1.bf16.msra.mxu0 0
      %3582 = vmatprep.subr.bf16.mxu0 0
      %3583 = vmatpush1.bf16.msra.mxu0 0
      %3584 = vmatprep.subr.bf16.mxu0 0
      %3585 = vmatpush1.bf16.msra.mxu0 0
      %3586 = vmatprep.subr.bf16.mxu0 0
      %3587 = vmatpush1.bf16.msra.mxu0 0
      %3588 = vmatprep.subr.bf16.mxu0 0
      %3589 = vmatpush1.bf16.msra.mxu0 0
      %3590 = vmatprep.subr.bf16.mxu0 0
      %3591 = vmatpush1.bf16.msra.mxu0 0
      %3592 = vmatprep.subr.bf16.mxu0 0
      %3593 = vmatpush1.bf16.msra.mxu0 0
      %3594 = vmatprep.subr.bf16.mxu0 0
      %3595 = vmatpush1.bf16.msra.mxu0 0
      %3596 = vmatprep.subr.bf16.mxu0 0
      %3597 = vmatpush1.bf16.msra.mxu0 0
      %3598 = vmatprep.subr.bf16.mxu0 0
      %3599 = vmatpush1.bf16.msra.mxu0 0
      %3600 = vmatprep.mubr.bf16.mxu0 0
      %3601 = vmatmul.mubr.bf16.gmra.mrb[0].mxu0 %v3518
      %v3602 = vpop.f32.mrb[0].mxu0
      %v3603 = vadd.f32 0.0, %v3602
      %v3604 = vpop.f32.mrb[0].mxu0
      %v3605 = vpop.f32.mrb[0].mxu0
      %v3606 = vadd.f32 0.0, %v3605
      %v3607 = vpop.f32.mrb[0].mxu0
      %3608 = vmatprep.mubr.bf16.mxu0 0
      %3609 = vmatmul.mubr.bf16.gmra.mrb[0].mxu0 %v3521
      %v3610 = vpop.f32.mrb[0].mxu0
      %v3611 = vadd.f32 0.0, %v3610
      %v3612 = vpop.f32.mrb[0].mxu0
      %v3613 = vpop.f32.mrb[0].mxu0
      %v3614 = vadd.f32 0.0, %v3613
      %v3615 = vpop.f32.mrb[0].mxu0
      %3616 = vmatprep.mubr.bf16.mxu0 0
      %3617 = vmatmul.mubr.bf16.gmra.mrb[0].mxu0 %v3524
      %v3618 = vpop.f32.mrb[0].mxu0
      %v3619 = vadd.f32 0.0, %v3618
      %v3620 = vpop.f32.mrb[0].mxu0
      %v3621 = vpop.f32.mrb[0].mxu0
      %v3622 = vadd.f32 0.0, %v3621
      %v3623 = vpop.f32.mrb[0].mxu0
      %3624 = vmatprep.mubr.bf16.mxu0 0
      %3625 = vmatmul.mubr.bf16.gmra.mrb[0].mxu0 %v3527
      %v3626 = vpop.f32.mrb[0].mxu0
      %v3627 = vadd.f32 0.0, %v3626
      %v3628 = vpop.f32.mrb[0].mxu0
      %v3629 = vpop.f32.mrb[0].mxu0
      %v3630 = vadd.f32 0.0, %v3629
      %v3631 = vpop.f32.mrb[0].mxu0
      %3632 = vmatprep.mubr.bf16.mxu0 0
      %3633 = vmatmul.mubr.bf16.gmra.mrb[0].mxu0 %v3530
      %v3634 = vpop.f32.mrb[0].mxu0
      %v3635 = vadd.f32 0.0, %v3634
      %v3636 = vpop.f32.mrb[0].mxu0
      %v3637 = vpop.f32.mrb[0].mxu0
      %v3638 = vadd.f32 0.0, %v3637
      %v3639 = vpop.f32.mrb[0].mxu0
      %3640 = vmatprep.mubr.bf16.mxu0 0
      %3641 = vmatmul.mubr.bf16.gmra.mrb[0].mxu0 %v3533
      %v3642 = vpop.f32.mrb[0].mxu0
      %v3643 = vadd.f32 0.0, %v3642
      %v3644 = vpop.f32.mrb[0].mxu0
      %v3645 = vpop.f32.mrb[0].mxu0
      %v3646 = vadd.f32 0.0, %v3645
      %v3647 = vpop.f32.mrb[0].mxu0
      %3648 = vmatprep.mubr.bf16.mxu0 0
      %3649 = vmatmul.mubr.bf16.gmra.mrb[0].mxu0 %v3536
      %v3650 = vpop.f32.mrb[0].mxu0
      %v3651 = vadd.f32 0.0, %v3650
      %v3652 = vpop.f32.mrb[0].mxu0
      %v3653 = vpop.f32.mrb[0].mxu0
      %v3654 = vadd.f32 0.0, %v3653
      %v3655 = vpop.f32.mrb[0].mxu0
      %3656 = vmatprep.mubr.bf16.mxu0 0
      %3657 = vmatmul.mubr.bf16.gmra.mrb[0].mxu0 %v3539
      %v3658 = vpop.f32.mrb[0].mxu0
      %v3659 = vadd.f32 0.0, %v3658
      %v3660 = vpop.f32.mrb[0].mxu0
      %v3661 = vpop.f32.mrb[0].mxu0
      %v3662 = vadd.f32 0.0, %v3661
      %v3663 = vpop.f32.mrb[0].mxu0
      %3664 = vmatprep.mubr.bf16.mxu0 0
      %3665 = vmatmul.mubr.bf16.gmra.mrb[0].mxu0 %v3542
      %v3666 = vpop.f32.mrb[0].mxu0
      %v3667 = vadd.f32 0.0, %v3666
      %v3668 = vpop.f32.mrb[0].mxu0
      %v3669 = vpop.f32.mrb[0].mxu0
      %v3670 = vadd.f32 0.0, %v3669
      %v3671 = vpop.f32.mrb[0].mxu0
      %3672 = vmatprep.mubr.bf16.mxu0 0
      %3673 = vmatmul.mubr.bf16.gmra.mrb[0].mxu0 %v3545
      %v3674 = vpop.f32.mrb[0].mxu0
      %v3675 = vadd.f32 0.0, %v3674
      %v3676 = vpop.f32.mrb[0].mxu0
      %v3677 = vpop.f32.mrb[0].mxu0
      %v3678 = vadd.f32 0.0, %v3677
      %v3679 = vpop.f32.mrb[0].mxu0
      %3680 = vmatprep.mubr.bf16.mxu0 0
      %3681 = vmatmul.mubr.bf16.gmra.mrb[0].mxu0 %v3548
      %v3682 = vpop.f32.mrb[0].mxu0
      %v3683 = vadd.f32 0.0, %v3682
      %v3684 = vpop.f32.mrb[0].mxu0
      %v3685 = vpop.f32.mrb[0].mxu0
      %v3686 = vadd.f32 0.0, %v3685
      %v3687 = vpop.f32.mrb[0].mxu0
      %3688 = vmatprep.mubr.bf16.mxu0 0
      %3689 = vmatmul.mubr.bf16.gmra.mrb[0].mxu0 %v3551
      %v3690 = vpop.f32.mrb[0].mxu0
      %v3691 = vadd.f32 0.0, %v3690
      %v3692 = vpop.f32.mrb[0].mxu0
      %v3693 = vpop.f32.mrb[0].mxu0
      %v3694 = vadd.f32 0.0, %v3693
      %v3695 = vpop.f32.mrb[0].mxu0
      %3696 = vmatprep.mubr.bf16.mxu0 0
      %3697 = vmatmul.mubr.bf16.gmra.mrb[0].mxu0 %v3554
      %v3698 = vpop.f32.mrb[0].mxu0
      %v3699 = vadd.f32 0.0, %v3698
      %v3700 = vpop.f32.mrb[0].mxu0
      %v3701 = vpop.f32.mrb[0].mxu0
      %v3702 = vadd.f32 0.0, %v3701
      %v3703 = vpop.f32.mrb[0].mxu0
      %3704 = vmatprep.mubr.bf16.mxu0 0
      %3705 = vmatmul.mubr.bf16.gmra.mrb[0].mxu0 %v3557
      %v3706 = vpop.f32.mrb[0].mxu0
      %v3707 = vadd.f32 0.0, %v3706
      %v3708 = vpop.f32.mrb[0].mxu0
      %v3709 = vpop.f32.mrb[0].mxu0
      %v3710 = vadd.f32 0.0, %v3709
      %v3711 = vpop.f32.mrb[0].mxu0
      %3712 = vmatprep.mubr.bf16.mxu0 0
      %3713 = vmatmul.mubr.bf16.gmra.mrb[0].mxu0 %v3560
      %v3714 = vpop.f32.mrb[0].mxu0
      %v3715 = vadd.f32 0.0, %v3714
      %v3716 = vpop.f32.mrb[0].mxu0
      %v3717 = vpop.f32.mrb[0].mxu0
      %v3718 = vadd.f32 0.0, %v3717
      %v3719 = vpop.f32.mrb[0].mxu0
      %3720 = vmatprep.mubr.bf16.mxu0 0
      %3721 = vmatmul.mubr.bf16.gmra.mrb[0].mxu0 %v3563
      %v3722 = vpop.f32.mrb[0].mxu0
      %v3723 = vadd.f32 0.0, %v3722
      %v3724 = vpop.f32.mrb[0].mxu0
      %v3725 = vpop.f32.mrb[0].mxu0
      %v3726 = vadd.f32 0.0, %v3725
      %v3727 = vpop.f32.mrb[0].mxu0
      %3728 = vdwg.mxu0
      %v3729 = vadd.f32 %v3435, %v3603
      %v3730 = vadd.f32 %v3436, %v3606
      %v3731 = vadd.f32 %v3437, %v3611
      %v3732 = vadd.f32 %v3438, %v3614
      %v3733 = vadd.f32 %v3439, %v3619
      %v3734 = vadd.f32 %v3440, %v3622
      %v3735 = vadd.f32 %v3441, %v3627
      %v3736 = vadd.f32 %v3442, %v3630
      %v3737 = vadd.f32 %v3443, %v3635
      %v3738 = vadd.f32 %v3444, %v3638
      %v3739 = vadd.f32 %v3445, %v3643
      %v3740 = vadd.f32 %v3446, %v3646
      %v3741 = vadd.f32 %v3447, %v3651
      %v3742 = vadd.f32 %v3448, %v3654
      %v3743 = vadd.f32 %v3449, %v3659
      %v3744 = vadd.f32 %v3450, %v3662
      %v3745 = vadd.f32 %v3451, %v3667
      %v3746 = vadd.f32 %v3452, %v3670
      %v3747 = vadd.f32 %v3453, %v3675
      %v3748 = vadd.f32 %v3454, %v3678
      %v3749 = vadd.f32 %v3455, %v3683
      %v3750 = vadd.f32 %v3456, %v3686
      %v3751 = vadd.f32 %v3457, %v3691
      %v3752 = vadd.f32 %v3458, %v3694
      %v3753 = vadd.f32 %v3459, %v3699
      %v3754 = vadd.f32 %v3460, %v3702
      %v3755 = vadd.f32 %v3461, %v3707
      %v3756 = vadd.f32 %v3462, %v3710
      %v3757 = vadd.f32 %v3463, %v3715
      %v3758 = vadd.f32 %v3464, %v3718
      %v3759 = vadd.f32 %v3465, %v3723
      %v3760 = vadd.f32 %v3466, %v3726
      %v3761 = vld [vmem:[%s3172 + $0x4] sm:$0xff]
      %v3762 = vld [vmem:[%s3172 + $0xc] sm:$0xff]
      %v3763 = vld [vmem:[%s3172 + $0x1c] sm:$0xff]
      %v3764 = vld [vmem:[%s3172 + $0x24] sm:$0xff]
      %v3765 = vld [vmem:[%s3172 + $0x34] sm:$0xff]
      %v3766 = vld [vmem:[%s3172 + $0x3c] sm:$0xff]
      %v3767 = vld [vmem:[%s3172 + $0x4c] sm:$0xff]
      %v3768 = vld [vmem:[%s3172 + $0x54] sm:$0xff]
      %v3769 = vld [vmem:[%s3172 + $0x64] sm:$0xff]
      %v3770 = vld [vmem:[%s3172 + $0x6c] sm:$0xff]
      %v3771 = vld [vmem:[%s3172 + $0x7c] sm:$0xff]
      %v3772 = vld [vmem:[%s3172 + $0x84] sm:$0xff]
      %v3773 = vld [vmem:[%s3172 + $0x94] sm:$0xff]
      %v3774 = vld [vmem:[%s3172 + $0x9c] sm:$0xff]
      %v3775 = vld [vmem:[%s3172 + $0xac] sm:$0xff]
      %v3776 = vld [vmem:[%s3172 + $0xb4] sm:$0xff]
      %v3777 = vld [vmem:[%s3172 + $0xc4] sm:$0xff]
      %v3778 = vld [vmem:[%s3172 + $0xcc] sm:$0xff]
      %v3779 = vld [vmem:[%s3172 + $0xdc] sm:$0xff]
      %v3780 = vld [vmem:[%s3172 + $0xe4] sm:$0xff]
      %v3781 = vld [vmem:[%s3172 + $0xf4] sm:$0xff]
      %v3782 = vld [vmem:[%s3172 + $0xfc] sm:$0xff]
      %v3783 = vld [vmem:[%s3172 + $0x10c] sm:$0xff]
      %v3784 = vld [vmem:[%s3172 + $0x114] sm:$0xff]
      %v3785 = vld [vmem:[%s3172 + $0x124] sm:$0xff]
      %v3786 = vld [vmem:[%s3172 + $0x12c] sm:$0xff]
      %v3787 = vld [vmem:[%s3172 + $0x13c] sm:$0xff]
      %v3788 = vld [vmem:[%s3172 + $0x144] sm:$0xff]
      %v3789 = vld [vmem:[%s3172 + $0x154] sm:$0xff]
      %v3790 = vld [vmem:[%s3172 + $0x15c] sm:$0xff]
      %v3791 = vld [vmem:[%s3172 + $0x16c] sm:$0xff]
      %v3792 = vld [vmem:[%s3172 + $0x174] sm:$0xff]
      %v3793 = vpack.c.bf16 %v3762, %v3761
      %v3794 = vpack.c.bf16 %v3764, %v3763
      %v3795 = vpack.c.bf16 %v3766, %v3765
      %v3796 = vpack.c.bf16 %v3768, %v3767
      %v3797 = vpack.c.bf16 %v3770, %v3769
      %v3798 = vpack.c.bf16 %v3772, %v3771
      %v3799 = vpack.c.bf16 %v3774, %v3773
      %v3800 = vpack.c.bf16 %v3776, %v3775
      %v3801 = vpack.c.bf16 %v3778, %v3777
      %v3802 = vpack.c.bf16 %v3780, %v3779
      %v3803 = vpack.c.bf16 %v3782, %v3781
      %v3804 = vpack.c.bf16 %v3784, %v3783
      %v3805 = vpack.c.bf16 %v3786, %v3785
      %v3806 = vpack.c.bf16 %v3788, %v3787
      %v3807 = vpack.c.bf16 %v3790, %v3789
      %v3808 = vpack.c.bf16 %v3792, %v3791
      %s3809 = scalar_lea.vmem %s5, 32
      %v3810 = vld [vmem:[%s3809] sm:$0xf]
      %v3812 = vsel %vm1378, %v3793, 0
      %v3815 = vsel %vm1378, %v3794, 0
      %v3818 = vsel %vm1378, %v3795, 0
      %v3821 = vsel %vm1378, %v3796, 0
      %v3824 = vsel %vm1378, %v3797, 0
      %v3827 = vsel %vm1378, %v3798, 0
      %v3830 = vsel %vm1378, %v3799, 0
      %v3833 = vsel %vm1378, %v3800, 0
      %v3836 = vsel %vm1378, %v3801, 0
      %v3839 = vsel %vm1378, %v3802, 0
      %v3842 = vsel %vm1378, %v3803, 0
      %v3845 = vsel %vm1378, %v3804, 0
      %v3848 = vsel %vm1378, %v3805, 0
      %v3851 = vsel %vm1378, %v3806, 0
      %v3854 = vsel %vm1378, %v3807, 0
      %v3857 = vsel %vm1378, %v3808, 0
      %v3860 = vsel %vm1619, %v3810, 0
      %3862 = vmatprep.subr.bf16.mxu0 0
      %3863 = vmatpush1.bf16.msra.mxu0 %v3860
      %3864 = vmatprep.subr.bf16.mxu0 0
      %3865 = vmatpush1.bf16.msra.mxu0 0
      %3866 = vmatprep.subr.bf16.mxu0 0
      %3867 = vmatpush1.bf16.msra.mxu0 0
      %3868 = vmatprep.subr.bf16.mxu0 0
      %3869 = vmatpush1.bf16.msra.mxu0 0
      %3870 = vmatprep.subr.bf16.mxu0 0
      %3871 = vmatpush1.bf16.msra.mxu0 0
      %3872 = vmatprep.subr.bf16.mxu0 0
      %3873 = vmatpush1.bf16.msra.mxu0 0
      %3874 = vmatprep.subr.bf16.mxu0 0
      %3875 = vmatpush1.bf16.msra.mxu0 0
      %3876 = vmatprep.subr.bf16.mxu0 0
      %3877 = vmatpush1.bf16.msra.mxu0 0
      %3878 = vmatprep.subr.bf16.mxu0 0
      %3879 = vmatpush1.bf16.msra.mxu0 0
      %3880 = vmatprep.subr.bf16.mxu0 0
      %3881 = vmatpush1.bf16.msra.mxu0 0
      %3882 = vmatprep.subr.bf16.mxu0 0
      %3883 = vmatpush1.bf16.msra.mxu0 0
      %3884 = vmatprep.subr.bf16.mxu0 0
      %3885 = vmatpush1.bf16.msra.mxu0 0
      %3886 = vmatprep.subr.bf16.mxu0 0
      %3887 = vmatpush1.bf16.msra.mxu0 0
      %3888 = vmatprep.subr.bf16.mxu0 0
      %3889 = vmatpush1.bf16.msra.mxu0 0
      %3890 = vmatprep.subr.bf16.mxu0 0
      %3891 = vmatpush1.bf16.msra.mxu0 0
      %3892 = vmatprep.subr.bf16.mxu0 0
      %3893 = vmatpush1.bf16.msra.mxu0 0
      %3894 = vmatprep.mubr.bf16.mxu0 0
      %3895 = vmatmul.mubr.bf16.gmra.mrb[0].mxu0 %v3812
      %v3896 = vpop.f32.mrb[0].mxu0
      %v3897 = vadd.f32 0.0, %v3896
      %v3898 = vpop.f32.mrb[0].mxu0
      %v3899 = vpop.f32.mrb[0].mxu0
      %v3900 = vadd.f32 0.0, %v3899
      %v3901 = vpop.f32.mrb[0].mxu0
      %3902 = vmatprep.mubr.bf16.mxu0 0
      %3903 = vmatmul.mubr.bf16.gmra.mrb[0].mxu0 %v3815
      %v3904 = vpop.f32.mrb[0].mxu0
      %v3905 = vadd.f32 0.0, %v3904
      %v3906 = vpop.f32.mrb[0].mxu0
      %v3907 = vpop.f32.mrb[0].mxu0
      %v3908 = vadd.f32 0.0, %v3907
      %v3909 = vpop.f32.mrb[0].mxu0
      %3910 = vmatprep.mubr.bf16.mxu0 0
      %3911 = vmatmul.mubr.bf16.gmra.mrb[0].mxu0 %v3818
      %v3912 = vpop.f32.mrb[0].mxu0
      %v3913 = vadd.f32 0.0, %v3912
      %v3914 = vpop.f32.mrb[0].mxu0
      %v3915 = vpop.f32.mrb[0].mxu0
      %v3916 = vadd.f32 0.0, %v3915
      %v3917 = vpop.f32.mrb[0].mxu0
      %3918 = vmatprep.mubr.bf16.mxu0 0
      %3919 = vmatmul.mubr.bf16.gmra.mrb[0].mxu0 %v3821
      %v3920 = vpop.f32.mrb[0].mxu0
      %v3921 = vadd.f32 0.0, %v3920
      %v3922 = vpop.f32.mrb[0].mxu0
      %v3923 = vpop.f32.mrb[0].mxu0
      %v3924 = vadd.f32 0.0, %v3923
      %v3925 = vpop.f32.mrb[0].mxu0
      %3926 = vmatprep.mubr.bf16.mxu0 0
      %3927 = vmatmul.mubr.bf16.gmra.mrb[0].mxu0 %v3824
      %v3928 = vpop.f32.mrb[0].mxu0
      %v3929 = vadd.f32 0.0, %v3928
      %v3930 = vpop.f32.mrb[0].mxu0
      %v3931 = vpop.f32.mrb[0].mxu0
      %v3932 = vadd.f32 0.0, %v3931
      %v3933 = vpop.f32.mrb[0].mxu0
      %3934 = vmatprep.mubr.bf16.mxu0 0
      %3935 = vmatmul.mubr.bf16.gmra.mrb[0].mxu0 %v3827
      %v3936 = vpop.f32.mrb[0].mxu0
      %v3937 = vadd.f32 0.0, %v3936
      %v3938 = vpop.f32.mrb[0].mxu0
      %v3939 = vpop.f32.mrb[0].mxu0
      %v3940 = vadd.f32 0.0, %v3939
      %v3941 = vpop.f32.mrb[0].mxu0
      %3942 = vmatprep.mubr.bf16.mxu0 0
      %3943 = vmatmul.mubr.bf16.gmra.mrb[0].mxu0 %v3830
      %v3944 = vpop.f32.mrb[0].mxu0
      %v3945 = vadd.f32 0.0, %v3944
      %v3946 = vpop.f32.mrb[0].mxu0
      %v3947 = vpop.f32.mrb[0].mxu0
      %v3948 = vadd.f32 0.0, %v3947
      %v3949 = vpop.f32.mrb[0].mxu0
      %3950 = vmatprep.mubr.bf16.mxu0 0
      %3951 = vmatmul.mubr.bf16.gmra.mrb[0].mxu0 %v3833
      %v3952 = vpop.f32.mrb[0].mxu0
      %v3953 = vadd.f32 0.0, %v3952
      %v3954 = vpop.f32.mrb[0].mxu0
      %v3955 = vpop.f32.mrb[0].mxu0
      %v3956 = vadd.f32 0.0, %v3955
      %v3957 = vpop.f32.mrb[0].mxu0
      %3958 = vmatprep.mubr.bf16.mxu0 0
      %3959 = vmatmul.mubr.bf16.gmra.mrb[0].mxu0 %v3836
      %v3960 = vpop.f32.mrb[0].mxu0
      %v3961 = vadd.f32 0.0, %v3960
      %v3962 = vpop.f32.mrb[0].mxu0
      %v3963 = vpop.f32.mrb[0].mxu0
      %v3964 = vadd.f32 0.0, %v3963
      %v3965 = vpop.f32.mrb[0].mxu0
      %3966 = vmatprep.mubr.bf16.mxu0 0
      %3967 = vmatmul.mubr.bf16.gmra.mrb[0].mxu0 %v3839
      %v3968 = vpop.f32.mrb[0].mxu0
      %v3969 = vadd.f32 0.0, %v3968
      %v3970 = vpop.f32.mrb[0].mxu0
      %v3971 = vpop.f32.mrb[0].mxu0
      %v3972 = vadd.f32 0.0, %v3971
      %v3973 = vpop.f32.mrb[0].mxu0
      %3974 = vmatprep.mubr.bf16.mxu0 0
      %3975 = vmatmul.mubr.bf16.gmra.mrb[0].mxu0 %v3842
      %v3976 = vpop.f32.mrb[0].mxu0
      %v3977 = vadd.f32 0.0, %v3976
      %v3978 = vpop.f32.mrb[0].mxu0
      %v3979 = vpop.f32.mrb[0].mxu0
      %v3980 = vadd.f32 0.0, %v3979
      %v3981 = vpop.f32.mrb[0].mxu0
      %3982 = vmatprep.mubr.bf16.mxu0 0
      %3983 = vmatmul.mubr.bf16.gmra.mrb[0].mxu0 %v3845
      %v3984 = vpop.f32.mrb[0].mxu0
      %v3985 = vadd.f32 0.0, %v3984
      %v3986 = vpop.f32.mrb[0].mxu0
      %v3987 = vpop.f32.mrb[0].mxu0
      %v3988 = vadd.f32 0.0, %v3987
      %v3989 = vpop.f32.mrb[0].mxu0
      %3990 = vmatprep.mubr.bf16.mxu0 0
      %3991 = vmatmul.mubr.bf16.gmra.mrb[0].mxu0 %v3848
      %v3992 = vpop.f32.mrb[0].mxu0
      %v3993 = vadd.f32 0.0, %v3992
      %v3994 = vpop.f32.mrb[0].mxu0
      %v3995 = vpop.f32.mrb[0].mxu0
      %v3996 = vadd.f32 0.0, %v3995
      %v3997 = vpop.f32.mrb[0].mxu0
      %3998 = vmatprep.mubr.bf16.mxu0 0
      %3999 = vmatmul.mubr.bf16.gmra.mrb[0].mxu0 %v3851
      %v4000 = vpop.f32.mrb[0].mxu0
      %v4001 = vadd.f32 0.0, %v4000
      %v4002 = vpop.f32.mrb[0].mxu0
      %v4003 = vpop.f32.mrb[0].mxu0
      %v4004 = vadd.f32 0.0, %v4003
      %v4005 = vpop.f32.mrb[0].mxu0
      %4006 = vmatprep.mubr.bf16.mxu0 0
      %4007 = vmatmul.mubr.bf16.gmra.mrb[0].mxu0 %v3854
      %v4008 = vpop.f32.mrb[0].mxu0
      %v4009 = vadd.f32 0.0, %v4008
      %v4010 = vpop.f32.mrb[0].mxu0
      %v4011 = vpop.f32.mrb[0].mxu0
      %v4012 = vadd.f32 0.0, %v4011
      %v4013 = vpop.f32.mrb[0].mxu0
      %4014 = vmatprep.mubr.bf16.mxu0 0
      %4015 = vmatmul.mubr.bf16.gmra.mrb[0].mxu0 %v3857
      %v4016 = vpop.f32.mrb[0].mxu0
      %v4017 = vadd.f32 0.0, %v4016
      %v4018 = vpop.f32.mrb[0].mxu0
      %v4019 = vpop.f32.mrb[0].mxu0
      %v4020 = vadd.f32 0.0, %v4019
      %v4021 = vpop.f32.mrb[0].mxu0
      %4022 = vdwg.mxu0
      %v4023 = vadd.f32 %v3729, %v3897
      %v4024 = vadd.f32 %v3730, %v3900
      %v4025 = vadd.f32 %v3731, %v3905
      %v4026 = vadd.f32 %v3732, %v3908
      %v4027 = vadd.f32 %v3733, %v3913
      %v4028 = vadd.f32 %v3734, %v3916
      %v4029 = vadd.f32 %v3735, %v3921
      %v4030 = vadd.f32 %v3736, %v3924
      %v4031 = vadd.f32 %v3737, %v3929
      %v4032 = vadd.f32 %v3738, %v3932
      %v4033 = vadd.f32 %v3739, %v3937
      %v4034 = vadd.f32 %v3740, %v3940
      %v4035 = vadd.f32 %v3741, %v3945
      %v4036 = vadd.f32 %v3742, %v3948
      %v4037 = vadd.f32 %v3743, %v3953
      %v4038 = vadd.f32 %v3744, %v3956
      %v4039 = vadd.f32 %v3745, %v3961
      %v4040 = vadd.f32 %v3746, %v3964
      %v4041 = vadd.f32 %v3747, %v3969
      %v4042 = vadd.f32 %v3748, %v3972
      %v4043 = vadd.f32 %v3749, %v3977
      %v4044 = vadd.f32 %v3750, %v3980
      %v4045 = vadd.f32 %v3751, %v3985
      %v4046 = vadd.f32 %v3752, %v3988
      %v4047 = vadd.f32 %v3753, %v3993
      %v4048 = vadd.f32 %v3754, %v3996
      %v4049 = vadd.f32 %v3755, %v4001
      %v4050 = vadd.f32 %v3756, %v4004
      %v4051 = vadd.f32 %v3757, %v4009
      %v4052 = vadd.f32 %v3758, %v4012
      %v4053 = vadd.f32 %v3759, %v4017
      %v4054 = vadd.f32 %v3760, %v4020
      %v4055 = vld [vmem:[%s6] sm:$0x1]
      %v4057 = vlaneseq
      %v4058 = vshrl.u32 %v4057, 7
      %v4059 = vsub.s32 0, %v4058
      %v4060 = vrot.slane %v4055, %v4059
      %v4062 = vadd.f32 %v4023, %v4060
      %v4063 = vadd.f32 %v4024, %v4060
      %v4064 = vadd.f32 %v4025, %v4060
      %v4065 = vadd.f32 %v4026, %v4060
      %v4066 = vadd.f32 %v4027, %v4060
      %v4067 = vadd.f32 %v4028, %v4060
      %v4068 = vadd.f32 %v4029, %v4060
      %v4069 = vadd.f32 %v4030, %v4060
      %v4070 = vadd.f32 %v4031, %v4060
      %v4071 = vadd.f32 %v4032, %v4060
      %v4072 = vadd.f32 %v4033, %v4060
      %v4073 = vadd.f32 %v4034, %v4060
      %v4074 = vadd.f32 %v4035, %v4060
      %v4075 = vadd.f32 %v4036, %v4060
      %v4076 = vadd.f32 %v4037, %v4060
      %v4077 = vadd.f32 %v4038, %v4060
      %v4078 = vadd.f32 %v4039, %v4060
      %v4079 = vadd.f32 %v4040, %v4060
      %v4080 = vadd.f32 %v4041, %v4060
      %v4081 = vadd.f32 %v4042, %v4060
      %v4082 = vadd.f32 %v4043, %v4060
      %v4083 = vadd.f32 %v4044, %v4060
      %v4084 = vadd.f32 %v4045, %v4060
      %v4085 = vadd.f32 %v4046, %v4060
      %v4086 = vadd.f32 %v4047, %v4060
      %v4087 = vadd.f32 %v4048, %v4060
      %v4088 = vadd.f32 %v4049, %v4060
      %v4089 = vadd.f32 %v4050, %v4060
      %v4090 = vadd.f32 %v4051, %v4060
      %v4091 = vadd.f32 %v4052, %v4060
      %v4092 = vadd.f32 %v4053, %v4060
      %v4093 = vadd.f32 %v4054, %v4060
      %v4094 = vsel %vm1378, %v4062, 0.0
      %v4095 = vsel %vm1378, %v4063, 0.0
      %v4096 = vadd.f32 %v4094, %v4095
      %v4097 = vsel %vm1378, %v4064, 0.0
      %v4098 = vadd.f32 %v4096, %v4097
      %v4099 = vsel %vm1378, %v4065, 0.0
      %v4100 = vadd.f32 %v4098, %v4099
      %v4101 = vsel %vm1378, %v4066, 0.0
      %v4102 = vadd.f32 %v4100, %v4101
      %v4103 = vsel %vm1378, %v4067, 0.0
      %v4104 = vadd.f32 %v4102, %v4103
      %v4105 = vsel %vm1378, %v4068, 0.0
      %v4106 = vadd.f32 %v4104, %v4105
      %v4107 = vsel %vm1378, %v4069, 0.0
      %v4108 = vadd.f32 %v4106, %v4107
      %v4109 = vsel %vm1378, %v4070, 0.0
      %v4110 = vadd.f32 %v4108, %v4109
      %v4111 = vsel %vm1378, %v4071, 0.0
      %v4112 = vadd.f32 %v4110, %v4111
      %v4113 = vsel %vm1378, %v4072, 0.0
      %v4114 = vadd.f32 %v4112, %v4113
      %v4115 = vsel %vm1378, %v4073, 0.0
      %v4116 = vadd.f32 %v4114, %v4115
      %v4117 = vsel %vm1378, %v4074, 0.0
      %v4118 = vadd.f32 %v4116, %v4117
      %v4119 = vsel %vm1378, %v4075, 0.0
      %v4120 = vadd.f32 %v4118, %v4119
      %v4121 = vsel %vm1378, %v4076, 0.0
      %v4122 = vadd.f32 %v4120, %v4121
      %v4123 = vsel %vm1378, %v4077, 0.0
      %v4124 = vadd.f32 %v4122, %v4123
      %v4125 = vsel %vm1378, %v4078, 0.0
      %v4126 = vadd.f32 %v4124, %v4125
      %v4127 = vsel %vm1378, %v4079, 0.0
      %v4128 = vadd.f32 %v4126, %v4127
      %v4129 = vsel %vm1378, %v4080, 0.0
      %v4130 = vadd.f32 %v4128, %v4129
      %v4131 = vsel %vm1378, %v4081, 0.0
      %v4132 = vadd.f32 %v4130, %v4131
      %v4133 = vsel %vm1378, %v4082, 0.0
      %v4134 = vadd.f32 %v4132, %v4133
      %v4135 = vsel %vm1378, %v4083, 0.0
      %v4136 = vadd.f32 %v4134, %v4135
      %v4137 = vsel %vm1378, %v4084, 0.0
      %v4138 = vadd.f32 %v4136, %v4137
      %v4139 = vsel %vm1378, %v4085, 0.0
      %v4140 = vadd.f32 %v4138, %v4139
      %v4141 = vsel %vm1378, %v4086, 0.0
      %v4142 = vadd.f32 %v4140, %v4141
      %v4143 = vsel %vm1378, %v4087, 0.0
      %v4144 = vadd.f32 %v4142, %v4143
      %v4145 = vsel %vm1378, %v4088, 0.0
      %v4146 = vadd.f32 %v4144, %v4145
      %v4147 = vsel %vm1378, %v4089, 0.0
      %v4148 = vadd.f32 %v4146, %v4147
      %v4149 = vsel %vm1378, %v4090, 0.0
      %v4150 = vadd.f32 %v4148, %v4149
      %v4151 = vsel %vm1378, %v4091, 0.0
      %v4152 = vadd.f32 %v4150, %v4151
      %v4153 = vsel %vm1378, %v4092, 0.0
      %v4154 = vadd.f32 %v4152, %v4153
      %v4155 = vsel %vm1378, %v4093, 0.0
      %v4156 = vadd.f32 %v4154, %v4155
      %v4157 = vrot.slane %v4156, 4
      %v4158 = vadd.f32 %v4156, %v4157
      %v4159 = vrot.slane %v4158, 2
      %v4160 = vadd.f32 %v4158, %v4159
      %v4161 = vrot.slane %v4160, 1
      %v4162 = vadd.f32 %v4160, %v4161
      %vm4163 = vcmask 57344
      %4164 = vst.msk [vmem:[%s405] sm:$0x1] %vm4163, %v4162
      %v4165 = vmul.f32 %v4062, %v4062
      %v4166 = vmul.f32 %v4063, %v4063
      %v4167 = vmul.f32 %v4064, %v4064
      %v4168 = vmul.f32 %v4065, %v4065
      %v4169 = vmul.f32 %v4066, %v4066
      %v4170 = vmul.f32 %v4067, %v4067
      %v4171 = vmul.f32 %v4068, %v4068
      %v4172 = vmul.f32 %v4069, %v4069
      %v4173 = vmul.f32 %v4070, %v4070
      %v4174 = vmul.f32 %v4071, %v4071
      %v4175 = vmul.f32 %v4072, %v4072
      %v4176 = vmul.f32 %v4073, %v4073
      %v4177 = vmul.f32 %v4074, %v4074
      %v4178 = vmul.f32 %v4075, %v4075
      %v4179 = vmul.f32 %v4076, %v4076
      %v4180 = vmul.f32 %v4077, %v4077
      %v4181 = vmul.f32 %v4078, %v4078
      %v4182 = vmul.f32 %v4079, %v4079
      %v4183 = vmul.f32 %v4080, %v4080
      %v4184 = vmul.f32 %v4081, %v4081
      %v4185 = vmul.f32 %v4082, %v4082
      %v4186 = vmul.f32 %v4083, %v4083
      %v4187 = vmul.f32 %v4084, %v4084
      %v4188 = vmul.f32 %v4085, %v4085
      %v4189 = vmul.f32 %v4086, %v4086
      %v4190 = vmul.f32 %v4087, %v4087
      %v4191 = vmul.f32 %v4088, %v4088
      %v4192 = vmul.f32 %v4089, %v4089
      %v4193 = vmul.f32 %v4090, %v4090
      %v4194 = vmul.f32 %v4091, %v4091
      %v4195 = vmul.f32 %v4092, %v4092
      %v4196 = vmul.f32 %v4093, %v4093
      %v4197 = vsel %vm1378, %v4165, 0.0
      %v4198 = vsel %vm1378, %v4166, 0.0
      %v4199 = vadd.f32 %v4197, %v4198
      %v4200 = vsel %vm1378, %v4167, 0.0
      %v4201 = vadd.f32 %v4199, %v4200
      %v4202 = vsel %vm1378, %v4168, 0.0
      %v4203 = vadd.f32 %v4201, %v4202
      %v4204 = vsel %vm1378, %v4169, 0.0
      %v4205 = vadd.f32 %v4203, %v4204
      %v4206 = vsel %vm1378, %v4170, 0.0
      %v4207 = vadd.f32 %v4205, %v4206
      %v4208 = vsel %vm1378, %v4171, 0.0
      %v4209 = vadd.f32 %v4207, %v4208
      %v4210 = vsel %vm1378, %v4172, 0.0
      %v4211 = vadd.f32 %v4209, %v4210
      %v4212 = vsel %vm1378, %v4173, 0.0
      %v4213 = vadd.f32 %v4211, %v4212
      %v4214 = vsel %vm1378, %v4174, 0.0
      %v4215 = vadd.f32 %v4213, %v4214
      %v4216 = vsel %vm1378, %v4175, 0.0
      %v4217 = vadd.f32 %v4215, %v4216
      %v4218 = vsel %vm1378, %v4176, 0.0
      %v4219 = vadd.f32 %v4217, %v4218
      %v4220 = vsel %vm1378, %v4177, 0.0
      %v4221 = vadd.f32 %v4219, %v4220
      %v4222 = vsel %vm1378, %v4178, 0.0
      %v4223 = vadd.f32 %v4221, %v4222
      %v4224 = vsel %vm1378, %v4179, 0.0
      %v4225 = vadd.f32 %v4223, %v4224
      %v4226 = vsel %vm1378, %v4180, 0.0
      %v4227 = vadd.f32 %v4225, %v4226
      %v4228 = vsel %vm1378, %v4181, 0.0
      %v4229 = vadd.f32 %v4227, %v4228
      %v4230 = vsel %vm1378, %v4182, 0.0
      %v4231 = vadd.f32 %v4229, %v4230
      %v4232 = vsel %vm1378, %v4183, 0.0
      %v4233 = vadd.f32 %v4231, %v4232
      %v4234 = vsel %vm1378, %v4184, 0.0
      %v4235 = vadd.f32 %v4233, %v4234
      %v4236 = vsel %vm1378, %v4185, 0.0
      %v4237 = vadd.f32 %v4235, %v4236
      %v4238 = vsel %vm1378, %v4186, 0.0
      %v4239 = vadd.f32 %v4237, %v4238
      %v4240 = vsel %vm1378, %v4187, 0.0
      %v4241 = vadd.f32 %v4239, %v4240
      %v4242 = vsel %vm1378, %v4188, 0.0
      %v4243 = vadd.f32 %v4241, %v4242
      %v4244 = vsel %vm1378, %v4189, 0.0
      %v4245 = vadd.f32 %v4243, %v4244
      %v4246 = vsel %vm1378, %v4190, 0.0
      %v4247 = vadd.f32 %v4245, %v4246
      %v4248 = vsel %vm1378, %v4191, 0.0
      %v4249 = vadd.f32 %v4247, %v4248
      %v4250 = vsel %vm1378, %v4192, 0.0
      %v4251 = vadd.f32 %v4249, %v4250
      %v4252 = vsel %vm1378, %v4193, 0.0
      %v4253 = vadd.f32 %v4251, %v4252
      %v4254 = vsel %vm1378, %v4194, 0.0
      %v4255 = vadd.f32 %v4253, %v4254
      %v4256 = vsel %vm1378, %v4195, 0.0
      %v4257 = vadd.f32 %v4255, %v4256
      %v4258 = vsel %vm1378, %v4196, 0.0
      %v4259 = vadd.f32 %v4257, %v4258
      %v4260 = vrot.slane %v4259, 4
      %v4261 = vadd.f32 %v4259, %v4260
      %v4262 = vrot.slane %v4261, 2
      %v4263 = vadd.f32 %v4261, %v4262
      %v4264 = vrot.slane %v4263, 1
      %v4265 = vadd.f32 %v4263, %v4264
      %4266 = vst.msk [vmem:[%s408] sm:$0x1] %vm4163, %v4265
      %v4267 = vpack.c.bf16 %v4063, %v4062
      %v4268 = vpack.c.bf16 %v4065, %v4064
      %v4269 = vpack.c.bf16 %v4067, %v4066
      %v4270 = vpack.c.bf16 %v4069, %v4068
      %v4271 = vpack.c.bf16 %v4071, %v4070
      %v4272 = vpack.c.bf16 %v4073, %v4072
      %v4273 = vpack.c.bf16 %v4075, %v4074
      %v4274 = vpack.c.bf16 %v4077, %v4076
      %v4275 = vpack.c.bf16 %v4079, %v4078
      %v4276 = vpack.c.bf16 %v4081, %v4080
      %v4277 = vpack.c.bf16 %v4083, %v4082
      %v4278 = vpack.c.bf16 %v4085, %v4084
      %v4279 = vpack.c.bf16 %v4087, %v4086
      %v4280 = vpack.c.bf16 %v4089, %v4088
      %v4281 = vpack.c.bf16 %v4091, %v4090
      %v4282 = vpack.c.bf16 %v4093, %v4092
      %v4299 = vunpack.c.l.b16 %v4267
      %v4300 = vunpack.c.h.b16 %v4267
      %v4301 = vunpack.c.l.b16 %v4268
      %v4302 = vunpack.c.h.b16 %v4268
      %v4303 = vunpack.c.l.b16 %v4269
      %v4304 = vunpack.c.h.b16 %v4269
      %v4305 = vunpack.c.l.b16 %v4270
      %v4306 = vunpack.c.h.b16 %v4270
      %v4307 = vunpack.c.l.b16 %v4271
      %v4308 = vunpack.c.h.b16 %v4271
      %v4309 = vunpack.c.l.b16 %v4272
      %v4310 = vunpack.c.h.b16 %v4272
      %v4311 = vunpack.c.l.b16 %v4273
      %v4312 = vunpack.c.h.b16 %v4273
      %v4313 = vunpack.c.l.b16 %v4274
      %v4314 = vunpack.c.h.b16 %v4274
      %v4315 = vunpack.c.l.b16 %v4275
      %v4316 = vunpack.c.h.b16 %v4275
      %v4317 = vunpack.c.l.b16 %v4276
      %v4318 = vunpack.c.h.b16 %v4276
      %v4319 = vunpack.c.l.b16 %v4277
      %v4320 = vunpack.c.h.b16 %v4277
      %v4321 = vunpack.c.l.b16 %v4278
      %v4322 = vunpack.c.h.b16 %v4278
      %v4323 = vunpack.c.l.b16 %v4279
      %v4324 = vunpack.c.h.b16 %v4279
      %v4325 = vunpack.c.l.b16 %v4280
      %v4326 = vunpack.c.h.b16 %v4280
      %v4327 = vunpack.c.l.b16 %v4281
      %v4328 = vunpack.c.h.b16 %v4281
      %v4329 = vunpack.c.l.b16 %v4282
      %v4330 = vunpack.c.h.b16 %v4282
      %v4331 = vpack.c.b16 %v4299, %v4299
      %v4332 = vpack.c.b16 %v4300, %v4300
      %v4333 = vpack.c.b16 %v4301, %v4301
      %v4334 = vpack.c.b16 %v4302, %v4302
      %v4335 = vpack.c.b16 %v4303, %v4303
      %v4336 = vpack.c.b16 %v4304, %v4304
      %v4337 = vpack.c.b16 %v4305, %v4305
      %v4338 = vpack.c.b16 %v4306, %v4306
      %v4339 = vpack.c.b16 %v4307, %v4307
      %v4340 = vpack.c.b16 %v4308, %v4308
      %v4341 = vpack.c.b16 %v4309, %v4309
      %v4342 = vpack.c.b16 %v4310, %v4310
      %v4343 = vpack.c.b16 %v4311, %v4311
      %v4344 = vpack.c.b16 %v4312, %v4312
      %v4345 = vpack.c.b16 %v4313, %v4313
      %v4346 = vpack.c.b16 %v4314, %v4314
      %v4347 = vpack.c.b16 %v4315, %v4315
      %v4348 = vpack.c.b16 %v4316, %v4316
      %v4349 = vpack.c.b16 %v4317, %v4317
      %v4350 = vpack.c.b16 %v4318, %v4318
      %v4351 = vpack.c.b16 %v4319, %v4319
      %v4352 = vpack.c.b16 %v4320, %v4320
      %v4353 = vpack.c.b16 %v4321, %v4321
      %v4354 = vpack.c.b16 %v4322, %v4322
      %v4355 = vpack.c.b16 %v4323, %v4323
      %v4356 = vpack.c.b16 %v4324, %v4324
      %v4357 = vpack.c.b16 %v4325, %v4325
      %v4358 = vpack.c.b16 %v4326, %v4326
      %v4359 = vpack.c.b16 %v4327, %v4327
      %v4360 = vpack.c.b16 %v4328, %v4328
      %v4361 = vpack.c.b16 %v4329, %v4329
      %v4362 = vpack.c.b16 %v4330, %v4330
      %4395 = vst.msk [vmem:[%s402] sm:$0xf] %vm1345, %v4331
      %4396 = vst.msk [vmem:[%s402 + $0x4] sm:$0xf] %vm1345, %v4332
      %4397 = vst.msk [vmem:[%s402 + $0x8] sm:$0xf] %vm1345, %v4333
      %4398 = vst.msk [vmem:[%s402 + $0xc] sm:$0xf] %vm1345, %v4334
      %4399 = vst.msk [vmem:[%s402 + $0x10] sm:$0xf] %vm1345, %v4335
      %4400 = vst.msk [vmem:[%s402 + $0x14] sm:$0xf] %vm1345, %v4336
      %4401 = vst.msk [vmem:[%s402 + $0x18] sm:$0xf] %vm1345, %v4337
      %4402 = vst.msk [vmem:[%s402 + $0x1c] sm:$0xf] %vm1345, %v4338
      %4403 = vst.msk [vmem:[%s402 + $0x20] sm:$0xf] %vm1345, %v4339
      %4404 = vst.msk [vmem:[%s402 + $0x24] sm:$0xf] %vm1345, %v4340
      %4405 = vst.msk [vmem:[%s402 + $0x28] sm:$0xf] %vm1345, %v4341
      %4406 = vst.msk [vmem:[%s402 + $0x2c] sm:$0xf] %vm1345, %v4342
      %4407 = vst.msk [vmem:[%s402 + $0x30] sm:$0xf] %vm1345, %v4343
      %4408 = vst.msk [vmem:[%s402 + $0x34] sm:$0xf] %vm1345, %v4344
      %4409 = vst.msk [vmem:[%s402 + $0x38] sm:$0xf] %vm1345, %v4345
      %4410 = vst.msk [vmem:[%s402 + $0x3c] sm:$0xf] %vm1345, %v4346
      %4411 = vst.msk [vmem:[%s402 + $0x40] sm:$0xf] %vm1345, %v4347
      %4412 = vst.msk [vmem:[%s402 + $0x44] sm:$0xf] %vm1345, %v4348
      %4413 = vst.msk [vmem:[%s402 + $0x48] sm:$0xf] %vm1345, %v4349
      %4414 = vst.msk [vmem:[%s402 + $0x4c] sm:$0xf] %vm1345, %v4350
      %4415 = vst.msk [vmem:[%s402 + $0x50] sm:$0xf] %vm1345, %v4351
      %4416 = vst.msk [vmem:[%s402 + $0x54] sm:$0xf] %vm1345, %v4352
      %4417 = vst.msk [vmem:[%s402 + $0x58] sm:$0xf] %vm1345, %v4353
      %4418 = vst.msk [vmem:[%s402 + $0x5c] sm:$0xf] %vm1345, %v4354
      %4419 = vst.msk [vmem:[%s402 + $0x60] sm:$0xf] %vm1345, %v4355
      %4420 = vst.msk [vmem:[%s402 + $0x64] sm:$0xf] %vm1345, %v4356
      %4421 = vst.msk [vmem:[%s402 + $0x68] sm:$0xf] %vm1345, %v4357
      %4422 = vst.msk [vmem:[%s402 + $0x6c] sm:$0xf] %vm1345, %v4358
      %4423 = vst.msk [vmem:[%s402 + $0x70] sm:$0xf] %vm1345, %v4359
      %4424 = vst.msk [vmem:[%s402 + $0x74] sm:$0xf] %vm1345, %v4360
      %4425 = vst.msk [vmem:[%s402 + $0x78] sm:$0xf] %vm1345, %v4361
      %4426 = vst.msk [vmem:[%s402 + $0x7c] sm:$0xf] %vm1345, %v4362
      %p4427 = scmp.lt.s32.totalorder %s22, 1
      %s4428 = scalar_select %p4427, %s22, 1
      %s4429 = smul.addr %s4428, 32
      %s4430 = smul.addr %s4429, 4
      %s4431 = scalar_lea.vmem %s7, %s4430
      %p4432 = scmp.lt.s32.totalorder %s22, 1
      %s4433 = scalar_select %p4432, %s22, 1
      %s4434 = smul.addr %s4433, 32
      %s4435 = smul.addr %s4434, 4
      %s4436 = scalar_lea.vmem %s8, %s4435
      %p4437 = scmp.lt.s32.totalorder %s22, 1
      %s4438 = scalar_select %p4437, %s22, 1
      %s4439 = scalar_lea.vmem %s9, %s4438
      %p4440 = scmp.lt.s32.totalorder %s22, 1
      %s4441 = scalar_select %p4440, %s22, 1
      %s4442 = scalar_lea.vmem %s10, %s4441
      // Predicated region
      $region49: #{a_call__.3} parent=47 // pred_check
        %p4443 = pneg %p197
      $region50: #{a_call__.3} parent=47 // pred_check_branch
        %4445 = sbr.rel (%p4443) target = $region52
      $region51: #{a_call__.3} parent=47 // pred_region
        _
      $region52: #{a_call__.3} parent=47 // pred_fallthru
        _
      // Predicated region
      $region53: #{a_call__.3} parent=47 // pred_check
        %p4446 = pneg %p223
      $region54: #{a_call__.3} parent=47 // pred_check_branch
        %4448 = sbr.rel (%p4446) target = $region56
      $region55: #{a_call__.3} parent=47 // pred_region
        _
      $region56: #{a_call__.3} parent=47 // pred_fallthru
        _
      // Predicated region
      $region57: #{a_call__.3} parent=47 // pred_check
        %p4449 = pneg %p249
      $region58: #{a_call__.3} parent=47 // pred_check_branch
        %4451 = sbr.rel (%p4449) target = $region60
      $region59: #{a_call__.3} parent=47 // pred_region
        _
      $region60: #{a_call__.3} parent=47 // pred_fallthru
        _
      // Predicated region
      $region61: #{a_call__.3} parent=47 // pred_check
        %p4452 = pneg %p275
      $region62: #{a_call__.3} parent=47 // pred_check_branch
        %4454 = sbr.rel (%p4452) target = $region64
      $region63: #{a_call__.3} parent=47 // pred_region
        _
      $region64: #{a_call__.3} parent=47 // pred_fallthru
        _
    $region48: #{a_call__.3} parent=5 // pred_fallthru
      _
    %p4455 = scmp.le.s32.totalorder 2, %s17
    // Predicated region
    $region65: #{a_call__.3} parent=5 // pred_check
      %p4456 = pneg %p4455
    $region66: #{a_call__.3} parent=5 // pred_check_branch
      %4458 = sbr.rel (%p4456) target = $region68
    $region67: #{a_call__.3} parent=5 // pred_region
      %s4459 = ssub.s32 %s17, 2
      // Predicated region
      $region69: #{a_call__.3} parent=67 // pred_check
        %p4460 = pneg %p203
      $region70: #{a_call__.3} parent=67 // pred_check_branch
        %4462 = sbr.rel (%p4460) target = $region72
      $region71: #{a_call__.3} parent=67 // pred_region
        %p4463 = scmp.lt.s32.totalorder %s23, 1
        %s4464 = scalar_select %p4463, %s23, 1
        %s4465 = smul.addr %s4464, 32
        %s4466 = smul.addr %s4465, 4
        %s4467 = scalar_lea.vmem %s7, %s4466
      $region72: #{a_call__.3} parent=67 // pred_fallthru
        _
      // Predicated region
      $region73: #{a_call__.3} parent=67 // pred_check
        %p4468 = pneg %p229
      $region74: #{a_call__.3} parent=67 // pred_check_branch
        %4470 = sbr.rel (%p4468) target = $region76
      $region75: #{a_call__.3} parent=67 // pred_region
        %p4471 = scmp.lt.s32.totalorder %s23, 1
        %s4472 = scalar_select %p4471, %s23, 1
        %s4473 = smul.addr %s4472, 32
        %s4474 = smul.addr %s4473, 4
        %s4475 = scalar_lea.vmem %s8, %s4474
      $region76: #{a_call__.3} parent=67 // pred_fallthru
        _
      // Predicated region
      $region77: #{a_call__.3} parent=67 // pred_check
        %p4476 = pneg %p255
      $region78: #{a_call__.3} parent=67 // pred_check_branch
        %4478 = sbr.rel (%p4476) target = $region80
      $region79: #{a_call__.3} parent=67 // pred_region
        %p4479 = scmp.lt.s32.totalorder %s23, 1
        %s4480 = scalar_select %p4479, %s23, 1
        %s4481 = scalar_lea.vmem %s9, %s4480
      $region80: #{a_call__.3} parent=67 // pred_fallthru
        _
      // Predicated region
      $region81: #{a_call__.3} parent=67 // pred_check
        %p4482 = pneg %p281
      $region82: #{a_call__.3} parent=67 // pred_check_branch
        %4484 = sbr.rel (%p4482) target = $region84
      $region83: #{a_call__.3} parent=67 // pred_region
        %p4485 = scmp.lt.s32.totalorder %s23, 1
        %s4486 = scalar_select %p4485, %s23, 1
        %s4487 = scalar_lea.vmem %s10, %s4486
      $region84: #{a_call__.3} parent=67 // pred_fallthru
        _
    $region68: #{a_call__.3} parent=5 // pred_fallthru
      _
  $region6: #{a_call__.3} parent=0 // loop_footer
    %s21 = sadd.s32 1, %s17
  $region7: #{a_call__.3} parent=0 // loop_footer_branch
    %16 = sbr.rel target = $region3
  $region8: #{a_call__.3} parent=0 // loop_exit
    _

</llo_original>
